<compile_context>
chip_gen: v7x
topology: tpu7x:2x2x1
jax: 0.10.0
libtpu: 0.0.40
codegen_flags: <defaults>
</compile_context>

<pallas_src>
import math

import jax
import jax.numpy as jnp
import numpy as np
from jax.experimental import pallas as pl
from jax.experimental.pallas import tpu as pltpu


def _pad_to_128(n):
    return ((n + 127) // 128) * 128


# ----------------------------- fused Pallas kernel ----------------------------

def _make_fused_kernel(H, W, P, PMAX, AOUT, n_actions, L):
    """P = [P_in, P_l1, ..., P_lL] padded channel counts (multiples of 128)."""
    HW = H * W

    def kernel(*refs):
        x_ref = refs[0]                       # (H, W, P[0])        bf16
        conv_refs = refs[1:1 + 2 * L]         # (w_l (9,Pin,Pout) bf16, b_l (1,Pout) f32) * L
        wva_ref = refs[1 + 2 * L]             # (P[-1], AOUT)       bf16
        bva_ref = refs[2 + 2 * L]             # (1, AOUT)           f32
        o_ref = refs[3 + 2 * L]               # (1, AOUT)           f32
        act_ref = refs[4 + 2 * L]             # (H+2, W+2, PMAX)    bf16 scratch

        # Zero the padded activation buffer (the 1-pixel ring must be zero for
        # pad=1 convs), then place this batch element's input in the interior.
        act_ref[...] = jnp.zeros_like(act_ref)
        act_ref[pl.ds(1, H), pl.ds(1, W), pl.ds(0, P[0])] = x_ref[...]

        feat = None
        for l in range(L):
            w_ref = conv_refs[2 * l]
            b_ref = conv_refs[2 * l + 1]
            pin, pout = P[l], P[l + 1]

            # 3x3 conv as 9 shifted-window matmuls, accumulated in f32.
            acc = jnp.zeros((HW, pout), jnp.float32)
            for t in range(9):
                kh, kw = divmod(t, 3)
                win = act_ref[pl.ds(kh, H), pl.ds(kw, W), pl.ds(0, pin)]   # (H, W, pin)
                acc = acc + jnp.dot(win.reshape(HW, pin), w_ref[t],
                                    preferred_element_type=jnp.float32)
            y = jnp.maximum(acc + b_ref[...], 0.0).astype(jnp.bfloat16)    # (HW, pout)

            if l + 1 < L:
                # Stays in VMEM for the next layer (interior only; ring stays 0).
                act_ref[pl.ds(1, H), pl.ds(1, W), pl.ds(0, pout)] = y.reshape(H, W, pout)
            else:
                feat = y

        # Global average pool as an MXU contraction (scale folded into the row).
        pool = jnp.full((1, HW), 1.0 / HW, dtype=jnp.bfloat16)
        s = jnp.dot(pool, feat, preferred_element_type=jnp.float32)        # (1, P[-1])

        # Fused V/A projection: column 0 = V, columns 1..n_actions = A.
        va = jnp.dot(s.astype(jnp.bfloat16), wva_ref[...],
                     preferred_element_type=jnp.float32) + bva_ref[...]    # (1, AOUT)

        col = jax.lax.broadcasted_iota(jnp.int32, (1, AOUT), 1)
        is_a = jnp.logical_and(col >= 1, col <= n_actions)
        a_vals = jnp.where(is_a, va, 0.0)
        a_mean = jnp.sum(a_vals, axis=1, keepdims=True) * (1.0 / n_actions)
        v_val = jnp.sum(jnp.where(col == 0, va, 0.0), axis=1, keepdims=True)
        q = jnp.where(is_a, v_val + a_vals - a_mean, 0.0)                  # (1, AOUT)
        o_ref[...] = q.astype(o_ref.dtype)

    return kernel


def dueling_cnn_forward(params, x_nchw):
    """Forward pass of DuelingCNN; everything hot runs in one Pallas kernel."""
    wv, bv = params["V"]
    wa, ba = params["A"]
    convs = params["convs"]
    n_actions = wa.shape[1]
    B, Cin, H, W = x_nchw.shape
    L = len(convs)

    chans = [Cin] + [w.shape[-1] for (w, _) in convs]
    P = [_pad_to_128(c) for c in chans]
    PMAX = max(P)
    AOUT = _pad_to_128(1 + n_actions)

    # ---- one-time operand prep (tiny XLA ops): NHWC, channel pad, bf16 ----
    x = jnp.transpose(x_nchw, (0, 2, 3, 1))
    x = jnp.pad(x, ((0, 0), (0, 0), (0, 0), (0, P[0] - Cin))).astype(jnp.bfloat16)

    flat_inputs = [x]
    in_specs = [pl.BlockSpec((None, H, W, P[0]), lambda b: (b, 0, 0, 0))]

    for l, (w, b_) in enumerate(convs):
        pin, pout = P[l], P[l + 1]
        wp = jnp.pad(w, ((0, 0), (0, 0), (0, pin - w.shape[2]), (0, pout - w.shape[3])))
        wp = wp.reshape(9, pin, pout).astype(jnp.bfloat16)
        bp = jnp.pad(b_, (0, pout - b_.shape[0])).reshape(1, pout).astype(jnp.float32)
        flat_inputs += [wp, bp]
        in_specs += [pl.BlockSpec((9, pin, pout), lambda b: (0, 0, 0)),
                     pl.BlockSpec((1, pout), lambda b: (0, 0))]

    F = chans[-1]
    PF = P[-1]
    wva = jnp.concatenate([wv, wa], axis=1)                      # (F, 1 + n_actions)
    wva = jnp.pad(wva, ((0, PF - F), (0, AOUT - (1 + n_actions)))).astype(jnp.bfloat16)
    bva = jnp.concatenate([bv.reshape(1, 1), ba.reshape(1, -1)], axis=1)
    bva = jnp.pad(bva, ((0, 0), (0, AOUT - (1 + n_actions)))).astype(jnp.float32)
    flat_inputs += [wva, bva]
    in_specs += [pl.BlockSpec((PF, AOUT), lambda b: (0, 0)),
                 pl.BlockSpec((1, AOUT), lambda b: (0, 0))]

    kernel = _make_fused_kernel(H, W, P, PMAX, AOUT, n_actions, L)

    out = pl.pallas_call(
        kernel,
        out_shape=jax.ShapeDtypeStruct((B, 1, AOUT), jnp.float32),
        grid=(B,),
        in_specs=in_specs,
        out_specs=pl.BlockSpec((None, 1, AOUT), lambda b: (b, 0, 0)),
        scratch_shapes=[pltpu.VMEM((H + 2, W + 2, PMAX), jnp.bfloat16)],
        compiler_params=pltpu.CompilerParams(dimension_semantics=("parallel",)),
    )(*flat_inputs)

    # Lane-dense (B, 128) kernel output -> real (B, n_actions) Q-values.
    return out.reshape(B, AOUT)[:, 1:1 + n_actions]


# ------------------------------ init & reference ------------------------------

def init_params(key, channels_in, channels_out, n_filters):
    params = {"convs": []}
    cin = channels_in
    for f in n_filters:
        key, k1, k2 = jax.random.split(key, 3)
        fan_in = 9 * cin
        w = jax.random.normal(k1, (3, 3, cin, f), jnp.float32) / math.sqrt(fan_in)
        b = 0.01 * jax.random.normal(k2, (f,), jnp.float32)
        params["convs"].append((w, b))
        cin = f
    F = n_filters[-1]
    key, kv, kbv, ka, kba = jax.random.split(key, 5)
    params["V"] = (jax.random.normal(kv, (F, 1), jnp.float32) / math.sqrt(F),
                   0.01 * jax.random.normal(kbv, (1,), jnp.float32))
    params["A"] = (jax.random.normal(ka, (F, channels_out), jnp.float32) / math.sqrt(F),
                   0.01 * jax.random.normal(kba, (channels_out,), jnp.float32))
    return params


def reference_forward(params, x_nchw):
    """Pure-JAX reference mirroring the kernel's bf16-operand / f32-accumulate."""
    f32 = jnp.float32
    hi = jax.lax.Precision.HIGHEST

    def q(a):  # bf16 round-trip, matching kernel operand precision
        return a.astype(jnp.bfloat16).astype(f32)

    x = q(jnp.transpose(x_nchw, (0, 2, 3, 1)))
    for (w, b) in params["convs"]:
        B_, H_, W_, _ = x.shape
        xp = jnp.pad(x, ((0, 0), (1, 1), (1, 1), (0, 0)))
        cols = [xp[:, kh:kh + H_, kw:kw + W_, :] for kh in range(3) for kw in range(3)]
        patches = jnp.concatenate(cols, axis=-1)
        y = jnp.einsum("bhwk,kf->bhwf", patches, q(w).reshape(-1, w.shape[-1]),
                       precision=hi) + b
        x = q(jnp.maximum(y, 0.0))
    s = q(jnp.mean(x, axis=(1, 2)))
    wv, bv = params["V"]
    wa, ba = params["A"]
    A = jnp.dot(s, q(wa), precision=hi) + ba
    V = jnp.dot(s, q(wv), precision=hi) + bv
    return V + A - jnp.mean(A, axis=1, keepdims=True)


if __name__ == "__main__":
    B, channels_in, H, W = 2, 4, 16, 16
    n_filters = (8, 16)
    channels_out = 6        # number of actions

    key = jax.random.PRNGKey(0)
    key, kx, kp = jax.random.split(key, 3)
    x = jax.random.normal(kx, (B, channels_in, H, W), jnp.float32)
    params = init_params(kp, channels_in, channels_out, n_filters)

    fwd = jax.jit(dueling_cnn_forward)
    out = jax.block_until_ready(fwd(params, x))

    ref = jax.block_until_ready(reference_forward(params, x))
    assert out.shape == (B, channels_out), out.shape
    # bf16 operands with f32 accumulation -> compare at bf16-level tolerance.
    np.testing.assert_allclose(np.asarray(out), np.asarray(ref), rtol=2e-2, atol=2e-2)

    print("KERNEL_OK")
</pallas_src>

<mosaic_0001>
module attributes {stable_mosaic.version = 11 : i64} {
  func.func @kernel(%arg0: i32, %arg1: memref<1x16x16x128xbf16, #tpu.memory_space<vmem>>, %arg2: memref<9x128x128xbf16, #tpu.memory_space<vmem>>, %arg3: memref<1x128xf32, #tpu.memory_space<vmem>>, %arg4: memref<9x128x128xbf16, #tpu.memory_space<vmem>>, %arg5: memref<1x128xf32, #tpu.memory_space<vmem>>, %arg6: memref<128x128xbf16, #tpu.memory_space<vmem>>, %arg7: memref<1x128xf32, #tpu.memory_space<vmem>>, %arg8: memref<1x1x128xf32, #tpu.memory_space<vmem>>, %arg9: memref<18x18x128xbf16, #tpu.memory_space<vmem>>) attributes {dimension_semantics = [#tpu.dimension_semantics<parallel>], iteration_bounds = array<i64: 2>, scalar_prefetch = 0 : i64, scratch_operands = 1 : i64, tpu.core_type = #tpu.core_type<tc>, window_params = [{transform_indices = @transform_0, window_bounds = array<i64: 1, 16, 16, 128>}, {pipeline_mode = #tpu.pipeline_mode<synchronous>, transform_indices = @transform_1, window_bounds = array<i64: 9, 128, 128>}, {pipeline_mode = #tpu.pipeline_mode<synchronous>, transform_indices = @transform_2, window_bounds = array<i64: 1, 128>}, {pipeline_mode = #tpu.pipeline_mode<synchronous>, transform_indices = @transform_3, window_bounds = array<i64: 9, 128, 128>}, {pipeline_mode = #tpu.pipeline_mode<synchronous>, transform_indices = @transform_4, window_bounds = array<i64: 1, 128>}, {pipeline_mode = #tpu.pipeline_mode<synchronous>, transform_indices = @transform_5, window_bounds = array<i64: 128, 128>}, {pipeline_mode = #tpu.pipeline_mode<synchronous>, transform_indices = @transform_6, window_bounds = array<i64: 1, 128>}, {transform_indices = @transform_7, window_bounds = array<i64: 1, 1, 128>}]} {
    %cst = arith.constant 0.000000e+00 : bf16
    %0 = vector.broadcast %cst : bf16 to vector<18x18x128xbf16>
    %c0 = arith.constant 0 : index
    %c0_0 = arith.constant 0 : index
    %c0_1 = arith.constant 0 : index
    %1 = vector.load %arg9[%c0, %c0_0, %c0_1] : memref<18x18x128xbf16, #tpu.memory_space<vmem>>, vector<18x18x128xbf16>
    tpu.vector_store %arg9[%c0, %c0_0, %c0_1], %0 {strides = array<i32>} : memref<18x18x128xbf16, #tpu.memory_space<vmem>>, vector<18x18x128xbf16>,
    %c0_2 = arith.constant 0 : index
    %c0_3 = arith.constant 0 : index
    %c0_4 = arith.constant 0 : index
    %c0_5 = arith.constant 0 : index
    %2 = vector.load %arg1[%c0_2, %c0_3, %c0_4, %c0_5] : memref<1x16x16x128xbf16, #tpu.memory_space<vmem>>, vector<1x16x16x128xbf16>
    %3 = vector.shape_cast %2 : vector<1x16x16x128xbf16> to vector<16x16x128xbf16>
    %c1 = arith.constant 1 : index
    %c1_6 = arith.constant 1 : index
    %c0_7 = arith.constant 0 : index
    %4 = vector.load %arg9[%c1, %c1_6, %c0_7] : memref<18x18x128xbf16, #tpu.memory_space<vmem>>, vector<16x16x128xbf16>
    tpu.vector_store %arg9[%c1, %c1_6, %c0_7], %3 {strides = array<i32>} : memref<18x18x128xbf16, #tpu.memory_space<vmem>>, vector<16x16x128xbf16>,
    %cst_8 = arith.constant 0.000000e+00 : f32
    %5 = vector.broadcast %cst_8 : f32 to vector<256x128xf32>
    %c0_9 = arith.constant 0 : index
    %c0_10 = arith.constant 0 : index
    %c0_11 = arith.constant 0 : index
    %6 = vector.load %arg9[%c0_9, %c0_10, %c0_11] : memref<18x18x128xbf16, #tpu.memory_space<vmem>>, vector<16x16x128xbf16>
    %7 = vector.shape_cast %6 : vector<16x16x128xbf16> to vector<256x128xbf16>
    %c0_12 = arith.constant 0 : index
    %c0_13 = arith.constant 0 : index
    %c0_14 = arith.constant 0 : index
    %8 = vector.load %arg2[%c0_12, %c0_13, %c0_14] : memref<9x128x128xbf16, #tpu.memory_space<vmem>>, vector<1x128x128xbf16>
    %9 = vector.shape_cast %8 : vector<1x128x128xbf16> to vector<128x128xbf16>
    %cst_15 = arith.constant dense<0.000000e+00> : vector<256x128xf32>
    %10 = tpu.matmul %7, %9, %cst_15 {dimension_numbers = #tpu.dot_dimension_numbers<[1], [0], [0], [1], [0, 0, 1, 1], [], []>} : vector<256x128xbf16>, vector<128x128xbf16>, vector<256x128xf32> -> vector<256x128xf32>
    %11 = arith.addf %5, %10 : vector<256x128xf32>
    %c0_16 = arith.constant 0 : index
    %c1_17 = arith.constant 1 : index
    %c0_18 = arith.constant 0 : index
    %12 = vector.load %arg9[%c0_16, %c1_17, %c0_18] : memref<18x18x128xbf16, #tpu.memory_space<vmem>>, vector<16x16x128xbf16>
    %13 = vector.shape_cast %12 : vector<16x16x128xbf16> to vector<256x128xbf16>
    %c1_19 = arith.constant 1 : index
    %c0_20 = arith.constant 0 : index
    %c0_21 = arith.constant 0 : index
    %14 = vector.load %arg2[%c1_19, %c0_20, %c0_21] : memref<9x128x128xbf16, #tpu.memory_space<vmem>>, vector<1x128x128xbf16>
    %15 = vector.shape_cast %14 : vector<1x128x128xbf16> to vector<128x128xbf16>
    %cst_22 = arith.constant dense<0.000000e+00> : vector<256x128xf32>
    %16 = tpu.matmul %13, %15, %cst_22 {dimension_numbers = #tpu.dot_dimension_numbers<[1], [0], [0], [1], [0, 0, 1, 1], [], []>} : vector<256x128xbf16>, vector<128x128xbf16>, vector<256x128xf32> -> vector<256x128xf32>
    %17 = arith.addf %11, %16 : vector<256x128xf32>
    %c0_23 = arith.constant 0 : index
    %c2 = arith.constant 2 : index
    %c0_24 = arith.constant 0 : index
    %18 = vector.load %arg9[%c0_23, %c2, %c0_24] : memref<18x18x128xbf16, #tpu.memory_space<vmem>>, vector<16x16x128xbf16>
    %19 = vector.shape_cast %18 : vector<16x16x128xbf16> to vector<256x128xbf16>
    %c2_25 = arith.constant 2 : index
    %c0_26 = arith.constant 0 : index
    %c0_27 = arith.constant 0 : index
    %20 = vector.load %arg2[%c2_25, %c0_26, %c0_27] : memref<9x128x128xbf16, #tpu.memory_space<vmem>>, vector<1x128x128xbf16>
    %21 = vector.shape_cast %20 : vector<1x128x128xbf16> to vector<128x128xbf16>
    %cst_28 = arith.constant dense<0.000000e+00> : vector<256x128xf32>
    %22 = tpu.matmul %19, %21, %cst_28 {dimension_numbers = #tpu.dot_dimension_numbers<[1], [0], [0], [1], [0, 0, 1, 1], [], []>} : vector<256x128xbf16>, vector<128x128xbf16>, vector<256x128xf32> -> vector<256x128xf32>
    %23 = arith.addf %17, %22 : vector<256x128xf32>
    %c1_29 = arith.constant 1 : index
    %c0_30 = arith.constant 0 : index
    %c0_31 = arith.constant 0 : index
    %24 = vector.load %arg9[%c1_29, %c0_30, %c0_31] : memref<18x18x128xbf16, #tpu.memory_space<vmem>>, vector<16x16x128xbf16>
    %25 = vector.shape_cast %24 : vector<16x16x128xbf16> to vector<256x128xbf16>
    %c3 = arith.constant 3 : index
    %c0_32 = arith.constant 0 : index
    %c0_33 = arith.constant 0 : index
    %26 = vector.load %arg2[%c3, %c0_32, %c0_33] : memref<9x128x128xbf16, #tpu.memory_space<vmem>>, vector<1x128x128xbf16>
    %27 = vector.shape_cast %26 : vector<1x128x128xbf16> to vector<128x128xbf16>
    %cst_34 = arith.constant dense<0.000000e+00> : vector<256x128xf32>
    %28 = tpu.matmul %25, %27, %cst_34 {dimension_numbers = #tpu.dot_dimension_numbers<[1], [0], [0], [1], [0, 0, 1, 1], [], []>} : vector<256x128xbf16>, vector<128x128xbf16>, vector<256x128xf32> -> vector<256x128xf32>
    %29 = arith.addf %23, %28 : vector<256x128xf32>
    %c1_35 = arith.constant 1 : index
    %c1_36 = arith.constant 1 : index
    %c0_37 = arith.constant 0 : index
    %30 = vector.load %arg9[%c1_35, %c1_36, %c0_37] : memref<18x18x128xbf16, #tpu.memory_space<vmem>>, vector<16x16x128xbf16>
    %31 = vector.shape_cast %30 : vector<16x16x128xbf16> to vector<256x128xbf16>
    %c4 = arith.constant 4 : index
    %c0_38 = arith.constant 0 : index
    %c0_39 = arith.constant 0 : index
    %32 = vector.load %arg2[%c4, %c0_38, %c0_39] : memref<9x128x128xbf16, #tpu.memory_space<vmem>>, vector<1x128x128xbf16>
    %33 = vector.shape_cast %32 : vector<1x128x128xbf16> to vector<128x128xbf16>
    %cst_40 = arith.constant dense<0.000000e+00> : vector<256x128xf32>
    %34 = tpu.matmul %31, %33, %cst_40 {dimension_numbers = #tpu.dot_dimension_numbers<[1], [0], [0], [1], [0, 0, 1, 1], [], []>} : vector<256x128xbf16>, vector<128x128xbf16>, vector<256x128xf32> -> vector<256x128xf32>
    %35 = arith.addf %29, %34 : vector<256x128xf32>
    %c1_41 = arith.constant 1 : index
    %c2_42 = arith.constant 2 : index
    %c0_43 = arith.constant 0 : index
    %36 = vector.load %arg9[%c1_41, %c2_42, %c0_43] : memref<18x18x128xbf16, #tpu.memory_space<vmem>>, vector<16x16x128xbf16>
    %37 = vector.shape_cast %36 : vector<16x16x128xbf16> to vector<256x128xbf16>
    %c5 = arith.constant 5 : index
    %c0_44 = arith.constant 0 : index
    %c0_45 = arith.constant 0 : index
    %38 = vector.load %arg2[%c5, %c0_44, %c0_45] : memref<9x128x128xbf16, #tpu.memory_space<vmem>>, vector<1x128x128xbf16>
    %39 = vector.shape_cast %38 : vector<1x128x128xbf16> to vector<128x128xbf16>
    %cst_46 = arith.constant dense<0.000000e+00> : vector<256x128xf32>
    %40 = tpu.matmul %37, %39, %cst_46 {dimension_numbers = #tpu.dot_dimension_numbers<[1], [0], [0], [1], [0, 0, 1, 1], [], []>} : vector<256x128xbf16>, vector<128x128xbf16>, vector<256x128xf32> -> vector<256x128xf32>
    %41 = arith.addf %35, %40 : vector<256x128xf32>
    %c2_47 = arith.constant 2 : index
    %c0_48 = arith.constant 0 : index
    %c0_49 = arith.constant 0 : index
    %42 = vector.load %arg9[%c2_47, %c0_48, %c0_49] : memref<18x18x128xbf16, #tpu.memory_space<vmem>>, vector<16x16x128xbf16>
    %43 = vector.shape_cast %42 : vector<16x16x128xbf16> to vector<256x128xbf16>
    %c6 = arith.constant 6 : index
    %c0_50 = arith.constant 0 : index
    %c0_51 = arith.constant 0 : index
    %44 = vector.load %arg2[%c6, %c0_50, %c0_51] : memref<9x128x128xbf16, #tpu.memory_space<vmem>>, vector<1x128x128xbf16>
    %45 = vector.shape_cast %44 : vector<1x128x128xbf16> to vector<128x128xbf16>
    %cst_52 = arith.constant dense<0.000000e+00> : vector<256x128xf32>
    %46 = tpu.matmul %43, %45, %cst_52 {dimension_numbers = #tpu.dot_dimension_numbers<[1], [0], [0], [1], [0, 0, 1, 1], [], []>} : vector<256x128xbf16>, vector<128x128xbf16>, vector<256x128xf32> -> vector<256x128xf32>
    %47 = arith.addf %41, %46 : vector<256x128xf32>
    %c2_53 = arith.constant 2 : index
    %c1_54 = arith.constant 1 : index
    %c0_55 = arith.constant 0 : index
    %48 = vector.load %arg9[%c2_53, %c1_54, %c0_55] : memref<18x18x128xbf16, #tpu.memory_space<vmem>>, vector<16x16x128xbf16>
    %49 = vector.shape_cast %48 : vector<16x16x128xbf16> to vector<256x128xbf16>
    %c7 = arith.constant 7 : index
    %c0_56 = arith.constant 0 : index
    %c0_57 = arith.constant 0 : index
    %50 = vector.load %arg2[%c7, %c0_56, %c0_57] : memref<9x128x128xbf16, #tpu.memory_space<vmem>>, vector<1x128x128xbf16>
    %51 = vector.shape_cast %50 : vector<1x128x128xbf16> to vector<128x128xbf16>
    %cst_58 = arith.constant dense<0.000000e+00> : vector<256x128xf32>
    %52 = tpu.matmul %49, %51, %cst_58 {dimension_numbers = #tpu.dot_dimension_numbers<[1], [0], [0], [1], [0, 0, 1, 1], [], []>} : vector<256x128xbf16>, vector<128x128xbf16>, vector<256x128xf32> -> vector<256x128xf32>
    %53 = arith.addf %47, %52 : vector<256x128xf32>
    %c2_59 = arith.constant 2 : index
    %c2_60 = arith.constant 2 : index
    %c0_61 = arith.constant 0 : index
    %54 = vector.load %arg9[%c2_59, %c2_60, %c0_61] : memref<18x18x128xbf16, #tpu.memory_space<vmem>>, vector<16x16x128xbf16>
    %55 = vector.shape_cast %54 : vector<16x16x128xbf16> to vector<256x128xbf16>
    %c8 = arith.constant 8 : index
    %c0_62 = arith.constant 0 : index
    %c0_63 = arith.constant 0 : index
    %56 = vector.load %arg2[%c8, %c0_62, %c0_63] : memref<9x128x128xbf16, #tpu.memory_space<vmem>>, vector<1x128x128xbf16>
    %57 = vector.shape_cast %56 : vector<1x128x128xbf16> to vector<128x128xbf16>
    %cst_64 = arith.constant dense<0.000000e+00> : vector<256x128xf32>
    %58 = tpu.matmul %55, %57, %cst_64 {dimension_numbers = #tpu.dot_dimension_numbers<[1], [0], [0], [1], [0, 0, 1, 1], [], []>} : vector<256x128xbf16>, vector<128x128xbf16>, vector<256x128xf32> -> vector<256x128xf32>
    %59 = arith.addf %53, %58 : vector<256x128xf32>
    %c0_65 = arith.constant 0 : index
    %c0_66 = arith.constant 0 : index
    %60 = vector.load %arg3[%c0_65, %c0_66] : memref<1x128xf32, #tpu.memory_space<vmem>>, vector<1x128xf32>
    %61 = vector.broadcast %60 : vector<1x128xf32> to vector<256x128xf32>
    %62 = arith.addf %59, %61 : vector<256x128xf32>
    %cst_67 = arith.constant 0.000000e+00 : f32
    %63 = vector.broadcast %cst_67 : f32 to vector<256x128xf32>
    %64 = arith.maximumf %62, %63 : vector<256x128xf32>
    %65 = arith.truncf %64 : vector<256x128xf32> to vector<256x128xbf16>
    %66 = vector.shape_cast %65 : vector<256x128xbf16> to vector<16x16x128xbf16>
    %c1_68 = arith.constant 1 : index
    %c1_69 = arith.constant 1 : index
    %c0_70 = arith.constant 0 : index
    %67 = vector.load %arg9[%c1_68, %c1_69, %c0_70] : memref<18x18x128xbf16, #tpu.memory_space<vmem>>, vector<16x16x128xbf16>
    tpu.vector_store %arg9[%c1_68, %c1_69, %c0_70], %66 {strides = array<i32>} : memref<18x18x128xbf16, #tpu.memory_space<vmem>>, vector<16x16x128xbf16>,
    %cst_71 = arith.constant 0.000000e+00 : f32
    %68 = vector.broadcast %cst_71 : f32 to vector<256x128xf32>
    %c0_72 = arith.constant 0 : index
    %c0_73 = arith.constant 0 : index
    %c0_74 = arith.constant 0 : index
    %69 = vector.load %arg9[%c0_72, %c0_73, %c0_74] : memref<18x18x128xbf16, #tpu.memory_space<vmem>>, vector<16x16x128xbf16>
    %70 = vector.shape_cast %69 : vector<16x16x128xbf16> to vector<256x128xbf16>
    %c0_75 = arith.constant 0 : index
    %c0_76 = arith.constant 0 : index
    %c0_77 = arith.constant 0 : index
    %71 = vector.load %arg4[%c0_75, %c0_76, %c0_77] : memref<9x128x128xbf16, #tpu.memory_space<vmem>>, vector<1x128x128xbf16>
    %72 = vector.shape_cast %71 : vector<1x128x128xbf16> to vector<128x128xbf16>
    %cst_78 = arith.constant dense<0.000000e+00> : vector<256x128xf32>
    %73 = tpu.matmul %70, %72, %cst_78 {dimension_numbers = #tpu.dot_dimension_numbers<[1], [0], [0], [1], [0, 0, 1, 1], [], []>} : vector<256x128xbf16>, vector<128x128xbf16>, vector<256x128xf32> -> vector<256x128xf32>
    %74 = arith.addf %68, %73 : vector<256x128xf32>
    %c0_79 = arith.constant 0 : index
    %c1_80 = arith.constant 1 : index
    %c0_81 = arith.constant 0 : index
    %75 = vector.load %arg9[%c0_79, %c1_80, %c0_81] : memref<18x18x128xbf16, #tpu.memory_space<vmem>>, vector<16x16x128xbf16>
    %76 = vector.shape_cast %75 : vector<16x16x128xbf16> to vector<256x128xbf16>
    %c1_82 = arith.constant 1 : index
    %c0_83 = arith.constant 0 : index
    %c0_84 = arith.constant 0 : index
    %77 = vector.load %arg4[%c1_82, %c0_83, %c0_84] : memref<9x128x128xbf16, #tpu.memory_space<vmem>>, vector<1x128x128xbf16>
    %78 = vector.shape_cast %77 : vector<1x128x128xbf16> to vector<128x128xbf16>
    %cst_85 = arith.constant dense<0.000000e+00> : vector<256x128xf32>
    %79 = tpu.matmul %76, %78, %cst_85 {dimension_numbers = #tpu.dot_dimension_numbers<[1], [0], [0], [1], [0, 0, 1, 1], [], []>} : vector<256x128xbf16>, vector<128x128xbf16>, vector<256x128xf32> -> vector<256x128xf32>
    %80 = arith.addf %74, %79 : vector<256x128xf32>
    %c0_86 = arith.constant 0 : index
    %c2_87 = arith.constant 2 : index
    %c0_88 = arith.constant 0 : index
    %81 = vector.load %arg9[%c0_86, %c2_87, %c0_88] : memref<18x18x128xbf16, #tpu.memory_space<vmem>>, vector<16x16x128xbf16>
    %82 = vector.shape_cast %81 : vector<16x16x128xbf16> to vector<256x128xbf16>
    %c2_89 = arith.constant 2 : index
    %c0_90 = arith.constant 0 : index
    %c0_91 = arith.constant 0 : index
    %83 = vector.load %arg4[%c2_89, %c0_90, %c0_91] : memref<9x128x128xbf16, #tpu.memory_space<vmem>>, vector<1x128x128xbf16>
    %84 = vector.shape_cast %83 : vector<1x128x128xbf16> to vector<128x128xbf16>
    %cst_92 = arith.constant dense<0.000000e+00> : vector<256x128xf32>
    %85 = tpu.matmul %82, %84, %cst_92 {dimension_numbers = #tpu.dot_dimension_numbers<[1], [0], [0], [1], [0, 0, 1, 1], [], []>} : vector<256x128xbf16>, vector<128x128xbf16>, vector<256x128xf32> -> vector<256x128xf32>
    %86 = arith.addf %80, %85 : vector<256x128xf32>
    %c1_93 = arith.constant 1 : index
    %c0_94 = arith.constant 0 : index
    %c0_95 = arith.constant 0 : index
    %87 = vector.load %arg9[%c1_93, %c0_94, %c0_95] : memref<18x18x128xbf16, #tpu.memory_space<vmem>>, vector<16x16x128xbf16>
    %88 = vector.shape_cast %87 : vector<16x16x128xbf16> to vector<256x128xbf16>
    %c3_96 = arith.constant 3 : index
    %c0_97 = arith.constant 0 : index
    %c0_98 = arith.constant 0 : index
    %89 = vector.load %arg4[%c3_96, %c0_97, %c0_98] : memref<9x128x128xbf16, #tpu.memory_space<vmem>>, vector<1x128x128xbf16>
    %90 = vector.shape_cast %89 : vector<1x128x128xbf16> to vector<128x128xbf16>
    %cst_99 = arith.constant dense<0.000000e+00> : vector<256x128xf32>
    %91 = tpu.matmul %88, %90, %cst_99 {dimension_numbers = #tpu.dot_dimension_numbers<[1], [0], [0], [1], [0, 0, 1, 1], [], []>} : vector<256x128xbf16>, vector<128x128xbf16>, vector<256x128xf32> -> vector<256x128xf32>
    %92 = arith.addf %86, %91 : vector<256x128xf32>
    %c1_100 = arith.constant 1 : index
    %c1_101 = arith.constant 1 : index
    %c0_102 = arith.constant 0 : index
    %93 = vector.load %arg9[%c1_100, %c1_101, %c0_102] : memref<18x18x128xbf16, #tpu.memory_space<vmem>>, vector<16x16x128xbf16>
    %94 = vector.shape_cast %93 : vector<16x16x128xbf16> to vector<256x128xbf16>
    %c4_103 = arith.constant 4 : index
    %c0_104 = arith.constant 0 : index
    %c0_105 = arith.constant 0 : index
    %95 = vector.load %arg4[%c4_103, %c0_104, %c0_105] : memref<9x128x128xbf16, #tpu.memory_space<vmem>>, vector<1x128x128xbf16>
    %96 = vector.shape_cast %95 : vector<1x128x128xbf16> to vector<128x128xbf16>
    %cst_106 = arith.constant dense<0.000000e+00> : vector<256x128xf32>
    %97 = tpu.matmul %94, %96, %cst_106 {dimension_numbers = #tpu.dot_dimension_numbers<[1], [0], [0], [1], [0, 0, 1, 1], [], []>} : vector<256x128xbf16>, vector<128x128xbf16>, vector<256x128xf32> -> vector<256x128xf32>
    %98 = arith.addf %92, %97 : vector<256x128xf32>
    %c1_107 = arith.constant 1 : index
    %c2_108 = arith.constant 2 : index
    %c0_109 = arith.constant 0 : index
    %99 = vector.load %arg9[%c1_107, %c2_108, %c0_109] : memref<18x18x128xbf16, #tpu.memory_space<vmem>>, vector<16x16x128xbf16>
    %100 = vector.shape_cast %99 : vector<16x16x128xbf16> to vector<256x128xbf16>
    %c5_110 = arith.constant 5 : index
    %c0_111 = arith.constant 0 : index
    %c0_112 = arith.constant 0 : index
    %101 = vector.load %arg4[%c5_110, %c0_111, %c0_112] : memref<9x128x128xbf16, #tpu.memory_space<vmem>>, vector<1x128x128xbf16>
    %102 = vector.shape_cast %101 : vector<1x128x128xbf16> to vector<128x128xbf16>
    %cst_113 = arith.constant dense<0.000000e+00> : vector<256x128xf32>
    %103 = tpu.matmul %100, %102, %cst_113 {dimension_numbers = #tpu.dot_dimension_numbers<[1], [0], [0], [1], [0, 0, 1, 1], [], []>} : vector<256x128xbf16>, vector<128x128xbf16>, vector<256x128xf32> -> vector<256x128xf32>
    %104 = arith.addf %98, %103 : vector<256x128xf32>
    %c2_114 = arith.constant 2 : index
    %c0_115 = arith.constant 0 : index
    %c0_116 = arith.constant 0 : index
    %105 = vector.load %arg9[%c2_114, %c0_115, %c0_116] : memref<18x18x128xbf16, #tpu.memory_space<vmem>>, vector<16x16x128xbf16>
    %106 = vector.shape_cast %105 : vector<16x16x128xbf16> to vector<256x128xbf16>
    %c6_117 = arith.constant 6 : index
    %c0_118 = arith.constant 0 : index
    %c0_119 = arith.constant 0 : index
    %107 = vector.load %arg4[%c6_117, %c0_118, %c0_119] : memref<9x128x128xbf16, #tpu.memory_space<vmem>>, vector<1x128x128xbf16>
    %108 = vector.shape_cast %107 : vector<1x128x128xbf16> to vector<128x128xbf16>
    %cst_120 = arith.constant dense<0.000000e+00> : vector<256x128xf32>
    %109 = tpu.matmul %106, %108, %cst_120 {dimension_numbers = #tpu.dot_dimension_numbers<[1], [0], [0], [1], [0, 0, 1, 1], [], []>} : vector<256x128xbf16>, vector<128x128xbf16>, vector<256x128xf32> -> vector<256x128xf32>
    %110 = arith.addf %104, %109 : vector<256x128xf32>
    %c2_121 = arith.constant 2 : index
    %c1_122 = arith.constant 1 : index
    %c0_123 = arith.constant 0 : index
    %111 = vector.load %arg9[%c2_121, %c1_122, %c0_123] : memref<18x18x128xbf16, #tpu.memory_space<vmem>>, vector<16x16x128xbf16>
    %112 = vector.shape_cast %111 : vector<16x16x128xbf16> to vector<256x128xbf16>
    %c7_124 = arith.constant 7 : index
    %c0_125 = arith.constant 0 : index
    %c0_126 = arith.constant 0 : index
    %113 = vector.load %arg4[%c7_124, %c0_125, %c0_126] : memref<9x128x128xbf16, #tpu.memory_space<vmem>>, vector<1x128x128xbf16>
    %114 = vector.shape_cast %113 : vector<1x128x128xbf16> to vector<128x128xbf16>
    %cst_127 = arith.constant dense<0.000000e+00> : vector<256x128xf32>
    %115 = tpu.matmul %112, %114, %cst_127 {dimension_numbers = #tpu.dot_dimension_numbers<[1], [0], [0], [1], [0, 0, 1, 1], [], []>} : vector<256x128xbf16>, vector<128x128xbf16>, vector<256x128xf32> -> vector<256x128xf32>
    %116 = arith.addf %110, %115 : vector<256x128xf32>
    %c2_128 = arith.constant 2 : index
    %c2_129 = arith.constant 2 : index
    %c0_130 = arith.constant 0 : index
    %117 = vector.load %arg9[%c2_128, %c2_129, %c0_130] : memref<18x18x128xbf16, #tpu.memory_space<vmem>>, vector<16x16x128xbf16>
    %118 = vector.shape_cast %117 : vector<16x16x128xbf16> to vector<256x128xbf16>
    %c8_131 = arith.constant 8 : index
    %c0_132 = arith.constant 0 : index
    %c0_133 = arith.constant 0 : index
    %119 = vector.load %arg4[%c8_131, %c0_132, %c0_133] : memref<9x128x128xbf16, #tpu.memory_space<vmem>>, vector<1x128x128xbf16>
    %120 = vector.shape_cast %119 : vector<1x128x128xbf16> to vector<128x128xbf16>
    %cst_134 = arith.constant dense<0.000000e+00> : vector<256x128xf32>
    %121 = tpu.matmul %118, %120, %cst_134 {dimension_numbers = #tpu.dot_dimension_numbers<[1], [0], [0], [1], [0, 0, 1, 1], [], []>} : vector<256x128xbf16>, vector<128x128xbf16>, vector<256x128xf32> -> vector<256x128xf32>
    %122 = arith.addf %116, %121 : vector<256x128xf32>
    %c0_135 = arith.constant 0 : index
    %c0_136 = arith.constant 0 : index
    %123 = vector.load %arg5[%c0_135, %c0_136] : memref<1x128xf32, #tpu.memory_space<vmem>>, vector<1x128xf32>
    %124 = vector.broadcast %123 : vector<1x128xf32> to vector<256x128xf32>
    %125 = arith.addf %122, %124 : vector<256x128xf32>
    %cst_137 = arith.constant 0.000000e+00 : f32
    %126 = vector.broadcast %cst_137 : f32 to vector<256x128xf32>
    %127 = arith.maximumf %125, %126 : vector<256x128xf32>
    %128 = arith.truncf %127 : vector<256x128xf32> to vector<256x128xbf16>
    %cst_138 = arith.constant 3.906250e-03 : bf16
    %129 = vector.broadcast %cst_138 : bf16 to vector<1x256xbf16>
    %cst_139 = arith.constant dense<0.000000e+00> : vector<1x128xf32>
    %130 = tpu.matmul %129, %128, %cst_139 {dimension_numbers = #tpu.dot_dimension_numbers<[1], [0], [0], [1], [0, 0, 1, 1], [], []>} : vector<1x256xbf16>, vector<256x128xbf16>, vector<1x128xf32> -> vector<1x128xf32>
    %131 = arith.truncf %130 : vector<1x128xf32> to vector<1x128xbf16>
    %c0_140 = arith.constant 0 : index
    %c0_141 = arith.constant 0 : index
    %132 = vector.load %arg6[%c0_140, %c0_141] : memref<128x128xbf16, #tpu.memory_space<vmem>>, vector<128x128xbf16>
    %cst_142 = arith.constant dense<0.000000e+00> : vector<1x128xf32>
    %133 = tpu.matmul %131, %132, %cst_142 {dimension_numbers = #tpu.dot_dimension_numbers<[1], [0], [0], [1], [0, 0, 1, 1], [], []>} : vector<1x128xbf16>, vector<128x128xbf16>, vector<1x128xf32> -> vector<1x128xf32>
    %c0_143 = arith.constant 0 : index
    %c0_144 = arith.constant 0 : index
    %134 = vector.load %arg7[%c0_143, %c0_144] : memref<1x128xf32, #tpu.memory_space<vmem>>, vector<1x128xf32>
    %135 = arith.addf %133, %134 : vector<1x128xf32>
    %136 = tpu.iota {dimensions = array<i32: 1>} : vector<1x128xi32>
    %c1_i32 = arith.constant 1 : i32
    %137 = vector.broadcast %c1_i32 : i32 to vector<1x128xi32>
    %138 = arith.cmpi sge, %136, %137 : vector<1x128xi32>
    %c6_i32 = arith.constant 6 : i32
    %139 = vector.broadcast %c6_i32 : i32 to vector<1x128xi32>
    %140 = arith.cmpi sle, %136, %139 : vector<1x128xi32>
    %141 = arith.andi %138, %140 : vector<1x128xi1>
    %cst_145 = arith.constant 0.000000e+00 : f32
    %142 = vector.broadcast %cst_145 : f32 to vector<1x128xf32>
    %143 = arith.select %141, %135, %142 : vector<1x128xi1>, vector<1x128xf32>
    %cst_146 = arith.constant dense<0.000000e+00> : vector<1xf32>
    %144 = vector.multi_reduction <add>, %143, %cst_146 [1] : vector<1x128xf32> to vector<1xf32>
    %145 = vector.shape_cast %144 : vector<1xf32> to vector<1x1xf32>
    %cst_147 = arith.constant 0.166666672 : f32
    %146 = vector.broadcast %cst_147 : f32 to vector<1x1xf32>
    %147 = arith.mulf %145, %146 : vector<1x1xf32>
    %c0_i32 = arith.constant 0 : i32
    %148 = vector.broadcast %c0_i32 : i32 to vector<1x128xi32>
    %149 = arith.cmpi eq, %136, %148 : vector<1x128xi32>
    %cst_148 = arith.constant 0.000000e+00 : f32
    %150 = vector.broadcast %cst_148 : f32 to vector<1x128xf32>
    %151 = arith.select %149, %135, %150 : vector<1x128xi1>, vector<1x128xf32>
    %cst_149 = arith.constant dense<0.000000e+00> : vector<1xf32>
    %152 = vector.multi_reduction <add>, %151, %cst_149 [1] : vector<1x128xf32> to vector<1xf32>
    %153 = vector.shape_cast %152 : vector<1xf32> to vector<1x1xf32>
    %154 = vector.broadcast %153 : vector<1x1xf32> to vector<1x128xf32>
    %155 = arith.addf %154, %143 : vector<1x128xf32>
    %156 = vector.broadcast %147 : vector<1x1xf32> to vector<1x128xf32>
    %157 = arith.subf %155, %156 : vector<1x128xf32>
    %cst_150 = arith.constant 0.000000e+00 : f32
    %158 = vector.broadcast %cst_150 : f32 to vector<1x128xf32>
    %159 = arith.select %141, %157, %158 : vector<1x128xi1>, vector<1x128xf32>
    %c0_151 = arith.constant 0 : index
    %c0_152 = arith.constant 0 : index
    %c0_153 = arith.constant 0 : index
    %160 = vector.load %arg8[%c0_151, %c0_152, %c0_153] : memref<1x1x128xf32, #tpu.memory_space<vmem>>, vector<1x1x128xf32>
    %161 = vector.shape_cast %160 : vector<1x1x128xf32> to vector<1x128xf32>
    %162 = vector.shape_cast %159 : vector<1x128xf32> to vector<1x1x128xf32>
    tpu.vector_store %arg8[%c0_151, %c0_152, %c0_153], %162 {strides = array<i32>} : memref<1x1x128xf32, #tpu.memory_space<vmem>>, vector<1x1x128xf32>,
    return
  }
  func.func @transform_0(%arg0: i32) -> (i32, i32, i32, i32) {
    %c0_i32 = arith.constant 0 : i32
    %c0_i32_0 = arith.constant 0 : i32
    %c0_i32_1 = arith.constant 0 : i32
    %c0_i32_2 = arith.constant 0 : i32
    return %arg0, %c0_i32, %c0_i32_0, %c0_i32_1 : i32, i32, i32, i32
  }
  func.func @transform_1(%arg0: i32) -> (i32, i32, i32) {
    %c0_i32 = arith.constant 0 : i32
    %c0_i32_0 = arith.constant 0 : i32
    %c0_i32_1 = arith.constant 0 : i32
    %c0_i32_2 = arith.constant 0 : i32
    return %c0_i32, %c0_i32_0, %c0_i32_1 : i32, i32, i32
  }
  func.func @transform_2(%arg0: i32) -> (i32, i32) {
    %c0_i32 = arith.constant 0 : i32
    %c0_i32_0 = arith.constant 0 : i32
    %c0_i32_1 = arith.constant 0 : i32
    return %c0_i32, %c0_i32_0 : i32, i32
  }
  func.func @transform_3(%arg0: i32) -> (i32, i32, i32) {
    %c0_i32 = arith.constant 0 : i32
    %c0_i32_0 = arith.constant 0 : i32
    %c0_i32_1 = arith.constant 0 : i32
    %c0_i32_2 = arith.constant 0 : i32
    return %c0_i32, %c0_i32_0, %c0_i32_1 : i32, i32, i32
  }
  func.func @transform_4(%arg0: i32) -> (i32, i32) {
    %c0_i32 = arith.constant 0 : i32
    %c0_i32_0 = arith.constant 0 : i32
    %c0_i32_1 = arith.constant 0 : i32
    return %c0_i32, %c0_i32_0 : i32, i32
  }
  func.func @transform_5(%arg0: i32) -> (i32, i32) {
    %c0_i32 = arith.constant 0 : i32
    %c0_i32_0 = arith.constant 0 : i32
    %c0_i32_1 = arith.constant 0 : i32
    return %c0_i32, %c0_i32_0 : i32, i32
  }
  func.func @transform_6(%arg0: i32) -> (i32, i32) {
    %c0_i32 = arith.constant 0 : i32
    %c0_i32_0 = arith.constant 0 : i32
    %c0_i32_1 = arith.constant 0 : i32
    return %c0_i32, %c0_i32_0 : i32, i32
  }
  func.func @transform_7(%arg0: i32) -> (i32, i32, i32) {
    %c0_i32 = arith.constant 0 : i32
    %c0_i32_0 = arith.constant 0 : i32
    %c0_i32_1 = arith.constant 0 : i32
    return %arg0, %c0_i32, %c0_i32_0 : i32, i32, i32
  }
}

</mosaic_0001>

<llo_original>
// kernel: dueling_cnn_forward.1
$region0: #{dueling_cnn_forward.1}
  #allocation0 [shape = 'u32[]', space=smem, size = 0x4, offset = 0x4, fixed_abs, tag = 'smem constant byte address 0x4 - core index']
  #allocation1 [shape = 'u32[144,128]{1,0:T(1,128)}', space=vmem, size = 0x12000, scoped, tag = 'internal scratch']
  #allocation2 [shape = 'bf16[18,18,128]{2,1,0:T(8,128)(2,1)}', space=vmem, size = 0x1b000, scoped, tag = 'scratch operand']
  %s0 = inlined_call_operand.vmem [shape: bf16[2,16,16,128], index: 0, kind: input, shape index: {}]
  %s1 = inlined_call_operand.vmem [shape: bf16[9,128,128], index: 1, kind: input, shape index: {}]
  %s2 = inlined_call_operand.vmem [shape: f32[1,128], index: 2, kind: input, shape index: {}]
  %s3 = inlined_call_operand.vmem [shape: bf16[9,128,128], index: 3, kind: input, shape index: {}]
  %s4 = inlined_call_operand.vmem [shape: f32[1,128], index: 4, kind: input, shape index: {}]
  %s5 = inlined_call_operand.vmem [shape: bf16[128,128], index: 5, kind: input, shape index: {}]
  %s6 = inlined_call_operand.vmem [shape: f32[1,128], index: 6, kind: input, shape index: {}]
  %s7 = inlined_call_operand.vmem [shape: f32[2,1,128], index: 7, kind: output, shape index: {}]
  %s8 = sld [smem:[#allocation0]]
  $region61: #{dueling_cnn_forward.1} parent=0
    _
  %s10 = ssub.s32 1, %s8
  %s11 = scalar_select 0, %s10, %s8
  loop: start=0, step=1, limit=4
  $region2: #{dueling_cnn_forward.1} parent=0 // loop_pre_header
    _
  $region3: #{dueling_cnn_forward.1} parent=0 // loop_header
    %s13 = sphi 0, %s17
    %p14 = scmp.ge.s32.totalorder %s13, 4
    %s23 = sphi 0, %s25
    %s26 = sphi 0, %s23
    %s27 = sphi 0, %s26
    %s43 = sphi 0, %s27
    %s47 = sphi 0, %s47
    %s49 = sphi 0, %s47
    %s50 = sphi 0, %s49
    %s64 = sphi 0, %s50
    %s68 = sphi 0, %s68
    %s70 = sphi 0, %s68
    %s71 = sphi 0, %s70
    %s85 = sphi 0, %s71
    %s89 = sphi 0, %s89
    %s91 = sphi 0, %s89
    %s92 = sphi 0, %s91
    %s106 = sphi 0, %s92
    %s110 = sphi 0, %s110
    %s112 = sphi 0, %s110
    %s113 = sphi 0, %s112
    %s127 = sphi 0, %s113
    %s131 = sphi 0, %s131
    %s133 = sphi 0, %s131
    %s134 = sphi 0, %s133
    %s148 = sphi 0, %s134
    %s152 = sphi 0, %s152
    %s154 = sphi 0, %s152
    %s155 = sphi 0, %s154
    %s169 = sphi 0, %s155
    %s175 = sphi 0, %s177
    %s178 = sphi 0, %s175
    %s179 = sphi 0, %s178
    %s195 = sphi 0, %s179
  $region4: #{dueling_cnn_forward.1} parent=0 // loop_header_branch
    %16 = sbr.rel (%p14) target = $region8
  $region5: #{dueling_cnn_forward.1} parent=0 // loop_body
    %s18 = ssub.s32 %s13, 1
    %s19 = ssub.s32 %s13, 2
    %s20 = sadd.s32 %s13, 1
    %s21 = ssub.s32 %s13, %s20
    %p22 = scmp.eq.s32.totalorder %s21, 0
    %s24 = sadd.s32 %s23, 1
    %s25 = scalar_select %p22, %s23, %s24
    %p28 = pneg %p22
    %p29 = scmp.eq.s32.totalorder %s13, 1
    %p30 = por %p28, %p29
    %p31 = scmp.ne.s32.totalorder %s23, %s26
    %p32 = scmp.eq.s32.totalorder %s13, 0
    %p33 = por %p31, %p32
    %p34 = scmp.ne.s32.totalorder %s23, %s26
    %p35 = scmp.eq.s32.totalorder %s18, 1
    %p36 = por %p34, %p35
    %p37 = scmp.ne.s32.totalorder %s26, %s27
    %p38 = scmp.eq.s32.totalorder %s18, 0
    %p39 = por %p37, %p38
    %p40 = scmp.ne.s32.totalorder %s26, %s27
    %p41 = scmp.eq.s32.totalorder %s19, 1
    %p42 = por %p40, %p41
    %p44 = scmp.ne.s32.totalorder %s27, %s43
    %p45 = scmp.eq.s32.totalorder %s19, 0
    %p46 = por %p44, %p45
    %s48 = sadd.s32 %s47, 1
    %p51 = scmp.eq.s32.totalorder %s13, 1
    %p52 = scmp.ne.s32.totalorder %s47, %s49
    %p53 = scmp.eq.s32.totalorder %s13, 0
    %p54 = por %p52, %p53
    %p55 = scmp.ne.s32.totalorder %s47, %s49
    %p56 = scmp.eq.s32.totalorder %s18, 1
    %p57 = por %p55, %p56
    %p58 = scmp.ne.s32.totalorder %s49, %s50
    %p59 = scmp.eq.s32.totalorder %s18, 0
    %p60 = por %p58, %p59
    %p61 = scmp.ne.s32.totalorder %s49, %s50
    %p62 = scmp.eq.s32.totalorder %s19, 1
    %p63 = por %p61, %p62
    %p65 = scmp.ne.s32.totalorder %s50, %s64
    %p66 = scmp.eq.s32.totalorder %s19, 0
    %p67 = por %p65, %p66
    %s69 = sadd.s32 %s68, 1
    %p72 = scmp.eq.s32.totalorder %s13, 1
    %p73 = scmp.ne.s32.totalorder %s68, %s70
    %p74 = scmp.eq.s32.totalorder %s13, 0
    %p75 = por %p73, %p74
    %p76 = scmp.ne.s32.totalorder %s68, %s70
    %p77 = scmp.eq.s32.totalorder %s18, 1
    %p78 = por %p76, %p77
    %p79 = scmp.ne.s32.totalorder %s70, %s71
    %p80 = scmp.eq.s32.totalorder %s18, 0
    %p81 = por %p79, %p80
    %p82 = scmp.ne.s32.totalorder %s70, %s71
    %p83 = scmp.eq.s32.totalorder %s19, 1
    %p84 = por %p82, %p83
    %p86 = scmp.ne.s32.totalorder %s71, %s85
    %p87 = scmp.eq.s32.totalorder %s19, 0
    %p88 = por %p86, %p87
    %s90 = sadd.s32 %s89, 1
    %p93 = scmp.eq.s32.totalorder %s13, 1
    %p94 = scmp.ne.s32.totalorder %s89, %s91
    %p95 = scmp.eq.s32.totalorder %s13, 0
    %p96 = por %p94, %p95
    %p97 = scmp.ne.s32.totalorder %s89, %s91
    %p98 = scmp.eq.s32.totalorder %s18, 1
    %p99 = por %p97, %p98
    %p100 = scmp.ne.s32.totalorder %s91, %s92
    %p101 = scmp.eq.s32.totalorder %s18, 0
    %p102 = por %p100, %p101
    %p103 = scmp.ne.s32.totalorder %s91, %s92
    %p104 = scmp.eq.s32.totalorder %s19, 1
    %p105 = por %p103, %p104
    %p107 = scmp.ne.s32.totalorder %s92, %s106
    %p108 = scmp.eq.s32.totalorder %s19, 0
    %p109 = por %p107, %p108
    %s111 = sadd.s32 %s110, 1
    %p114 = scmp.eq.s32.totalorder %s13, 1
    %p115 = scmp.ne.s32.totalorder %s110, %s112
    %p116 = scmp.eq.s32.totalorder %s13, 0
    %p117 = por %p115, %p116
    %p118 = scmp.ne.s32.totalorder %s110, %s112
    %p119 = scmp.eq.s32.totalorder %s18, 1
    %p120 = por %p118, %p119
    %p121 = scmp.ne.s32.totalorder %s112, %s113
    %p122 = scmp.eq.s32.totalorder %s18, 0
    %p123 = por %p121, %p122
    %p124 = scmp.ne.s32.totalorder %s112, %s113
    %p125 = scmp.eq.s32.totalorder %s19, 1
    %p126 = por %p124, %p125
    %p128 = scmp.ne.s32.totalorder %s113, %s127
    %p129 = scmp.eq.s32.totalorder %s19, 0
    %p130 = por %p128, %p129
    %s132 = sadd.s32 %s131, 1
    %p135 = scmp.eq.s32.totalorder %s13, 1
    %p136 = scmp.ne.s32.totalorder %s131, %s133
    %p137 = scmp.eq.s32.totalorder %s13, 0
    %p138 = por %p136, %p137
    %p139 = scmp.ne.s32.totalorder %s131, %s133
    %p140 = scmp.eq.s32.totalorder %s18, 1
    %p141 = por %p139, %p140
    %p142 = scmp.ne.s32.totalorder %s133, %s134
    %p143 = scmp.eq.s32.totalorder %s18, 0
    %p144 = por %p142, %p143
    %p145 = scmp.ne.s32.totalorder %s133, %s134
    %p146 = scmp.eq.s32.totalorder %s19, 1
    %p147 = por %p145, %p146
    %p149 = scmp.ne.s32.totalorder %s134, %s148
    %p150 = scmp.eq.s32.totalorder %s19, 0
    %p151 = por %p149, %p150
    %s153 = sadd.s32 %s152, 1
    %p156 = scmp.eq.s32.totalorder %s13, 1
    %p157 = scmp.ne.s32.totalorder %s152, %s154
    %p158 = scmp.eq.s32.totalorder %s13, 0
    %p159 = por %p157, %p158
    %p160 = scmp.ne.s32.totalorder %s152, %s154
    %p161 = scmp.eq.s32.totalorder %s18, 1
    %p162 = por %p160, %p161
    %p163 = scmp.ne.s32.totalorder %s154, %s155
    %p164 = scmp.eq.s32.totalorder %s18, 0
    %p165 = por %p163, %p164
    %p166 = scmp.ne.s32.totalorder %s154, %s155
    %p167 = scmp.eq.s32.totalorder %s19, 1
    %p168 = por %p166, %p167
    %p170 = scmp.ne.s32.totalorder %s155, %s169
    %p171 = scmp.eq.s32.totalorder %s19, 0
    %p172 = por %p170, %p171
    %s173 = ssub.s32 %s13, %s20
    %p174 = scmp.eq.s32.totalorder %s173, 0
    %s176 = sadd.s32 %s175, 1
    %s177 = scalar_select %p174, %s175, %s176
    %p180 = pneg %p174
    %p181 = scmp.eq.s32.totalorder %s13, 1
    %p182 = por %p180, %p181
    %p183 = scmp.ne.s32.totalorder %s175, %s178
    %p184 = scmp.eq.s32.totalorder %s13, 0
    %p185 = por %p183, %p184
    %p186 = scmp.ne.s32.totalorder %s175, %s178
    %p187 = scmp.eq.s32.totalorder %s18, 1
    %p188 = por %p186, %p187
    %p189 = scmp.ne.s32.totalorder %s178, %s179
    %p190 = scmp.eq.s32.totalorder %s18, 0
    %p191 = por %p189, %p190
    %p192 = scmp.ne.s32.totalorder %s178, %s179
    %p193 = scmp.eq.s32.totalorder %s19, 1
    %p194 = por %p192, %p193
    %p196 = scmp.ne.s32.totalorder %s179, %s195
    %p197 = scmp.eq.s32.totalorder %s19, 0
    %p198 = por %p196, %p197
    %p199 = scmp.le.s32.totalorder 1, %s13
    %p200 = scmp.lt.s32.totalorder %s13, 3
    %p201 = pnand %p199, %p200
    %p202 = pneg %p201
    // Predicated region
    $region9: #{dueling_cnn_forward.1} parent=5 // pred_check
      _
    $region10: #{dueling_cnn_forward.1} parent=5 // pred_check_branch
      %204 = sbr.rel (%p201) target = $region12
    $region11: #{dueling_cnn_forward.1} parent=5 // pred_region
      %s205 = ssub.s32 %s13, 1
      // Predicated region
      $region13: #{dueling_cnn_forward.1} parent=11 // pred_check
        %p206 = pneg %p60
      $region14: #{dueling_cnn_forward.1} parent=11 // pred_check_branch
        %208 = sbr.rel (%p206) target = $region16
      $region15: #{dueling_cnn_forward.1} parent=11 // pred_region
        _
      $region16: #{dueling_cnn_forward.1} parent=11 // pred_fallthru
        _
      // Predicated region
      $region17: #{dueling_cnn_forward.1} parent=11 // pred_check
        %p209 = pneg %p81
      $region18: #{dueling_cnn_forward.1} parent=11 // pred_check_branch
        %211 = sbr.rel (%p209) target = $region20
      $region19: #{dueling_cnn_forward.1} parent=11 // pred_region
        _
      $region20: #{dueling_cnn_forward.1} parent=11 // pred_fallthru
        _
      // Predicated region
      $region21: #{dueling_cnn_forward.1} parent=11 // pred_check
        %p212 = pneg %p102
      $region22: #{dueling_cnn_forward.1} parent=11 // pred_check_branch
        %214 = sbr.rel (%p212) target = $region24
      $region23: #{dueling_cnn_forward.1} parent=11 // pred_region
        _
      $region24: #{dueling_cnn_forward.1} parent=11 // pred_fallthru
        _
      // Predicated region
      $region25: #{dueling_cnn_forward.1} parent=11 // pred_check
        %p215 = pneg %p123
      $region26: #{dueling_cnn_forward.1} parent=11 // pred_check_branch
        %217 = sbr.rel (%p215) target = $region28
      $region27: #{dueling_cnn_forward.1} parent=11 // pred_region
        _
      $region28: #{dueling_cnn_forward.1} parent=11 // pred_fallthru
        _
      // Predicated region
      $region29: #{dueling_cnn_forward.1} parent=11 // pred_check
        %p218 = pneg %p144
      $region30: #{dueling_cnn_forward.1} parent=11 // pred_check_branch
        %220 = sbr.rel (%p218) target = $region32
      $region31: #{dueling_cnn_forward.1} parent=11 // pred_region
        _
      $region32: #{dueling_cnn_forward.1} parent=11 // pred_fallthru
        _
      // Predicated region
      $region33: #{dueling_cnn_forward.1} parent=11 // pred_check
        %p221 = pneg %p165
      $region34: #{dueling_cnn_forward.1} parent=11 // pred_check_branch
        %223 = sbr.rel (%p221) target = $region36
      $region35: #{dueling_cnn_forward.1} parent=11 // pred_region
        _
      $region36: #{dueling_cnn_forward.1} parent=11 // pred_fallthru
        _
    $region12: #{dueling_cnn_forward.1} parent=5 // pred_fallthru
      _
    %p224 = scmp.lt.s32.totalorder %s13, 2
    // Predicated region
    $region37: #{dueling_cnn_forward.1} parent=5 // pred_check
      %p225 = pneg %p224
    $region38: #{dueling_cnn_forward.1} parent=5 // pred_check_branch
      %227 = sbr.rel (%p225) target = $region40
    $region39: #{dueling_cnn_forward.1} parent=5 // pred_region
      // Predicated region
      $region41: #{dueling_cnn_forward.1} parent=39 // pred_check
        %p228 = pneg %p33
      $region42: #{dueling_cnn_forward.1} parent=39 // pred_check_branch
        %230 = sbr.rel (%p228) target = $region44
      $region43: #{dueling_cnn_forward.1} parent=39 // pred_region
        %p231 = scmp.lt.s32.totalorder %s13, 1
        %s232 = scalar_select %p231, %s13, 1
        %s233 = smul.addr %s232, 32
        %s234 = smul.addr %s233, 4
        %s235 = scalar_lea.vmem %s0, %s234
      $region44: #{dueling_cnn_forward.1} parent=39 // pred_fallthru
        _
    $region40: #{dueling_cnn_forward.1} parent=5 // pred_fallthru
      _
    %p236 = scmp.le.s32.totalorder 1, %s13
    %p237 = scmp.lt.s32.totalorder %s13, 3
    %p238 = pnand %p236, %p237
    %p239 = pneg %p238
    // Predicated region
    $region45: #{dueling_cnn_forward.1} parent=5 // pred_check
      _
    $region46: #{dueling_cnn_forward.1} parent=5 // pred_check_branch
      %241 = sbr.rel (%p238) target = $region48
    $region47: #{dueling_cnn_forward.1} parent=5 // pred_region
      %s242 = ssub.s32 %s13, 1
      %p243 = scmp.lt.s32.totalorder %s18, 1
      %s244 = scalar_select %p243, %s18, 1
      %s245 = smul.addr %s244, 32
      %s246 = smul.addr %s245, 4
      %s247 = scalar_lea.vmem %s0, %s246
      %p248 = pneg %p39
      %p249 = pneg %p36
      %p250 = pneg %p60
      %p251 = pneg %p57
      %p252 = pneg %p81
      %p253 = pneg %p78
      %p254 = pneg %p102
      %p255 = pneg %p99
      %p256 = pneg %p123
      %p257 = pneg %p120
      %p258 = pneg %p144
      %p259 = pneg %p141
      %p260 = pneg %p165
      %p261 = pneg %p162
      %p262 = pneg %p191
      %p263 = pneg %p188
      %p264 = scmp.lt.s32.totalorder %s18, 1
      %s265 = scalar_select %p264, %s18, 1
      %s266 = scalar_lea.vmem %s7, %s265
      %p267 = scmp.lt.s32.totalorder %s18, 1
      %s268 = scalar_select %p267, %s18, 1
      %s269 = smul.addr %s268, 32
      %s270 = smul.addr %s269, 4
      %s271 = scalar_lea.vmem %s0, %s270
      %p272 = scmp.lt.s32.totalorder %s18, 1
      %s273 = scalar_select %p272, %s18, 1
      %s274 = scalar_lea.vmem %s7, %s273
      %277 = vst [vmem:[#allocation2] sm:$0xf] 0
      %278 = vst [vmem:[#allocation2 + $0x4] sm:$0xf] 0
      %279 = vst [vmem:[#allocation2 + $0x8] sm:$0x1] 0
      %280 = vst [vmem:[#allocation2 + $0xc] sm:$0xf] 0
      %281 = vst [vmem:[#allocation2 + $0x10] sm:$0xf] 0
      %282 = vst [vmem:[#allocation2 + $0x14] sm:$0x1] 0
      %283 = vst [vmem:[#allocation2 + $0x18] sm:$0xf] 0
      %284 = vst [vmem:[#allocation2 + $0x1c] sm:$0xf] 0
      %285 = vst [vmem:[#allocation2 + $0x20] sm:$0x1] 0
      %286 = vst [vmem:[#allocation2 + $0x24] sm:$0xf] 0
      %287 = vst [vmem:[#allocation2 + $0x28] sm:$0xf] 0
      %288 = vst [vmem:[#allocation2 + $0x2c] sm:$0x1] 0
      %289 = vst [vmem:[#allocation2 + $0x30] sm:$0xf] 0
      %290 = vst [vmem:[#allocation2 + $0x34] sm:$0xf] 0
      %291 = vst [vmem:[#allocation2 + $0x38] sm:$0x1] 0
      %292 = vst [vmem:[#allocation2 + $0x3c] sm:$0xf] 0
      %293 = vst [vmem:[#allocation2 + $0x40] sm:$0xf] 0
      %294 = vst [vmem:[#allocation2 + $0x44] sm:$0x1] 0
      %295 = vst [vmem:[#allocation2 + $0x48] sm:$0xf] 0
      %296 = vst [vmem:[#allocation2 + $0x4c] sm:$0xf] 0
      %297 = vst [vmem:[#allocation2 + $0x50] sm:$0x1] 0
      %298 = vst [vmem:[#allocation2 + $0x54] sm:$0xf] 0
      %299 = vst [vmem:[#allocation2 + $0x58] sm:$0xf] 0
      %300 = vst [vmem:[#allocation2 + $0x5c] sm:$0x1] 0
      %301 = vst [vmem:[#allocation2 + $0x60] sm:$0xf] 0
      %302 = vst [vmem:[#allocation2 + $0x64] sm:$0xf] 0
      %303 = vst [vmem:[#allocation2 + $0x68] sm:$0x1] 0
      %304 = vst [vmem:[#allocation2 + $0x6c] sm:$0xf] 0
      %305 = vst [vmem:[#allocation2 + $0x70] sm:$0xf] 0
      %306 = vst [vmem:[#allocation2 + $0x74] sm:$0x1] 0
      %307 = vst [vmem:[#allocation2 + $0x78] sm:$0xf] 0
      %308 = vst [vmem:[#allocation2 + $0x7c] sm:$0xf] 0
      %309 = vst [vmem:[#allocation2 + $0x80] sm:$0x1] 0
      %310 = vst [vmem:[#allocation2 + $0x84] sm:$0xf] 0
      %311 = vst [vmem:[#allocation2 + $0x88] sm:$0xf] 0
      %312 = vst [vmem:[#allocation2 + $0x8c] sm:$0x1] 0
      %313 = vst [vmem:[#allocation2 + $0x90] sm:$0xf] 0
      %314 = vst [vmem:[#allocation2 + $0x94] sm:$0xf] 0
      %315 = vst [vmem:[#allocation2 + $0x98] sm:$0x1] 0
      %316 = vst [vmem:[#allocation2 + $0x9c] sm:$0xf] 0
      %317 = vst [vmem:[#allocation2 + $0xa0] sm:$0xf] 0
      %318 = vst [vmem:[#allocation2 + $0xa4] sm:$0x1] 0
      %319 = vst [vmem:[#allocation2 + $0xa8] sm:$0xf] 0
      %320 = vst [vmem:[#allocation2 + $0xac] sm:$0xf] 0
      %321 = vst [vmem:[#allocation2 + $0xb0] sm:$0x1] 0
      %322 = vst [vmem:[#allocation2 + $0xb4] sm:$0xf] 0
      %323 = vst [vmem:[#allocation2 + $0xb8] sm:$0xf] 0
      %324 = vst [vmem:[#allocation2 + $0xbc] sm:$0x1] 0
      %325 = vst [vmem:[#allocation2 + $0xc0] sm:$0xf] 0
      %326 = vst [vmem:[#allocation2 + $0xc4] sm:$0xf] 0
      %327 = vst [vmem:[#allocation2 + $0xc8] sm:$0x1] 0
      %328 = vst [vmem:[#allocation2 + $0xcc] sm:$0xf] 0
      %329 = vst [vmem:[#allocation2 + $0xd0] sm:$0xf] 0
      %330 = vst [vmem:[#allocation2 + $0xd4] sm:$0x1] 0
      %v331 = vld [vmem:[%s271] sm:$0xf]
      %v332 = vld [vmem:[%s271 + $0x4] sm:$0xf]
      %v333 = vld [vmem:[%s271 + $0x8] sm:$0xf]
      %v334 = vld [vmem:[%s271 + $0xc] sm:$0xf]
      %v335 = vld [vmem:[%s271 + $0x10] sm:$0xf]
      %v336 = vld [vmem:[%s271 + $0x14] sm:$0xf]
      %v337 = vld [vmem:[%s271 + $0x18] sm:$0xf]
      %v338 = vld [vmem:[%s271 + $0x1c] sm:$0xf]
      %v339 = vld [vmem:[%s271 + $0x20] sm:$0xf]
      %v340 = vld [vmem:[%s271 + $0x24] sm:$0xf]
      %v341 = vld [vmem:[%s271 + $0x28] sm:$0xf]
      %v342 = vld [vmem:[%s271 + $0x2c] sm:$0xf]
      %v343 = vld [vmem:[%s271 + $0x30] sm:$0xf]
      %v344 = vld [vmem:[%s271 + $0x34] sm:$0xf]
      %v345 = vld [vmem:[%s271 + $0x38] sm:$0xf]
      %v346 = vld [vmem:[%s271 + $0x3c] sm:$0xf]
      %v347 = vld [vmem:[%s271 + $0x40] sm:$0xf]
      %v348 = vld [vmem:[%s271 + $0x44] sm:$0xf]
      %v349 = vld [vmem:[%s271 + $0x48] sm:$0xf]
      %v350 = vld [vmem:[%s271 + $0x4c] sm:$0xf]
      %v351 = vld [vmem:[%s271 + $0x50] sm:$0xf]
      %v352 = vld [vmem:[%s271 + $0x54] sm:$0xf]
      %v353 = vld [vmem:[%s271 + $0x58] sm:$0xf]
      %v354 = vld [vmem:[%s271 + $0x5c] sm:$0xf]
      %v355 = vld [vmem:[%s271 + $0x60] sm:$0xf]
      %v356 = vld [vmem:[%s271 + $0x64] sm:$0xf]
      %v357 = vld [vmem:[%s271 + $0x68] sm:$0xf]
      %v358 = vld [vmem:[%s271 + $0x6c] sm:$0xf]
      %v359 = vld [vmem:[%s271 + $0x70] sm:$0xf]
      %v360 = vld [vmem:[%s271 + $0x74] sm:$0xf]
      %v361 = vld [vmem:[%s271 + $0x78] sm:$0xf]
      %v362 = vld [vmem:[%s271 + $0x7c] sm:$0xf]
      %vm363 = vsmask.f32 256
      %vm364 = vsmask.f32 4368
      %vm365 = vmor %vm363, %vm364
      %v367 = vshrl.u32 %v331, 16
      %v369 = vrot.slane %v367, 7
      %v370 = vshll.u32 %v331, 16
      %v372 = vor.u32 %v369, %v370
      %v373 = vrot.slane %v369, 4
      %v375 = vshrl.u32 %v332, 16
      %v377 = vrot.slane %v375, 7
      %v378 = vshll.u32 %v332, 16
      %v380 = vor.u32 %v377, %v378
      %v381 = vsel %vm365, %v373, %v380
      %v382 = vrot.slane %v377, 4
      %v384 = vshrl.u32 %v333, 16
      %v386 = vrot.slane %v384, 7
      %v387 = vshll.u32 %v333, 16
      %v389 = vor.u32 %v386, %v387
      %v390 = vrot.slane %v386, 4
      %v392 = vshrl.u32 %v334, 16
      %v394 = vrot.slane %v392, 7
      %v395 = vshll.u32 %v334, 16
      %v397 = vor.u32 %v394, %v395
      %v398 = vsel %vm365, %v390, %v397
      %v399 = vrot.slane %v394, 4
      %v401 = vshrl.u32 %v335, 16
      %v403 = vrot.slane %v401, 7
      %v404 = vshll.u32 %v335, 16
      %v406 = vor.u32 %v403, %v404
      %v407 = vrot.slane %v403, 4
      %v409 = vshrl.u32 %v336, 16
      %v411 = vrot.slane %v409, 7
      %v412 = vshll.u32 %v336, 16
      %v414 = vor.u32 %v411, %v412
      %v415 = vsel %vm365, %v407, %v414
      %v416 = vrot.slane %v411, 4
      %v418 = vshrl.u32 %v337, 16
      %v420 = vrot.slane %v418, 7
      %v421 = vshll.u32 %v337, 16
      %v423 = vor.u32 %v420, %v421
      %v424 = vrot.slane %v420, 4
      %v426 = vshrl.u32 %v338, 16
      %v428 = vrot.slane %v426, 7
      %v429 = vshll.u32 %v338, 16
      %v431 = vor.u32 %v428, %v429
      %v432 = vsel %vm365, %v424, %v431
      %v433 = vrot.slane %v428, 4
      %v435 = vshrl.u32 %v339, 16
      %v437 = vrot.slane %v435, 7
      %v438 = vshll.u32 %v339, 16
      %v440 = vor.u32 %v437, %v438
      %v441 = vrot.slane %v437, 4
      %v443 = vshrl.u32 %v340, 16
      %v445 = vrot.slane %v443, 7
      %v446 = vshll.u32 %v340, 16
      %v448 = vor.u32 %v445, %v446
      %v449 = vsel %vm365, %v441, %v448
      %v450 = vrot.slane %v445, 4
      %v452 = vshrl.u32 %v341, 16
      %v454 = vrot.slane %v452, 7
      %v455 = vshll.u32 %v341, 16
      %v457 = vor.u32 %v454, %v455
      %v458 = vrot.slane %v454, 4
      %v460 = vshrl.u32 %v342, 16
      %v462 = vrot.slane %v460, 7
      %v463 = vshll.u32 %v342, 16
      %v465 = vor.u32 %v462, %v463
      %v466 = vsel %vm365, %v458, %v465
      %v467 = vrot.slane %v462, 4
      %v469 = vshrl.u32 %v343, 16
      %v471 = vrot.slane %v469, 7
      %v472 = vshll.u32 %v343, 16
      %v474 = vor.u32 %v471, %v472
      %v475 = vrot.slane %v471, 4
      %v477 = vshrl.u32 %v344, 16
      %v479 = vrot.slane %v477, 7
      %v480 = vshll.u32 %v344, 16
      %v482 = vor.u32 %v479, %v480
      %v483 = vsel %vm365, %v475, %v482
      %v484 = vrot.slane %v479, 4
      %v486 = vshrl.u32 %v345, 16
      %v488 = vrot.slane %v486, 7
      %v489 = vshll.u32 %v345, 16
      %v491 = vor.u32 %v488, %v489
      %v492 = vrot.slane %v488, 4
      %v494 = vshrl.u32 %v346, 16
      %v496 = vrot.slane %v494, 7
      %v497 = vshll.u32 %v346, 16
      %v499 = vor.u32 %v496, %v497
      %v500 = vsel %vm365, %v492, %v499
      %v501 = vrot.slane %v496, 4
      %v503 = vshrl.u32 %v347, 16
      %v505 = vrot.slane %v503, 7
      %v506 = vshll.u32 %v347, 16
      %v508 = vor.u32 %v505, %v506
      %v509 = vrot.slane %v505, 4
      %v511 = vshrl.u32 %v348, 16
      %v513 = vrot.slane %v511, 7
      %v514 = vshll.u32 %v348, 16
      %v516 = vor.u32 %v513, %v514
      %v517 = vsel %vm365, %v509, %v516
      %v518 = vrot.slane %v513, 4
      %v520 = vshrl.u32 %v349, 16
      %v522 = vrot.slane %v520, 7
      %v523 = vshll.u32 %v349, 16
      %v525 = vor.u32 %v522, %v523
      %v526 = vrot.slane %v522, 4
      %v528 = vshrl.u32 %v350, 16
      %v530 = vrot.slane %v528, 7
      %v531 = vshll.u32 %v350, 16
      %v533 = vor.u32 %v530, %v531
      %v534 = vsel %vm365, %v526, %v533
      %v535 = vrot.slane %v530, 4
      %v537 = vshrl.u32 %v351, 16
      %v539 = vrot.slane %v537, 7
      %v540 = vshll.u32 %v351, 16
      %v542 = vor.u32 %v539, %v540
      %v543 = vrot.slane %v539, 4
      %v545 = vshrl.u32 %v352, 16
      %v547 = vrot.slane %v545, 7
      %v548 = vshll.u32 %v352, 16
      %v550 = vor.u32 %v547, %v548
      %v551 = vsel %vm365, %v543, %v550
      %v552 = vrot.slane %v547, 4
      %v554 = vshrl.u32 %v353, 16
      %v556 = vrot.slane %v554, 7
      %v557 = vshll.u32 %v353, 16
      %v559 = vor.u32 %v556, %v557
      %v560 = vrot.slane %v556, 4
      %v562 = vshrl.u32 %v354, 16
      %v564 = vrot.slane %v562, 7
      %v565 = vshll.u32 %v354, 16
      %v567 = vor.u32 %v564, %v565
      %v568 = vsel %vm365, %v560, %v567
      %v569 = vrot.slane %v564, 4
      %v571 = vshrl.u32 %v355, 16
      %v573 = vrot.slane %v571, 7
      %v574 = vshll.u32 %v355, 16
      %v576 = vor.u32 %v573, %v574
      %v577 = vrot.slane %v573, 4
      %v579 = vshrl.u32 %v356, 16
      %v581 = vrot.slane %v579, 7
      %v582 = vshll.u32 %v356, 16
      %v584 = vor.u32 %v581, %v582
      %v585 = vsel %vm365, %v577, %v584
      %v586 = vrot.slane %v581, 4
      %v588 = vshrl.u32 %v357, 16
      %v590 = vrot.slane %v588, 7
      %v591 = vshll.u32 %v357, 16
      %v593 = vor.u32 %v590, %v591
      %v594 = vrot.slane %v590, 4
      %v596 = vshrl.u32 %v358, 16
      %v598 = vrot.slane %v596, 7
      %v599 = vshll.u32 %v358, 16
      %v601 = vor.u32 %v598, %v599
      %v602 = vsel %vm365, %v594, %v601
      %v603 = vrot.slane %v598, 4
      %v605 = vshrl.u32 %v359, 16
      %v607 = vrot.slane %v605, 7
      %v608 = vshll.u32 %v359, 16
      %v610 = vor.u32 %v607, %v608
      %v611 = vrot.slane %v607, 4
      %v613 = vshrl.u32 %v360, 16
      %v615 = vrot.slane %v613, 7
      %v616 = vshll.u32 %v360, 16
      %v618 = vor.u32 %v615, %v616
      %v619 = vsel %vm365, %v611, %v618
      %v620 = vrot.slane %v615, 4
      %v622 = vshrl.u32 %v361, 16
      %v624 = vrot.slane %v622, 7
      %v625 = vshll.u32 %v361, 16
      %v627 = vor.u32 %v624, %v625
      %v628 = vrot.slane %v624, 4
      %v630 = vshrl.u32 %v362, 16
      %v632 = vrot.slane %v630, 7
      %v633 = vshll.u32 %v362, 16
      %v635 = vor.u32 %v632, %v633
      %v636 = vsel %vm365, %v628, %v635
      %v637 = vrot.slane %v632, 4
      %s686 = scalar_lea.vmem [#allocation2], 12
      %vm687 = vcmask 1043456
      %vm688 = vsmask.f32 7938
      %vm689 = vmand %vm687, %vm688
      %v690 = vld [vmem:[%s686] sm:$0xf]
      %v691 = vsel %vm689, %v372, %v690
      %692 = vst [vmem:[%s686] sm:$0xf] %v691
      %693 = vst [vmem:[%s686 + $0x4] sm:$0xf] %v381
      %vm694 = vcmask 1040384
      %vm695 = vmand %vm694, %vm363
      %v696 = vld [vmem:[%s686 + $0x8] sm:$0x1]
      %v697 = vsel %vm695, %v382, %v696
      %698 = vst [vmem:[%s686 + $0x8] sm:$0x1] %v697
      %v699 = vld [vmem:[%s686 + $0xc] sm:$0xf]
      %v700 = vsel %vm689, %v389, %v699
      %701 = vst [vmem:[%s686 + $0xc] sm:$0xf] %v700
      %702 = vst [vmem:[%s686 + $0x10] sm:$0xf] %v398
      %v703 = vld [vmem:[%s686 + $0x14] sm:$0x1]
      %v704 = vsel %vm695, %v399, %v703
      %705 = vst [vmem:[%s686 + $0x14] sm:$0x1] %v704
      %v706 = vld [vmem:[%s686 + $0x18] sm:$0xf]
      %v707 = vsel %vm689, %v406, %v706
      %708 = vst [vmem:[%s686 + $0x18] sm:$0xf] %v707
      %709 = vst [vmem:[%s686 + $0x1c] sm:$0xf] %v415
      %v710 = vld [vmem:[%s686 + $0x20] sm:$0x1]
      %v711 = vsel %vm695, %v416, %v710
      %712 = vst [vmem:[%s686 + $0x20] sm:$0x1] %v711
      %v713 = vld [vmem:[%s686 + $0x24] sm:$0xf]
      %v714 = vsel %vm689, %v423, %v713
      %715 = vst [vmem:[%s686 + $0x24] sm:$0xf] %v714
      %716 = vst [vmem:[%s686 + $0x28] sm:$0xf] %v432
      %v717 = vld [vmem:[%s686 + $0x2c] sm:$0x1]
      %v718 = vsel %vm695, %v433, %v717
      %719 = vst [vmem:[%s686 + $0x2c] sm:$0x1] %v718
      %v720 = vld [vmem:[%s686 + $0x30] sm:$0xf]
      %v721 = vsel %vm689, %v440, %v720
      %722 = vst [vmem:[%s686 + $0x30] sm:$0xf] %v721
      %723 = vst [vmem:[%s686 + $0x34] sm:$0xf] %v449
      %v724 = vld [vmem:[%s686 + $0x38] sm:$0x1]
      %v725 = vsel %vm695, %v450, %v724
      %726 = vst [vmem:[%s686 + $0x38] sm:$0x1] %v725
      %v727 = vld [vmem:[%s686 + $0x3c] sm:$0xf]
      %v728 = vsel %vm689, %v457, %v727
      %729 = vst [vmem:[%s686 + $0x3c] sm:$0xf] %v728
      %730 = vst [vmem:[%s686 + $0x40] sm:$0xf] %v466
      %v731 = vld [vmem:[%s686 + $0x44] sm:$0x1]
      %v732 = vsel %vm695, %v467, %v731
      %733 = vst [vmem:[%s686 + $0x44] sm:$0x1] %v732
      %v734 = vld [vmem:[%s686 + $0x48] sm:$0xf]
      %v735 = vsel %vm689, %v474, %v734
      %736 = vst [vmem:[%s686 + $0x48] sm:$0xf] %v735
      %737 = vst [vmem:[%s686 + $0x4c] sm:$0xf] %v483
      %v738 = vld [vmem:[%s686 + $0x50] sm:$0x1]
      %v739 = vsel %vm695, %v484, %v738
      %740 = vst [vmem:[%s686 + $0x50] sm:$0x1] %v739
      %v741 = vld [vmem:[%s686 + $0x54] sm:$0xf]
      %v742 = vsel %vm689, %v491, %v741
      %743 = vst [vmem:[%s686 + $0x54] sm:$0xf] %v742
      %744 = vst [vmem:[%s686 + $0x58] sm:$0xf] %v500
      %v745 = vld [vmem:[%s686 + $0x5c] sm:$0x1]
      %v746 = vsel %vm695, %v501, %v745
      %747 = vst [vmem:[%s686 + $0x5c] sm:$0x1] %v746
      %v748 = vld [vmem:[%s686 + $0x60] sm:$0xf]
      %v749 = vsel %vm689, %v508, %v748
      %750 = vst [vmem:[%s686 + $0x60] sm:$0xf] %v749
      %751 = vst [vmem:[%s686 + $0x64] sm:$0xf] %v517
      %v752 = vld [vmem:[%s686 + $0x68] sm:$0x1]
      %v753 = vsel %vm695, %v518, %v752
      %754 = vst [vmem:[%s686 + $0x68] sm:$0x1] %v753
      %v755 = vld [vmem:[%s686 + $0x6c] sm:$0xf]
      %v756 = vsel %vm689, %v525, %v755
      %757 = vst [vmem:[%s686 + $0x6c] sm:$0xf] %v756
      %758 = vst [vmem:[%s686 + $0x70] sm:$0xf] %v534
      %v759 = vld [vmem:[%s686 + $0x74] sm:$0x1]
      %v760 = vsel %vm695, %v535, %v759
      %761 = vst [vmem:[%s686 + $0x74] sm:$0x1] %v760
      %v762 = vld [vmem:[%s686 + $0x78] sm:$0xf]
      %v763 = vsel %vm689, %v542, %v762
      %764 = vst [vmem:[%s686 + $0x78] sm:$0xf] %v763
      %765 = vst [vmem:[%s686 + $0x7c] sm:$0xf] %v551
      %v766 = vld [vmem:[%s686 + $0x80] sm:$0x1]
      %v767 = vsel %vm695, %v552, %v766
      %768 = vst [vmem:[%s686 + $0x80] sm:$0x1] %v767
      %v769 = vld [vmem:[%s686 + $0x84] sm:$0xf]
      %v770 = vsel %vm689, %v559, %v769
      %771 = vst [vmem:[%s686 + $0x84] sm:$0xf] %v770
      %772 = vst [vmem:[%s686 + $0x88] sm:$0xf] %v568
      %v773 = vld [vmem:[%s686 + $0x8c] sm:$0x1]
      %v774 = vsel %vm695, %v569, %v773
      %775 = vst [vmem:[%s686 + $0x8c] sm:$0x1] %v774
      %v776 = vld [vmem:[%s686 + $0x90] sm:$0xf]
      %v777 = vsel %vm689, %v576, %v776
      %778 = vst [vmem:[%s686 + $0x90] sm:$0xf] %v777
      %779 = vst [vmem:[%s686 + $0x94] sm:$0xf] %v585
      %v780 = vld [vmem:[%s686 + $0x98] sm:$0x1]
      %v781 = vsel %vm695, %v586, %v780
      %782 = vst [vmem:[%s686 + $0x98] sm:$0x1] %v781
      %v783 = vld [vmem:[%s686 + $0x9c] sm:$0xf]
      %v784 = vsel %vm689, %v593, %v783
      %785 = vst [vmem:[%s686 + $0x9c] sm:$0xf] %v784
      %786 = vst [vmem:[%s686 + $0xa0] sm:$0xf] %v602
      %v787 = vld [vmem:[%s686 + $0xa4] sm:$0x1]
      %v788 = vsel %vm695, %v603, %v787
      %789 = vst [vmem:[%s686 + $0xa4] sm:$0x1] %v788
      %v790 = vld [vmem:[%s686 + $0xa8] sm:$0xf]
      %v791 = vsel %vm689, %v610, %v790
      %792 = vst [vmem:[%s686 + $0xa8] sm:$0xf] %v791
      %793 = vst [vmem:[%s686 + $0xac] sm:$0xf] %v619
      %v794 = vld [vmem:[%s686 + $0xb0] sm:$0x1]
      %v795 = vsel %vm695, %v620, %v794
      %796 = vst [vmem:[%s686 + $0xb0] sm:$0x1] %v795
      %v797 = vld [vmem:[%s686 + $0xb4] sm:$0xf]
      %v798 = vsel %vm689, %v627, %v797
      %799 = vst [vmem:[%s686 + $0xb4] sm:$0xf] %v798
      %800 = vst [vmem:[%s686 + $0xb8] sm:$0xf] %v636
      %v801 = vld [vmem:[%s686 + $0xbc] sm:$0x1]
      %v802 = vsel %vm695, %v637, %v801
      %803 = vst [vmem:[%s686 + $0xbc] sm:$0x1] %v802
      %v804 = vld [vmem:[#allocation2] sm:$0xf]
      %v805 = vld [vmem:[#allocation2 + $0x4] sm:$0xf]
      %v806 = vld [vmem:[#allocation2 + $0xc] sm:$0xf]
      %v807 = vld [vmem:[#allocation2 + $0x10] sm:$0xf]
      %v808 = vld [vmem:[#allocation2 + $0x18] sm:$0xf]
      %v809 = vld [vmem:[#allocation2 + $0x1c] sm:$0xf]
      %v810 = vld [vmem:[#allocation2 + $0x24] sm:$0xf]
      %v811 = vld [vmem:[#allocation2 + $0x28] sm:$0xf]
      %v812 = vld [vmem:[#allocation2 + $0x30] sm:$0xf]
      %v813 = vld [vmem:[#allocation2 + $0x34] sm:$0xf]
      %v814 = vld [vmem:[#allocation2 + $0x3c] sm:$0xf]
      %v815 = vld [vmem:[#allocation2 + $0x40] sm:$0xf]
      %v816 = vld [vmem:[#allocation2 + $0x48] sm:$0xf]
      %v817 = vld [vmem:[#allocation2 + $0x4c] sm:$0xf]
      %v818 = vld [vmem:[#allocation2 + $0x54] sm:$0xf]
      %v819 = vld [vmem:[#allocation2 + $0x58] sm:$0xf]
      %v820 = vld [vmem:[#allocation2 + $0x60] sm:$0xf]
      %v821 = vld [vmem:[#allocation2 + $0x64] sm:$0xf]
      %v822 = vld [vmem:[#allocation2 + $0x6c] sm:$0xf]
      %v823 = vld [vmem:[#allocation2 + $0x70] sm:$0xf]
      %v824 = vld [vmem:[#allocation2 + $0x78] sm:$0xf]
      %v825 = vld [vmem:[#allocation2 + $0x7c] sm:$0xf]
      %v826 = vld [vmem:[#allocation2 + $0x84] sm:$0xf]
      %v827 = vld [vmem:[#allocation2 + $0x88] sm:$0xf]
      %v828 = vld [vmem:[#allocation2 + $0x90] sm:$0xf]
      %v829 = vld [vmem:[#allocation2 + $0x94] sm:$0xf]
      %v830 = vld [vmem:[#allocation2 + $0x9c] sm:$0xf]
      %v831 = vld [vmem:[#allocation2 + $0xa0] sm:$0xf]
      %v832 = vld [vmem:[#allocation2 + $0xa8] sm:$0xf]
      %v833 = vld [vmem:[#allocation2 + $0xac] sm:$0xf]
      %v834 = vld [vmem:[#allocation2 + $0xb4] sm:$0xf]
      %v835 = vld [vmem:[#allocation2 + $0xb8] sm:$0xf]
      %v836 = vld [vmem:[%s1] sm:$0xf]
      %v837 = vld [vmem:[%s1 + $0x4] sm:$0xf]
      %v838 = vld [vmem:[%s1 + $0x8] sm:$0xf]
      %v839 = vld [vmem:[%s1 + $0xc] sm:$0xf]
      %v840 = vld [vmem:[%s1 + $0x10] sm:$0xf]
      %v841 = vld [vmem:[%s1 + $0x14] sm:$0xf]
      %v842 = vld [vmem:[%s1 + $0x18] sm:$0xf]
      %v843 = vld [vmem:[%s1 + $0x1c] sm:$0xf]
      %v844 = vld [vmem:[%s1 + $0x20] sm:$0xf]
      %v845 = vld [vmem:[%s1 + $0x24] sm:$0xf]
      %v846 = vld [vmem:[%s1 + $0x28] sm:$0xf]
      %v847 = vld [vmem:[%s1 + $0x2c] sm:$0xf]
      %v848 = vld [vmem:[%s1 + $0x30] sm:$0xf]
      %v849 = vld [vmem:[%s1 + $0x34] sm:$0xf]
      %v850 = vld [vmem:[%s1 + $0x38] sm:$0xf]
      %v851 = vld [vmem:[%s1 + $0x3c] sm:$0xf]
      %v852 = vld [vmem:[#allocation2 + $0x8] sm:$0x1]
      %v853 = vld [vmem:[#allocation2 + $0x14] sm:$0x1]
      %v854 = vld [vmem:[#allocation2 + $0x20] sm:$0x1]
      %v855 = vld [vmem:[#allocation2 + $0x2c] sm:$0x1]
      %v856 = vld [vmem:[#allocation2 + $0x38] sm:$0x1]
      %v857 = vld [vmem:[#allocation2 + $0x44] sm:$0x1]
      %v858 = vld [vmem:[#allocation2 + $0x50] sm:$0x1]
      %v859 = vld [vmem:[#allocation2 + $0x5c] sm:$0x1]
      %v860 = vld [vmem:[#allocation2 + $0x68] sm:$0x1]
      %v861 = vld [vmem:[#allocation2 + $0x74] sm:$0x1]
      %v862 = vld [vmem:[#allocation2 + $0x80] sm:$0x1]
      %v863 = vld [vmem:[#allocation2 + $0x8c] sm:$0x1]
      %v864 = vld [vmem:[#allocation2 + $0x98] sm:$0x1]
      %v865 = vld [vmem:[#allocation2 + $0xa4] sm:$0x1]
      %v866 = vld [vmem:[#allocation2 + $0xb0] sm:$0x1]
      %v867 = vld [vmem:[#allocation2 + $0xbc] sm:$0x1]
      %vm868 = vsmask.f32 3328
      %vm869 = vsmask.f32 7440
      %vm870 = vmor %vm868, %vm869
      %v872 = vshrl.u32 %v804, 16
      %v874 = vrot.slane %v872, 4
      %v875 = vshll.u32 %v804, 16
      %v877 = vrot.slane %v875, 5
      %v878 = vor.u32 %v874, %v877
      %v879 = vrot.slane %v878, 4
      %v881 = vshll.u32 %v805, 16
      %v883 = vrot.slane %v881, 5
      %v884 = vsel %vm870, %v879, %v883
      %v885 = vshrl.u32 %v805, 16
      %v887 = vrot.slane %v885, 4
      %v888 = vor.u32 %v887, %v883
      %v889 = vrot.slane %v888, 4
      %v891 = vshll.u32 %v852, 16
      %v893 = vrot.slane %v891, 5
      %v894 = vsel %vm870, %v889, %v893
      %v896 = vshrl.u32 %v806, 16
      %v898 = vrot.slane %v896, 4
      %v899 = vshll.u32 %v806, 16
      %v901 = vrot.slane %v899, 5
      %v902 = vor.u32 %v898, %v901
      %v903 = vrot.slane %v902, 4
      %v905 = vshll.u32 %v807, 16
      %v907 = vrot.slane %v905, 5
      %v908 = vsel %vm870, %v903, %v907
      %v909 = vshrl.u32 %v807, 16
      %v911 = vrot.slane %v909, 4
      %v912 = vor.u32 %v911, %v907
      %v913 = vrot.slane %v912, 4
      %v915 = vshll.u32 %v853, 16
      %v917 = vrot.slane %v915, 5
      %v918 = vsel %vm870, %v913, %v917
      %v920 = vshrl.u32 %v808, 16
      %v922 = vrot.slane %v920, 4
      %v923 = vshll.u32 %v808, 16
      %v925 = vrot.slane %v923, 5
      %v926 = vor.u32 %v922, %v925
      %v927 = vrot.slane %v926, 4
      %v929 = vshll.u32 %v809, 16
      %v931 = vrot.slane %v929, 5
      %v932 = vsel %vm870, %v927, %v931
      %v933 = vshrl.u32 %v809, 16
      %v935 = vrot.slane %v933, 4
      %v936 = vor.u32 %v935, %v931
      %v937 = vrot.slane %v936, 4
      %v939 = vshll.u32 %v854, 16
      %v941 = vrot.slane %v939, 5
      %v942 = vsel %vm870, %v937, %v941
      %v944 = vshrl.u32 %v810, 16
      %v946 = vrot.slane %v944, 4
      %v947 = vshll.u32 %v810, 16
      %v949 = vrot.slane %v947, 5
      %v950 = vor.u32 %v946, %v949
      %v951 = vrot.slane %v950, 4
      %v953 = vshll.u32 %v811, 16
      %v955 = vrot.slane %v953, 5
      %v956 = vsel %vm870, %v951, %v955
      %v957 = vshrl.u32 %v811, 16
      %v959 = vrot.slane %v957, 4
      %v960 = vor.u32 %v959, %v955
      %v961 = vrot.slane %v960, 4
      %v963 = vshll.u32 %v855, 16
      %v965 = vrot.slane %v963, 5
      %v966 = vsel %vm870, %v961, %v965
      %v968 = vshrl.u32 %v812, 16
      %v970 = vrot.slane %v968, 4
      %v971 = vshll.u32 %v812, 16
      %v973 = vrot.slane %v971, 5
      %v974 = vor.u32 %v970, %v973
      %v975 = vrot.slane %v974, 4
      %v977 = vshll.u32 %v813, 16
      %v979 = vrot.slane %v977, 5
      %v980 = vsel %vm870, %v975, %v979
      %v981 = vshrl.u32 %v813, 16
      %v983 = vrot.slane %v981, 4
      %v984 = vor.u32 %v983, %v979
      %v985 = vrot.slane %v984, 4
      %v987 = vshll.u32 %v856, 16
      %v989 = vrot.slane %v987, 5
      %v990 = vsel %vm870, %v985, %v989
      %v992 = vshrl.u32 %v814, 16
      %v994 = vrot.slane %v992, 4
      %v995 = vshll.u32 %v814, 16
      %v997 = vrot.slane %v995, 5
      %v998 = vor.u32 %v994, %v997
      %v999 = vrot.slane %v998, 4
      %v1001 = vshll.u32 %v815, 16
      %v1003 = vrot.slane %v1001, 5
      %v1004 = vsel %vm870, %v999, %v1003
      %v1005 = vshrl.u32 %v815, 16
      %v1007 = vrot.slane %v1005, 4
      %v1008 = vor.u32 %v1007, %v1003
      %v1009 = vrot.slane %v1008, 4
      %v1011 = vshll.u32 %v857, 16
      %v1013 = vrot.slane %v1011, 5
      %v1014 = vsel %vm870, %v1009, %v1013
      %v1016 = vshrl.u32 %v816, 16
      %v1018 = vrot.slane %v1016, 4
      %v1019 = vshll.u32 %v816, 16
      %v1021 = vrot.slane %v1019, 5
      %v1022 = vor.u32 %v1018, %v1021
      %v1023 = vrot.slane %v1022, 4
      %v1025 = vshll.u32 %v817, 16
      %v1027 = vrot.slane %v1025, 5
      %v1028 = vsel %vm870, %v1023, %v1027
      %v1029 = vshrl.u32 %v817, 16
      %v1031 = vrot.slane %v1029, 4
      %v1032 = vor.u32 %v1031, %v1027
      %v1033 = vrot.slane %v1032, 4
      %v1035 = vshll.u32 %v858, 16
      %v1037 = vrot.slane %v1035, 5
      %v1038 = vsel %vm870, %v1033, %v1037
      %v1040 = vshrl.u32 %v818, 16
      %v1042 = vrot.slane %v1040, 4
      %v1043 = vshll.u32 %v818, 16
      %v1045 = vrot.slane %v1043, 5
      %v1046 = vor.u32 %v1042, %v1045
      %v1047 = vrot.slane %v1046, 4
      %v1049 = vshll.u32 %v819, 16
      %v1051 = vrot.slane %v1049, 5
      %v1052 = vsel %vm870, %v1047, %v1051
      %v1053 = vshrl.u32 %v819, 16
      %v1055 = vrot.slane %v1053, 4
      %v1056 = vor.u32 %v1055, %v1051
      %v1057 = vrot.slane %v1056, 4
      %v1059 = vshll.u32 %v859, 16
      %v1061 = vrot.slane %v1059, 5
      %v1062 = vsel %vm870, %v1057, %v1061
      %v1064 = vshrl.u32 %v820, 16
      %v1066 = vrot.slane %v1064, 4
      %v1067 = vshll.u32 %v820, 16
      %v1069 = vrot.slane %v1067, 5
      %v1070 = vor.u32 %v1066, %v1069
      %v1071 = vrot.slane %v1070, 4
      %v1073 = vshll.u32 %v821, 16
      %v1075 = vrot.slane %v1073, 5
      %v1076 = vsel %vm870, %v1071, %v1075
      %v1077 = vshrl.u32 %v821, 16
      %v1079 = vrot.slane %v1077, 4
      %v1080 = vor.u32 %v1079, %v1075
      %v1081 = vrot.slane %v1080, 4
      %v1083 = vshll.u32 %v860, 16
      %v1085 = vrot.slane %v1083, 5
      %v1086 = vsel %vm870, %v1081, %v1085
      %v1088 = vshrl.u32 %v822, 16
      %v1090 = vrot.slane %v1088, 4
      %v1091 = vshll.u32 %v822, 16
      %v1093 = vrot.slane %v1091, 5
      %v1094 = vor.u32 %v1090, %v1093
      %v1095 = vrot.slane %v1094, 4
      %v1097 = vshll.u32 %v823, 16
      %v1099 = vrot.slane %v1097, 5
      %v1100 = vsel %vm870, %v1095, %v1099
      %v1101 = vshrl.u32 %v823, 16
      %v1103 = vrot.slane %v1101, 4
      %v1104 = vor.u32 %v1103, %v1099
      %v1105 = vrot.slane %v1104, 4
      %v1107 = vshll.u32 %v861, 16
      %v1109 = vrot.slane %v1107, 5
      %v1110 = vsel %vm870, %v1105, %v1109
      %v1112 = vshrl.u32 %v824, 16
      %v1114 = vrot.slane %v1112, 4
      %v1115 = vshll.u32 %v824, 16
      %v1117 = vrot.slane %v1115, 5
      %v1118 = vor.u32 %v1114, %v1117
      %v1119 = vrot.slane %v1118, 4
      %v1121 = vshll.u32 %v825, 16
      %v1123 = vrot.slane %v1121, 5
      %v1124 = vsel %vm870, %v1119, %v1123
      %v1125 = vshrl.u32 %v825, 16
      %v1127 = vrot.slane %v1125, 4
      %v1128 = vor.u32 %v1127, %v1123
      %v1129 = vrot.slane %v1128, 4
      %v1131 = vshll.u32 %v862, 16
      %v1133 = vrot.slane %v1131, 5
      %v1134 = vsel %vm870, %v1129, %v1133
      %v1136 = vshrl.u32 %v826, 16
      %v1138 = vrot.slane %v1136, 4
      %v1139 = vshll.u32 %v826, 16
      %v1141 = vrot.slane %v1139, 5
      %v1142 = vor.u32 %v1138, %v1141
      %v1143 = vrot.slane %v1142, 4
      %v1145 = vshll.u32 %v827, 16
      %v1147 = vrot.slane %v1145, 5
      %v1148 = vsel %vm870, %v1143, %v1147
      %v1149 = vshrl.u32 %v827, 16
      %v1151 = vrot.slane %v1149, 4
      %v1152 = vor.u32 %v1151, %v1147
      %v1153 = vrot.slane %v1152, 4
      %v1155 = vshll.u32 %v863, 16
      %v1157 = vrot.slane %v1155, 5
      %v1158 = vsel %vm870, %v1153, %v1157
      %v1160 = vshrl.u32 %v828, 16
      %v1162 = vrot.slane %v1160, 4
      %v1163 = vshll.u32 %v828, 16
      %v1165 = vrot.slane %v1163, 5
      %v1166 = vor.u32 %v1162, %v1165
      %v1167 = vrot.slane %v1166, 4
      %v1169 = vshll.u32 %v829, 16
      %v1171 = vrot.slane %v1169, 5
      %v1172 = vsel %vm870, %v1167, %v1171
      %v1173 = vshrl.u32 %v829, 16
      %v1175 = vrot.slane %v1173, 4
      %v1176 = vor.u32 %v1175, %v1171
      %v1177 = vrot.slane %v1176, 4
      %v1179 = vshll.u32 %v864, 16
      %v1181 = vrot.slane %v1179, 5
      %v1182 = vsel %vm870, %v1177, %v1181
      %v1184 = vshrl.u32 %v830, 16
      %v1186 = vrot.slane %v1184, 4
      %v1187 = vshll.u32 %v830, 16
      %v1189 = vrot.slane %v1187, 5
      %v1190 = vor.u32 %v1186, %v1189
      %v1191 = vrot.slane %v1190, 4
      %v1193 = vshll.u32 %v831, 16
      %v1195 = vrot.slane %v1193, 5
      %v1196 = vsel %vm870, %v1191, %v1195
      %v1197 = vshrl.u32 %v831, 16
      %v1199 = vrot.slane %v1197, 4
      %v1200 = vor.u32 %v1199, %v1195
      %v1201 = vrot.slane %v1200, 4
      %v1203 = vshll.u32 %v865, 16
      %v1205 = vrot.slane %v1203, 5
      %v1206 = vsel %vm870, %v1201, %v1205
      %v1208 = vshrl.u32 %v832, 16
      %v1210 = vrot.slane %v1208, 4
      %v1211 = vshll.u32 %v832, 16
      %v1213 = vrot.slane %v1211, 5
      %v1214 = vor.u32 %v1210, %v1213
      %v1215 = vrot.slane %v1214, 4
      %v1217 = vshll.u32 %v833, 16
      %v1219 = vrot.slane %v1217, 5
      %v1220 = vsel %vm870, %v1215, %v1219
      %v1221 = vshrl.u32 %v833, 16
      %v1223 = vrot.slane %v1221, 4
      %v1224 = vor.u32 %v1223, %v1219
      %v1225 = vrot.slane %v1224, 4
      %v1227 = vshll.u32 %v866, 16
      %v1229 = vrot.slane %v1227, 5
      %v1230 = vsel %vm870, %v1225, %v1229
      %v1232 = vshrl.u32 %v834, 16
      %v1234 = vrot.slane %v1232, 4
      %v1235 = vshll.u32 %v834, 16
      %v1237 = vrot.slane %v1235, 5
      %v1238 = vor.u32 %v1234, %v1237
      %v1239 = vrot.slane %v1238, 4
      %v1241 = vshll.u32 %v835, 16
      %v1243 = vrot.slane %v1241, 5
      %v1244 = vsel %vm870, %v1239, %v1243
      %v1245 = vshrl.u32 %v835, 16
      %v1247 = vrot.slane %v1245, 4
      %v1248 = vor.u32 %v1247, %v1243
      %v1249 = vrot.slane %v1248, 4
      %v1251 = vshll.u32 %v867, 16
      %v1253 = vrot.slane %v1251, 5
      %v1254 = vsel %vm870, %v1249, %v1253
      %s1255 = scalar_lea.vmem %s1, 64
      %v1256 = vld [vmem:[%s1255] sm:$0xf]
      %v1257 = vld [vmem:[%s1255 + $0x4] sm:$0xf]
      %v1258 = vld [vmem:[%s1255 + $0x8] sm:$0xf]
      %v1259 = vld [vmem:[%s1255 + $0xc] sm:$0xf]
      %v1260 = vld [vmem:[%s1255 + $0x10] sm:$0xf]
      %v1261 = vld [vmem:[%s1255 + $0x14] sm:$0xf]
      %v1262 = vld [vmem:[%s1255 + $0x18] sm:$0xf]
      %v1263 = vld [vmem:[%s1255 + $0x1c] sm:$0xf]
      %v1264 = vld [vmem:[%s1255 + $0x20] sm:$0xf]
      %v1265 = vld [vmem:[%s1255 + $0x24] sm:$0xf]
      %v1266 = vld [vmem:[%s1255 + $0x28] sm:$0xf]
      %v1267 = vld [vmem:[%s1255 + $0x2c] sm:$0xf]
      %v1268 = vld [vmem:[%s1255 + $0x30] sm:$0xf]
      %v1269 = vld [vmem:[%s1255 + $0x34] sm:$0xf]
      %v1270 = vld [vmem:[%s1255 + $0x38] sm:$0xf]
      %v1271 = vld [vmem:[%s1255 + $0x3c] sm:$0xf]
      %v1272 = vunpack.c.l.b16 %v884
      %v1273 = vunpack.c.l.b16 %v894
      %v1274 = vunpack.c.l.b16 %v908
      %v1275 = vunpack.c.l.b16 %v918
      %v1276 = vunpack.c.l.b16 %v932
      %v1277 = vunpack.c.l.b16 %v942
      %v1278 = vunpack.c.l.b16 %v956
      %v1279 = vunpack.c.l.b16 %v966
      %v1280 = vunpack.c.l.b16 %v980
      %v1281 = vunpack.c.l.b16 %v990
      %v1282 = vunpack.c.l.b16 %v1004
      %v1283 = vunpack.c.l.b16 %v1014
      %v1284 = vunpack.c.l.b16 %v1028
      %v1285 = vunpack.c.l.b16 %v1038
      %v1286 = vunpack.c.l.b16 %v1052
      %v1287 = vunpack.c.l.b16 %v1062
      %v1288 = vunpack.c.l.b16 %v1076
      %v1289 = vunpack.c.l.b16 %v1086
      %v1290 = vunpack.c.l.b16 %v1100
      %v1291 = vunpack.c.l.b16 %v1110
      %v1292 = vunpack.c.l.b16 %v1124
      %v1293 = vunpack.c.l.b16 %v1134
      %v1294 = vunpack.c.l.b16 %v1148
      %v1295 = vunpack.c.l.b16 %v1158
      %v1296 = vunpack.c.l.b16 %v1172
      %v1297 = vunpack.c.l.b16 %v1182
      %v1298 = vunpack.c.l.b16 %v1196
      %v1299 = vunpack.c.l.b16 %v1206
      %v1300 = vunpack.c.l.b16 %v1220
      %v1301 = vunpack.c.l.b16 %v1230
      %v1302 = vunpack.c.l.b16 %v1244
      %v1303 = vunpack.c.l.b16 %v1254
      %v1304 = vpack.c.b16 %v1273, %v1272
      %v1305 = vpack.c.b16 %v1275, %v1274
      %v1306 = vpack.c.b16 %v1277, %v1276
      %v1307 = vpack.c.b16 %v1279, %v1278
      %v1308 = vpack.c.b16 %v1281, %v1280
      %v1309 = vpack.c.b16 %v1283, %v1282
      %v1310 = vpack.c.b16 %v1285, %v1284
      %v1311 = vpack.c.b16 %v1287, %v1286
      %v1312 = vpack.c.b16 %v1289, %v1288
      %v1313 = vpack.c.b16 %v1291, %v1290
      %v1314 = vpack.c.b16 %v1293, %v1292
      %v1315 = vpack.c.b16 %v1295, %v1294
      %v1316 = vpack.c.b16 %v1297, %v1296
      %v1317 = vpack.c.b16 %v1299, %v1298
      %v1318 = vpack.c.b16 %v1301, %v1300
      %v1319 = vpack.c.b16 %v1303, %v1302
      %v1352 = vunpack.c.l.b16 %v1256
      %v1353 = vunpack.c.l.b16 %v1257
      %v1354 = vunpack.c.l.b16 %v1258
      %v1355 = vunpack.c.l.b16 %v1259
      %v1356 = vunpack.c.l.b16 %v1260
      %v1357 = vunpack.c.l.b16 %v1261
      %v1358 = vunpack.c.l.b16 %v1262
      %v1359 = vunpack.c.l.b16 %v1263
      %v1360 = vunpack.c.l.b16 %v1264
      %v1361 = vunpack.c.l.b16 %v1265
      %v1362 = vunpack.c.l.b16 %v1266
      %v1363 = vunpack.c.l.b16 %v1267
      %v1364 = vunpack.c.l.b16 %v1268
      %v1365 = vunpack.c.l.b16 %v1269
      %v1366 = vunpack.c.l.b16 %v1270
      %v1367 = vunpack.c.l.b16 %v1271
      %v1368 = vpack.c.b16 %v1353, %v1352
      %v1369 = vpack.c.b16 %v1355, %v1354
      %v1370 = vpack.c.b16 %v1357, %v1356
      %v1371 = vpack.c.b16 %v1359, %v1358
      %v1372 = vpack.c.b16 %v1361, %v1360
      %v1373 = vpack.c.b16 %v1363, %v1362
      %v1374 = vpack.c.b16 %v1365, %v1364
      %v1375 = vpack.c.b16 %v1367, %v1366
      %1384 = vmatprep.subr.bf16.mxu0 0
      %1385 = vmatpush1.bf16.msra.mxu0 %v1368
      %1386 = vmatprep.subr.bf16.mxu0 0
      %1387 = vmatpush1.bf16.msra.mxu0 %v1369
      %1388 = vmatprep.subr.bf16.mxu0 0
      %1389 = vmatpush1.bf16.msra.mxu0 %v1370
      %1390 = vmatprep.subr.bf16.mxu0 0
      %1391 = vmatpush1.bf16.msra.mxu0 %v1371
      %1392 = vmatprep.subr.bf16.mxu0 0
      %1393 = vmatpush1.bf16.msra.mxu0 %v1372
      %1394 = vmatprep.subr.bf16.mxu0 0
      %1395 = vmatpush1.bf16.msra.mxu0 %v1373
      %1396 = vmatprep.subr.bf16.mxu0 0
      %1397 = vmatpush1.bf16.msra.mxu0 %v1374
      %1398 = vmatprep.subr.bf16.mxu0 0
      %1399 = vmatpush1.bf16.msra.mxu0 %v1375
      %1400 = vmatprep.subr.bf16.mxu0 0
      %1401 = vmatpush1.bf16.msra.mxu0 0
      %1402 = vmatprep.subr.bf16.mxu0 0
      %1403 = vmatpush1.bf16.msra.mxu0 0
      %1404 = vmatprep.subr.bf16.mxu0 0
      %1405 = vmatpush1.bf16.msra.mxu0 0
      %1406 = vmatprep.subr.bf16.mxu0 0
      %1407 = vmatpush1.bf16.msra.mxu0 0
      %1408 = vmatprep.subr.bf16.mxu0 0
      %1409 = vmatpush1.bf16.msra.mxu0 0
      %1410 = vmatprep.subr.bf16.mxu0 0
      %1411 = vmatpush1.bf16.msra.mxu0 0
      %1412 = vmatprep.subr.bf16.mxu0 0
      %1413 = vmatpush1.bf16.msra.mxu0 0
      %1414 = vmatprep.subr.bf16.mxu0 0
      %1415 = vmatpush1.bf16.msra.mxu0 0
      %1416 = vmatprep.mubr.bf16.mxu0 0
      %1417 = vmatmul.mubr.bf16.gmra.mrb[0].mxu0 %v1304
      %v1418 = vpop.f32.mrb[0].mxu0
      %v1419 = vadd.f32 0.0, %v1418
      %v1420 = vpop.f32.mrb[0].mxu0
      %v1421 = vpop.f32.mrb[0].mxu0
      %v1422 = vadd.f32 0.0, %v1421
      %v1423 = vpop.f32.mrb[0].mxu0
      %1424 = vmatprep.mubr.bf16.mxu0 0
      %1425 = vmatmul.mubr.bf16.gmra.mrb[0].mxu0 %v1305
      %v1426 = vpop.f32.mrb[0].mxu0
      %v1427 = vadd.f32 0.0, %v1426
      %v1428 = vpop.f32.mrb[0].mxu0
      %v1429 = vpop.f32.mrb[0].mxu0
      %v1430 = vadd.f32 0.0, %v1429
      %v1431 = vpop.f32.mrb[0].mxu0
      %1432 = vmatprep.mubr.bf16.mxu0 0
      %1433 = vmatmul.mubr.bf16.gmra.mrb[0].mxu0 %v1306
      %v1434 = vpop.f32.mrb[0].mxu0
      %v1435 = vadd.f32 0.0, %v1434
      %v1436 = vpop.f32.mrb[0].mxu0
      %v1437 = vpop.f32.mrb[0].mxu0
      %v1438 = vadd.f32 0.0, %v1437
      %v1439 = vpop.f32.mrb[0].mxu0
      %1440 = vmatprep.mubr.bf16.mxu0 0
      %1441 = vmatmul.mubr.bf16.gmra.mrb[0].mxu0 %v1307
      %v1442 = vpop.f32.mrb[0].mxu0
      %v1443 = vadd.f32 0.0, %v1442
      %v1444 = vpop.f32.mrb[0].mxu0
      %v1445 = vpop.f32.mrb[0].mxu0
      %v1446 = vadd.f32 0.0, %v1445
      %v1447 = vpop.f32.mrb[0].mxu0
      %1448 = vmatprep.mubr.bf16.mxu0 0
      %1449 = vmatmul.mubr.bf16.gmra.mrb[0].mxu0 %v1308
      %v1450 = vpop.f32.mrb[0].mxu0
      %v1451 = vadd.f32 0.0, %v1450
      %v1452 = vpop.f32.mrb[0].mxu0
      %v1453 = vpop.f32.mrb[0].mxu0
      %v1454 = vadd.f32 0.0, %v1453
      %v1455 = vpop.f32.mrb[0].mxu0
      %1456 = vmatprep.mubr.bf16.mxu0 0
      %1457 = vmatmul.mubr.bf16.gmra.mrb[0].mxu0 %v1309
      %v1458 = vpop.f32.mrb[0].mxu0
      %v1459 = vadd.f32 0.0, %v1458
      %v1460 = vpop.f32.mrb[0].mxu0
      %v1461 = vpop.f32.mrb[0].mxu0
      %v1462 = vadd.f32 0.0, %v1461
      %v1463 = vpop.f32.mrb[0].mxu0
      %1464 = vmatprep.mubr.bf16.mxu0 0
      %1465 = vmatmul.mubr.bf16.gmra.mrb[0].mxu0 %v1310
      %v1466 = vpop.f32.mrb[0].mxu0
      %v1467 = vadd.f32 0.0, %v1466
      %v1468 = vpop.f32.mrb[0].mxu0
      %v1469 = vpop.f32.mrb[0].mxu0
      %v1470 = vadd.f32 0.0, %v1469
      %v1471 = vpop.f32.mrb[0].mxu0
      %1472 = vmatprep.mubr.bf16.mxu0 0
      %1473 = vmatmul.mubr.bf16.gmra.mrb[0].mxu0 %v1311
      %v1474 = vpop.f32.mrb[0].mxu0
      %v1475 = vadd.f32 0.0, %v1474
      %v1476 = vpop.f32.mrb[0].mxu0
      %v1477 = vpop.f32.mrb[0].mxu0
      %v1478 = vadd.f32 0.0, %v1477
      %v1479 = vpop.f32.mrb[0].mxu0
      %1480 = vmatprep.mubr.bf16.mxu0 0
      %1481 = vmatmul.mubr.bf16.gmra.mrb[0].mxu0 %v1312
      %v1482 = vpop.f32.mrb[0].mxu0
      %v1483 = vadd.f32 0.0, %v1482
      %v1484 = vpop.f32.mrb[0].mxu0
      %v1485 = vpop.f32.mrb[0].mxu0
      %v1486 = vadd.f32 0.0, %v1485
      %v1487 = vpop.f32.mrb[0].mxu0
      %1488 = vmatprep.mubr.bf16.mxu0 0
      %1489 = vmatmul.mubr.bf16.gmra.mrb[0].mxu0 %v1313
      %v1490 = vpop.f32.mrb[0].mxu0
      %v1491 = vadd.f32 0.0, %v1490
      %v1492 = vpop.f32.mrb[0].mxu0
      %v1493 = vpop.f32.mrb[0].mxu0
      %v1494 = vadd.f32 0.0, %v1493
      %v1495 = vpop.f32.mrb[0].mxu0
      %1496 = vmatprep.mubr.bf16.mxu0 0
      %1497 = vmatmul.mubr.bf16.gmra.mrb[0].mxu0 %v1314
      %v1498 = vpop.f32.mrb[0].mxu0
      %v1499 = vadd.f32 0.0, %v1498
      %v1500 = vpop.f32.mrb[0].mxu0
      %v1501 = vpop.f32.mrb[0].mxu0
      %v1502 = vadd.f32 0.0, %v1501
      %v1503 = vpop.f32.mrb[0].mxu0
      %1504 = vmatprep.mubr.bf16.mxu0 0
      %1505 = vmatmul.mubr.bf16.gmra.mrb[0].mxu0 %v1315
      %v1506 = vpop.f32.mrb[0].mxu0
      %v1507 = vadd.f32 0.0, %v1506
      %v1508 = vpop.f32.mrb[0].mxu0
      %v1509 = vpop.f32.mrb[0].mxu0
      %v1510 = vadd.f32 0.0, %v1509
      %v1511 = vpop.f32.mrb[0].mxu0
      %1512 = vmatprep.mubr.bf16.mxu0 0
      %1513 = vmatmul.mubr.bf16.gmra.mrb[0].mxu0 %v1316
      %v1514 = vpop.f32.mrb[0].mxu0
      %v1515 = vadd.f32 0.0, %v1514
      %v1516 = vpop.f32.mrb[0].mxu0
      %v1517 = vpop.f32.mrb[0].mxu0
      %v1518 = vadd.f32 0.0, %v1517
      %v1519 = vpop.f32.mrb[0].mxu0
      %1520 = vmatprep.mubr.bf16.mxu0 0
      %1521 = vmatmul.mubr.bf16.gmra.mrb[0].mxu0 %v1317
      %v1522 = vpop.f32.mrb[0].mxu0
      %v1523 = vadd.f32 0.0, %v1522
      %v1524 = vpop.f32.mrb[0].mxu0
      %v1525 = vpop.f32.mrb[0].mxu0
      %v1526 = vadd.f32 0.0, %v1525
      %v1527 = vpop.f32.mrb[0].mxu0
      %1528 = vmatprep.mubr.bf16.mxu0 0
      %1529 = vmatmul.mubr.bf16.gmra.mrb[0].mxu0 %v1318
      %v1530 = vpop.f32.mrb[0].mxu0
      %v1531 = vadd.f32 0.0, %v1530
      %v1532 = vpop.f32.mrb[0].mxu0
      %v1533 = vpop.f32.mrb[0].mxu0
      %v1534 = vadd.f32 0.0, %v1533
      %v1535 = vpop.f32.mrb[0].mxu0
      %1536 = vmatprep.mubr.bf16.mxu0 0
      %1537 = vmatmul.mubr.bf16.gmra.mrb[0].mxu0 %v1319
      %v1538 = vpop.f32.mrb[0].mxu0
      %v1539 = vadd.f32 0.0, %v1538
      %v1540 = vpop.f32.mrb[0].mxu0
      %v1541 = vpop.f32.mrb[0].mxu0
      %v1542 = vadd.f32 0.0, %v1541
      %v1543 = vpop.f32.mrb[0].mxu0
      %1544 = vdwg.mxu0
      %v1577 = vunpack.c.l.b16 %v804
      %v1578 = vunpack.c.l.b16 %v805
      %v1579 = vunpack.c.l.b16 %v806
      %v1580 = vunpack.c.l.b16 %v807
      %v1581 = vunpack.c.l.b16 %v808
      %v1582 = vunpack.c.l.b16 %v809
      %v1583 = vunpack.c.l.b16 %v810
      %v1584 = vunpack.c.l.b16 %v811
      %v1585 = vunpack.c.l.b16 %v812
      %v1586 = vunpack.c.l.b16 %v813
      %v1587 = vunpack.c.l.b16 %v814
      %v1588 = vunpack.c.l.b16 %v815
      %v1589 = vunpack.c.l.b16 %v816
      %v1590 = vunpack.c.l.b16 %v817
      %v1591 = vunpack.c.l.b16 %v818
      %v1592 = vunpack.c.l.b16 %v819
      %v1593 = vunpack.c.l.b16 %v820
      %v1594 = vunpack.c.l.b16 %v821
      %v1595 = vunpack.c.l.b16 %v822
      %v1596 = vunpack.c.l.b16 %v823
      %v1597 = vunpack.c.l.b16 %v824
      %v1598 = vunpack.c.l.b16 %v825
      %v1599 = vunpack.c.l.b16 %v826
      %v1600 = vunpack.c.l.b16 %v827
      %v1601 = vunpack.c.l.b16 %v828
      %v1602 = vunpack.c.l.b16 %v829
      %v1603 = vunpack.c.l.b16 %v830
      %v1604 = vunpack.c.l.b16 %v831
      %v1605 = vunpack.c.l.b16 %v832
      %v1606 = vunpack.c.l.b16 %v833
      %v1607 = vunpack.c.l.b16 %v834
      %v1608 = vunpack.c.l.b16 %v835
      %v1609 = vpack.c.b16 %v1578, %v1577
      %v1610 = vpack.c.b16 %v1580, %v1579
      %v1611 = vpack.c.b16 %v1582, %v1581
      %v1612 = vpack.c.b16 %v1584, %v1583
      %v1613 = vpack.c.b16 %v1586, %v1585
      %v1614 = vpack.c.b16 %v1588, %v1587
      %v1615 = vpack.c.b16 %v1590, %v1589
      %v1616 = vpack.c.b16 %v1592, %v1591
      %v1617 = vpack.c.b16 %v1594, %v1593
      %v1618 = vpack.c.b16 %v1596, %v1595
      %v1619 = vpack.c.b16 %v1598, %v1597
      %v1620 = vpack.c.b16 %v1600, %v1599
      %v1621 = vpack.c.b16 %v1602, %v1601
      %v1622 = vpack.c.b16 %v1604, %v1603
      %v1623 = vpack.c.b16 %v1606, %v1605
      %v1624 = vpack.c.b16 %v1608, %v1607
      %v1657 = vunpack.c.l.b16 %v836
      %v1658 = vunpack.c.l.b16 %v837
      %v1659 = vunpack.c.l.b16 %v838
      %v1660 = vunpack.c.l.b16 %v839
      %v1661 = vunpack.c.l.b16 %v840
      %v1662 = vunpack.c.l.b16 %v841
      %v1663 = vunpack.c.l.b16 %v842
      %v1664 = vunpack.c.l.b16 %v843
      %v1665 = vunpack.c.l.b16 %v844
      %v1666 = vunpack.c.l.b16 %v845
      %v1667 = vunpack.c.l.b16 %v846
      %v1668 = vunpack.c.l.b16 %v847
      %v1669 = vunpack.c.l.b16 %v848
      %v1670 = vunpack.c.l.b16 %v849
      %v1671 = vunpack.c.l.b16 %v850
      %v1672 = vunpack.c.l.b16 %v851
      %v1673 = vpack.c.b16 %v1658, %v1657
      %v1674 = vpack.c.b16 %v1660, %v1659
      %v1675 = vpack.c.b16 %v1662, %v1661
      %v1676 = vpack.c.b16 %v1664, %v1663
      %v1677 = vpack.c.b16 %v1666, %v1665
      %v1678 = vpack.c.b16 %v1668, %v1667
      %v1679 = vpack.c.b16 %v1670, %v1669
      %v1680 = vpack.c.b16 %v1672, %v1671
      %1689 = vmatprep.subr.bf16.mxu0 0
      %1690 = vmatpush1.bf16.msra.mxu0 %v1673
      %1691 = vmatprep.subr.bf16.mxu0 0
      %1692 = vmatpush1.bf16.msra.mxu0 %v1674
      %1693 = vmatprep.subr.bf16.mxu0 0
      %1694 = vmatpush1.bf16.msra.mxu0 %v1675
      %1695 = vmatprep.subr.bf16.mxu0 0
      %1696 = vmatpush1.bf16.msra.mxu0 %v1676
      %1697 = vmatprep.subr.bf16.mxu0 0
      %1698 = vmatpush1.bf16.msra.mxu0 %v1677
      %1699 = vmatprep.subr.bf16.mxu0 0
      %1700 = vmatpush1.bf16.msra.mxu0 %v1678
      %1701 = vmatprep.subr.bf16.mxu0 0
      %1702 = vmatpush1.bf16.msra.mxu0 %v1679
      %1703 = vmatprep.subr.bf16.mxu0 0
      %1704 = vmatpush1.bf16.msra.mxu0 %v1680
      %1705 = vmatprep.subr.bf16.mxu0 0
      %1706 = vmatpush1.bf16.msra.mxu0 0
      %1707 = vmatprep.subr.bf16.mxu0 0
      %1708 = vmatpush1.bf16.msra.mxu0 0
      %1709 = vmatprep.subr.bf16.mxu0 0
      %1710 = vmatpush1.bf16.msra.mxu0 0
      %1711 = vmatprep.subr.bf16.mxu0 0
      %1712 = vmatpush1.bf16.msra.mxu0 0
      %1713 = vmatprep.subr.bf16.mxu0 0
      %1714 = vmatpush1.bf16.msra.mxu0 0
      %1715 = vmatprep.subr.bf16.mxu0 0
      %1716 = vmatpush1.bf16.msra.mxu0 0
      %1717 = vmatprep.subr.bf16.mxu0 0
      %1718 = vmatpush1.bf16.msra.mxu0 0
      %1719 = vmatprep.subr.bf16.mxu0 0
      %1720 = vmatpush1.bf16.msra.mxu0 0
      %1721 = vmatprep.mubr.bf16.mxu0 0
      %1722 = vmatmul.mubr.bf16.gmra.mrb[0].mxu0 %v1609
      %v1723 = vpop.f32.mrb[0].mxu0
      %v1724 = vadd.f32 %v1419, %v1723
      %v1725 = vpop.f32.mrb[0].mxu0
      %v1726 = vpop.f32.mrb[0].mxu0
      %v1727 = vadd.f32 %v1422, %v1726
      %v1728 = vpop.f32.mrb[0].mxu0
      %1729 = vmatprep.mubr.bf16.mxu0 0
      %1730 = vmatmul.mubr.bf16.gmra.mrb[0].mxu0 %v1610
      %v1731 = vpop.f32.mrb[0].mxu0
      %v1732 = vadd.f32 %v1427, %v1731
      %v1733 = vpop.f32.mrb[0].mxu0
      %v1734 = vpop.f32.mrb[0].mxu0
      %v1735 = vadd.f32 %v1430, %v1734
      %v1736 = vpop.f32.mrb[0].mxu0
      %1737 = vmatprep.mubr.bf16.mxu0 0
      %1738 = vmatmul.mubr.bf16.gmra.mrb[0].mxu0 %v1611
      %v1739 = vpop.f32.mrb[0].mxu0
      %v1740 = vadd.f32 %v1435, %v1739
      %v1741 = vpop.f32.mrb[0].mxu0
      %v1742 = vpop.f32.mrb[0].mxu0
      %v1743 = vadd.f32 %v1438, %v1742
      %v1744 = vpop.f32.mrb[0].mxu0
      %1745 = vmatprep.mubr.bf16.mxu0 0
      %1746 = vmatmul.mubr.bf16.gmra.mrb[0].mxu0 %v1612
      %v1747 = vpop.f32.mrb[0].mxu0
      %v1748 = vadd.f32 %v1443, %v1747
      %v1749 = vpop.f32.mrb[0].mxu0
      %v1750 = vpop.f32.mrb[0].mxu0
      %v1751 = vadd.f32 %v1446, %v1750
      %v1752 = vpop.f32.mrb[0].mxu0
      %1753 = vmatprep.mubr.bf16.mxu0 0
      %1754 = vmatmul.mubr.bf16.gmra.mrb[0].mxu0 %v1613
      %v1755 = vpop.f32.mrb[0].mxu0
      %v1756 = vadd.f32 %v1451, %v1755
      %v1757 = vpop.f32.mrb[0].mxu0
      %v1758 = vpop.f32.mrb[0].mxu0
      %v1759 = vadd.f32 %v1454, %v1758
      %v1760 = vpop.f32.mrb[0].mxu0
      %1761 = vmatprep.mubr.bf16.mxu0 0
      %1762 = vmatmul.mubr.bf16.gmra.mrb[0].mxu0 %v1614
      %v1763 = vpop.f32.mrb[0].mxu0
      %v1764 = vadd.f32 %v1459, %v1763
      %v1765 = vpop.f32.mrb[0].mxu0
      %v1766 = vpop.f32.mrb[0].mxu0
      %v1767 = vadd.f32 %v1462, %v1766
      %v1768 = vpop.f32.mrb[0].mxu0
      %1769 = vmatprep.mubr.bf16.mxu0 0
      %1770 = vmatmul.mubr.bf16.gmra.mrb[0].mxu0 %v1615
      %v1771 = vpop.f32.mrb[0].mxu0
      %v1772 = vadd.f32 %v1467, %v1771
      %v1773 = vpop.f32.mrb[0].mxu0
      %v1774 = vpop.f32.mrb[0].mxu0
      %v1775 = vadd.f32 %v1470, %v1774
      %v1776 = vpop.f32.mrb[0].mxu0
      %1777 = vmatprep.mubr.bf16.mxu0 0
      %1778 = vmatmul.mubr.bf16.gmra.mrb[0].mxu0 %v1616
      %v1779 = vpop.f32.mrb[0].mxu0
      %v1780 = vadd.f32 %v1475, %v1779
      %v1781 = vpop.f32.mrb[0].mxu0
      %v1782 = vpop.f32.mrb[0].mxu0
      %v1783 = vadd.f32 %v1478, %v1782
      %v1784 = vpop.f32.mrb[0].mxu0
      %1785 = vmatprep.mubr.bf16.mxu0 0
      %1786 = vmatmul.mubr.bf16.gmra.mrb[0].mxu0 %v1617
      %v1787 = vpop.f32.mrb[0].mxu0
      %v1788 = vadd.f32 %v1483, %v1787
      %v1789 = vpop.f32.mrb[0].mxu0
      %v1790 = vpop.f32.mrb[0].mxu0
      %v1791 = vadd.f32 %v1486, %v1790
      %v1792 = vpop.f32.mrb[0].mxu0
      %1793 = vmatprep.mubr.bf16.mxu0 0
      %1794 = vmatmul.mubr.bf16.gmra.mrb[0].mxu0 %v1618
      %v1795 = vpop.f32.mrb[0].mxu0
      %v1796 = vadd.f32 %v1491, %v1795
      %v1797 = vpop.f32.mrb[0].mxu0
      %v1798 = vpop.f32.mrb[0].mxu0
      %v1799 = vadd.f32 %v1494, %v1798
      %v1800 = vpop.f32.mrb[0].mxu0
      %1801 = vmatprep.mubr.bf16.mxu0 0
      %1802 = vmatmul.mubr.bf16.gmra.mrb[0].mxu0 %v1619
      %v1803 = vpop.f32.mrb[0].mxu0
      %v1804 = vadd.f32 %v1499, %v1803
      %v1805 = vpop.f32.mrb[0].mxu0
      %v1806 = vpop.f32.mrb[0].mxu0
      %v1807 = vadd.f32 %v1502, %v1806
      %v1808 = vpop.f32.mrb[0].mxu0
      %1809 = vmatprep.mubr.bf16.mxu0 0
      %1810 = vmatmul.mubr.bf16.gmra.mrb[0].mxu0 %v1620
      %v1811 = vpop.f32.mrb[0].mxu0
      %v1812 = vadd.f32 %v1507, %v1811
      %v1813 = vpop.f32.mrb[0].mxu0
      %v1814 = vpop.f32.mrb[0].mxu0
      %v1815 = vadd.f32 %v1510, %v1814
      %v1816 = vpop.f32.mrb[0].mxu0
      %1817 = vmatprep.mubr.bf16.mxu0 0
      %1818 = vmatmul.mubr.bf16.gmra.mrb[0].mxu0 %v1621
      %v1819 = vpop.f32.mrb[0].mxu0
      %v1820 = vadd.f32 %v1515, %v1819
      %v1821 = vpop.f32.mrb[0].mxu0
      %v1822 = vpop.f32.mrb[0].mxu0
      %v1823 = vadd.f32 %v1518, %v1822
      %v1824 = vpop.f32.mrb[0].mxu0
      %1825 = vmatprep.mubr.bf16.mxu0 0
      %1826 = vmatmul.mubr.bf16.gmra.mrb[0].mxu0 %v1622
      %v1827 = vpop.f32.mrb[0].mxu0
      %v1828 = vadd.f32 %v1523, %v1827
      %v1829 = vpop.f32.mrb[0].mxu0
      %v1830 = vpop.f32.mrb[0].mxu0
      %v1831 = vadd.f32 %v1526, %v1830
      %v1832 = vpop.f32.mrb[0].mxu0
      %1833 = vmatprep.mubr.bf16.mxu0 0
      %1834 = vmatmul.mubr.bf16.gmra.mrb[0].mxu0 %v1623
      %v1835 = vpop.f32.mrb[0].mxu0
      %v1836 = vadd.f32 %v1531, %v1835
      %v1837 = vpop.f32.mrb[0].mxu0
      %v1838 = vpop.f32.mrb[0].mxu0
      %v1839 = vadd.f32 %v1534, %v1838
      %v1840 = vpop.f32.mrb[0].mxu0
      %1841 = vmatprep.mubr.bf16.mxu0 0
      %1842 = vmatmul.mubr.bf16.gmra.mrb[0].mxu0 %v1624
      %v1843 = vpop.f32.mrb[0].mxu0
      %v1844 = vadd.f32 %v1539, %v1843
      %v1845 = vpop.f32.mrb[0].mxu0
      %v1846 = vpop.f32.mrb[0].mxu0
      %v1847 = vadd.f32 %v1542, %v1846
      %v1848 = vpop.f32.mrb[0].mxu0
      %1849 = vdwg.mxu0
      %v1850 = vld [vmem:[#allocation2] sm:$0xe]
      %v1851 = vld [vmem:[#allocation2 + $0xc] sm:$0xe]
      %v1852 = vld [vmem:[#allocation2 + $0x18] sm:$0xe]
      %v1853 = vld [vmem:[#allocation2 + $0x24] sm:$0xe]
      %v1854 = vld [vmem:[#allocation2 + $0x30] sm:$0xe]
      %v1855 = vld [vmem:[#allocation2 + $0x3c] sm:$0xe]
      %v1856 = vld [vmem:[#allocation2 + $0x48] sm:$0xe]
      %v1857 = vld [vmem:[#allocation2 + $0x54] sm:$0xe]
      %v1858 = vld [vmem:[#allocation2 + $0x60] sm:$0xe]
      %v1859 = vld [vmem:[#allocation2 + $0x6c] sm:$0xe]
      %v1860 = vld [vmem:[#allocation2 + $0x78] sm:$0xe]
      %v1861 = vld [vmem:[#allocation2 + $0x84] sm:$0xe]
      %v1862 = vld [vmem:[#allocation2 + $0x90] sm:$0xe]
      %v1863 = vld [vmem:[#allocation2 + $0x9c] sm:$0xe]
      %v1864 = vld [vmem:[#allocation2 + $0xa8] sm:$0xe]
      %v1865 = vld [vmem:[#allocation2 + $0xb4] sm:$0xe]
      %vm1898 = vcmask 1042432
      %vm1899 = vcmask 1046532
      %vm1900 = vmor %vm1898, %vm1899
      %v1901 = vrot.slane %v1850, 5
      %v1902 = vrot.slane %v1901, 4
      %v1903 = vrot.slane %v805, 5
      %v1904 = vsel %vm1900, %v1902, %v1903
      %v1905 = vrot.slane %v1903, 4
      %v1906 = vrot.slane %v852, 5
      %v1907 = vsel %vm1900, %v1905, %v1906
      %v1908 = vrot.slane %v1851, 5
      %v1909 = vrot.slane %v1908, 4
      %v1910 = vrot.slane %v807, 5
      %v1911 = vsel %vm1900, %v1909, %v1910
      %v1912 = vrot.slane %v1910, 4
      %v1913 = vrot.slane %v853, 5
      %v1914 = vsel %vm1900, %v1912, %v1913
      %v1915 = vrot.slane %v1852, 5
      %v1916 = vrot.slane %v1915, 4
      %v1917 = vrot.slane %v809, 5
      %v1918 = vsel %vm1900, %v1916, %v1917
      %v1919 = vrot.slane %v1917, 4
      %v1920 = vrot.slane %v854, 5
      %v1921 = vsel %vm1900, %v1919, %v1920
      %v1922 = vrot.slane %v1853, 5
      %v1923 = vrot.slane %v1922, 4
      %v1924 = vrot.slane %v811, 5
      %v1925 = vsel %vm1900, %v1923, %v1924
      %v1926 = vrot.slane %v1924, 4
      %v1927 = vrot.slane %v855, 5
      %v1928 = vsel %vm1900, %v1926, %v1927
      %v1929 = vrot.slane %v1854, 5
      %v1930 = vrot.slane %v1929, 4
      %v1931 = vrot.slane %v813, 5
      %v1932 = vsel %vm1900, %v1930, %v1931
      %v1933 = vrot.slane %v1931, 4
      %v1934 = vrot.slane %v856, 5
      %v1935 = vsel %vm1900, %v1933, %v1934
      %v1936 = vrot.slane %v1855, 5
      %v1937 = vrot.slane %v1936, 4
      %v1938 = vrot.slane %v815, 5
      %v1939 = vsel %vm1900, %v1937, %v1938
      %v1940 = vrot.slane %v1938, 4
      %v1941 = vrot.slane %v857, 5
      %v1942 = vsel %vm1900, %v1940, %v1941
      %v1943 = vrot.slane %v1856, 5
      %v1944 = vrot.slane %v1943, 4
      %v1945 = vrot.slane %v817, 5
      %v1946 = vsel %vm1900, %v1944, %v1945
      %v1947 = vrot.slane %v1945, 4
      %v1948 = vrot.slane %v858, 5
      %v1949 = vsel %vm1900, %v1947, %v1948
      %v1950 = vrot.slane %v1857, 5
      %v1951 = vrot.slane %v1950, 4
      %v1952 = vrot.slane %v819, 5
      %v1953 = vsel %vm1900, %v1951, %v1952
      %v1954 = vrot.slane %v1952, 4
      %v1955 = vrot.slane %v859, 5
      %v1956 = vsel %vm1900, %v1954, %v1955
      %v1957 = vrot.slane %v1858, 5
      %v1958 = vrot.slane %v1957, 4
      %v1959 = vrot.slane %v821, 5
      %v1960 = vsel %vm1900, %v1958, %v1959
      %v1961 = vrot.slane %v1959, 4
      %v1962 = vrot.slane %v860, 5
      %v1963 = vsel %vm1900, %v1961, %v1962
      %v1964 = vrot.slane %v1859, 5
      %v1965 = vrot.slane %v1964, 4
      %v1966 = vrot.slane %v823, 5
      %v1967 = vsel %vm1900, %v1965, %v1966
      %v1968 = vrot.slane %v1966, 4
      %v1969 = vrot.slane %v861, 5
      %v1970 = vsel %vm1900, %v1968, %v1969
      %v1971 = vrot.slane %v1860, 5
      %v1972 = vrot.slane %v1971, 4
      %v1973 = vrot.slane %v825, 5
      %v1974 = vsel %vm1900, %v1972, %v1973
      %v1975 = vrot.slane %v1973, 4
      %v1976 = vrot.slane %v862, 5
      %v1977 = vsel %vm1900, %v1975, %v1976
      %v1978 = vrot.slane %v1861, 5
      %v1979 = vrot.slane %v1978, 4
      %v1980 = vrot.slane %v827, 5
      %v1981 = vsel %vm1900, %v1979, %v1980
      %v1982 = vrot.slane %v1980, 4
      %v1983 = vrot.slane %v863, 5
      %v1984 = vsel %vm1900, %v1982, %v1983
      %v1985 = vrot.slane %v1862, 5
      %v1986 = vrot.slane %v1985, 4
      %v1987 = vrot.slane %v829, 5
      %v1988 = vsel %vm1900, %v1986, %v1987
      %v1989 = vrot.slane %v1987, 4
      %v1990 = vrot.slane %v864, 5
      %v1991 = vsel %vm1900, %v1989, %v1990
      %v1992 = vrot.slane %v1863, 5
      %v1993 = vrot.slane %v1992, 4
      %v1994 = vrot.slane %v831, 5
      %v1995 = vsel %vm1900, %v1993, %v1994
      %v1996 = vrot.slane %v1994, 4
      %v1997 = vrot.slane %v865, 5
      %v1998 = vsel %vm1900, %v1996, %v1997
      %v1999 = vrot.slane %v1864, 5
      %v2000 = vrot.slane %v1999, 4
      %v2001 = vrot.slane %v833, 5
      %v2002 = vsel %vm1900, %v2000, %v2001
      %v2003 = vrot.slane %v2001, 4
      %v2004 = vrot.slane %v866, 5
      %v2005 = vsel %vm1900, %v2003, %v2004
      %v2006 = vrot.slane %v1865, 5
      %v2007 = vrot.slane %v2006, 4
      %v2008 = vrot.slane %v835, 5
      %v2009 = vsel %vm1900, %v2007, %v2008
      %v2010 = vrot.slane %v2008, 4
      %v2011 = vrot.slane %v867, 5
      %v2012 = vsel %vm1900, %v2010, %v2011
      %s2013 = scalar_lea.vmem %s1, 128
      %v2014 = vld [vmem:[%s2013] sm:$0xf]
      %v2015 = vld [vmem:[%s2013 + $0x4] sm:$0xf]
      %v2016 = vld [vmem:[%s2013 + $0x8] sm:$0xf]
      %v2017 = vld [vmem:[%s2013 + $0xc] sm:$0xf]
      %v2018 = vld [vmem:[%s2013 + $0x10] sm:$0xf]
      %v2019 = vld [vmem:[%s2013 + $0x14] sm:$0xf]
      %v2020 = vld [vmem:[%s2013 + $0x18] sm:$0xf]
      %v2021 = vld [vmem:[%s2013 + $0x1c] sm:$0xf]
      %v2022 = vld [vmem:[%s2013 + $0x20] sm:$0xf]
      %v2023 = vld [vmem:[%s2013 + $0x24] sm:$0xf]
      %v2024 = vld [vmem:[%s2013 + $0x28] sm:$0xf]
      %v2025 = vld [vmem:[%s2013 + $0x2c] sm:$0xf]
      %v2026 = vld [vmem:[%s2013 + $0x30] sm:$0xf]
      %v2027 = vld [vmem:[%s2013 + $0x34] sm:$0xf]
      %v2028 = vld [vmem:[%s2013 + $0x38] sm:$0xf]
      %v2029 = vld [vmem:[%s2013 + $0x3c] sm:$0xf]
      %v2030 = vunpack.c.l.b16 %v1904
      %v2031 = vunpack.c.l.b16 %v1907
      %v2032 = vunpack.c.l.b16 %v1911
      %v2033 = vunpack.c.l.b16 %v1914
      %v2034 = vunpack.c.l.b16 %v1918
      %v2035 = vunpack.c.l.b16 %v1921
      %v2036 = vunpack.c.l.b16 %v1925
      %v2037 = vunpack.c.l.b16 %v1928
      %v2038 = vunpack.c.l.b16 %v1932
      %v2039 = vunpack.c.l.b16 %v1935
      %v2040 = vunpack.c.l.b16 %v1939
      %v2041 = vunpack.c.l.b16 %v1942
      %v2042 = vunpack.c.l.b16 %v1946
      %v2043 = vunpack.c.l.b16 %v1949
      %v2044 = vunpack.c.l.b16 %v1953
      %v2045 = vunpack.c.l.b16 %v1956
      %v2046 = vunpack.c.l.b16 %v1960
      %v2047 = vunpack.c.l.b16 %v1963
      %v2048 = vunpack.c.l.b16 %v1967
      %v2049 = vunpack.c.l.b16 %v1970
      %v2050 = vunpack.c.l.b16 %v1974
      %v2051 = vunpack.c.l.b16 %v1977
      %v2052 = vunpack.c.l.b16 %v1981
      %v2053 = vunpack.c.l.b16 %v1984
      %v2054 = vunpack.c.l.b16 %v1988
      %v2055 = vunpack.c.l.b16 %v1991
      %v2056 = vunpack.c.l.b16 %v1995
      %v2057 = vunpack.c.l.b16 %v1998
      %v2058 = vunpack.c.l.b16 %v2002
      %v2059 = vunpack.c.l.b16 %v2005
      %v2060 = vunpack.c.l.b16 %v2009
      %v2061 = vunpack.c.l.b16 %v2012
      %v2062 = vpack.c.b16 %v2031, %v2030
      %v2063 = vpack.c.b16 %v2033, %v2032
      %v2064 = vpack.c.b16 %v2035, %v2034
      %v2065 = vpack.c.b16 %v2037, %v2036
      %v2066 = vpack.c.b16 %v2039, %v2038
      %v2067 = vpack.c.b16 %v2041, %v2040
      %v2068 = vpack.c.b16 %v2043, %v2042
      %v2069 = vpack.c.b16 %v2045, %v2044
      %v2070 = vpack.c.b16 %v2047, %v2046
      %v2071 = vpack.c.b16 %v2049, %v2048
      %v2072 = vpack.c.b16 %v2051, %v2050
      %v2073 = vpack.c.b16 %v2053, %v2052
      %v2074 = vpack.c.b16 %v2055, %v2054
      %v2075 = vpack.c.b16 %v2057, %v2056
      %v2076 = vpack.c.b16 %v2059, %v2058
      %v2077 = vpack.c.b16 %v2061, %v2060
      %v2110 = vunpack.c.l.b16 %v2014
      %v2111 = vunpack.c.l.b16 %v2015
      %v2112 = vunpack.c.l.b16 %v2016
      %v2113 = vunpack.c.l.b16 %v2017
      %v2114 = vunpack.c.l.b16 %v2018
      %v2115 = vunpack.c.l.b16 %v2019
      %v2116 = vunpack.c.l.b16 %v2020
      %v2117 = vunpack.c.l.b16 %v2021
      %v2118 = vunpack.c.l.b16 %v2022
      %v2119 = vunpack.c.l.b16 %v2023
      %v2120 = vunpack.c.l.b16 %v2024
      %v2121 = vunpack.c.l.b16 %v2025
      %v2122 = vunpack.c.l.b16 %v2026
      %v2123 = vunpack.c.l.b16 %v2027
      %v2124 = vunpack.c.l.b16 %v2028
      %v2125 = vunpack.c.l.b16 %v2029
      %v2126 = vpack.c.b16 %v2111, %v2110
      %v2127 = vpack.c.b16 %v2113, %v2112
      %v2128 = vpack.c.b16 %v2115, %v2114
      %v2129 = vpack.c.b16 %v2117, %v2116
      %v2130 = vpack.c.b16 %v2119, %v2118
      %v2131 = vpack.c.b16 %v2121, %v2120
      %v2132 = vpack.c.b16 %v2123, %v2122
      %v2133 = vpack.c.b16 %v2125, %v2124
      %2142 = vmatprep.subr.bf16.mxu0 0
      %2143 = vmatpush1.bf16.msra.mxu0 %v2126
      %2144 = vmatprep.subr.bf16.mxu0 0
      %2145 = vmatpush1.bf16.msra.mxu0 %v2127
      %2146 = vmatprep.subr.bf16.mxu0 0
      %2147 = vmatpush1.bf16.msra.mxu0 %v2128
      %2148 = vmatprep.subr.bf16.mxu0 0
      %2149 = vmatpush1.bf16.msra.mxu0 %v2129
      %2150 = vmatprep.subr.bf16.mxu0 0
      %2151 = vmatpush1.bf16.msra.mxu0 %v2130
      %2152 = vmatprep.subr.bf16.mxu0 0
      %2153 = vmatpush1.bf16.msra.mxu0 %v2131
      %2154 = vmatprep.subr.bf16.mxu0 0
      %2155 = vmatpush1.bf16.msra.mxu0 %v2132
      %2156 = vmatprep.subr.bf16.mxu0 0
      %2157 = vmatpush1.bf16.msra.mxu0 %v2133
      %2158 = vmatprep.subr.bf16.mxu0 0
      %2159 = vmatpush1.bf16.msra.mxu0 0
      %2160 = vmatprep.subr.bf16.mxu0 0
      %2161 = vmatpush1.bf16.msra.mxu0 0
      %2162 = vmatprep.subr.bf16.mxu0 0
      %2163 = vmatpush1.bf16.msra.mxu0 0
      %2164 = vmatprep.subr.bf16.mxu0 0
      %2165 = vmatpush1.bf16.msra.mxu0 0
      %2166 = vmatprep.subr.bf16.mxu0 0
      %2167 = vmatpush1.bf16.msra.mxu0 0
      %2168 = vmatprep.subr.bf16.mxu0 0
      %2169 = vmatpush1.bf16.msra.mxu0 0
      %2170 = vmatprep.subr.bf16.mxu0 0
      %2171 = vmatpush1.bf16.msra.mxu0 0
      %2172 = vmatprep.subr.bf16.mxu0 0
      %2173 = vmatpush1.bf16.msra.mxu0 0
      %2174 = vmatprep.mubr.bf16.mxu0 0
      %2175 = vmatmul.mubr.bf16.gmra.mrb[0].mxu0 %v2062
      %v2176 = vpop.f32.mrb[0].mxu0
      %v2177 = vadd.f32 0.0, %v2176
      %v2178 = vpop.f32.mrb[0].mxu0
      %v2179 = vpop.f32.mrb[0].mxu0
      %v2180 = vadd.f32 0.0, %v2179
      %v2181 = vpop.f32.mrb[0].mxu0
      %2182 = vmatprep.mubr.bf16.mxu0 0
      %2183 = vmatmul.mubr.bf16.gmra.mrb[0].mxu0 %v2063
      %v2184 = vpop.f32.mrb[0].mxu0
      %v2185 = vadd.f32 0.0, %v2184
      %v2186 = vpop.f32.mrb[0].mxu0
      %v2187 = vpop.f32.mrb[0].mxu0
      %v2188 = vadd.f32 0.0, %v2187
      %v2189 = vpop.f32.mrb[0].mxu0
      %2190 = vmatprep.mubr.bf16.mxu0 0
      %2191 = vmatmul.mubr.bf16.gmra.mrb[0].mxu0 %v2064
      %v2192 = vpop.f32.mrb[0].mxu0
      %v2193 = vadd.f32 0.0, %v2192
      %v2194 = vpop.f32.mrb[0].mxu0
      %v2195 = vpop.f32.mrb[0].mxu0
      %v2196 = vadd.f32 0.0, %v2195
      %v2197 = vpop.f32.mrb[0].mxu0
      %2198 = vmatprep.mubr.bf16.mxu0 0
      %2199 = vmatmul.mubr.bf16.gmra.mrb[0].mxu0 %v2065
      %v2200 = vpop.f32.mrb[0].mxu0
      %v2201 = vadd.f32 0.0, %v2200
      %v2202 = vpop.f32.mrb[0].mxu0
      %v2203 = vpop.f32.mrb[0].mxu0
      %v2204 = vadd.f32 0.0, %v2203
      %v2205 = vpop.f32.mrb[0].mxu0
      %2206 = vmatprep.mubr.bf16.mxu0 0
      %2207 = vmatmul.mubr.bf16.gmra.mrb[0].mxu0 %v2066
      %v2208 = vpop.f32.mrb[0].mxu0
      %v2209 = vadd.f32 0.0, %v2208
      %v2210 = vpop.f32.mrb[0].mxu0
      %v2211 = vpop.f32.mrb[0].mxu0
      %v2212 = vadd.f32 0.0, %v2211
      %v2213 = vpop.f32.mrb[0].mxu0
      %2214 = vmatprep.mubr.bf16.mxu0 0
      %2215 = vmatmul.mubr.bf16.gmra.mrb[0].mxu0 %v2067
      %v2216 = vpop.f32.mrb[0].mxu0
      %v2217 = vadd.f32 0.0, %v2216
      %v2218 = vpop.f32.mrb[0].mxu0
      %v2219 = vpop.f32.mrb[0].mxu0
      %v2220 = vadd.f32 0.0, %v2219
      %v2221 = vpop.f32.mrb[0].mxu0
      %2222 = vmatprep.mubr.bf16.mxu0 0
      %2223 = vmatmul.mubr.bf16.gmra.mrb[0].mxu0 %v2068
      %v2224 = vpop.f32.mrb[0].mxu0
      %v2225 = vadd.f32 0.0, %v2224
      %v2226 = vpop.f32.mrb[0].mxu0
      %v2227 = vpop.f32.mrb[0].mxu0
      %v2228 = vadd.f32 0.0, %v2227
      %v2229 = vpop.f32.mrb[0].mxu0
      %2230 = vmatprep.mubr.bf16.mxu0 0
      %2231 = vmatmul.mubr.bf16.gmra.mrb[0].mxu0 %v2069
      %v2232 = vpop.f32.mrb[0].mxu0
      %v2233 = vadd.f32 0.0, %v2232
      %v2234 = vpop.f32.mrb[0].mxu0
      %v2235 = vpop.f32.mrb[0].mxu0
      %v2236 = vadd.f32 0.0, %v2235
      %v2237 = vpop.f32.mrb[0].mxu0
      %2238 = vmatprep.mubr.bf16.mxu0 0
      %2239 = vmatmul.mubr.bf16.gmra.mrb[0].mxu0 %v2070
      %v2240 = vpop.f32.mrb[0].mxu0
      %v2241 = vadd.f32 0.0, %v2240
      %v2242 = vpop.f32.mrb[0].mxu0
      %v2243 = vpop.f32.mrb[0].mxu0
      %v2244 = vadd.f32 0.0, %v2243
      %v2245 = vpop.f32.mrb[0].mxu0
      %2246 = vmatprep.mubr.bf16.mxu0 0
      %2247 = vmatmul.mubr.bf16.gmra.mrb[0].mxu0 %v2071
      %v2248 = vpop.f32.mrb[0].mxu0
      %v2249 = vadd.f32 0.0, %v2248
      %v2250 = vpop.f32.mrb[0].mxu0
      %v2251 = vpop.f32.mrb[0].mxu0
      %v2252 = vadd.f32 0.0, %v2251
      %v2253 = vpop.f32.mrb[0].mxu0
      %2254 = vmatprep.mubr.bf16.mxu0 0
      %2255 = vmatmul.mubr.bf16.gmra.mrb[0].mxu0 %v2072
      %v2256 = vpop.f32.mrb[0].mxu0
      %v2257 = vadd.f32 0.0, %v2256
      %v2258 = vpop.f32.mrb[0].mxu0
      %v2259 = vpop.f32.mrb[0].mxu0
      %v2260 = vadd.f32 0.0, %v2259
      %v2261 = vpop.f32.mrb[0].mxu0
      %2262 = vmatprep.mubr.bf16.mxu0 0
      %2263 = vmatmul.mubr.bf16.gmra.mrb[0].mxu0 %v2073
      %v2264 = vpop.f32.mrb[0].mxu0
      %v2265 = vadd.f32 0.0, %v2264
      %v2266 = vpop.f32.mrb[0].mxu0
      %v2267 = vpop.f32.mrb[0].mxu0
      %v2268 = vadd.f32 0.0, %v2267
      %v2269 = vpop.f32.mrb[0].mxu0
      %2270 = vmatprep.mubr.bf16.mxu0 0
      %2271 = vmatmul.mubr.bf16.gmra.mrb[0].mxu0 %v2074
      %v2272 = vpop.f32.mrb[0].mxu0
      %v2273 = vadd.f32 0.0, %v2272
      %v2274 = vpop.f32.mrb[0].mxu0
      %v2275 = vpop.f32.mrb[0].mxu0
      %v2276 = vadd.f32 0.0, %v2275
      %v2277 = vpop.f32.mrb[0].mxu0
      %2278 = vmatprep.mubr.bf16.mxu0 0
      %2279 = vmatmul.mubr.bf16.gmra.mrb[0].mxu0 %v2075
      %v2280 = vpop.f32.mrb[0].mxu0
      %v2281 = vadd.f32 0.0, %v2280
      %v2282 = vpop.f32.mrb[0].mxu0
      %v2283 = vpop.f32.mrb[0].mxu0
      %v2284 = vadd.f32 0.0, %v2283
      %v2285 = vpop.f32.mrb[0].mxu0
      %2286 = vmatprep.mubr.bf16.mxu0 0
      %2287 = vmatmul.mubr.bf16.gmra.mrb[0].mxu0 %v2076
      %v2288 = vpop.f32.mrb[0].mxu0
      %v2289 = vadd.f32 0.0, %v2288
      %v2290 = vpop.f32.mrb[0].mxu0
      %v2291 = vpop.f32.mrb[0].mxu0
      %v2292 = vadd.f32 0.0, %v2291
      %v2293 = vpop.f32.mrb[0].mxu0
      %2294 = vmatprep.mubr.bf16.mxu0 0
      %2295 = vmatmul.mubr.bf16.gmra.mrb[0].mxu0 %v2077
      %v2296 = vpop.f32.mrb[0].mxu0
      %v2297 = vadd.f32 0.0, %v2296
      %v2298 = vpop.f32.mrb[0].mxu0
      %v2299 = vpop.f32.mrb[0].mxu0
      %v2300 = vadd.f32 0.0, %v2299
      %v2301 = vpop.f32.mrb[0].mxu0
      %2302 = vdwg.mxu0
      %v2303 = vadd.f32 %v1724, %v2177
      %v2304 = vadd.f32 %v1727, %v2180
      %v2305 = vadd.f32 %v1732, %v2185
      %v2306 = vadd.f32 %v1735, %v2188
      %v2307 = vadd.f32 %v1740, %v2193
      %v2308 = vadd.f32 %v1743, %v2196
      %v2309 = vadd.f32 %v1748, %v2201
      %v2310 = vadd.f32 %v1751, %v2204
      %v2311 = vadd.f32 %v1756, %v2209
      %v2312 = vadd.f32 %v1759, %v2212
      %v2313 = vadd.f32 %v1764, %v2217
      %v2314 = vadd.f32 %v1767, %v2220
      %v2315 = vadd.f32 %v1772, %v2225
      %v2316 = vadd.f32 %v1775, %v2228
      %v2317 = vadd.f32 %v1780, %v2233
      %v2318 = vadd.f32 %v1783, %v2236
      %v2319 = vadd.f32 %v1788, %v2241
      %v2320 = vadd.f32 %v1791, %v2244
      %v2321 = vadd.f32 %v1796, %v2249
      %v2322 = vadd.f32 %v1799, %v2252
      %v2323 = vadd.f32 %v1804, %v2257
      %v2324 = vadd.f32 %v1807, %v2260
      %v2325 = vadd.f32 %v1812, %v2265
      %v2326 = vadd.f32 %v1815, %v2268
      %v2327 = vadd.f32 %v1820, %v2273
      %v2328 = vadd.f32 %v1823, %v2276
      %v2329 = vadd.f32 %v1828, %v2281
      %v2330 = vadd.f32 %v1831, %v2284
      %v2331 = vadd.f32 %v1836, %v2289
      %v2332 = vadd.f32 %v1839, %v2292
      %v2333 = vadd.f32 %v1844, %v2297
      %v2334 = vadd.f32 %v1847, %v2300
      %v2335 = vld [vmem:[%s686] sm:$0xf]
      %v2336 = vld [vmem:[%s686 + $0x4] sm:$0xf]
      %v2337 = vld [vmem:[%s686 + $0xc] sm:$0xf]
      %v2338 = vld [vmem:[%s686 + $0x10] sm:$0xf]
      %v2339 = vld [vmem:[%s686 + $0x18] sm:$0xf]
      %v2340 = vld [vmem:[%s686 + $0x1c] sm:$0xf]
      %v2341 = vld [vmem:[%s686 + $0x24] sm:$0xf]
      %v2342 = vld [vmem:[%s686 + $0x28] sm:$0xf]
      %v2343 = vld [vmem:[%s686 + $0x30] sm:$0xf]
      %v2344 = vld [vmem:[%s686 + $0x34] sm:$0xf]
      %v2345 = vld [vmem:[%s686 + $0x3c] sm:$0xf]
      %v2346 = vld [vmem:[%s686 + $0x40] sm:$0xf]
      %v2347 = vld [vmem:[%s686 + $0x48] sm:$0xf]
      %v2348 = vld [vmem:[%s686 + $0x4c] sm:$0xf]
      %v2349 = vld [vmem:[%s686 + $0x54] sm:$0xf]
      %v2350 = vld [vmem:[%s686 + $0x58] sm:$0xf]
      %v2351 = vld [vmem:[%s686 + $0x60] sm:$0xf]
      %v2352 = vld [vmem:[%s686 + $0x64] sm:$0xf]
      %v2353 = vld [vmem:[%s686 + $0x6c] sm:$0xf]
      %v2354 = vld [vmem:[%s686 + $0x70] sm:$0xf]
      %v2355 = vld [vmem:[%s686 + $0x78] sm:$0xf]
      %v2356 = vld [vmem:[%s686 + $0x7c] sm:$0xf]
      %v2357 = vld [vmem:[%s686 + $0x84] sm:$0xf]
      %v2358 = vld [vmem:[%s686 + $0x88] sm:$0xf]
      %v2359 = vld [vmem:[%s686 + $0x90] sm:$0xf]
      %v2360 = vld [vmem:[%s686 + $0x94] sm:$0xf]
      %v2361 = vld [vmem:[%s686 + $0x9c] sm:$0xf]
      %v2362 = vld [vmem:[%s686 + $0xa0] sm:$0xf]
      %v2363 = vld [vmem:[%s686 + $0xa8] sm:$0xf]
      %v2364 = vld [vmem:[%s686 + $0xac] sm:$0xf]
      %v2365 = vld [vmem:[%s686 + $0xb4] sm:$0xf]
      %v2366 = vld [vmem:[%s686 + $0xb8] sm:$0xf]
      %s2367 = scalar_lea.vmem %s1, 192
      %v2368 = vld [vmem:[%s2367] sm:$0xf]
      %v2369 = vld [vmem:[%s2367 + $0x4] sm:$0xf]
      %v2370 = vld [vmem:[%s2367 + $0x8] sm:$0xf]
      %v2371 = vld [vmem:[%s2367 + $0xc] sm:$0xf]
      %v2372 = vld [vmem:[%s2367 + $0x10] sm:$0xf]
      %v2373 = vld [vmem:[%s2367 + $0x14] sm:$0xf]
      %v2374 = vld [vmem:[%s2367 + $0x18] sm:$0xf]
      %v2375 = vld [vmem:[%s2367 + $0x1c] sm:$0xf]
      %v2376 = vld [vmem:[%s2367 + $0x20] sm:$0xf]
      %v2377 = vld [vmem:[%s2367 + $0x24] sm:$0xf]
      %v2378 = vld [vmem:[%s2367 + $0x28] sm:$0xf]
      %v2379 = vld [vmem:[%s2367 + $0x2c] sm:$0xf]
      %v2380 = vld [vmem:[%s2367 + $0x30] sm:$0xf]
      %v2381 = vld [vmem:[%s2367 + $0x34] sm:$0xf]
      %v2382 = vld [vmem:[%s2367 + $0x38] sm:$0xf]
      %v2383 = vld [vmem:[%s2367 + $0x3c] sm:$0xf]
      %v2416 = vunpack.c.l.b16 %v2335
      %v2417 = vunpack.c.l.b16 %v2336
      %v2418 = vunpack.c.l.b16 %v2337
      %v2419 = vunpack.c.l.b16 %v2338
      %v2420 = vunpack.c.l.b16 %v2339
      %v2421 = vunpack.c.l.b16 %v2340
      %v2422 = vunpack.c.l.b16 %v2341
      %v2423 = vunpack.c.l.b16 %v2342
      %v2424 = vunpack.c.l.b16 %v2343
      %v2425 = vunpack.c.l.b16 %v2344
      %v2426 = vunpack.c.l.b16 %v2345
      %v2427 = vunpack.c.l.b16 %v2346
      %v2428 = vunpack.c.l.b16 %v2347
      %v2429 = vunpack.c.l.b16 %v2348
      %v2430 = vunpack.c.l.b16 %v2349
      %v2431 = vunpack.c.l.b16 %v2350
      %v2432 = vunpack.c.l.b16 %v2351
      %v2433 = vunpack.c.l.b16 %v2352
      %v2434 = vunpack.c.l.b16 %v2353
      %v2435 = vunpack.c.l.b16 %v2354
      %v2436 = vunpack.c.l.b16 %v2355
      %v2437 = vunpack.c.l.b16 %v2356
      %v2438 = vunpack.c.l.b16 %v2357
      %v2439 = vunpack.c.l.b16 %v2358
      %v2440 = vunpack.c.l.b16 %v2359
      %v2441 = vunpack.c.l.b16 %v2360
      %v2442 = vunpack.c.l.b16 %v2361
      %v2443 = vunpack.c.l.b16 %v2362
      %v2444 = vunpack.c.l.b16 %v2363
      %v2445 = vunpack.c.l.b16 %v2364
      %v2446 = vunpack.c.l.b16 %v2365
      %v2447 = vunpack.c.l.b16 %v2366
      %v2448 = vpack.c.b16 %v2417, %v2416
      %v2449 = vpack.c.b16 %v2419, %v2418
      %v2450 = vpack.c.b16 %v2421, %v2420
      %v2451 = vpack.c.b16 %v2423, %v2422
      %v2452 = vpack.c.b16 %v2425, %v2424
      %v2453 = vpack.c.b16 %v2427, %v2426
      %v2454 = vpack.c.b16 %v2429, %v2428
      %v2455 = vpack.c.b16 %v2431, %v2430
      %v2456 = vpack.c.b16 %v2433, %v2432
      %v2457 = vpack.c.b16 %v2435, %v2434
      %v2458 = vpack.c.b16 %v2437, %v2436
      %v2459 = vpack.c.b16 %v2439, %v2438
      %v2460 = vpack.c.b16 %v2441, %v2440
      %v2461 = vpack.c.b16 %v2443, %v2442
      %v2462 = vpack.c.b16 %v2445, %v2444
      %v2463 = vpack.c.b16 %v2447, %v2446
      %v2496 = vunpack.c.l.b16 %v2368
      %v2497 = vunpack.c.l.b16 %v2369
      %v2498 = vunpack.c.l.b16 %v2370
      %v2499 = vunpack.c.l.b16 %v2371
      %v2500 = vunpack.c.l.b16 %v2372
      %v2501 = vunpack.c.l.b16 %v2373
      %v2502 = vunpack.c.l.b16 %v2374
      %v2503 = vunpack.c.l.b16 %v2375
      %v2504 = vunpack.c.l.b16 %v2376
      %v2505 = vunpack.c.l.b16 %v2377
      %v2506 = vunpack.c.l.b16 %v2378
      %v2507 = vunpack.c.l.b16 %v2379
      %v2508 = vunpack.c.l.b16 %v2380
      %v2509 = vunpack.c.l.b16 %v2381
      %v2510 = vunpack.c.l.b16 %v2382
      %v2511 = vunpack.c.l.b16 %v2383
      %v2512 = vpack.c.b16 %v2497, %v2496
      %v2513 = vpack.c.b16 %v2499, %v2498
      %v2514 = vpack.c.b16 %v2501, %v2500
      %v2515 = vpack.c.b16 %v2503, %v2502
      %v2516 = vpack.c.b16 %v2505, %v2504
      %v2517 = vpack.c.b16 %v2507, %v2506
      %v2518 = vpack.c.b16 %v2509, %v2508
      %v2519 = vpack.c.b16 %v2511, %v2510
      %2528 = vmatprep.subr.bf16.mxu0 0
      %2529 = vmatpush1.bf16.msra.mxu0 %v2512
      %2530 = vmatprep.subr.bf16.mxu0 0
      %2531 = vmatpush1.bf16.msra.mxu0 %v2513
      %2532 = vmatprep.subr.bf16.mxu0 0
      %2533 = vmatpush1.bf16.msra.mxu0 %v2514
      %2534 = vmatprep.subr.bf16.mxu0 0
      %2535 = vmatpush1.bf16.msra.mxu0 %v2515
      %2536 = vmatprep.subr.bf16.mxu0 0
      %2537 = vmatpush1.bf16.msra.mxu0 %v2516
      %2538 = vmatprep.subr.bf16.mxu0 0
      %2539 = vmatpush1.bf16.msra.mxu0 %v2517
      %2540 = vmatprep.subr.bf16.mxu0 0
      %2541 = vmatpush1.bf16.msra.mxu0 %v2518
      %2542 = vmatprep.subr.bf16.mxu0 0
      %2543 = vmatpush1.bf16.msra.mxu0 %v2519
      %2544 = vmatprep.subr.bf16.mxu0 0
      %2545 = vmatpush1.bf16.msra.mxu0 0
      %2546 = vmatprep.subr.bf16.mxu0 0
      %2547 = vmatpush1.bf16.msra.mxu0 0
      %2548 = vmatprep.subr.bf16.mxu0 0
      %2549 = vmatpush1.bf16.msra.mxu0 0
      %2550 = vmatprep.subr.bf16.mxu0 0
      %2551 = vmatpush1.bf16.msra.mxu0 0
      %2552 = vmatprep.subr.bf16.mxu0 0
      %2553 = vmatpush1.bf16.msra.mxu0 0
      %2554 = vmatprep.subr.bf16.mxu0 0
      %2555 = vmatpush1.bf16.msra.mxu0 0
      %2556 = vmatprep.subr.bf16.mxu0 0
      %2557 = vmatpush1.bf16.msra.mxu0 0
      %2558 = vmatprep.subr.bf16.mxu0 0
      %2559 = vmatpush1.bf16.msra.mxu0 0
      %2560 = vmatprep.mubr.bf16.mxu0 0
      %2561 = vmatmul.mubr.bf16.gmra.mrb[0].mxu0 %v2448
      %v2562 = vpop.f32.mrb[0].mxu0
      %v2563 = vadd.f32 0.0, %v2562
      %v2564 = vpop.f32.mrb[0].mxu0
      %v2565 = vpop.f32.mrb[0].mxu0
      %v2566 = vadd.f32 0.0, %v2565
      %v2567 = vpop.f32.mrb[0].mxu0
      %2568 = vmatprep.mubr.bf16.mxu0 0
      %2569 = vmatmul.mubr.bf16.gmra.mrb[0].mxu0 %v2449
      %v2570 = vpop.f32.mrb[0].mxu0
      %v2571 = vadd.f32 0.0, %v2570
      %v2572 = vpop.f32.mrb[0].mxu0
      %v2573 = vpop.f32.mrb[0].mxu0
      %v2574 = vadd.f32 0.0, %v2573
      %v2575 = vpop.f32.mrb[0].mxu0
      %2576 = vmatprep.mubr.bf16.mxu0 0
      %2577 = vmatmul.mubr.bf16.gmra.mrb[0].mxu0 %v2450
      %v2578 = vpop.f32.mrb[0].mxu0
      %v2579 = vadd.f32 0.0, %v2578
      %v2580 = vpop.f32.mrb[0].mxu0
      %v2581 = vpop.f32.mrb[0].mxu0
      %v2582 = vadd.f32 0.0, %v2581
      %v2583 = vpop.f32.mrb[0].mxu0
      %2584 = vmatprep.mubr.bf16.mxu0 0
      %2585 = vmatmul.mubr.bf16.gmra.mrb[0].mxu0 %v2451
      %v2586 = vpop.f32.mrb[0].mxu0
      %v2587 = vadd.f32 0.0, %v2586
      %v2588 = vpop.f32.mrb[0].mxu0
      %v2589 = vpop.f32.mrb[0].mxu0
      %v2590 = vadd.f32 0.0, %v2589
      %v2591 = vpop.f32.mrb[0].mxu0
      %2592 = vmatprep.mubr.bf16.mxu0 0
      %2593 = vmatmul.mubr.bf16.gmra.mrb[0].mxu0 %v2452
      %v2594 = vpop.f32.mrb[0].mxu0
      %v2595 = vadd.f32 0.0, %v2594
      %v2596 = vpop.f32.mrb[0].mxu0
      %v2597 = vpop.f32.mrb[0].mxu0
      %v2598 = vadd.f32 0.0, %v2597
      %v2599 = vpop.f32.mrb[0].mxu0
      %2600 = vmatprep.mubr.bf16.mxu0 0
      %2601 = vmatmul.mubr.bf16.gmra.mrb[0].mxu0 %v2453
      %v2602 = vpop.f32.mrb[0].mxu0
      %v2603 = vadd.f32 0.0, %v2602
      %v2604 = vpop.f32.mrb[0].mxu0
      %v2605 = vpop.f32.mrb[0].mxu0
      %v2606 = vadd.f32 0.0, %v2605
      %v2607 = vpop.f32.mrb[0].mxu0
      %2608 = vmatprep.mubr.bf16.mxu0 0
      %2609 = vmatmul.mubr.bf16.gmra.mrb[0].mxu0 %v2454
      %v2610 = vpop.f32.mrb[0].mxu0
      %v2611 = vadd.f32 0.0, %v2610
      %v2612 = vpop.f32.mrb[0].mxu0
      %v2613 = vpop.f32.mrb[0].mxu0
      %v2614 = vadd.f32 0.0, %v2613
      %v2615 = vpop.f32.mrb[0].mxu0
      %2616 = vmatprep.mubr.bf16.mxu0 0
      %2617 = vmatmul.mubr.bf16.gmra.mrb[0].mxu0 %v2455
      %v2618 = vpop.f32.mrb[0].mxu0
      %v2619 = vadd.f32 0.0, %v2618
      %v2620 = vpop.f32.mrb[0].mxu0
      %v2621 = vpop.f32.mrb[0].mxu0
      %v2622 = vadd.f32 0.0, %v2621
      %v2623 = vpop.f32.mrb[0].mxu0
      %2624 = vmatprep.mubr.bf16.mxu0 0
      %2625 = vmatmul.mubr.bf16.gmra.mrb[0].mxu0 %v2456
      %v2626 = vpop.f32.mrb[0].mxu0
      %v2627 = vadd.f32 0.0, %v2626
      %v2628 = vpop.f32.mrb[0].mxu0
      %v2629 = vpop.f32.mrb[0].mxu0
      %v2630 = vadd.f32 0.0, %v2629
      %v2631 = vpop.f32.mrb[0].mxu0
      %2632 = vmatprep.mubr.bf16.mxu0 0
      %2633 = vmatmul.mubr.bf16.gmra.mrb[0].mxu0 %v2457
      %v2634 = vpop.f32.mrb[0].mxu0
      %v2635 = vadd.f32 0.0, %v2634
      %v2636 = vpop.f32.mrb[0].mxu0
      %v2637 = vpop.f32.mrb[0].mxu0
      %v2638 = vadd.f32 0.0, %v2637
      %v2639 = vpop.f32.mrb[0].mxu0
      %2640 = vmatprep.mubr.bf16.mxu0 0
      %2641 = vmatmul.mubr.bf16.gmra.mrb[0].mxu0 %v2458
      %v2642 = vpop.f32.mrb[0].mxu0
      %v2643 = vadd.f32 0.0, %v2642
      %v2644 = vpop.f32.mrb[0].mxu0
      %v2645 = vpop.f32.mrb[0].mxu0
      %v2646 = vadd.f32 0.0, %v2645
      %v2647 = vpop.f32.mrb[0].mxu0
      %2648 = vmatprep.mubr.bf16.mxu0 0
      %2649 = vmatmul.mubr.bf16.gmra.mrb[0].mxu0 %v2459
      %v2650 = vpop.f32.mrb[0].mxu0
      %v2651 = vadd.f32 0.0, %v2650
      %v2652 = vpop.f32.mrb[0].mxu0
      %v2653 = vpop.f32.mrb[0].mxu0
      %v2654 = vadd.f32 0.0, %v2653
      %v2655 = vpop.f32.mrb[0].mxu0
      %2656 = vmatprep.mubr.bf16.mxu0 0
      %2657 = vmatmul.mubr.bf16.gmra.mrb[0].mxu0 %v2460
      %v2658 = vpop.f32.mrb[0].mxu0
      %v2659 = vadd.f32 0.0, %v2658
      %v2660 = vpop.f32.mrb[0].mxu0
      %v2661 = vpop.f32.mrb[0].mxu0
      %v2662 = vadd.f32 0.0, %v2661
      %v2663 = vpop.f32.mrb[0].mxu0
      %2664 = vmatprep.mubr.bf16.mxu0 0
      %2665 = vmatmul.mubr.bf16.gmra.mrb[0].mxu0 %v2461
      %v2666 = vpop.f32.mrb[0].mxu0
      %v2667 = vadd.f32 0.0, %v2666
      %v2668 = vpop.f32.mrb[0].mxu0
      %v2669 = vpop.f32.mrb[0].mxu0
      %v2670 = vadd.f32 0.0, %v2669
      %v2671 = vpop.f32.mrb[0].mxu0
      %2672 = vmatprep.mubr.bf16.mxu0 0
      %2673 = vmatmul.mubr.bf16.gmra.mrb[0].mxu0 %v2462
      %v2674 = vpop.f32.mrb[0].mxu0
      %v2675 = vadd.f32 0.0, %v2674
      %v2676 = vpop.f32.mrb[0].mxu0
      %v2677 = vpop.f32.mrb[0].mxu0
      %v2678 = vadd.f32 0.0, %v2677
      %v2679 = vpop.f32.mrb[0].mxu0
      %2680 = vmatprep.mubr.bf16.mxu0 0
      %2681 = vmatmul.mubr.bf16.gmra.mrb[0].mxu0 %v2463
      %v2682 = vpop.f32.mrb[0].mxu0
      %v2683 = vadd.f32 0.0, %v2682
      %v2684 = vpop.f32.mrb[0].mxu0
      %v2685 = vpop.f32.mrb[0].mxu0
      %v2686 = vadd.f32 0.0, %v2685
      %v2687 = vpop.f32.mrb[0].mxu0
      %2688 = vdwg.mxu0
      %v2689 = vadd.f32 %v2303, %v2563
      %v2690 = vadd.f32 %v2304, %v2566
      %v2691 = vadd.f32 %v2305, %v2571
      %v2692 = vadd.f32 %v2306, %v2574
      %v2693 = vadd.f32 %v2307, %v2579
      %v2694 = vadd.f32 %v2308, %v2582
      %v2695 = vadd.f32 %v2309, %v2587
      %v2696 = vadd.f32 %v2310, %v2590
      %v2697 = vadd.f32 %v2311, %v2595
      %v2698 = vadd.f32 %v2312, %v2598
      %v2699 = vadd.f32 %v2313, %v2603
      %v2700 = vadd.f32 %v2314, %v2606
      %v2701 = vadd.f32 %v2315, %v2611
      %v2702 = vadd.f32 %v2316, %v2614
      %v2703 = vadd.f32 %v2317, %v2619
      %v2704 = vadd.f32 %v2318, %v2622
      %v2705 = vadd.f32 %v2319, %v2627
      %v2706 = vadd.f32 %v2320, %v2630
      %v2707 = vadd.f32 %v2321, %v2635
      %v2708 = vadd.f32 %v2322, %v2638
      %v2709 = vadd.f32 %v2323, %v2643
      %v2710 = vadd.f32 %v2324, %v2646
      %v2711 = vadd.f32 %v2325, %v2651
      %v2712 = vadd.f32 %v2326, %v2654
      %v2713 = vadd.f32 %v2327, %v2659
      %v2714 = vadd.f32 %v2328, %v2662
      %v2715 = vadd.f32 %v2329, %v2667
      %v2716 = vadd.f32 %v2330, %v2670
      %v2717 = vadd.f32 %v2331, %v2675
      %v2718 = vadd.f32 %v2332, %v2678
      %v2719 = vadd.f32 %v2333, %v2683
      %v2720 = vadd.f32 %v2334, %v2686
      %v2721 = vld [vmem:[%s686] sm:$0xf]
      %v2722 = vld [vmem:[%s686 + $0x4] sm:$0xf]
      %v2723 = vld [vmem:[%s686 + $0x8] sm:$0x1]
      %v2724 = vld [vmem:[%s686 + $0xc] sm:$0xf]
      %v2725 = vld [vmem:[%s686 + $0x10] sm:$0xf]
      %v2726 = vld [vmem:[%s686 + $0x14] sm:$0x1]
      %v2727 = vld [vmem:[%s686 + $0x18] sm:$0xf]
      %v2728 = vld [vmem:[%s686 + $0x1c] sm:$0xf]
      %v2729 = vld [vmem:[%s686 + $0x20] sm:$0x1]
      %v2730 = vld [vmem:[%s686 + $0x24] sm:$0xf]
      %v2731 = vld [vmem:[%s686 + $0x28] sm:$0xf]
      %v2732 = vld [vmem:[%s686 + $0x2c] sm:$0x1]
      %v2733 = vld [vmem:[%s686 + $0x30] sm:$0xf]
      %v2734 = vld [vmem:[%s686 + $0x34] sm:$0xf]
      %v2735 = vld [vmem:[%s686 + $0x38] sm:$0x1]
      %v2736 = vld [vmem:[%s686 + $0x3c] sm:$0xf]
      %v2737 = vld [vmem:[%s686 + $0x40] sm:$0xf]
      %v2738 = vld [vmem:[%s686 + $0x44] sm:$0x1]
      %v2739 = vld [vmem:[%s686 + $0x48] sm:$0xf]
      %v2740 = vld [vmem:[%s686 + $0x4c] sm:$0xf]
      %v2741 = vld [vmem:[%s686 + $0x50] sm:$0x1]
      %v2742 = vld [vmem:[%s686 + $0x54] sm:$0xf]
      %v2743 = vld [vmem:[%s686 + $0x58] sm:$0xf]
      %v2744 = vld [vmem:[%s686 + $0x5c] sm:$0x1]
      %v2745 = vld [vmem:[%s686 + $0x60] sm:$0xf]
      %v2746 = vld [vmem:[%s686 + $0x64] sm:$0xf]
      %v2747 = vld [vmem:[%s686 + $0x68] sm:$0x1]
      %v2748 = vld [vmem:[%s686 + $0x6c] sm:$0xf]
      %v2749 = vld [vmem:[%s686 + $0x70] sm:$0xf]
      %v2750 = vld [vmem:[%s686 + $0x74] sm:$0x1]
      %v2751 = vld [vmem:[%s686 + $0x78] sm:$0xf]
      %v2752 = vld [vmem:[%s686 + $0x7c] sm:$0xf]
      %v2753 = vld [vmem:[%s686 + $0x80] sm:$0x1]
      %v2754 = vld [vmem:[%s686 + $0x84] sm:$0xf]
      %v2755 = vld [vmem:[%s686 + $0x88] sm:$0xf]
      %v2756 = vld [vmem:[%s686 + $0x8c] sm:$0x1]
      %v2757 = vld [vmem:[%s686 + $0x90] sm:$0xf]
      %v2758 = vld [vmem:[%s686 + $0x94] sm:$0xf]
      %v2759 = vld [vmem:[%s686 + $0x98] sm:$0x1]
      %v2760 = vld [vmem:[%s686 + $0x9c] sm:$0xf]
      %v2761 = vld [vmem:[%s686 + $0xa0] sm:$0xf]
      %v2762 = vld [vmem:[%s686 + $0xa4] sm:$0x1]
      %v2763 = vld [vmem:[%s686 + $0xa8] sm:$0xf]
      %v2764 = vld [vmem:[%s686 + $0xac] sm:$0xf]
      %v2765 = vld [vmem:[%s686 + $0xb0] sm:$0x1]
      %v2766 = vld [vmem:[%s686 + $0xb4] sm:$0xf]
      %v2767 = vld [vmem:[%s686 + $0xb8] sm:$0xf]
      %v2768 = vld [vmem:[%s686 + $0xbc] sm:$0x1]
      %v2770 = vshrl.u32 %v2721, 16
      %v2772 = vrot.slane %v2770, 4
      %v2773 = vshll.u32 %v2721, 16
      %v2775 = vrot.slane %v2773, 5
      %v2776 = vor.u32 %v2772, %v2775
      %v2777 = vrot.slane %v2776, 4
      %v2779 = vshll.u32 %v2722, 16
      %v2781 = vrot.slane %v2779, 5
      %v2782 = vsel %vm870, %v2777, %v2781
      %v2783 = vshrl.u32 %v2722, 16
      %v2785 = vrot.slane %v2783, 4
      %v2786 = vor.u32 %v2785, %v2781
      %v2787 = vrot.slane %v2786, 4
      %v2789 = vshll.u32 %v2723, 16
      %v2791 = vrot.slane %v2789, 5
      %v2792 = vsel %vm870, %v2787, %v2791
      %v2794 = vshrl.u32 %v2724, 16
      %v2796 = vrot.slane %v2794, 4
      %v2797 = vshll.u32 %v2724, 16
      %v2799 = vrot.slane %v2797, 5
      %v2800 = vor.u32 %v2796, %v2799
      %v2801 = vrot.slane %v2800, 4
      %v2803 = vshll.u32 %v2725, 16
      %v2805 = vrot.slane %v2803, 5
      %v2806 = vsel %vm870, %v2801, %v2805
      %v2807 = vshrl.u32 %v2725, 16
      %v2809 = vrot.slane %v2807, 4
      %v2810 = vor.u32 %v2809, %v2805
      %v2811 = vrot.slane %v2810, 4
      %v2813 = vshll.u32 %v2726, 16
      %v2815 = vrot.slane %v2813, 5
      %v2816 = vsel %vm870, %v2811, %v2815
      %v2818 = vshrl.u32 %v2727, 16
      %v2820 = vrot.slane %v2818, 4
      %v2821 = vshll.u32 %v2727, 16
      %v2823 = vrot.slane %v2821, 5
      %v2824 = vor.u32 %v2820, %v2823
      %v2825 = vrot.slane %v2824, 4
      %v2827 = vshll.u32 %v2728, 16
      %v2829 = vrot.slane %v2827, 5
      %v2830 = vsel %vm870, %v2825, %v2829
      %v2831 = vshrl.u32 %v2728, 16
      %v2833 = vrot.slane %v2831, 4
      %v2834 = vor.u32 %v2833, %v2829
      %v2835 = vrot.slane %v2834, 4
      %v2837 = vshll.u32 %v2729, 16
      %v2839 = vrot.slane %v2837, 5
      %v2840 = vsel %vm870, %v2835, %v2839
      %v2842 = vshrl.u32 %v2730, 16
      %v2844 = vrot.slane %v2842, 4
      %v2845 = vshll.u32 %v2730, 16
      %v2847 = vrot.slane %v2845, 5
      %v2848 = vor.u32 %v2844, %v2847
      %v2849 = vrot.slane %v2848, 4
      %v2851 = vshll.u32 %v2731, 16
      %v2853 = vrot.slane %v2851, 5
      %v2854 = vsel %vm870, %v2849, %v2853
      %v2855 = vshrl.u32 %v2731, 16
      %v2857 = vrot.slane %v2855, 4
      %v2858 = vor.u32 %v2857, %v2853
      %v2859 = vrot.slane %v2858, 4
      %v2861 = vshll.u32 %v2732, 16
      %v2863 = vrot.slane %v2861, 5
      %v2864 = vsel %vm870, %v2859, %v2863
      %v2866 = vshrl.u32 %v2733, 16
      %v2868 = vrot.slane %v2866, 4
      %v2869 = vshll.u32 %v2733, 16
      %v2871 = vrot.slane %v2869, 5
      %v2872 = vor.u32 %v2868, %v2871
      %v2873 = vrot.slane %v2872, 4
      %v2875 = vshll.u32 %v2734, 16
      %v2877 = vrot.slane %v2875, 5
      %v2878 = vsel %vm870, %v2873, %v2877
      %v2879 = vshrl.u32 %v2734, 16
      %v2881 = vrot.slane %v2879, 4
      %v2882 = vor.u32 %v2881, %v2877
      %v2883 = vrot.slane %v2882, 4
      %v2885 = vshll.u32 %v2735, 16
      %v2887 = vrot.slane %v2885, 5
      %v2888 = vsel %vm870, %v2883, %v2887
      %v2890 = vshrl.u32 %v2736, 16
      %v2892 = vrot.slane %v2890, 4
      %v2893 = vshll.u32 %v2736, 16
      %v2895 = vrot.slane %v2893, 5
      %v2896 = vor.u32 %v2892, %v2895
      %v2897 = vrot.slane %v2896, 4
      %v2899 = vshll.u32 %v2737, 16
      %v2901 = vrot.slane %v2899, 5
      %v2902 = vsel %vm870, %v2897, %v2901
      %v2903 = vshrl.u32 %v2737, 16
      %v2905 = vrot.slane %v2903, 4
      %v2906 = vor.u32 %v2905, %v2901
      %v2907 = vrot.slane %v2906, 4
      %v2909 = vshll.u32 %v2738, 16
      %v2911 = vrot.slane %v2909, 5
      %v2912 = vsel %vm870, %v2907, %v2911
      %v2914 = vshrl.u32 %v2739, 16
      %v2916 = vrot.slane %v2914, 4
      %v2917 = vshll.u32 %v2739, 16
      %v2919 = vrot.slane %v2917, 5
      %v2920 = vor.u32 %v2916, %v2919
      %v2921 = vrot.slane %v2920, 4
      %v2923 = vshll.u32 %v2740, 16
      %v2925 = vrot.slane %v2923, 5
      %v2926 = vsel %vm870, %v2921, %v2925
      %v2927 = vshrl.u32 %v2740, 16
      %v2929 = vrot.slane %v2927, 4
      %v2930 = vor.u32 %v2929, %v2925
      %v2931 = vrot.slane %v2930, 4
      %v2933 = vshll.u32 %v2741, 16
      %v2935 = vrot.slane %v2933, 5
      %v2936 = vsel %vm870, %v2931, %v2935
      %v2938 = vshrl.u32 %v2742, 16
      %v2940 = vrot.slane %v2938, 4
      %v2941 = vshll.u32 %v2742, 16
      %v2943 = vrot.slane %v2941, 5
      %v2944 = vor.u32 %v2940, %v2943
      %v2945 = vrot.slane %v2944, 4
      %v2947 = vshll.u32 %v2743, 16
      %v2949 = vrot.slane %v2947, 5
      %v2950 = vsel %vm870, %v2945, %v2949
      %v2951 = vshrl.u32 %v2743, 16
      %v2953 = vrot.slane %v2951, 4
      %v2954 = vor.u32 %v2953, %v2949
      %v2955 = vrot.slane %v2954, 4
      %v2957 = vshll.u32 %v2744, 16
      %v2959 = vrot.slane %v2957, 5
      %v2960 = vsel %vm870, %v2955, %v2959
      %v2962 = vshrl.u32 %v2745, 16
      %v2964 = vrot.slane %v2962, 4
      %v2965 = vshll.u32 %v2745, 16
      %v2967 = vrot.slane %v2965, 5
      %v2968 = vor.u32 %v2964, %v2967
      %v2969 = vrot.slane %v2968, 4
      %v2971 = vshll.u32 %v2746, 16
      %v2973 = vrot.slane %v2971, 5
      %v2974 = vsel %vm870, %v2969, %v2973
      %v2975 = vshrl.u32 %v2746, 16
      %v2977 = vrot.slane %v2975, 4
      %v2978 = vor.u32 %v2977, %v2973
      %v2979 = vrot.slane %v2978, 4
      %v2981 = vshll.u32 %v2747, 16
      %v2983 = vrot.slane %v2981, 5
      %v2984 = vsel %vm870, %v2979, %v2983
      %v2986 = vshrl.u32 %v2748, 16
      %v2988 = vrot.slane %v2986, 4
      %v2989 = vshll.u32 %v2748, 16
      %v2991 = vrot.slane %v2989, 5
      %v2992 = vor.u32 %v2988, %v2991
      %v2993 = vrot.slane %v2992, 4
      %v2995 = vshll.u32 %v2749, 16
      %v2997 = vrot.slane %v2995, 5
      %v2998 = vsel %vm870, %v2993, %v2997
      %v2999 = vshrl.u32 %v2749, 16
      %v3001 = vrot.slane %v2999, 4
      %v3002 = vor.u32 %v3001, %v2997
      %v3003 = vrot.slane %v3002, 4
      %v3005 = vshll.u32 %v2750, 16
      %v3007 = vrot.slane %v3005, 5
      %v3008 = vsel %vm870, %v3003, %v3007
      %v3010 = vshrl.u32 %v2751, 16
      %v3012 = vrot.slane %v3010, 4
      %v3013 = vshll.u32 %v2751, 16
      %v3015 = vrot.slane %v3013, 5
      %v3016 = vor.u32 %v3012, %v3015
      %v3017 = vrot.slane %v3016, 4
      %v3019 = vshll.u32 %v2752, 16
      %v3021 = vrot.slane %v3019, 5
      %v3022 = vsel %vm870, %v3017, %v3021
      %v3023 = vshrl.u32 %v2752, 16
      %v3025 = vrot.slane %v3023, 4
      %v3026 = vor.u32 %v3025, %v3021
      %v3027 = vrot.slane %v3026, 4
      %v3029 = vshll.u32 %v2753, 16
      %v3031 = vrot.slane %v3029, 5
      %v3032 = vsel %vm870, %v3027, %v3031
      %v3034 = vshrl.u32 %v2754, 16
      %v3036 = vrot.slane %v3034, 4
      %v3037 = vshll.u32 %v2754, 16
      %v3039 = vrot.slane %v3037, 5
      %v3040 = vor.u32 %v3036, %v3039
      %v3041 = vrot.slane %v3040, 4
      %v3043 = vshll.u32 %v2755, 16
      %v3045 = vrot.slane %v3043, 5
      %v3046 = vsel %vm870, %v3041, %v3045
      %v3047 = vshrl.u32 %v2755, 16
      %v3049 = vrot.slane %v3047, 4
      %v3050 = vor.u32 %v3049, %v3045
      %v3051 = vrot.slane %v3050, 4
      %v3053 = vshll.u32 %v2756, 16
      %v3055 = vrot.slane %v3053, 5
      %v3056 = vsel %vm870, %v3051, %v3055
      %v3058 = vshrl.u32 %v2757, 16
      %v3060 = vrot.slane %v3058, 4
      %v3061 = vshll.u32 %v2757, 16
      %v3063 = vrot.slane %v3061, 5
      %v3064 = vor.u32 %v3060, %v3063
      %v3065 = vrot.slane %v3064, 4
      %v3067 = vshll.u32 %v2758, 16
      %v3069 = vrot.slane %v3067, 5
      %v3070 = vsel %vm870, %v3065, %v3069
      %v3071 = vshrl.u32 %v2758, 16
      %v3073 = vrot.slane %v3071, 4
      %v3074 = vor.u32 %v3073, %v3069
      %v3075 = vrot.slane %v3074, 4
      %v3077 = vshll.u32 %v2759, 16
      %v3079 = vrot.slane %v3077, 5
      %v3080 = vsel %vm870, %v3075, %v3079
      %v3082 = vshrl.u32 %v2760, 16
      %v3084 = vrot.slane %v3082, 4
      %v3085 = vshll.u32 %v2760, 16
      %v3087 = vrot.slane %v3085, 5
      %v3088 = vor.u32 %v3084, %v3087
      %v3089 = vrot.slane %v3088, 4
      %v3091 = vshll.u32 %v2761, 16
      %v3093 = vrot.slane %v3091, 5
      %v3094 = vsel %vm870, %v3089, %v3093
      %v3095 = vshrl.u32 %v2761, 16
      %v3097 = vrot.slane %v3095, 4
      %v3098 = vor.u32 %v3097, %v3093
      %v3099 = vrot.slane %v3098, 4
      %v3101 = vshll.u32 %v2762, 16
      %v3103 = vrot.slane %v3101, 5
      %v3104 = vsel %vm870, %v3099, %v3103
      %v3106 = vshrl.u32 %v2763, 16
      %v3108 = vrot.slane %v3106, 4
      %v3109 = vshll.u32 %v2763, 16
      %v3111 = vrot.slane %v3109, 5
      %v3112 = vor.u32 %v3108, %v3111
      %v3113 = vrot.slane %v3112, 4
      %v3115 = vshll.u32 %v2764, 16
      %v3117 = vrot.slane %v3115, 5
      %v3118 = vsel %vm870, %v3113, %v3117
      %v3119 = vshrl.u32 %v2764, 16
      %v3121 = vrot.slane %v3119, 4
      %v3122 = vor.u32 %v3121, %v3117
      %v3123 = vrot.slane %v3122, 4
      %v3125 = vshll.u32 %v2765, 16
      %v3127 = vrot.slane %v3125, 5
      %v3128 = vsel %vm870, %v3123, %v3127
      %v3130 = vshrl.u32 %v2766, 16
      %v3132 = vrot.slane %v3130, 4
      %v3133 = vshll.u32 %v2766, 16
      %v3135 = vrot.slane %v3133, 5
      %v3136 = vor.u32 %v3132, %v3135
      %v3137 = vrot.slane %v3136, 4
      %v3139 = vshll.u32 %v2767, 16
      %v3141 = vrot.slane %v3139, 5
      %v3142 = vsel %vm870, %v3137, %v3141
      %v3143 = vshrl.u32 %v2767, 16
      %v3145 = vrot.slane %v3143, 4
      %v3146 = vor.u32 %v3145, %v3141
      %v3147 = vrot.slane %v3146, 4
      %v3149 = vshll.u32 %v2768, 16
      %v3151 = vrot.slane %v3149, 5
      %v3152 = vsel %vm870, %v3147, %v3151
      %s3153 = scalar_lea.vmem %s1, 256
      %v3154 = vld [vmem:[%s3153] sm:$0xf]
      %v3155 = vld [vmem:[%s3153 + $0x4] sm:$0xf]
      %v3156 = vld [vmem:[%s3153 + $0x8] sm:$0xf]
      %v3157 = vld [vmem:[%s3153 + $0xc] sm:$0xf]
      %v3158 = vld [vmem:[%s3153 + $0x10] sm:$0xf]
      %v3159 = vld [vmem:[%s3153 + $0x14] sm:$0xf]
      %v3160 = vld [vmem:[%s3153 + $0x18] sm:$0xf]
      %v3161 = vld [vmem:[%s3153 + $0x1c] sm:$0xf]
      %v3162 = vld [vmem:[%s3153 + $0x20] sm:$0xf]
      %v3163 = vld [vmem:[%s3153 + $0x24] sm:$0xf]
      %v3164 = vld [vmem:[%s3153 + $0x28] sm:$0xf]
      %v3165 = vld [vmem:[%s3153 + $0x2c] sm:$0xf]
      %v3166 = vld [vmem:[%s3153 + $0x30] sm:$0xf]
      %v3167 = vld [vmem:[%s3153 + $0x34] sm:$0xf]
      %v3168 = vld [vmem:[%s3153 + $0x38] sm:$0xf]
      %v3169 = vld [vmem:[%s3153 + $0x3c] sm:$0xf]
      %v3170 = vunpack.c.l.b16 %v2782
      %v3171 = vunpack.c.l.b16 %v2792
      %v3172 = vunpack.c.l.b16 %v2806
      %v3173 = vunpack.c.l.b16 %v2816
      %v3174 = vunpack.c.l.b16 %v2830
      %v3175 = vunpack.c.l.b16 %v2840
      %v3176 = vunpack.c.l.b16 %v2854
      %v3177 = vunpack.c.l.b16 %v2864
      %v3178 = vunpack.c.l.b16 %v2878
      %v3179 = vunpack.c.l.b16 %v2888
      %v3180 = vunpack.c.l.b16 %v2902
      %v3181 = vunpack.c.l.b16 %v2912
      %v3182 = vunpack.c.l.b16 %v2926
      %v3183 = vunpack.c.l.b16 %v2936
      %v3184 = vunpack.c.l.b16 %v2950
      %v3185 = vunpack.c.l.b16 %v2960
      %v3186 = vunpack.c.l.b16 %v2974
      %v3187 = vunpack.c.l.b16 %v2984
      %v3188 = vunpack.c.l.b16 %v2998
      %v3189 = vunpack.c.l.b16 %v3008
      %v3190 = vunpack.c.l.b16 %v3022
      %v3191 = vunpack.c.l.b16 %v3032
      %v3192 = vunpack.c.l.b16 %v3046
      %v3193 = vunpack.c.l.b16 %v3056
      %v3194 = vunpack.c.l.b16 %v3070
      %v3195 = vunpack.c.l.b16 %v3080
      %v3196 = vunpack.c.l.b16 %v3094
      %v3197 = vunpack.c.l.b16 %v3104
      %v3198 = vunpack.c.l.b16 %v3118
      %v3199 = vunpack.c.l.b16 %v3128
      %v3200 = vunpack.c.l.b16 %v3142
      %v3201 = vunpack.c.l.b16 %v3152
      %v3202 = vpack.c.b16 %v3171, %v3170
      %v3203 = vpack.c.b16 %v3173, %v3172
      %v3204 = vpack.c.b16 %v3175, %v3174
      %v3205 = vpack.c.b16 %v3177, %v3176
      %v3206 = vpack.c.b16 %v3179, %v3178
      %v3207 = vpack.c.b16 %v3181, %v3180
      %v3208 = vpack.c.b16 %v3183, %v3182
      %v3209 = vpack.c.b16 %v3185, %v3184
      %v3210 = vpack.c.b16 %v3187, %v3186
      %v3211 = vpack.c.b16 %v3189, %v3188
      %v3212 = vpack.c.b16 %v3191, %v3190
      %v3213 = vpack.c.b16 %v3193, %v3192
      %v3214 = vpack.c.b16 %v3195, %v3194
      %v3215 = vpack.c.b16 %v3197, %v3196
      %v3216 = vpack.c.b16 %v3199, %v3198
      %v3217 = vpack.c.b16 %v3201, %v3200
      %v3250 = vunpack.c.l.b16 %v3154
      %v3251 = vunpack.c.l.b16 %v3155
      %v3252 = vunpack.c.l.b16 %v3156
      %v3253 = vunpack.c.l.b16 %v3157
      %v3254 = vunpack.c.l.b16 %v3158
      %v3255 = vunpack.c.l.b16 %v3159
      %v3256 = vunpack.c.l.b16 %v3160
      %v3257 = vunpack.c.l.b16 %v3161
      %v3258 = vunpack.c.l.b16 %v3162
      %v3259 = vunpack.c.l.b16 %v3163
      %v3260 = vunpack.c.l.b16 %v3164
      %v3261 = vunpack.c.l.b16 %v3165
      %v3262 = vunpack.c.l.b16 %v3166
      %v3263 = vunpack.c.l.b16 %v3167
      %v3264 = vunpack.c.l.b16 %v3168
      %v3265 = vunpack.c.l.b16 %v3169
      %v3266 = vpack.c.b16 %v3251, %v3250
      %v3267 = vpack.c.b16 %v3253, %v3252
      %v3268 = vpack.c.b16 %v3255, %v3254
      %v3269 = vpack.c.b16 %v3257, %v3256
      %v3270 = vpack.c.b16 %v3259, %v3258
      %v3271 = vpack.c.b16 %v3261, %v3260
      %v3272 = vpack.c.b16 %v3263, %v3262
      %v3273 = vpack.c.b16 %v3265, %v3264
      %3282 = vmatprep.subr.bf16.mxu0 0
      %3283 = vmatpush1.bf16.msra.mxu0 %v3266
      %3284 = vmatprep.subr.bf16.mxu0 0
      %3285 = vmatpush1.bf16.msra.mxu0 %v3267
      %3286 = vmatprep.subr.bf16.mxu0 0
      %3287 = vmatpush1.bf16.msra.mxu0 %v3268
      %3288 = vmatprep.subr.bf16.mxu0 0
      %3289 = vmatpush1.bf16.msra.mxu0 %v3269
      %3290 = vmatprep.subr.bf16.mxu0 0
      %3291 = vmatpush1.bf16.msra.mxu0 %v3270
      %3292 = vmatprep.subr.bf16.mxu0 0
      %3293 = vmatpush1.bf16.msra.mxu0 %v3271
      %3294 = vmatprep.subr.bf16.mxu0 0
      %3295 = vmatpush1.bf16.msra.mxu0 %v3272
      %3296 = vmatprep.subr.bf16.mxu0 0
      %3297 = vmatpush1.bf16.msra.mxu0 %v3273
      %3298 = vmatprep.subr.bf16.mxu0 0
      %3299 = vmatpush1.bf16.msra.mxu0 0
      %3300 = vmatprep.subr.bf16.mxu0 0
      %3301 = vmatpush1.bf16.msra.mxu0 0
      %3302 = vmatprep.subr.bf16.mxu0 0
      %3303 = vmatpush1.bf16.msra.mxu0 0
      %3304 = vmatprep.subr.bf16.mxu0 0
      %3305 = vmatpush1.bf16.msra.mxu0 0
      %3306 = vmatprep.subr.bf16.mxu0 0
      %3307 = vmatpush1.bf16.msra.mxu0 0
      %3308 = vmatprep.subr.bf16.mxu0 0
      %3309 = vmatpush1.bf16.msra.mxu0 0
      %3310 = vmatprep.subr.bf16.mxu0 0
      %3311 = vmatpush1.bf16.msra.mxu0 0
      %3312 = vmatprep.subr.bf16.mxu0 0
      %3313 = vmatpush1.bf16.msra.mxu0 0
      %3314 = vmatprep.mubr.bf16.mxu0 0
      %3315 = vmatmul.mubr.bf16.gmra.mrb[0].mxu0 %v3202
      %v3316 = vpop.f32.mrb[0].mxu0
      %v3317 = vadd.f32 0.0, %v3316
      %v3318 = vpop.f32.mrb[0].mxu0
      %v3319 = vpop.f32.mrb[0].mxu0
      %v3320 = vadd.f32 0.0, %v3319
      %v3321 = vpop.f32.mrb[0].mxu0
      %3322 = vmatprep.mubr.bf16.mxu0 0
      %3323 = vmatmul.mubr.bf16.gmra.mrb[0].mxu0 %v3203
      %v3324 = vpop.f32.mrb[0].mxu0
      %v3325 = vadd.f32 0.0, %v3324
      %v3326 = vpop.f32.mrb[0].mxu0
      %v3327 = vpop.f32.mrb[0].mxu0
      %v3328 = vadd.f32 0.0, %v3327
      %v3329 = vpop.f32.mrb[0].mxu0
      %3330 = vmatprep.mubr.bf16.mxu0 0
      %3331 = vmatmul.mubr.bf16.gmra.mrb[0].mxu0 %v3204
      %v3332 = vpop.f32.mrb[0].mxu0
      %v3333 = vadd.f32 0.0, %v3332
      %v3334 = vpop.f32.mrb[0].mxu0
      %v3335 = vpop.f32.mrb[0].mxu0
      %v3336 = vadd.f32 0.0, %v3335
      %v3337 = vpop.f32.mrb[0].mxu0
      %3338 = vmatprep.mubr.bf16.mxu0 0
      %3339 = vmatmul.mubr.bf16.gmra.mrb[0].mxu0 %v3205
      %v3340 = vpop.f32.mrb[0].mxu0
      %v3341 = vadd.f32 0.0, %v3340
      %v3342 = vpop.f32.mrb[0].mxu0
      %v3343 = vpop.f32.mrb[0].mxu0
      %v3344 = vadd.f32 0.0, %v3343
      %v3345 = vpop.f32.mrb[0].mxu0
      %3346 = vmatprep.mubr.bf16.mxu0 0
      %3347 = vmatmul.mubr.bf16.gmra.mrb[0].mxu0 %v3206
      %v3348 = vpop.f32.mrb[0].mxu0
      %v3349 = vadd.f32 0.0, %v3348
      %v3350 = vpop.f32.mrb[0].mxu0
      %v3351 = vpop.f32.mrb[0].mxu0
      %v3352 = vadd.f32 0.0, %v3351
      %v3353 = vpop.f32.mrb[0].mxu0
      %3354 = vmatprep.mubr.bf16.mxu0 0
      %3355 = vmatmul.mubr.bf16.gmra.mrb[0].mxu0 %v3207
      %v3356 = vpop.f32.mrb[0].mxu0
      %v3357 = vadd.f32 0.0, %v3356
      %v3358 = vpop.f32.mrb[0].mxu0
      %v3359 = vpop.f32.mrb[0].mxu0
      %v3360 = vadd.f32 0.0, %v3359
      %v3361 = vpop.f32.mrb[0].mxu0
      %3362 = vmatprep.mubr.bf16.mxu0 0
      %3363 = vmatmul.mubr.bf16.gmra.mrb[0].mxu0 %v3208
      %v3364 = vpop.f32.mrb[0].mxu0
      %v3365 = vadd.f32 0.0, %v3364
      %v3366 = vpop.f32.mrb[0].mxu0
      %v3367 = vpop.f32.mrb[0].mxu0
      %v3368 = vadd.f32 0.0, %v3367
      %v3369 = vpop.f32.mrb[0].mxu0
      %3370 = vmatprep.mubr.bf16.mxu0 0
      %3371 = vmatmul.mubr.bf16.gmra.mrb[0].mxu0 %v3209
      %v3372 = vpop.f32.mrb[0].mxu0
      %v3373 = vadd.f32 0.0, %v3372
      %v3374 = vpop.f32.mrb[0].mxu0
      %v3375 = vpop.f32.mrb[0].mxu0
      %v3376 = vadd.f32 0.0, %v3375
      %v3377 = vpop.f32.mrb[0].mxu0
      %3378 = vmatprep.mubr.bf16.mxu0 0
      %3379 = vmatmul.mubr.bf16.gmra.mrb[0].mxu0 %v3210
      %v3380 = vpop.f32.mrb[0].mxu0
      %v3381 = vadd.f32 0.0, %v3380
      %v3382 = vpop.f32.mrb[0].mxu0
      %v3383 = vpop.f32.mrb[0].mxu0
      %v3384 = vadd.f32 0.0, %v3383
      %v3385 = vpop.f32.mrb[0].mxu0
      %3386 = vmatprep.mubr.bf16.mxu0 0
      %3387 = vmatmul.mubr.bf16.gmra.mrb[0].mxu0 %v3211
      %v3388 = vpop.f32.mrb[0].mxu0
      %v3389 = vadd.f32 0.0, %v3388
      %v3390 = vpop.f32.mrb[0].mxu0
      %v3391 = vpop.f32.mrb[0].mxu0
      %v3392 = vadd.f32 0.0, %v3391
      %v3393 = vpop.f32.mrb[0].mxu0
      %3394 = vmatprep.mubr.bf16.mxu0 0
      %3395 = vmatmul.mubr.bf16.gmra.mrb[0].mxu0 %v3212
      %v3396 = vpop.f32.mrb[0].mxu0
      %v3397 = vadd.f32 0.0, %v3396
      %v3398 = vpop.f32.mrb[0].mxu0
      %v3399 = vpop.f32.mrb[0].mxu0
      %v3400 = vadd.f32 0.0, %v3399
      %v3401 = vpop.f32.mrb[0].mxu0
      %3402 = vmatprep.mubr.bf16.mxu0 0
      %3403 = vmatmul.mubr.bf16.gmra.mrb[0].mxu0 %v3213
      %v3404 = vpop.f32.mrb[0].mxu0
      %v3405 = vadd.f32 0.0, %v3404
      %v3406 = vpop.f32.mrb[0].mxu0
      %v3407 = vpop.f32.mrb[0].mxu0
      %v3408 = vadd.f32 0.0, %v3407
      %v3409 = vpop.f32.mrb[0].mxu0
      %3410 = vmatprep.mubr.bf16.mxu0 0
      %3411 = vmatmul.mubr.bf16.gmra.mrb[0].mxu0 %v3214
      %v3412 = vpop.f32.mrb[0].mxu0
      %v3413 = vadd.f32 0.0, %v3412
      %v3414 = vpop.f32.mrb[0].mxu0
      %v3415 = vpop.f32.mrb[0].mxu0
      %v3416 = vadd.f32 0.0, %v3415
      %v3417 = vpop.f32.mrb[0].mxu0
      %3418 = vmatprep.mubr.bf16.mxu0 0
      %3419 = vmatmul.mubr.bf16.gmra.mrb[0].mxu0 %v3215
      %v3420 = vpop.f32.mrb[0].mxu0
      %v3421 = vadd.f32 0.0, %v3420
      %v3422 = vpop.f32.mrb[0].mxu0
      %v3423 = vpop.f32.mrb[0].mxu0
      %v3424 = vadd.f32 0.0, %v3423
      %v3425 = vpop.f32.mrb[0].mxu0
      %3426 = vmatprep.mubr.bf16.mxu0 0
      %3427 = vmatmul.mubr.bf16.gmra.mrb[0].mxu0 %v3216
      %v3428 = vpop.f32.mrb[0].mxu0
      %v3429 = vadd.f32 0.0, %v3428
      %v3430 = vpop.f32.mrb[0].mxu0
      %v3431 = vpop.f32.mrb[0].mxu0
      %v3432 = vadd.f32 0.0, %v3431
      %v3433 = vpop.f32.mrb[0].mxu0
      %3434 = vmatprep.mubr.bf16.mxu0 0
      %3435 = vmatmul.mubr.bf16.gmra.mrb[0].mxu0 %v3217
      %v3436 = vpop.f32.mrb[0].mxu0
      %v3437 = vadd.f32 0.0, %v3436
      %v3438 = vpop.f32.mrb[0].mxu0
      %v3439 = vpop.f32.mrb[0].mxu0
      %v3440 = vadd.f32 0.0, %v3439
      %v3441 = vpop.f32.mrb[0].mxu0
      %3442 = vdwg.mxu0
      %v3443 = vadd.f32 %v2689, %v3317
      %v3444 = vadd.f32 %v2690, %v3320
      %v3445 = vadd.f32 %v2691, %v3325
      %v3446 = vadd.f32 %v2692, %v3328
      %v3447 = vadd.f32 %v2693, %v3333
      %v3448 = vadd.f32 %v2694, %v3336
      %v3449 = vadd.f32 %v2695, %v3341
      %v3450 = vadd.f32 %v2696, %v3344
      %v3451 = vadd.f32 %v2697, %v3349
      %v3452 = vadd.f32 %v2698, %v3352
      %v3453 = vadd.f32 %v2699, %v3357
      %v3454 = vadd.f32 %v2700, %v3360
      %v3455 = vadd.f32 %v2701, %v3365
      %v3456 = vadd.f32 %v2702, %v3368
      %v3457 = vadd.f32 %v2703, %v3373
      %v3458 = vadd.f32 %v2704, %v3376
      %v3459 = vadd.f32 %v2705, %v3381
      %v3460 = vadd.f32 %v2706, %v3384
      %v3461 = vadd.f32 %v2707, %v3389
      %v3462 = vadd.f32 %v2708, %v3392
      %v3463 = vadd.f32 %v2709, %v3397
      %v3464 = vadd.f32 %v2710, %v3400
      %v3465 = vadd.f32 %v2711, %v3405
      %v3466 = vadd.f32 %v2712, %v3408
      %v3467 = vadd.f32 %v2713, %v3413
      %v3468 = vadd.f32 %v2714, %v3416
      %v3469 = vadd.f32 %v2715, %v3421
      %v3470 = vadd.f32 %v2716, %v3424
      %v3471 = vadd.f32 %v2717, %v3429
      %v3472 = vadd.f32 %v2718, %v3432
      %v3473 = vadd.f32 %v2719, %v3437
      %v3474 = vadd.f32 %v2720, %v3440
      %v3475 = vld [vmem:[%s686] sm:$0xe]
      %v3476 = vld [vmem:[%s686 + $0xc] sm:$0xe]
      %v3477 = vld [vmem:[%s686 + $0x18] sm:$0xe]
      %v3478 = vld [vmem:[%s686 + $0x24] sm:$0xe]
      %v3479 = vld [vmem:[%s686 + $0x30] sm:$0xe]
      %v3480 = vld [vmem:[%s686 + $0x3c] sm:$0xe]
      %v3481 = vld [vmem:[%s686 + $0x48] sm:$0xe]
      %v3482 = vld [vmem:[%s686 + $0x54] sm:$0xe]
      %v3483 = vld [vmem:[%s686 + $0x60] sm:$0xe]
      %v3484 = vld [vmem:[%s686 + $0x6c] sm:$0xe]
      %v3485 = vld [vmem:[%s686 + $0x78] sm:$0xe]
      %v3486 = vld [vmem:[%s686 + $0x84] sm:$0xe]
      %v3487 = vld [vmem:[%s686 + $0x90] sm:$0xe]
      %v3488 = vld [vmem:[%s686 + $0x9c] sm:$0xe]
      %v3489 = vld [vmem:[%s686 + $0xa8] sm:$0xe]
      %v3490 = vld [vmem:[%s686 + $0xb4] sm:$0xe]
      %v3539 = vrot.slane %v3475, 5
      %v3540 = vrot.slane %v3539, 4
      %v3541 = vrot.slane %v2722, 5
      %v3542 = vsel %vm1900, %v3540, %v3541
      %v3543 = vrot.slane %v3541, 4
      %v3544 = vrot.slane %v2723, 5
      %v3545 = vsel %vm1900, %v3543, %v3544
      %v3546 = vrot.slane %v3476, 5
      %v3547 = vrot.slane %v3546, 4
      %v3548 = vrot.slane %v2725, 5
      %v3549 = vsel %vm1900, %v3547, %v3548
      %v3550 = vrot.slane %v3548, 4
      %v3551 = vrot.slane %v2726, 5
      %v3552 = vsel %vm1900, %v3550, %v3551
      %v3553 = vrot.slane %v3477, 5
      %v3554 = vrot.slane %v3553, 4
      %v3555 = vrot.slane %v2728, 5
      %v3556 = vsel %vm1900, %v3554, %v3555
      %v3557 = vrot.slane %v3555, 4
      %v3558 = vrot.slane %v2729, 5
      %v3559 = vsel %vm1900, %v3557, %v3558
      %v3560 = vrot.slane %v3478, 5
      %v3561 = vrot.slane %v3560, 4
      %v3562 = vrot.slane %v2731, 5
      %v3563 = vsel %vm1900, %v3561, %v3562
      %v3564 = vrot.slane %v3562, 4
      %v3565 = vrot.slane %v2732, 5
      %v3566 = vsel %vm1900, %v3564, %v3565
      %v3567 = vrot.slane %v3479, 5
      %v3568 = vrot.slane %v3567, 4
      %v3569 = vrot.slane %v2734, 5
      %v3570 = vsel %vm1900, %v3568, %v3569
      %v3571 = vrot.slane %v3569, 4
      %v3572 = vrot.slane %v2735, 5
      %v3573 = vsel %vm1900, %v3571, %v3572
      %v3574 = vrot.slane %v3480, 5
      %v3575 = vrot.slane %v3574, 4
      %v3576 = vrot.slane %v2737, 5
      %v3577 = vsel %vm1900, %v3575, %v3576
      %v3578 = vrot.slane %v3576, 4
      %v3579 = vrot.slane %v2738, 5
      %v3580 = vsel %vm1900, %v3578, %v3579
      %v3581 = vrot.slane %v3481, 5
      %v3582 = vrot.slane %v3581, 4
      %v3583 = vrot.slane %v2740, 5
      %v3584 = vsel %vm1900, %v3582, %v3583
      %v3585 = vrot.slane %v3583, 4
      %v3586 = vrot.slane %v2741, 5
      %v3587 = vsel %vm1900, %v3585, %v3586
      %v3588 = vrot.slane %v3482, 5
      %v3589 = vrot.slane %v3588, 4
      %v3590 = vrot.slane %v2743, 5
      %v3591 = vsel %vm1900, %v3589, %v3590
      %v3592 = vrot.slane %v3590, 4
      %v3593 = vrot.slane %v2744, 5
      %v3594 = vsel %vm1900, %v3592, %v3593
      %v3595 = vrot.slane %v3483, 5
      %v3596 = vrot.slane %v3595, 4
      %v3597 = vrot.slane %v2746, 5
      %v3598 = vsel %vm1900, %v3596, %v3597
      %v3599 = vrot.slane %v3597, 4
      %v3600 = vrot.slane %v2747, 5
      %v3601 = vsel %vm1900, %v3599, %v3600
      %v3602 = vrot.slane %v3484, 5
      %v3603 = vrot.slane %v3602, 4
      %v3604 = vrot.slane %v2749, 5
      %v3605 = vsel %vm1900, %v3603, %v3604
      %v3606 = vrot.slane %v3604, 4
      %v3607 = vrot.slane %v2750, 5
      %v3608 = vsel %vm1900, %v3606, %v3607
      %v3609 = vrot.slane %v3485, 5
      %v3610 = vrot.slane %v3609, 4
      %v3611 = vrot.slane %v2752, 5
      %v3612 = vsel %vm1900, %v3610, %v3611
      %v3613 = vrot.slane %v3611, 4
      %v3614 = vrot.slane %v2753, 5
      %v3615 = vsel %vm1900, %v3613, %v3614
      %v3616 = vrot.slane %v3486, 5
      %v3617 = vrot.slane %v3616, 4
      %v3618 = vrot.slane %v2755, 5
      %v3619 = vsel %vm1900, %v3617, %v3618
      %v3620 = vrot.slane %v3618, 4
      %v3621 = vrot.slane %v2756, 5
      %v3622 = vsel %vm1900, %v3620, %v3621
      %v3623 = vrot.slane %v3487, 5
      %v3624 = vrot.slane %v3623, 4
      %v3625 = vrot.slane %v2758, 5
      %v3626 = vsel %vm1900, %v3624, %v3625
      %v3627 = vrot.slane %v3625, 4
      %v3628 = vrot.slane %v2759, 5
      %v3629 = vsel %vm1900, %v3627, %v3628
      %v3630 = vrot.slane %v3488, 5
      %v3631 = vrot.slane %v3630, 4
      %v3632 = vrot.slane %v2761, 5
      %v3633 = vsel %vm1900, %v3631, %v3632
      %v3634 = vrot.slane %v3632, 4
      %v3635 = vrot.slane %v2762, 5
      %v3636 = vsel %vm1900, %v3634, %v3635
      %v3637 = vrot.slane %v3489, 5
      %v3638 = vrot.slane %v3637, 4
      %v3639 = vrot.slane %v2764, 5
      %v3640 = vsel %vm1900, %v3638, %v3639
      %v3641 = vrot.slane %v3639, 4
      %v3642 = vrot.slane %v2765, 5
      %v3643 = vsel %vm1900, %v3641, %v3642
      %v3644 = vrot.slane %v3490, 5
      %v3645 = vrot.slane %v3644, 4
      %v3646 = vrot.slane %v2767, 5
      %v3647 = vsel %vm1900, %v3645, %v3646
      %v3648 = vrot.slane %v3646, 4
      %v3649 = vrot.slane %v2768, 5
      %v3650 = vsel %vm1900, %v3648, %v3649
      %s3651 = scalar_lea.vmem %s1, 320
      %v3652 = vld [vmem:[%s3651] sm:$0xf]
      %v3653 = vld [vmem:[%s3651 + $0x4] sm:$0xf]
      %v3654 = vld [vmem:[%s3651 + $0x8] sm:$0xf]
      %v3655 = vld [vmem:[%s3651 + $0xc] sm:$0xf]
      %v3656 = vld [vmem:[%s3651 + $0x10] sm:$0xf]
      %v3657 = vld [vmem:[%s3651 + $0x14] sm:$0xf]
      %v3658 = vld [vmem:[%s3651 + $0x18] sm:$0xf]
      %v3659 = vld [vmem:[%s3651 + $0x1c] sm:$0xf]
      %v3660 = vld [vmem:[%s3651 + $0x20] sm:$0xf]
      %v3661 = vld [vmem:[%s3651 + $0x24] sm:$0xf]
      %v3662 = vld [vmem:[%s3651 + $0x28] sm:$0xf]
      %v3663 = vld [vmem:[%s3651 + $0x2c] sm:$0xf]
      %v3664 = vld [vmem:[%s3651 + $0x30] sm:$0xf]
      %v3665 = vld [vmem:[%s3651 + $0x34] sm:$0xf]
      %v3666 = vld [vmem:[%s3651 + $0x38] sm:$0xf]
      %v3667 = vld [vmem:[%s3651 + $0x3c] sm:$0xf]
      %v3668 = vunpack.c.l.b16 %v3542
      %v3669 = vunpack.c.l.b16 %v3545
      %v3670 = vunpack.c.l.b16 %v3549
      %v3671 = vunpack.c.l.b16 %v3552
      %v3672 = vunpack.c.l.b16 %v3556
      %v3673 = vunpack.c.l.b16 %v3559
      %v3674 = vunpack.c.l.b16 %v3563
      %v3675 = vunpack.c.l.b16 %v3566
      %v3676 = vunpack.c.l.b16 %v3570
      %v3677 = vunpack.c.l.b16 %v3573
      %v3678 = vunpack.c.l.b16 %v3577
      %v3679 = vunpack.c.l.b16 %v3580
      %v3680 = vunpack.c.l.b16 %v3584
      %v3681 = vunpack.c.l.b16 %v3587
      %v3682 = vunpack.c.l.b16 %v3591
      %v3683 = vunpack.c.l.b16 %v3594
      %v3684 = vunpack.c.l.b16 %v3598
      %v3685 = vunpack.c.l.b16 %v3601
      %v3686 = vunpack.c.l.b16 %v3605
      %v3687 = vunpack.c.l.b16 %v3608
      %v3688 = vunpack.c.l.b16 %v3612
      %v3689 = vunpack.c.l.b16 %v3615
      %v3690 = vunpack.c.l.b16 %v3619
      %v3691 = vunpack.c.l.b16 %v3622
      %v3692 = vunpack.c.l.b16 %v3626
      %v3693 = vunpack.c.l.b16 %v3629
      %v3694 = vunpack.c.l.b16 %v3633
      %v3695 = vunpack.c.l.b16 %v3636
      %v3696 = vunpack.c.l.b16 %v3640
      %v3697 = vunpack.c.l.b16 %v3643
      %v3698 = vunpack.c.l.b16 %v3647
      %v3699 = vunpack.c.l.b16 %v3650
      %v3700 = vpack.c.b16 %v3669, %v3668
      %v3701 = vpack.c.b16 %v3671, %v3670
      %v3702 = vpack.c.b16 %v3673, %v3672
      %v3703 = vpack.c.b16 %v3675, %v3674
      %v3704 = vpack.c.b16 %v3677, %v3676
      %v3705 = vpack.c.b16 %v3679, %v3678
      %v3706 = vpack.c.b16 %v3681, %v3680
      %v3707 = vpack.c.b16 %v3683, %v3682
      %v3708 = vpack.c.b16 %v3685, %v3684
      %v3709 = vpack.c.b16 %v3687, %v3686
      %v3710 = vpack.c.b16 %v3689, %v3688
      %v3711 = vpack.c.b16 %v3691, %v3690
      %v3712 = vpack.c.b16 %v3693, %v3692
      %v3713 = vpack.c.b16 %v3695, %v3694
      %v3714 = vpack.c.b16 %v3697, %v3696
      %v3715 = vpack.c.b16 %v3699, %v3698
      %v3748 = vunpack.c.l.b16 %v3652
      %v3749 = vunpack.c.l.b16 %v3653
      %v3750 = vunpack.c.l.b16 %v3654
      %v3751 = vunpack.c.l.b16 %v3655
      %v3752 = vunpack.c.l.b16 %v3656
      %v3753 = vunpack.c.l.b16 %v3657
      %v3754 = vunpack.c.l.b16 %v3658
      %v3755 = vunpack.c.l.b16 %v3659
      %v3756 = vunpack.c.l.b16 %v3660
      %v3757 = vunpack.c.l.b16 %v3661
      %v3758 = vunpack.c.l.b16 %v3662
      %v3759 = vunpack.c.l.b16 %v3663
      %v3760 = vunpack.c.l.b16 %v3664
      %v3761 = vunpack.c.l.b16 %v3665
      %v3762 = vunpack.c.l.b16 %v3666
      %v3763 = vunpack.c.l.b16 %v3667
      %v3764 = vpack.c.b16 %v3749, %v3748
      %v3765 = vpack.c.b16 %v3751, %v3750
      %v3766 = vpack.c.b16 %v3753, %v3752
      %v3767 = vpack.c.b16 %v3755, %v3754
      %v3768 = vpack.c.b16 %v3757, %v3756
      %v3769 = vpack.c.b16 %v3759, %v3758
      %v3770 = vpack.c.b16 %v3761, %v3760
      %v3771 = vpack.c.b16 %v3763, %v3762
      %3780 = vmatprep.subr.bf16.mxu0 0
      %3781 = vmatpush1.bf16.msra.mxu0 %v3764
      %3782 = vmatprep.subr.bf16.mxu0 0
      %3783 = vmatpush1.bf16.msra.mxu0 %v3765
      %3784 = vmatprep.subr.bf16.mxu0 0
      %3785 = vmatpush1.bf16.msra.mxu0 %v3766
      %3786 = vmatprep.subr.bf16.mxu0 0
      %3787 = vmatpush1.bf16.msra.mxu0 %v3767
      %3788 = vmatprep.subr.bf16.mxu0 0
      %3789 = vmatpush1.bf16.msra.mxu0 %v3768
      %3790 = vmatprep.subr.bf16.mxu0 0
      %3791 = vmatpush1.bf16.msra.mxu0 %v3769
      %3792 = vmatprep.subr.bf16.mxu0 0
      %3793 = vmatpush1.bf16.msra.mxu0 %v3770
      %3794 = vmatprep.subr.bf16.mxu0 0
      %3795 = vmatpush1.bf16.msra.mxu0 %v3771
      %3796 = vmatprep.subr.bf16.mxu0 0
      %3797 = vmatpush1.bf16.msra.mxu0 0
      %3798 = vmatprep.subr.bf16.mxu0 0
      %3799 = vmatpush1.bf16.msra.mxu0 0
      %3800 = vmatprep.subr.bf16.mxu0 0
      %3801 = vmatpush1.bf16.msra.mxu0 0
      %3802 = vmatprep.subr.bf16.mxu0 0
      %3803 = vmatpush1.bf16.msra.mxu0 0
      %3804 = vmatprep.subr.bf16.mxu0 0
      %3805 = vmatpush1.bf16.msra.mxu0 0
      %3806 = vmatprep.subr.bf16.mxu0 0
      %3807 = vmatpush1.bf16.msra.mxu0 0
      %3808 = vmatprep.subr.bf16.mxu0 0
      %3809 = vmatpush1.bf16.msra.mxu0 0
      %3810 = vmatprep.subr.bf16.mxu0 0
      %3811 = vmatpush1.bf16.msra.mxu0 0
      %3812 = vmatprep.mubr.bf16.mxu0 0
      %3813 = vmatmul.mubr.bf16.gmra.mrb[0].mxu0 %v3700
      %v3814 = vpop.f32.mrb[0].mxu0
      %v3815 = vadd.f32 0.0, %v3814
      %v3816 = vpop.f32.mrb[0].mxu0
      %v3817 = vpop.f32.mrb[0].mxu0
      %v3818 = vadd.f32 0.0, %v3817
      %v3819 = vpop.f32.mrb[0].mxu0
      %3820 = vmatprep.mubr.bf16.mxu0 0
      %3821 = vmatmul.mubr.bf16.gmra.mrb[0].mxu0 %v3701
      %v3822 = vpop.f32.mrb[0].mxu0
      %v3823 = vadd.f32 0.0, %v3822
      %v3824 = vpop.f32.mrb[0].mxu0
      %v3825 = vpop.f32.mrb[0].mxu0
      %v3826 = vadd.f32 0.0, %v3825
      %v3827 = vpop.f32.mrb[0].mxu0
      %3828 = vmatprep.mubr.bf16.mxu0 0
      %3829 = vmatmul.mubr.bf16.gmra.mrb[0].mxu0 %v3702
      %v3830 = vpop.f32.mrb[0].mxu0
      %v3831 = vadd.f32 0.0, %v3830
      %v3832 = vpop.f32.mrb[0].mxu0
      %v3833 = vpop.f32.mrb[0].mxu0
      %v3834 = vadd.f32 0.0, %v3833
      %v3835 = vpop.f32.mrb[0].mxu0
      %3836 = vmatprep.mubr.bf16.mxu0 0
      %3837 = vmatmul.mubr.bf16.gmra.mrb[0].mxu0 %v3703
      %v3838 = vpop.f32.mrb[0].mxu0
      %v3839 = vadd.f32 0.0, %v3838
      %v3840 = vpop.f32.mrb[0].mxu0
      %v3841 = vpop.f32.mrb[0].mxu0
      %v3842 = vadd.f32 0.0, %v3841
      %v3843 = vpop.f32.mrb[0].mxu0
      %3844 = vmatprep.mubr.bf16.mxu0 0
      %3845 = vmatmul.mubr.bf16.gmra.mrb[0].mxu0 %v3704
      %v3846 = vpop.f32.mrb[0].mxu0
      %v3847 = vadd.f32 0.0, %v3846
      %v3848 = vpop.f32.mrb[0].mxu0
      %v3849 = vpop.f32.mrb[0].mxu0
      %v3850 = vadd.f32 0.0, %v3849
      %v3851 = vpop.f32.mrb[0].mxu0
      %3852 = vmatprep.mubr.bf16.mxu0 0
      %3853 = vmatmul.mubr.bf16.gmra.mrb[0].mxu0 %v3705
      %v3854 = vpop.f32.mrb[0].mxu0
      %v3855 = vadd.f32 0.0, %v3854
      %v3856 = vpop.f32.mrb[0].mxu0
      %v3857 = vpop.f32.mrb[0].mxu0
      %v3858 = vadd.f32 0.0, %v3857
      %v3859 = vpop.f32.mrb[0].mxu0
      %3860 = vmatprep.mubr.bf16.mxu0 0
      %3861 = vmatmul.mubr.bf16.gmra.mrb[0].mxu0 %v3706
      %v3862 = vpop.f32.mrb[0].mxu0
      %v3863 = vadd.f32 0.0, %v3862
      %v3864 = vpop.f32.mrb[0].mxu0
      %v3865 = vpop.f32.mrb[0].mxu0
      %v3866 = vadd.f32 0.0, %v3865
      %v3867 = vpop.f32.mrb[0].mxu0
      %3868 = vmatprep.mubr.bf16.mxu0 0
      %3869 = vmatmul.mubr.bf16.gmra.mrb[0].mxu0 %v3707
      %v3870 = vpop.f32.mrb[0].mxu0
      %v3871 = vadd.f32 0.0, %v3870
      %v3872 = vpop.f32.mrb[0].mxu0
      %v3873 = vpop.f32.mrb[0].mxu0
      %v3874 = vadd.f32 0.0, %v3873
      %v3875 = vpop.f32.mrb[0].mxu0
      %3876 = vmatprep.mubr.bf16.mxu0 0
      %3877 = vmatmul.mubr.bf16.gmra.mrb[0].mxu0 %v3708
      %v3878 = vpop.f32.mrb[0].mxu0
      %v3879 = vadd.f32 0.0, %v3878
      %v3880 = vpop.f32.mrb[0].mxu0
      %v3881 = vpop.f32.mrb[0].mxu0
      %v3882 = vadd.f32 0.0, %v3881
      %v3883 = vpop.f32.mrb[0].mxu0
      %3884 = vmatprep.mubr.bf16.mxu0 0
      %3885 = vmatmul.mubr.bf16.gmra.mrb[0].mxu0 %v3709
      %v3886 = vpop.f32.mrb[0].mxu0
      %v3887 = vadd.f32 0.0, %v3886
      %v3888 = vpop.f32.mrb[0].mxu0
      %v3889 = vpop.f32.mrb[0].mxu0
      %v3890 = vadd.f32 0.0, %v3889
      %v3891 = vpop.f32.mrb[0].mxu0
      %3892 = vmatprep.mubr.bf16.mxu0 0
      %3893 = vmatmul.mubr.bf16.gmra.mrb[0].mxu0 %v3710
      %v3894 = vpop.f32.mrb[0].mxu0
      %v3895 = vadd.f32 0.0, %v3894
      %v3896 = vpop.f32.mrb[0].mxu0
      %v3897 = vpop.f32.mrb[0].mxu0
      %v3898 = vadd.f32 0.0, %v3897
      %v3899 = vpop.f32.mrb[0].mxu0
      %3900 = vmatprep.mubr.bf16.mxu0 0
      %3901 = vmatmul.mubr.bf16.gmra.mrb[0].mxu0 %v3711
      %v3902 = vpop.f32.mrb[0].mxu0
      %v3903 = vadd.f32 0.0, %v3902
      %v3904 = vpop.f32.mrb[0].mxu0
      %v3905 = vpop.f32.mrb[0].mxu0
      %v3906 = vadd.f32 0.0, %v3905
      %v3907 = vpop.f32.mrb[0].mxu0
      %3908 = vmatprep.mubr.bf16.mxu0 0
      %3909 = vmatmul.mubr.bf16.gmra.mrb[0].mxu0 %v3712
      %v3910 = vpop.f32.mrb[0].mxu0
      %v3911 = vadd.f32 0.0, %v3910
      %v3912 = vpop.f32.mrb[0].mxu0
      %v3913 = vpop.f32.mrb[0].mxu0
      %v3914 = vadd.f32 0.0, %v3913
      %v3915 = vpop.f32.mrb[0].mxu0
      %3916 = vmatprep.mubr.bf16.mxu0 0
      %3917 = vmatmul.mubr.bf16.gmra.mrb[0].mxu0 %v3713
      %v3918 = vpop.f32.mrb[0].mxu0
      %v3919 = vadd.f32 0.0, %v3918
      %v3920 = vpop.f32.mrb[0].mxu0
      %v3921 = vpop.f32.mrb[0].mxu0
      %v3922 = vadd.f32 0.0, %v3921
      %v3923 = vpop.f32.mrb[0].mxu0
      %3924 = vmatprep.mubr.bf16.mxu0 0
      %3925 = vmatmul.mubr.bf16.gmra.mrb[0].mxu0 %v3714
      %v3926 = vpop.f32.mrb[0].mxu0
      %v3927 = vadd.f32 0.0, %v3926
      %v3928 = vpop.f32.mrb[0].mxu0
      %v3929 = vpop.f32.mrb[0].mxu0
      %v3930 = vadd.f32 0.0, %v3929
      %v3931 = vpop.f32.mrb[0].mxu0
      %3932 = vmatprep.mubr.bf16.mxu0 0
      %3933 = vmatmul.mubr.bf16.gmra.mrb[0].mxu0 %v3715
      %v3934 = vpop.f32.mrb[0].mxu0
      %v3935 = vadd.f32 0.0, %v3934
      %v3936 = vpop.f32.mrb[0].mxu0
      %v3937 = vpop.f32.mrb[0].mxu0
      %v3938 = vadd.f32 0.0, %v3937
      %v3939 = vpop.f32.mrb[0].mxu0
      %3940 = vdwg.mxu0
      %v3941 = vadd.f32 %v3443, %v3815
      %v3942 = vadd.f32 %v3444, %v3818
      %v3943 = vadd.f32 %v3445, %v3823
      %v3944 = vadd.f32 %v3446, %v3826
      %v3945 = vadd.f32 %v3447, %v3831
      %v3946 = vadd.f32 %v3448, %v3834
      %v3947 = vadd.f32 %v3449, %v3839
      %v3948 = vadd.f32 %v3450, %v3842
      %v3949 = vadd.f32 %v3451, %v3847
      %v3950 = vadd.f32 %v3452, %v3850
      %v3951 = vadd.f32 %v3453, %v3855
      %v3952 = vadd.f32 %v3454, %v3858
      %v3953 = vadd.f32 %v3455, %v3863
      %v3954 = vadd.f32 %v3456, %v3866
      %v3955 = vadd.f32 %v3457, %v3871
      %v3956 = vadd.f32 %v3458, %v3874
      %v3957 = vadd.f32 %v3459, %v3879
      %v3958 = vadd.f32 %v3460, %v3882
      %v3959 = vadd.f32 %v3461, %v3887
      %v3960 = vadd.f32 %v3462, %v3890
      %v3961 = vadd.f32 %v3463, %v3895
      %v3962 = vadd.f32 %v3464, %v3898
      %v3963 = vadd.f32 %v3465, %v3903
      %v3964 = vadd.f32 %v3466, %v3906
      %v3965 = vadd.f32 %v3467, %v3911
      %v3966 = vadd.f32 %v3468, %v3914
      %v3967 = vadd.f32 %v3469, %v3919
      %v3968 = vadd.f32 %v3470, %v3922
      %v3969 = vadd.f32 %v3471, %v3927
      %v3970 = vadd.f32 %v3472, %v3930
      %v3971 = vadd.f32 %v3473, %v3935
      %v3972 = vadd.f32 %v3474, %v3938
      %s3973 = scalar_lea.vmem [#allocation2], 24
      %v3974 = vld [vmem:[%s3973] sm:$0xf]
      %v3975 = vld [vmem:[%s3973 + $0x4] sm:$0xf]
      %v3976 = vld [vmem:[%s3973 + $0xc] sm:$0xf]
      %v3977 = vld [vmem:[%s3973 + $0x10] sm:$0xf]
      %v3978 = vld [vmem:[%s3973 + $0x18] sm:$0xf]
      %v3979 = vld [vmem:[%s3973 + $0x1c] sm:$0xf]
      %v3980 = vld [vmem:[%s3973 + $0x24] sm:$0xf]
      %v3981 = vld [vmem:[%s3973 + $0x28] sm:$0xf]
      %v3982 = vld [vmem:[%s3973 + $0x30] sm:$0xf]
      %v3983 = vld [vmem:[%s3973 + $0x34] sm:$0xf]
      %v3984 = vld [vmem:[%s3973 + $0x3c] sm:$0xf]
      %v3985 = vld [vmem:[%s3973 + $0x40] sm:$0xf]
      %v3986 = vld [vmem:[%s3973 + $0x48] sm:$0xf]
      %v3987 = vld [vmem:[%s3973 + $0x4c] sm:$0xf]
      %v3988 = vld [vmem:[%s3973 + $0x54] sm:$0xf]
      %v3989 = vld [vmem:[%s3973 + $0x58] sm:$0xf]
      %v3990 = vld [vmem:[%s3973 + $0x60] sm:$0xf]
      %v3991 = vld [vmem:[%s3973 + $0x64] sm:$0xf]
      %v3992 = vld [vmem:[%s3973 + $0x6c] sm:$0xf]
      %v3993 = vld [vmem:[%s3973 + $0x70] sm:$0xf]
      %v3994 = vld [vmem:[%s3973 + $0x78] sm:$0xf]
      %v3995 = vld [vmem:[%s3973 + $0x7c] sm:$0xf]
      %v3996 = vld [vmem:[%s3973 + $0x84] sm:$0xf]
      %v3997 = vld [vmem:[%s3973 + $0x88] sm:$0xf]
      %v3998 = vld [vmem:[%s3973 + $0x90] sm:$0xf]
      %v3999 = vld [vmem:[%s3973 + $0x94] sm:$0xf]
      %v4000 = vld [vmem:[%s3973 + $0x9c] sm:$0xf]
      %v4001 = vld [vmem:[%s3973 + $0xa0] sm:$0xf]
      %v4002 = vld [vmem:[%s3973 + $0xa8] sm:$0xf]
      %v4003 = vld [vmem:[%s3973 + $0xac] sm:$0xf]
      %v4004 = vld [vmem:[%s3973 + $0xb4] sm:$0xf]
      %v4005 = vld [vmem:[%s3973 + $0xb8] sm:$0xf]
      %s4006 = scalar_lea.vmem %s1, 384
      %v4007 = vld [vmem:[%s4006] sm:$0xf]
      %v4008 = vld [vmem:[%s4006 + $0x4] sm:$0xf]
      %v4009 = vld [vmem:[%s4006 + $0x8] sm:$0xf]
      %v4010 = vld [vmem:[%s4006 + $0xc] sm:$0xf]
      %v4011 = vld [vmem:[%s4006 + $0x10] sm:$0xf]
      %v4012 = vld [vmem:[%s4006 + $0x14] sm:$0xf]
      %v4013 = vld [vmem:[%s4006 + $0x18] sm:$0xf]
      %v4014 = vld [vmem:[%s4006 + $0x1c] sm:$0xf]
      %v4015 = vld [vmem:[%s4006 + $0x20] sm:$0xf]
      %v4016 = vld [vmem:[%s4006 + $0x24] sm:$0xf]
      %v4017 = vld [vmem:[%s4006 + $0x28] sm:$0xf]
      %v4018 = vld [vmem:[%s4006 + $0x2c] sm:$0xf]
      %v4019 = vld [vmem:[%s4006 + $0x30] sm:$0xf]
      %v4020 = vld [vmem:[%s4006 + $0x34] sm:$0xf]
      %v4021 = vld [vmem:[%s4006 + $0x38] sm:$0xf]
      %v4022 = vld [vmem:[%s4006 + $0x3c] sm:$0xf]
      %v4055 = vunpack.c.l.b16 %v3974
      %v4056 = vunpack.c.l.b16 %v3975
      %v4057 = vunpack.c.l.b16 %v3976
      %v4058 = vunpack.c.l.b16 %v3977
      %v4059 = vunpack.c.l.b16 %v3978
      %v4060 = vunpack.c.l.b16 %v3979
      %v4061 = vunpack.c.l.b16 %v3980
      %v4062 = vunpack.c.l.b16 %v3981
      %v4063 = vunpack.c.l.b16 %v3982
      %v4064 = vunpack.c.l.b16 %v3983
      %v4065 = vunpack.c.l.b16 %v3984
      %v4066 = vunpack.c.l.b16 %v3985
      %v4067 = vunpack.c.l.b16 %v3986
      %v4068 = vunpack.c.l.b16 %v3987
      %v4069 = vunpack.c.l.b16 %v3988
      %v4070 = vunpack.c.l.b16 %v3989
      %v4071 = vunpack.c.l.b16 %v3990
      %v4072 = vunpack.c.l.b16 %v3991
      %v4073 = vunpack.c.l.b16 %v3992
      %v4074 = vunpack.c.l.b16 %v3993
      %v4075 = vunpack.c.l.b16 %v3994
      %v4076 = vunpack.c.l.b16 %v3995
      %v4077 = vunpack.c.l.b16 %v3996
      %v4078 = vunpack.c.l.b16 %v3997
      %v4079 = vunpack.c.l.b16 %v3998
      %v4080 = vunpack.c.l.b16 %v3999
      %v4081 = vunpack.c.l.b16 %v4000
      %v4082 = vunpack.c.l.b16 %v4001
      %v4083 = vunpack.c.l.b16 %v4002
      %v4084 = vunpack.c.l.b16 %v4003
      %v4085 = vunpack.c.l.b16 %v4004
      %v4086 = vunpack.c.l.b16 %v4005
      %v4087 = vpack.c.b16 %v4056, %v4055
      %v4088 = vpack.c.b16 %v4058, %v4057
      %v4089 = vpack.c.b16 %v4060, %v4059
      %v4090 = vpack.c.b16 %v4062, %v4061
      %v4091 = vpack.c.b16 %v4064, %v4063
      %v4092 = vpack.c.b16 %v4066, %v4065
      %v4093 = vpack.c.b16 %v4068, %v4067
      %v4094 = vpack.c.b16 %v4070, %v4069
      %v4095 = vpack.c.b16 %v4072, %v4071
      %v4096 = vpack.c.b16 %v4074, %v4073
      %v4097 = vpack.c.b16 %v4076, %v4075
      %v4098 = vpack.c.b16 %v4078, %v4077
      %v4099 = vpack.c.b16 %v4080, %v4079
      %v4100 = vpack.c.b16 %v4082, %v4081
      %v4101 = vpack.c.b16 %v4084, %v4083
      %v4102 = vpack.c.b16 %v4086, %v4085
      %v4135 = vunpack.c.l.b16 %v4007
      %v4136 = vunpack.c.l.b16 %v4008
      %v4137 = vunpack.c.l.b16 %v4009
      %v4138 = vunpack.c.l.b16 %v4010
      %v4139 = vunpack.c.l.b16 %v4011
      %v4140 = vunpack.c.l.b16 %v4012
      %v4141 = vunpack.c.l.b16 %v4013
      %v4142 = vunpack.c.l.b16 %v4014
      %v4143 = vunpack.c.l.b16 %v4015
      %v4144 = vunpack.c.l.b16 %v4016
      %v4145 = vunpack.c.l.b16 %v4017
      %v4146 = vunpack.c.l.b16 %v4018
      %v4147 = vunpack.c.l.b16 %v4019
      %v4148 = vunpack.c.l.b16 %v4020
      %v4149 = vunpack.c.l.b16 %v4021
      %v4150 = vunpack.c.l.b16 %v4022
      %v4151 = vpack.c.b16 %v4136, %v4135
      %v4152 = vpack.c.b16 %v4138, %v4137
      %v4153 = vpack.c.b16 %v4140, %v4139
      %v4154 = vpack.c.b16 %v4142, %v4141
      %v4155 = vpack.c.b16 %v4144, %v4143
      %v4156 = vpack.c.b16 %v4146, %v4145
      %v4157 = vpack.c.b16 %v4148, %v4147
      %v4158 = vpack.c.b16 %v4150, %v4149
      %4167 = vmatprep.subr.bf16.mxu0 0
      %4168 = vmatpush1.bf16.msra.mxu0 %v4151
      %4169 = vmatprep.subr.bf16.mxu0 0
      %4170 = vmatpush1.bf16.msra.mxu0 %v4152
      %4171 = vmatprep.subr.bf16.mxu0 0
      %4172 = vmatpush1.bf16.msra.mxu0 %v4153
      %4173 = vmatprep.subr.bf16.mxu0 0
      %4174 = vmatpush1.bf16.msra.mxu0 %v4154
      %4175 = vmatprep.subr.bf16.mxu0 0
      %4176 = vmatpush1.bf16.msra.mxu0 %v4155
      %4177 = vmatprep.subr.bf16.mxu0 0
      %4178 = vmatpush1.bf16.msra.mxu0 %v4156
      %4179 = vmatprep.subr.bf16.mxu0 0
      %4180 = vmatpush1.bf16.msra.mxu0 %v4157
      %4181 = vmatprep.subr.bf16.mxu0 0
      %4182 = vmatpush1.bf16.msra.mxu0 %v4158
      %4183 = vmatprep.subr.bf16.mxu0 0
      %4184 = vmatpush1.bf16.msra.mxu0 0
      %4185 = vmatprep.subr.bf16.mxu0 0
      %4186 = vmatpush1.bf16.msra.mxu0 0
      %4187 = vmatprep.subr.bf16.mxu0 0
      %4188 = vmatpush1.bf16.msra.mxu0 0
      %4189 = vmatprep.subr.bf16.mxu0 0
      %4190 = vmatpush1.bf16.msra.mxu0 0
      %4191 = vmatprep.subr.bf16.mxu0 0
      %4192 = vmatpush1.bf16.msra.mxu0 0
      %4193 = vmatprep.subr.bf16.mxu0 0
      %4194 = vmatpush1.bf16.msra.mxu0 0
      %4195 = vmatprep.subr.bf16.mxu0 0
      %4196 = vmatpush1.bf16.msra.mxu0 0
      %4197 = vmatprep.subr.bf16.mxu0 0
      %4198 = vmatpush1.bf16.msra.mxu0 0
      %4199 = vmatprep.mubr.bf16.mxu0 0
      %4200 = vmatmul.mubr.bf16.gmra.mrb[0].mxu0 %v4087
      %v4201 = vpop.f32.mrb[0].mxu0
      %v4202 = vadd.f32 0.0, %v4201
      %v4203 = vpop.f32.mrb[0].mxu0
      %v4204 = vpop.f32.mrb[0].mxu0
      %v4205 = vadd.f32 0.0, %v4204
      %v4206 = vpop.f32.mrb[0].mxu0
      %4207 = vmatprep.mubr.bf16.mxu0 0
      %4208 = vmatmul.mubr.bf16.gmra.mrb[0].mxu0 %v4088
      %v4209 = vpop.f32.mrb[0].mxu0
      %v4210 = vadd.f32 0.0, %v4209
      %v4211 = vpop.f32.mrb[0].mxu0
      %v4212 = vpop.f32.mrb[0].mxu0
      %v4213 = vadd.f32 0.0, %v4212
      %v4214 = vpop.f32.mrb[0].mxu0
      %4215 = vmatprep.mubr.bf16.mxu0 0
      %4216 = vmatmul.mubr.bf16.gmra.mrb[0].mxu0 %v4089
      %v4217 = vpop.f32.mrb[0].mxu0
      %v4218 = vadd.f32 0.0, %v4217
      %v4219 = vpop.f32.mrb[0].mxu0
      %v4220 = vpop.f32.mrb[0].mxu0
      %v4221 = vadd.f32 0.0, %v4220
      %v4222 = vpop.f32.mrb[0].mxu0
      %4223 = vmatprep.mubr.bf16.mxu0 0
      %4224 = vmatmul.mubr.bf16.gmra.mrb[0].mxu0 %v4090
      %v4225 = vpop.f32.mrb[0].mxu0
      %v4226 = vadd.f32 0.0, %v4225
      %v4227 = vpop.f32.mrb[0].mxu0
      %v4228 = vpop.f32.mrb[0].mxu0
      %v4229 = vadd.f32 0.0, %v4228
      %v4230 = vpop.f32.mrb[0].mxu0
      %4231 = vmatprep.mubr.bf16.mxu0 0
      %4232 = vmatmul.mubr.bf16.gmra.mrb[0].mxu0 %v4091
      %v4233 = vpop.f32.mrb[0].mxu0
      %v4234 = vadd.f32 0.0, %v4233
      %v4235 = vpop.f32.mrb[0].mxu0
      %v4236 = vpop.f32.mrb[0].mxu0
      %v4237 = vadd.f32 0.0, %v4236
      %v4238 = vpop.f32.mrb[0].mxu0
      %4239 = vmatprep.mubr.bf16.mxu0 0
      %4240 = vmatmul.mubr.bf16.gmra.mrb[0].mxu0 %v4092
      %v4241 = vpop.f32.mrb[0].mxu0
      %v4242 = vadd.f32 0.0, %v4241
      %v4243 = vpop.f32.mrb[0].mxu0
      %v4244 = vpop.f32.mrb[0].mxu0
      %v4245 = vadd.f32 0.0, %v4244
      %v4246 = vpop.f32.mrb[0].mxu0
      %4247 = vmatprep.mubr.bf16.mxu0 0
      %4248 = vmatmul.mubr.bf16.gmra.mrb[0].mxu0 %v4093
      %v4249 = vpop.f32.mrb[0].mxu0
      %v4250 = vadd.f32 0.0, %v4249
      %v4251 = vpop.f32.mrb[0].mxu0
      %v4252 = vpop.f32.mrb[0].mxu0
      %v4253 = vadd.f32 0.0, %v4252
      %v4254 = vpop.f32.mrb[0].mxu0
      %4255 = vmatprep.mubr.bf16.mxu0 0
      %4256 = vmatmul.mubr.bf16.gmra.mrb[0].mxu0 %v4094
      %v4257 = vpop.f32.mrb[0].mxu0
      %v4258 = vadd.f32 0.0, %v4257
      %v4259 = vpop.f32.mrb[0].mxu0
      %v4260 = vpop.f32.mrb[0].mxu0
      %v4261 = vadd.f32 0.0, %v4260
      %v4262 = vpop.f32.mrb[0].mxu0
      %4263 = vmatprep.mubr.bf16.mxu0 0
      %4264 = vmatmul.mubr.bf16.gmra.mrb[0].mxu0 %v4095
      %v4265 = vpop.f32.mrb[0].mxu0
      %v4266 = vadd.f32 0.0, %v4265
      %v4267 = vpop.f32.mrb[0].mxu0
      %v4268 = vpop.f32.mrb[0].mxu0
      %v4269 = vadd.f32 0.0, %v4268
      %v4270 = vpop.f32.mrb[0].mxu0
      %4271 = vmatprep.mubr.bf16.mxu0 0
      %4272 = vmatmul.mubr.bf16.gmra.mrb[0].mxu0 %v4096
      %v4273 = vpop.f32.mrb[0].mxu0
      %v4274 = vadd.f32 0.0, %v4273
      %v4275 = vpop.f32.mrb[0].mxu0
      %v4276 = vpop.f32.mrb[0].mxu0
      %v4277 = vadd.f32 0.0, %v4276
      %v4278 = vpop.f32.mrb[0].mxu0
      %4279 = vmatprep.mubr.bf16.mxu0 0
      %4280 = vmatmul.mubr.bf16.gmra.mrb[0].mxu0 %v4097
      %v4281 = vpop.f32.mrb[0].mxu0
      %v4282 = vadd.f32 0.0, %v4281
      %v4283 = vpop.f32.mrb[0].mxu0
      %v4284 = vpop.f32.mrb[0].mxu0
      %v4285 = vadd.f32 0.0, %v4284
      %v4286 = vpop.f32.mrb[0].mxu0
      %4287 = vmatprep.mubr.bf16.mxu0 0
      %4288 = vmatmul.mubr.bf16.gmra.mrb[0].mxu0 %v4098
      %v4289 = vpop.f32.mrb[0].mxu0
      %v4290 = vadd.f32 0.0, %v4289
      %v4291 = vpop.f32.mrb[0].mxu0
      %v4292 = vpop.f32.mrb[0].mxu0
      %v4293 = vadd.f32 0.0, %v4292
      %v4294 = vpop.f32.mrb[0].mxu0
      %4295 = vmatprep.mubr.bf16.mxu0 0
      %4296 = vmatmul.mubr.bf16.gmra.mrb[0].mxu0 %v4099
      %v4297 = vpop.f32.mrb[0].mxu0
      %v4298 = vadd.f32 0.0, %v4297
      %v4299 = vpop.f32.mrb[0].mxu0
      %v4300 = vpop.f32.mrb[0].mxu0
      %v4301 = vadd.f32 0.0, %v4300
      %v4302 = vpop.f32.mrb[0].mxu0
      %4303 = vmatprep.mubr.bf16.mxu0 0
      %4304 = vmatmul.mubr.bf16.gmra.mrb[0].mxu0 %v4100
      %v4305 = vpop.f32.mrb[0].mxu0
      %v4306 = vadd.f32 0.0, %v4305
      %v4307 = vpop.f32.mrb[0].mxu0
      %v4308 = vpop.f32.mrb[0].mxu0
      %v4309 = vadd.f32 0.0, %v4308
      %v4310 = vpop.f32.mrb[0].mxu0
      %4311 = vmatprep.mubr.bf16.mxu0 0
      %4312 = vmatmul.mubr.bf16.gmra.mrb[0].mxu0 %v4101
      %v4313 = vpop.f32.mrb[0].mxu0
      %v4314 = vadd.f32 0.0, %v4313
      %v4315 = vpop.f32.mrb[0].mxu0
      %v4316 = vpop.f32.mrb[0].mxu0
      %v4317 = vadd.f32 0.0, %v4316
      %v4318 = vpop.f32.mrb[0].mxu0
      %4319 = vmatprep.mubr.bf16.mxu0 0
      %4320 = vmatmul.mubr.bf16.gmra.mrb[0].mxu0 %v4102
      %v4321 = vpop.f32.mrb[0].mxu0
      %v4322 = vadd.f32 0.0, %v4321
      %v4323 = vpop.f32.mrb[0].mxu0
      %v4324 = vpop.f32.mrb[0].mxu0
      %v4325 = vadd.f32 0.0, %v4324
      %v4326 = vpop.f32.mrb[0].mxu0
      %4327 = vdwg.mxu0
      %v4328 = vadd.f32 %v3941, %v4202
      %v4329 = vadd.f32 %v3942, %v4205
      %v4330 = vadd.f32 %v3943, %v4210
      %v4331 = vadd.f32 %v3944, %v4213
      %v4332 = vadd.f32 %v3945, %v4218
      %v4333 = vadd.f32 %v3946, %v4221
      %v4334 = vadd.f32 %v3947, %v4226
      %v4335 = vadd.f32 %v3948, %v4229
      %v4336 = vadd.f32 %v3949, %v4234
      %v4337 = vadd.f32 %v3950, %v4237
      %v4338 = vadd.f32 %v3951, %v4242
      %v4339 = vadd.f32 %v3952, %v4245
      %v4340 = vadd.f32 %v3953, %v4250
      %v4341 = vadd.f32 %v3954, %v4253
      %v4342 = vadd.f32 %v3955, %v4258
      %v4343 = vadd.f32 %v3956, %v4261
      %v4344 = vadd.f32 %v3957, %v4266
      %v4345 = vadd.f32 %v3958, %v4269
      %v4346 = vadd.f32 %v3959, %v4274
      %v4347 = vadd.f32 %v3960, %v4277
      %v4348 = vadd.f32 %v3961, %v4282
      %v4349 = vadd.f32 %v3962, %v4285
      %v4350 = vadd.f32 %v3963, %v4290
      %v4351 = vadd.f32 %v3964, %v4293
      %v4352 = vadd.f32 %v3965, %v4298
      %v4353 = vadd.f32 %v3966, %v4301
      %v4354 = vadd.f32 %v3967, %v4306
      %v4355 = vadd.f32 %v3968, %v4309
      %v4356 = vadd.f32 %v3969, %v4314
      %v4357 = vadd.f32 %v3970, %v4317
      %v4358 = vadd.f32 %v3971, %v4322
      %v4359 = vadd.f32 %v3972, %v4325
      %v4360 = vld [vmem:[%s3973] sm:$0xf]
      %v4361 = vld [vmem:[%s3973 + $0x4] sm:$0xf]
      %v4362 = vld [vmem:[%s3973 + $0x8] sm:$0x1]
      %v4363 = vld [vmem:[%s3973 + $0xc] sm:$0xf]
      %v4364 = vld [vmem:[%s3973 + $0x10] sm:$0xf]
      %v4365 = vld [vmem:[%s3973 + $0x14] sm:$0x1]
      %v4366 = vld [vmem:[%s3973 + $0x18] sm:$0xf]
      %v4367 = vld [vmem:[%s3973 + $0x1c] sm:$0xf]
      %v4368 = vld [vmem:[%s3973 + $0x20] sm:$0x1]
      %v4369 = vld [vmem:[%s3973 + $0x24] sm:$0xf]
      %v4370 = vld [vmem:[%s3973 + $0x28] sm:$0xf]
      %v4371 = vld [vmem:[%s3973 + $0x2c] sm:$0x1]
      %v4372 = vld [vmem:[%s3973 + $0x30] sm:$0xf]
      %v4373 = vld [vmem:[%s3973 + $0x34] sm:$0xf]
      %v4374 = vld [vmem:[%s3973 + $0x38] sm:$0x1]
      %v4375 = vld [vmem:[%s3973 + $0x3c] sm:$0xf]
      %v4376 = vld [vmem:[%s3973 + $0x40] sm:$0xf]
      %v4377 = vld [vmem:[%s3973 + $0x44] sm:$0x1]
      %v4378 = vld [vmem:[%s3973 + $0x48] sm:$0xf]
      %v4379 = vld [vmem:[%s3973 + $0x4c] sm:$0xf]
      %v4380 = vld [vmem:[%s3973 + $0x50] sm:$0x1]
      %v4381 = vld [vmem:[%s3973 + $0x54] sm:$0xf]
      %v4382 = vld [vmem:[%s3973 + $0x58] sm:$0xf]
      %v4383 = vld [vmem:[%s3973 + $0x5c] sm:$0x1]
      %v4384 = vld [vmem:[%s3973 + $0x60] sm:$0xf]
      %v4385 = vld [vmem:[%s3973 + $0x64] sm:$0xf]
      %v4386 = vld [vmem:[%s3973 + $0x68] sm:$0x1]
      %v4387 = vld [vmem:[%s3973 + $0x6c] sm:$0xf]
      %v4388 = vld [vmem:[%s3973 + $0x70] sm:$0xf]
      %v4389 = vld [vmem:[%s3973 + $0x74] sm:$0x1]
      %v4390 = vld [vmem:[%s3973 + $0x78] sm:$0xf]
      %v4391 = vld [vmem:[%s3973 + $0x7c] sm:$0xf]
      %v4392 = vld [vmem:[%s3973 + $0x80] sm:$0x1]
      %v4393 = vld [vmem:[%s3973 + $0x84] sm:$0xf]
      %v4394 = vld [vmem:[%s3973 + $0x88] sm:$0xf]
      %v4395 = vld [vmem:[%s3973 + $0x8c] sm:$0x1]
      %v4396 = vld [vmem:[%s3973 + $0x90] sm:$0xf]
      %v4397 = vld [vmem:[%s3973 + $0x94] sm:$0xf]
      %v4398 = vld [vmem:[%s3973 + $0x98] sm:$0x1]
      %v4399 = vld [vmem:[%s3973 + $0x9c] sm:$0xf]
      %v4400 = vld [vmem:[%s3973 + $0xa0] sm:$0xf]
      %v4401 = vld [vmem:[%s3973 + $0xa4] sm:$0x1]
      %v4402 = vld [vmem:[%s3973 + $0xa8] sm:$0xf]
      %v4403 = vld [vmem:[%s3973 + $0xac] sm:$0xf]
      %v4404 = vld [vmem:[%s3973 + $0xb0] sm:$0x1]
      %v4405 = vld [vmem:[%s3973 + $0xb4] sm:$0xf]
      %v4406 = vld [vmem:[%s3973 + $0xb8] sm:$0xf]
      %v4407 = vld [vmem:[%s3973 + $0xbc] sm:$0x1]
      %v4409 = vshrl.u32 %v4360, 16
      %v4411 = vrot.slane %v4409, 4
      %v4412 = vshll.u32 %v4360, 16
      %v4414 = vrot.slane %v4412, 5
      %v4415 = vor.u32 %v4411, %v4414
      %v4416 = vrot.slane %v4415, 4
      %v4418 = vshll.u32 %v4361, 16
      %v4420 = vrot.slane %v4418, 5
      %v4421 = vsel %vm870, %v4416, %v4420
      %v4422 = vshrl.u32 %v4361, 16
      %v4424 = vrot.slane %v4422, 4
      %v4425 = vor.u32 %v4424, %v4420
      %v4426 = vrot.slane %v4425, 4
      %v4428 = vshll.u32 %v4362, 16
      %v4430 = vrot.slane %v4428, 5
      %v4431 = vsel %vm870, %v4426, %v4430
      %v4433 = vshrl.u32 %v4363, 16
      %v4435 = vrot.slane %v4433, 4
      %v4436 = vshll.u32 %v4363, 16
      %v4438 = vrot.slane %v4436, 5
      %v4439 = vor.u32 %v4435, %v4438
      %v4440 = vrot.slane %v4439, 4
      %v4442 = vshll.u32 %v4364, 16
      %v4444 = vrot.slane %v4442, 5
      %v4445 = vsel %vm870, %v4440, %v4444
      %v4446 = vshrl.u32 %v4364, 16
      %v4448 = vrot.slane %v4446, 4
      %v4449 = vor.u32 %v4448, %v4444
      %v4450 = vrot.slane %v4449, 4
      %v4452 = vshll.u32 %v4365, 16
      %v4454 = vrot.slane %v4452, 5
      %v4455 = vsel %vm870, %v4450, %v4454
      %v4457 = vshrl.u32 %v4366, 16
      %v4459 = vrot.slane %v4457, 4
      %v4460 = vshll.u32 %v4366, 16
      %v4462 = vrot.slane %v4460, 5
      %v4463 = vor.u32 %v4459, %v4462
      %v4464 = vrot.slane %v4463, 4
      %v4466 = vshll.u32 %v4367, 16
      %v4468 = vrot.slane %v4466, 5
      %v4469 = vsel %vm870, %v4464, %v4468
      %v4470 = vshrl.u32 %v4367, 16
      %v4472 = vrot.slane %v4470, 4
      %v4473 = vor.u32 %v4472, %v4468
      %v4474 = vrot.slane %v4473, 4
      %v4476 = vshll.u32 %v4368, 16
      %v4478 = vrot.slane %v4476, 5
      %v4479 = vsel %vm870, %v4474, %v4478
      %v4481 = vshrl.u32 %v4369, 16
      %v4483 = vrot.slane %v4481, 4
      %v4484 = vshll.u32 %v4369, 16
      %v4486 = vrot.slane %v4484, 5
      %v4487 = vor.u32 %v4483, %v4486
      %v4488 = vrot.slane %v4487, 4
      %v4490 = vshll.u32 %v4370, 16
      %v4492 = vrot.slane %v4490, 5
      %v4493 = vsel %vm870, %v4488, %v4492
      %v4494 = vshrl.u32 %v4370, 16
      %v4496 = vrot.slane %v4494, 4
      %v4497 = vor.u32 %v4496, %v4492
      %v4498 = vrot.slane %v4497, 4
      %v4500 = vshll.u32 %v4371, 16
      %v4502 = vrot.slane %v4500, 5
      %v4503 = vsel %vm870, %v4498, %v4502
      %v4505 = vshrl.u32 %v4372, 16
      %v4507 = vrot.slane %v4505, 4
      %v4508 = vshll.u32 %v4372, 16
      %v4510 = vrot.slane %v4508, 5
      %v4511 = vor.u32 %v4507, %v4510
      %v4512 = vrot.slane %v4511, 4
      %v4514 = vshll.u32 %v4373, 16
      %v4516 = vrot.slane %v4514, 5
      %v4517 = vsel %vm870, %v4512, %v4516
      %v4518 = vshrl.u32 %v4373, 16
      %v4520 = vrot.slane %v4518, 4
      %v4521 = vor.u32 %v4520, %v4516
      %v4522 = vrot.slane %v4521, 4
      %v4524 = vshll.u32 %v4374, 16
      %v4526 = vrot.slane %v4524, 5
      %v4527 = vsel %vm870, %v4522, %v4526
      %v4529 = vshrl.u32 %v4375, 16
      %v4531 = vrot.slane %v4529, 4
      %v4532 = vshll.u32 %v4375, 16
      %v4534 = vrot.slane %v4532, 5
      %v4535 = vor.u32 %v4531, %v4534
      %v4536 = vrot.slane %v4535, 4
      %v4538 = vshll.u32 %v4376, 16
      %v4540 = vrot.slane %v4538, 5
      %v4541 = vsel %vm870, %v4536, %v4540
      %v4542 = vshrl.u32 %v4376, 16
      %v4544 = vrot.slane %v4542, 4
      %v4545 = vor.u32 %v4544, %v4540
      %v4546 = vrot.slane %v4545, 4
      %v4548 = vshll.u32 %v4377, 16
      %v4550 = vrot.slane %v4548, 5
      %v4551 = vsel %vm870, %v4546, %v4550
      %v4553 = vshrl.u32 %v4378, 16
      %v4555 = vrot.slane %v4553, 4
      %v4556 = vshll.u32 %v4378, 16
      %v4558 = vrot.slane %v4556, 5
      %v4559 = vor.u32 %v4555, %v4558
      %v4560 = vrot.slane %v4559, 4
      %v4562 = vshll.u32 %v4379, 16
      %v4564 = vrot.slane %v4562, 5
      %v4565 = vsel %vm870, %v4560, %v4564
      %v4566 = vshrl.u32 %v4379, 16
      %v4568 = vrot.slane %v4566, 4
      %v4569 = vor.u32 %v4568, %v4564
      %v4570 = vrot.slane %v4569, 4
      %v4572 = vshll.u32 %v4380, 16
      %v4574 = vrot.slane %v4572, 5
      %v4575 = vsel %vm870, %v4570, %v4574
      %v4577 = vshrl.u32 %v4381, 16
      %v4579 = vrot.slane %v4577, 4
      %v4580 = vshll.u32 %v4381, 16
      %v4582 = vrot.slane %v4580, 5
      %v4583 = vor.u32 %v4579, %v4582
      %v4584 = vrot.slane %v4583, 4
      %v4586 = vshll.u32 %v4382, 16
      %v4588 = vrot.slane %v4586, 5
      %v4589 = vsel %vm870, %v4584, %v4588
      %v4590 = vshrl.u32 %v4382, 16
      %v4592 = vrot.slane %v4590, 4
      %v4593 = vor.u32 %v4592, %v4588
      %v4594 = vrot.slane %v4593, 4
      %v4596 = vshll.u32 %v4383, 16
      %v4598 = vrot.slane %v4596, 5
      %v4599 = vsel %vm870, %v4594, %v4598
      %v4601 = vshrl.u32 %v4384, 16
      %v4603 = vrot.slane %v4601, 4
      %v4604 = vshll.u32 %v4384, 16
      %v4606 = vrot.slane %v4604, 5
      %v4607 = vor.u32 %v4603, %v4606
      %v4608 = vrot.slane %v4607, 4
      %v4610 = vshll.u32 %v4385, 16
      %v4612 = vrot.slane %v4610, 5
      %v4613 = vsel %vm870, %v4608, %v4612
      %v4614 = vshrl.u32 %v4385, 16
      %v4616 = vrot.slane %v4614, 4
      %v4617 = vor.u32 %v4616, %v4612
      %v4618 = vrot.slane %v4617, 4
      %v4620 = vshll.u32 %v4386, 16
      %v4622 = vrot.slane %v4620, 5
      %v4623 = vsel %vm870, %v4618, %v4622
      %v4625 = vshrl.u32 %v4387, 16
      %v4627 = vrot.slane %v4625, 4
      %v4628 = vshll.u32 %v4387, 16
      %v4630 = vrot.slane %v4628, 5
      %v4631 = vor.u32 %v4627, %v4630
      %v4632 = vrot.slane %v4631, 4
      %v4634 = vshll.u32 %v4388, 16
      %v4636 = vrot.slane %v4634, 5
      %v4637 = vsel %vm870, %v4632, %v4636
      %v4638 = vshrl.u32 %v4388, 16
      %v4640 = vrot.slane %v4638, 4
      %v4641 = vor.u32 %v4640, %v4636
      %v4642 = vrot.slane %v4641, 4
      %v4644 = vshll.u32 %v4389, 16
      %v4646 = vrot.slane %v4644, 5
      %v4647 = vsel %vm870, %v4642, %v4646
      %v4649 = vshrl.u32 %v4390, 16
      %v4651 = vrot.slane %v4649, 4
      %v4652 = vshll.u32 %v4390, 16
      %v4654 = vrot.slane %v4652, 5
      %v4655 = vor.u32 %v4651, %v4654
      %v4656 = vrot.slane %v4655, 4
      %v4658 = vshll.u32 %v4391, 16
      %v4660 = vrot.slane %v4658, 5
      %v4661 = vsel %vm870, %v4656, %v4660
      %v4662 = vshrl.u32 %v4391, 16
      %v4664 = vrot.slane %v4662, 4
      %v4665 = vor.u32 %v4664, %v4660
      %v4666 = vrot.slane %v4665, 4
      %v4668 = vshll.u32 %v4392, 16
      %v4670 = vrot.slane %v4668, 5
      %v4671 = vsel %vm870, %v4666, %v4670
      %v4673 = vshrl.u32 %v4393, 16
      %v4675 = vrot.slane %v4673, 4
      %v4676 = vshll.u32 %v4393, 16
      %v4678 = vrot.slane %v4676, 5
      %v4679 = vor.u32 %v4675, %v4678
      %v4680 = vrot.slane %v4679, 4
      %v4682 = vshll.u32 %v4394, 16
      %v4684 = vrot.slane %v4682, 5
      %v4685 = vsel %vm870, %v4680, %v4684
      %v4686 = vshrl.u32 %v4394, 16
      %v4688 = vrot.slane %v4686, 4
      %v4689 = vor.u32 %v4688, %v4684
      %v4690 = vrot.slane %v4689, 4
      %v4692 = vshll.u32 %v4395, 16
      %v4694 = vrot.slane %v4692, 5
      %v4695 = vsel %vm870, %v4690, %v4694
      %v4697 = vshrl.u32 %v4396, 16
      %v4699 = vrot.slane %v4697, 4
      %v4700 = vshll.u32 %v4396, 16
      %v4702 = vrot.slane %v4700, 5
      %v4703 = vor.u32 %v4699, %v4702
      %v4704 = vrot.slane %v4703, 4
      %v4706 = vshll.u32 %v4397, 16
      %v4708 = vrot.slane %v4706, 5
      %v4709 = vsel %vm870, %v4704, %v4708
      %v4710 = vshrl.u32 %v4397, 16
      %v4712 = vrot.slane %v4710, 4
      %v4713 = vor.u32 %v4712, %v4708
      %v4714 = vrot.slane %v4713, 4
      %v4716 = vshll.u32 %v4398, 16
      %v4718 = vrot.slane %v4716, 5
      %v4719 = vsel %vm870, %v4714, %v4718
      %v4721 = vshrl.u32 %v4399, 16
      %v4723 = vrot.slane %v4721, 4
      %v4724 = vshll.u32 %v4399, 16
      %v4726 = vrot.slane %v4724, 5
      %v4727 = vor.u32 %v4723, %v4726
      %v4728 = vrot.slane %v4727, 4
      %v4730 = vshll.u32 %v4400, 16
      %v4732 = vrot.slane %v4730, 5
      %v4733 = vsel %vm870, %v4728, %v4732
      %v4734 = vshrl.u32 %v4400, 16
      %v4736 = vrot.slane %v4734, 4
      %v4737 = vor.u32 %v4736, %v4732
      %v4738 = vrot.slane %v4737, 4
      %v4740 = vshll.u32 %v4401, 16
      %v4742 = vrot.slane %v4740, 5
      %v4743 = vsel %vm870, %v4738, %v4742
      %v4745 = vshrl.u32 %v4402, 16
      %v4747 = vrot.slane %v4745, 4
      %v4748 = vshll.u32 %v4402, 16
      %v4750 = vrot.slane %v4748, 5
      %v4751 = vor.u32 %v4747, %v4750
      %v4752 = vrot.slane %v4751, 4
      %v4754 = vshll.u32 %v4403, 16
      %v4756 = vrot.slane %v4754, 5
      %v4757 = vsel %vm870, %v4752, %v4756
      %v4758 = vshrl.u32 %v4403, 16
      %v4760 = vrot.slane %v4758, 4
      %v4761 = vor.u32 %v4760, %v4756
      %v4762 = vrot.slane %v4761, 4
      %v4764 = vshll.u32 %v4404, 16
      %v4766 = vrot.slane %v4764, 5
      %v4767 = vsel %vm870, %v4762, %v4766
      %v4769 = vshrl.u32 %v4405, 16
      %v4771 = vrot.slane %v4769, 4
      %v4772 = vshll.u32 %v4405, 16
      %v4774 = vrot.slane %v4772, 5
      %v4775 = vor.u32 %v4771, %v4774
      %v4776 = vrot.slane %v4775, 4
      %v4778 = vshll.u32 %v4406, 16
      %v4780 = vrot.slane %v4778, 5
      %v4781 = vsel %vm870, %v4776, %v4780
      %v4782 = vshrl.u32 %v4406, 16
      %v4784 = vrot.slane %v4782, 4
      %v4785 = vor.u32 %v4784, %v4780
      %v4786 = vrot.slane %v4785, 4
      %v4788 = vshll.u32 %v4407, 16
      %v4790 = vrot.slane %v4788, 5
      %v4791 = vsel %vm870, %v4786, %v4790
      %s4792 = scalar_lea.vmem %s1, 448
      %v4793 = vld [vmem:[%s4792] sm:$0xf]
      %v4794 = vld [vmem:[%s4792 + $0x4] sm:$0xf]
      %v4795 = vld [vmem:[%s4792 + $0x8] sm:$0xf]
      %v4796 = vld [vmem:[%s4792 + $0xc] sm:$0xf]
      %v4797 = vld [vmem:[%s4792 + $0x10] sm:$0xf]
      %v4798 = vld [vmem:[%s4792 + $0x14] sm:$0xf]
      %v4799 = vld [vmem:[%s4792 + $0x18] sm:$0xf]
      %v4800 = vld [vmem:[%s4792 + $0x1c] sm:$0xf]
      %v4801 = vld [vmem:[%s4792 + $0x20] sm:$0xf]
      %v4802 = vld [vmem:[%s4792 + $0x24] sm:$0xf]
      %v4803 = vld [vmem:[%s4792 + $0x28] sm:$0xf]
      %v4804 = vld [vmem:[%s4792 + $0x2c] sm:$0xf]
      %v4805 = vld [vmem:[%s4792 + $0x30] sm:$0xf]
      %v4806 = vld [vmem:[%s4792 + $0x34] sm:$0xf]
      %v4807 = vld [vmem:[%s4792 + $0x38] sm:$0xf]
      %v4808 = vld [vmem:[%s4792 + $0x3c] sm:$0xf]
      %v4809 = vunpack.c.l.b16 %v4421
      %v4810 = vunpack.c.l.b16 %v4431
      %v4811 = vunpack.c.l.b16 %v4445
      %v4812 = vunpack.c.l.b16 %v4455
      %v4813 = vunpack.c.l.b16 %v4469
      %v4814 = vunpack.c.l.b16 %v4479
      %v4815 = vunpack.c.l.b16 %v4493
      %v4816 = vunpack.c.l.b16 %v4503
      %v4817 = vunpack.c.l.b16 %v4517
      %v4818 = vunpack.c.l.b16 %v4527
      %v4819 = vunpack.c.l.b16 %v4541
      %v4820 = vunpack.c.l.b16 %v4551
      %v4821 = vunpack.c.l.b16 %v4565
      %v4822 = vunpack.c.l.b16 %v4575
      %v4823 = vunpack.c.l.b16 %v4589
      %v4824 = vunpack.c.l.b16 %v4599
      %v4825 = vunpack.c.l.b16 %v4613
      %v4826 = vunpack.c.l.b16 %v4623
      %v4827 = vunpack.c.l.b16 %v4637
      %v4828 = vunpack.c.l.b16 %v4647
      %v4829 = vunpack.c.l.b16 %v4661
      %v4830 = vunpack.c.l.b16 %v4671
      %v4831 = vunpack.c.l.b16 %v4685
      %v4832 = vunpack.c.l.b16 %v4695
      %v4833 = vunpack.c.l.b16 %v4709
      %v4834 = vunpack.c.l.b16 %v4719
      %v4835 = vunpack.c.l.b16 %v4733
      %v4836 = vunpack.c.l.b16 %v4743
      %v4837 = vunpack.c.l.b16 %v4757
      %v4838 = vunpack.c.l.b16 %v4767
      %v4839 = vunpack.c.l.b16 %v4781
      %v4840 = vunpack.c.l.b16 %v4791
      %v4841 = vpack.c.b16 %v4810, %v4809
      %v4842 = vpack.c.b16 %v4812, %v4811
      %v4843 = vpack.c.b16 %v4814, %v4813
      %v4844 = vpack.c.b16 %v4816, %v4815
      %v4845 = vpack.c.b16 %v4818, %v4817
      %v4846 = vpack.c.b16 %v4820, %v4819
      %v4847 = vpack.c.b16 %v4822, %v4821
      %v4848 = vpack.c.b16 %v4824, %v4823
      %v4849 = vpack.c.b16 %v4826, %v4825
      %v4850 = vpack.c.b16 %v4828, %v4827
      %v4851 = vpack.c.b16 %v4830, %v4829
      %v4852 = vpack.c.b16 %v4832, %v4831
      %v4853 = vpack.c.b16 %v4834, %v4833
      %v4854 = vpack.c.b16 %v4836, %v4835
      %v4855 = vpack.c.b16 %v4838, %v4837
      %v4856 = vpack.c.b16 %v4840, %v4839
      %v4889 = vunpack.c.l.b16 %v4793
      %v4890 = vunpack.c.l.b16 %v4794
      %v4891 = vunpack.c.l.b16 %v4795
      %v4892 = vunpack.c.l.b16 %v4796
      %v4893 = vunpack.c.l.b16 %v4797
      %v4894 = vunpack.c.l.b16 %v4798
      %v4895 = vunpack.c.l.b16 %v4799
      %v4896 = vunpack.c.l.b16 %v4800
      %v4897 = vunpack.c.l.b16 %v4801
      %v4898 = vunpack.c.l.b16 %v4802
      %v4899 = vunpack.c.l.b16 %v4803
      %v4900 = vunpack.c.l.b16 %v4804
      %v4901 = vunpack.c.l.b16 %v4805
      %v4902 = vunpack.c.l.b16 %v4806
      %v4903 = vunpack.c.l.b16 %v4807
      %v4904 = vunpack.c.l.b16 %v4808
      %v4905 = vpack.c.b16 %v4890, %v4889
      %v4906 = vpack.c.b16 %v4892, %v4891
      %v4907 = vpack.c.b16 %v4894, %v4893
      %v4908 = vpack.c.b16 %v4896, %v4895
      %v4909 = vpack.c.b16 %v4898, %v4897
      %v4910 = vpack.c.b16 %v4900, %v4899
      %v4911 = vpack.c.b16 %v4902, %v4901
      %v4912 = vpack.c.b16 %v4904, %v4903
      %4921 = vmatprep.subr.bf16.mxu0 0
      %4922 = vmatpush1.bf16.msra.mxu0 %v4905
      %4923 = vmatprep.subr.bf16.mxu0 0
      %4924 = vmatpush1.bf16.msra.mxu0 %v4906
      %4925 = vmatprep.subr.bf16.mxu0 0
      %4926 = vmatpush1.bf16.msra.mxu0 %v4907
      %4927 = vmatprep.subr.bf16.mxu0 0
      %4928 = vmatpush1.bf16.msra.mxu0 %v4908
      %4929 = vmatprep.subr.bf16.mxu0 0
      %4930 = vmatpush1.bf16.msra.mxu0 %v4909
      %4931 = vmatprep.subr.bf16.mxu0 0
      %4932 = vmatpush1.bf16.msra.mxu0 %v4910
      %4933 = vmatprep.subr.bf16.mxu0 0
      %4934 = vmatpush1.bf16.msra.mxu0 %v4911
      %4935 = vmatprep.subr.bf16.mxu0 0
      %4936 = vmatpush1.bf16.msra.mxu0 %v4912
      %4937 = vmatprep.subr.bf16.mxu0 0
      %4938 = vmatpush1.bf16.msra.mxu0 0
      %4939 = vmatprep.subr.bf16.mxu0 0
      %4940 = vmatpush1.bf16.msra.mxu0 0
      %4941 = vmatprep.subr.bf16.mxu0 0
      %4942 = vmatpush1.bf16.msra.mxu0 0
      %4943 = vmatprep.subr.bf16.mxu0 0
      %4944 = vmatpush1.bf16.msra.mxu0 0
      %4945 = vmatprep.subr.bf16.mxu0 0
      %4946 = vmatpush1.bf16.msra.mxu0 0
      %4947 = vmatprep.subr.bf16.mxu0 0
      %4948 = vmatpush1.bf16.msra.mxu0 0
      %4949 = vmatprep.subr.bf16.mxu0 0
      %4950 = vmatpush1.bf16.msra.mxu0 0
      %4951 = vmatprep.subr.bf16.mxu0 0
      %4952 = vmatpush1.bf16.msra.mxu0 0
      %4953 = vmatprep.mubr.bf16.mxu0 0
      %4954 = vmatmul.mubr.bf16.gmra.mrb[0].mxu0 %v4841
      %v4955 = vpop.f32.mrb[0].mxu0
      %v4956 = vadd.f32 0.0, %v4955
      %v4957 = vpop.f32.mrb[0].mxu0
      %v4958 = vpop.f32.mrb[0].mxu0
      %v4959 = vadd.f32 0.0, %v4958
      %v4960 = vpop.f32.mrb[0].mxu0
      %4961 = vmatprep.mubr.bf16.mxu0 0
      %4962 = vmatmul.mubr.bf16.gmra.mrb[0].mxu0 %v4842
      %v4963 = vpop.f32.mrb[0].mxu0
      %v4964 = vadd.f32 0.0, %v4963
      %v4965 = vpop.f32.mrb[0].mxu0
      %v4966 = vpop.f32.mrb[0].mxu0
      %v4967 = vadd.f32 0.0, %v4966
      %v4968 = vpop.f32.mrb[0].mxu0
      %4969 = vmatprep.mubr.bf16.mxu0 0
      %4970 = vmatmul.mubr.bf16.gmra.mrb[0].mxu0 %v4843
      %v4971 = vpop.f32.mrb[0].mxu0
      %v4972 = vadd.f32 0.0, %v4971
      %v4973 = vpop.f32.mrb[0].mxu0
      %v4974 = vpop.f32.mrb[0].mxu0
      %v4975 = vadd.f32 0.0, %v4974
      %v4976 = vpop.f32.mrb[0].mxu0
      %4977 = vmatprep.mubr.bf16.mxu0 0
      %4978 = vmatmul.mubr.bf16.gmra.mrb[0].mxu0 %v4844
      %v4979 = vpop.f32.mrb[0].mxu0
      %v4980 = vadd.f32 0.0, %v4979
      %v4981 = vpop.f32.mrb[0].mxu0
      %v4982 = vpop.f32.mrb[0].mxu0
      %v4983 = vadd.f32 0.0, %v4982
      %v4984 = vpop.f32.mrb[0].mxu0
      %4985 = vmatprep.mubr.bf16.mxu0 0
      %4986 = vmatmul.mubr.bf16.gmra.mrb[0].mxu0 %v4845
      %v4987 = vpop.f32.mrb[0].mxu0
      %v4988 = vadd.f32 0.0, %v4987
      %v4989 = vpop.f32.mrb[0].mxu0
      %v4990 = vpop.f32.mrb[0].mxu0
      %v4991 = vadd.f32 0.0, %v4990
      %v4992 = vpop.f32.mrb[0].mxu0
      %4993 = vmatprep.mubr.bf16.mxu0 0
      %4994 = vmatmul.mubr.bf16.gmra.mrb[0].mxu0 %v4846
      %v4995 = vpop.f32.mrb[0].mxu0
      %v4996 = vadd.f32 0.0, %v4995
      %v4997 = vpop.f32.mrb[0].mxu0
      %v4998 = vpop.f32.mrb[0].mxu0
      %v4999 = vadd.f32 0.0, %v4998
      %v5000 = vpop.f32.mrb[0].mxu0
      %5001 = vmatprep.mubr.bf16.mxu0 0
      %5002 = vmatmul.mubr.bf16.gmra.mrb[0].mxu0 %v4847
      %v5003 = vpop.f32.mrb[0].mxu0
      %v5004 = vadd.f32 0.0, %v5003
      %v5005 = vpop.f32.mrb[0].mxu0
      %v5006 = vpop.f32.mrb[0].mxu0
      %v5007 = vadd.f32 0.0, %v5006
      %v5008 = vpop.f32.mrb[0].mxu0
      %5009 = vmatprep.mubr.bf16.mxu0 0
      %5010 = vmatmul.mubr.bf16.gmra.mrb[0].mxu0 %v4848
      %v5011 = vpop.f32.mrb[0].mxu0
      %v5012 = vadd.f32 0.0, %v5011
      %v5013 = vpop.f32.mrb[0].mxu0
      %v5014 = vpop.f32.mrb[0].mxu0
      %v5015 = vadd.f32 0.0, %v5014
      %v5016 = vpop.f32.mrb[0].mxu0
      %5017 = vmatprep.mubr.bf16.mxu0 0
      %5018 = vmatmul.mubr.bf16.gmra.mrb[0].mxu0 %v4849
      %v5019 = vpop.f32.mrb[0].mxu0
      %v5020 = vadd.f32 0.0, %v5019
      %v5021 = vpop.f32.mrb[0].mxu0
      %v5022 = vpop.f32.mrb[0].mxu0
      %v5023 = vadd.f32 0.0, %v5022
      %v5024 = vpop.f32.mrb[0].mxu0
      %5025 = vmatprep.mubr.bf16.mxu0 0
      %5026 = vmatmul.mubr.bf16.gmra.mrb[0].mxu0 %v4850
      %v5027 = vpop.f32.mrb[0].mxu0
      %v5028 = vadd.f32 0.0, %v5027
      %v5029 = vpop.f32.mrb[0].mxu0
      %v5030 = vpop.f32.mrb[0].mxu0
      %v5031 = vadd.f32 0.0, %v5030
      %v5032 = vpop.f32.mrb[0].mxu0
      %5033 = vmatprep.mubr.bf16.mxu0 0
      %5034 = vmatmul.mubr.bf16.gmra.mrb[0].mxu0 %v4851
      %v5035 = vpop.f32.mrb[0].mxu0
      %v5036 = vadd.f32 0.0, %v5035
      %v5037 = vpop.f32.mrb[0].mxu0
      %v5038 = vpop.f32.mrb[0].mxu0
      %v5039 = vadd.f32 0.0, %v5038
      %v5040 = vpop.f32.mrb[0].mxu0
      %5041 = vmatprep.mubr.bf16.mxu0 0
      %5042 = vmatmul.mubr.bf16.gmra.mrb[0].mxu0 %v4852
      %v5043 = vpop.f32.mrb[0].mxu0
      %v5044 = vadd.f32 0.0, %v5043
      %v5045 = vpop.f32.mrb[0].mxu0
      %v5046 = vpop.f32.mrb[0].mxu0
      %v5047 = vadd.f32 0.0, %v5046
      %v5048 = vpop.f32.mrb[0].mxu0
      %5049 = vmatprep.mubr.bf16.mxu0 0
      %5050 = vmatmul.mubr.bf16.gmra.mrb[0].mxu0 %v4853
      %v5051 = vpop.f32.mrb[0].mxu0
      %v5052 = vadd.f32 0.0, %v5051
      %v5053 = vpop.f32.mrb[0].mxu0
      %v5054 = vpop.f32.mrb[0].mxu0
      %v5055 = vadd.f32 0.0, %v5054
      %v5056 = vpop.f32.mrb[0].mxu0
      %5057 = vmatprep.mubr.bf16.mxu0 0
      %5058 = vmatmul.mubr.bf16.gmra.mrb[0].mxu0 %v4854
      %v5059 = vpop.f32.mrb[0].mxu0
      %v5060 = vadd.f32 0.0, %v5059
      %v5061 = vpop.f32.mrb[0].mxu0
      %v5062 = vpop.f32.mrb[0].mxu0
      %v5063 = vadd.f32 0.0, %v5062
      %v5064 = vpop.f32.mrb[0].mxu0
      %5065 = vmatprep.mubr.bf16.mxu0 0
      %5066 = vmatmul.mubr.bf16.gmra.mrb[0].mxu0 %v4855
      %v5067 = vpop.f32.mrb[0].mxu0
      %v5068 = vadd.f32 0.0, %v5067
      %v5069 = vpop.f32.mrb[0].mxu0
      %v5070 = vpop.f32.mrb[0].mxu0
      %v5071 = vadd.f32 0.0, %v5070
      %v5072 = vpop.f32.mrb[0].mxu0
      %5073 = vmatprep.mubr.bf16.mxu0 0
      %5074 = vmatmul.mubr.bf16.gmra.mrb[0].mxu0 %v4856
      %v5075 = vpop.f32.mrb[0].mxu0
      %v5076 = vadd.f32 0.0, %v5075
      %v5077 = vpop.f32.mrb[0].mxu0
      %v5078 = vpop.f32.mrb[0].mxu0
      %v5079 = vadd.f32 0.0, %v5078
      %v5080 = vpop.f32.mrb[0].mxu0
      %5081 = vdwg.mxu0
      %v5082 = vadd.f32 %v4328, %v4956
      %v5083 = vadd.f32 %v4329, %v4959
      %v5084 = vadd.f32 %v4330, %v4964
      %v5085 = vadd.f32 %v4331, %v4967
      %v5086 = vadd.f32 %v4332, %v4972
      %v5087 = vadd.f32 %v4333, %v4975
      %v5088 = vadd.f32 %v4334, %v4980
      %v5089 = vadd.f32 %v4335, %v4983
      %v5090 = vadd.f32 %v4336, %v4988
      %v5091 = vadd.f32 %v4337, %v4991
      %v5092 = vadd.f32 %v4338, %v4996
      %v5093 = vadd.f32 %v4339, %v4999
      %v5094 = vadd.f32 %v4340, %v5004
      %v5095 = vadd.f32 %v4341, %v5007
      %v5096 = vadd.f32 %v4342, %v5012
      %v5097 = vadd.f32 %v4343, %v5015
      %v5098 = vadd.f32 %v4344, %v5020
      %v5099 = vadd.f32 %v4345, %v5023
      %v5100 = vadd.f32 %v4346, %v5028
      %v5101 = vadd.f32 %v4347, %v5031
      %v5102 = vadd.f32 %v4348, %v5036
      %v5103 = vadd.f32 %v4349, %v5039
      %v5104 = vadd.f32 %v4350, %v5044
      %v5105 = vadd.f32 %v4351, %v5047
      %v5106 = vadd.f32 %v4352, %v5052
      %v5107 = vadd.f32 %v4353, %v5055
      %v5108 = vadd.f32 %v4354, %v5060
      %v5109 = vadd.f32 %v4355, %v5063
      %v5110 = vadd.f32 %v4356, %v5068
      %v5111 = vadd.f32 %v4357, %v5071
      %v5112 = vadd.f32 %v4358, %v5076
      %v5113 = vadd.f32 %v4359, %v5079
      %v5114 = vld [vmem:[%s3973] sm:$0xe]
      %v5115 = vld [vmem:[%s3973 + $0xc] sm:$0xe]
      %v5116 = vld [vmem:[%s3973 + $0x18] sm:$0xe]
      %v5117 = vld [vmem:[%s3973 + $0x24] sm:$0xe]
      %v5118 = vld [vmem:[%s3973 + $0x30] sm:$0xe]
      %v5119 = vld [vmem:[%s3973 + $0x3c] sm:$0xe]
      %v5120 = vld [vmem:[%s3973 + $0x48] sm:$0xe]
      %v5121 = vld [vmem:[%s3973 + $0x54] sm:$0xe]
      %v5122 = vld [vmem:[%s3973 + $0x60] sm:$0xe]
      %v5123 = vld [vmem:[%s3973 + $0x6c] sm:$0xe]
      %v5124 = vld [vmem:[%s3973 + $0x78] sm:$0xe]
      %v5125 = vld [vmem:[%s3973 + $0x84] sm:$0xe]
      %v5126 = vld [vmem:[%s3973 + $0x90] sm:$0xe]
      %v5127 = vld [vmem:[%s3973 + $0x9c] sm:$0xe]
      %v5128 = vld [vmem:[%s3973 + $0xa8] sm:$0xe]
      %v5129 = vld [vmem:[%s3973 + $0xb4] sm:$0xe]
      %v5178 = vrot.slane %v5114, 5
      %v5179 = vrot.slane %v5178, 4
      %v5180 = vrot.slane %v4361, 5
      %v5181 = vsel %vm1900, %v5179, %v5180
      %v5182 = vrot.slane %v5180, 4
      %v5183 = vrot.slane %v4362, 5
      %v5184 = vsel %vm1900, %v5182, %v5183
      %v5185 = vrot.slane %v5115, 5
      %v5186 = vrot.slane %v5185, 4
      %v5187 = vrot.slane %v4364, 5
      %v5188 = vsel %vm1900, %v5186, %v5187
      %v5189 = vrot.slane %v5187, 4
      %v5190 = vrot.slane %v4365, 5
      %v5191 = vsel %vm1900, %v5189, %v5190
      %v5192 = vrot.slane %v5116, 5
      %v5193 = vrot.slane %v5192, 4
      %v5194 = vrot.slane %v4367, 5
      %v5195 = vsel %vm1900, %v5193, %v5194
      %v5196 = vrot.slane %v5194, 4
      %v5197 = vrot.slane %v4368, 5
      %v5198 = vsel %vm1900, %v5196, %v5197
      %v5199 = vrot.slane %v5117, 5
      %v5200 = vrot.slane %v5199, 4
      %v5201 = vrot.slane %v4370, 5
      %v5202 = vsel %vm1900, %v5200, %v5201
      %v5203 = vrot.slane %v5201, 4
      %v5204 = vrot.slane %v4371, 5
      %v5205 = vsel %vm1900, %v5203, %v5204
      %v5206 = vrot.slane %v5118, 5
      %v5207 = vrot.slane %v5206, 4
      %v5208 = vrot.slane %v4373, 5
      %v5209 = vsel %vm1900, %v5207, %v5208
      %v5210 = vrot.slane %v5208, 4
      %v5211 = vrot.slane %v4374, 5
      %v5212 = vsel %vm1900, %v5210, %v5211
      %v5213 = vrot.slane %v5119, 5
      %v5214 = vrot.slane %v5213, 4
      %v5215 = vrot.slane %v4376, 5
      %v5216 = vsel %vm1900, %v5214, %v5215
      %v5217 = vrot.slane %v5215, 4
      %v5218 = vrot.slane %v4377, 5
      %v5219 = vsel %vm1900, %v5217, %v5218
      %v5220 = vrot.slane %v5120, 5
      %v5221 = vrot.slane %v5220, 4
      %v5222 = vrot.slane %v4379, 5
      %v5223 = vsel %vm1900, %v5221, %v5222
      %v5224 = vrot.slane %v5222, 4
      %v5225 = vrot.slane %v4380, 5
      %v5226 = vsel %vm1900, %v5224, %v5225
      %v5227 = vrot.slane %v5121, 5
      %v5228 = vrot.slane %v5227, 4
      %v5229 = vrot.slane %v4382, 5
      %v5230 = vsel %vm1900, %v5228, %v5229
      %v5231 = vrot.slane %v5229, 4
      %v5232 = vrot.slane %v4383, 5
      %v5233 = vsel %vm1900, %v5231, %v5232
      %v5234 = vrot.slane %v5122, 5
      %v5235 = vrot.slane %v5234, 4
      %v5236 = vrot.slane %v4385, 5
      %v5237 = vsel %vm1900, %v5235, %v5236
      %v5238 = vrot.slane %v5236, 4
      %v5239 = vrot.slane %v4386, 5
      %v5240 = vsel %vm1900, %v5238, %v5239
      %v5241 = vrot.slane %v5123, 5
      %v5242 = vrot.slane %v5241, 4
      %v5243 = vrot.slane %v4388, 5
      %v5244 = vsel %vm1900, %v5242, %v5243
      %v5245 = vrot.slane %v5243, 4
      %v5246 = vrot.slane %v4389, 5
      %v5247 = vsel %vm1900, %v5245, %v5246
      %v5248 = vrot.slane %v5124, 5
      %v5249 = vrot.slane %v5248, 4
      %v5250 = vrot.slane %v4391, 5
      %v5251 = vsel %vm1900, %v5249, %v5250
      %v5252 = vrot.slane %v5250, 4
      %v5253 = vrot.slane %v4392, 5
      %v5254 = vsel %vm1900, %v5252, %v5253
      %v5255 = vrot.slane %v5125, 5
      %v5256 = vrot.slane %v5255, 4
      %v5257 = vrot.slane %v4394, 5
      %v5258 = vsel %vm1900, %v5256, %v5257
      %v5259 = vrot.slane %v5257, 4
      %v5260 = vrot.slane %v4395, 5
      %v5261 = vsel %vm1900, %v5259, %v5260
      %v5262 = vrot.slane %v5126, 5
      %v5263 = vrot.slane %v5262, 4
      %v5264 = vrot.slane %v4397, 5
      %v5265 = vsel %vm1900, %v5263, %v5264
      %v5266 = vrot.slane %v5264, 4
      %v5267 = vrot.slane %v4398, 5
      %v5268 = vsel %vm1900, %v5266, %v5267
      %v5269 = vrot.slane %v5127, 5
      %v5270 = vrot.slane %v5269, 4
      %v5271 = vrot.slane %v4400, 5
      %v5272 = vsel %vm1900, %v5270, %v5271
      %v5273 = vrot.slane %v5271, 4
      %v5274 = vrot.slane %v4401, 5
      %v5275 = vsel %vm1900, %v5273, %v5274
      %v5276 = vrot.slane %v5128, 5
      %v5277 = vrot.slane %v5276, 4
      %v5278 = vrot.slane %v4403, 5
      %v5279 = vsel %vm1900, %v5277, %v5278
      %v5280 = vrot.slane %v5278, 4
      %v5281 = vrot.slane %v4404, 5
      %v5282 = vsel %vm1900, %v5280, %v5281
      %v5283 = vrot.slane %v5129, 5
      %v5284 = vrot.slane %v5283, 4
      %v5285 = vrot.slane %v4406, 5
      %v5286 = vsel %vm1900, %v5284, %v5285
      %v5287 = vrot.slane %v5285, 4
      %v5288 = vrot.slane %v4407, 5
      %v5289 = vsel %vm1900, %v5287, %v5288
      %s5290 = scalar_lea.vmem %s1, 512
      %v5291 = vld [vmem:[%s5290] sm:$0xf]
      %v5292 = vld [vmem:[%s5290 + $0x4] sm:$0xf]
      %v5293 = vld [vmem:[%s5290 + $0x8] sm:$0xf]
      %v5294 = vld [vmem:[%s5290 + $0xc] sm:$0xf]
      %v5295 = vld [vmem:[%s5290 + $0x10] sm:$0xf]
      %v5296 = vld [vmem:[%s5290 + $0x14] sm:$0xf]
      %v5297 = vld [vmem:[%s5290 + $0x18] sm:$0xf]
      %v5298 = vld [vmem:[%s5290 + $0x1c] sm:$0xf]
      %v5299 = vld [vmem:[%s5290 + $0x20] sm:$0xf]
      %v5300 = vld [vmem:[%s5290 + $0x24] sm:$0xf]
      %v5301 = vld [vmem:[%s5290 + $0x28] sm:$0xf]
      %v5302 = vld [vmem:[%s5290 + $0x2c] sm:$0xf]
      %v5303 = vld [vmem:[%s5290 + $0x30] sm:$0xf]
      %v5304 = vld [vmem:[%s5290 + $0x34] sm:$0xf]
      %v5305 = vld [vmem:[%s5290 + $0x38] sm:$0xf]
      %v5306 = vld [vmem:[%s5290 + $0x3c] sm:$0xf]
      %v5307 = vunpack.c.l.b16 %v5181
      %v5308 = vunpack.c.l.b16 %v5184
      %v5309 = vunpack.c.l.b16 %v5188
      %v5310 = vunpack.c.l.b16 %v5191
      %v5311 = vunpack.c.l.b16 %v5195
      %v5312 = vunpack.c.l.b16 %v5198
      %v5313 = vunpack.c.l.b16 %v5202
      %v5314 = vunpack.c.l.b16 %v5205
      %v5315 = vunpack.c.l.b16 %v5209
      %v5316 = vunpack.c.l.b16 %v5212
      %v5317 = vunpack.c.l.b16 %v5216
      %v5318 = vunpack.c.l.b16 %v5219
      %v5319 = vunpack.c.l.b16 %v5223
      %v5320 = vunpack.c.l.b16 %v5226
      %v5321 = vunpack.c.l.b16 %v5230
      %v5322 = vunpack.c.l.b16 %v5233
      %v5323 = vunpack.c.l.b16 %v5237
      %v5324 = vunpack.c.l.b16 %v5240
      %v5325 = vunpack.c.l.b16 %v5244
      %v5326 = vunpack.c.l.b16 %v5247
      %v5327 = vunpack.c.l.b16 %v5251
      %v5328 = vunpack.c.l.b16 %v5254
      %v5329 = vunpack.c.l.b16 %v5258
      %v5330 = vunpack.c.l.b16 %v5261
      %v5331 = vunpack.c.l.b16 %v5265
      %v5332 = vunpack.c.l.b16 %v5268
      %v5333 = vunpack.c.l.b16 %v5272
      %v5334 = vunpack.c.l.b16 %v5275
      %v5335 = vunpack.c.l.b16 %v5279
      %v5336 = vunpack.c.l.b16 %v5282
      %v5337 = vunpack.c.l.b16 %v5286
      %v5338 = vunpack.c.l.b16 %v5289
      %v5339 = vpack.c.b16 %v5308, %v5307
      %v5340 = vpack.c.b16 %v5310, %v5309
      %v5341 = vpack.c.b16 %v5312, %v5311
      %v5342 = vpack.c.b16 %v5314, %v5313
      %v5343 = vpack.c.b16 %v5316, %v5315
      %v5344 = vpack.c.b16 %v5318, %v5317
      %v5345 = vpack.c.b16 %v5320, %v5319
      %v5346 = vpack.c.b16 %v5322, %v5321
      %v5347 = vpack.c.b16 %v5324, %v5323
      %v5348 = vpack.c.b16 %v5326, %v5325
      %v5349 = vpack.c.b16 %v5328, %v5327
      %v5350 = vpack.c.b16 %v5330, %v5329
      %v5351 = vpack.c.b16 %v5332, %v5331
      %v5352 = vpack.c.b16 %v5334, %v5333
      %v5353 = vpack.c.b16 %v5336, %v5335
      %v5354 = vpack.c.b16 %v5338, %v5337
      %v5387 = vunpack.c.l.b16 %v5291
      %v5388 = vunpack.c.l.b16 %v5292
      %v5389 = vunpack.c.l.b16 %v5293
      %v5390 = vunpack.c.l.b16 %v5294
      %v5391 = vunpack.c.l.b16 %v5295
      %v5392 = vunpack.c.l.b16 %v5296
      %v5393 = vunpack.c.l.b16 %v5297
      %v5394 = vunpack.c.l.b16 %v5298
      %v5395 = vunpack.c.l.b16 %v5299
      %v5396 = vunpack.c.l.b16 %v5300
      %v5397 = vunpack.c.l.b16 %v5301
      %v5398 = vunpack.c.l.b16 %v5302
      %v5399 = vunpack.c.l.b16 %v5303
      %v5400 = vunpack.c.l.b16 %v5304
      %v5401 = vunpack.c.l.b16 %v5305
      %v5402 = vunpack.c.l.b16 %v5306
      %v5403 = vpack.c.b16 %v5388, %v5387
      %v5404 = vpack.c.b16 %v5390, %v5389
      %v5405 = vpack.c.b16 %v5392, %v5391
      %v5406 = vpack.c.b16 %v5394, %v5393
      %v5407 = vpack.c.b16 %v5396, %v5395
      %v5408 = vpack.c.b16 %v5398, %v5397
      %v5409 = vpack.c.b16 %v5400, %v5399
      %v5410 = vpack.c.b16 %v5402, %v5401
      %5419 = vmatprep.subr.bf16.mxu0 0
      %5420 = vmatpush1.bf16.msra.mxu0 %v5403
      %5421 = vmatprep.subr.bf16.mxu0 0
      %5422 = vmatpush1.bf16.msra.mxu0 %v5404
      %5423 = vmatprep.subr.bf16.mxu0 0
      %5424 = vmatpush1.bf16.msra.mxu0 %v5405
      %5425 = vmatprep.subr.bf16.mxu0 0
      %5426 = vmatpush1.bf16.msra.mxu0 %v5406
      %5427 = vmatprep.subr.bf16.mxu0 0
      %5428 = vmatpush1.bf16.msra.mxu0 %v5407
      %5429 = vmatprep.subr.bf16.mxu0 0
      %5430 = vmatpush1.bf16.msra.mxu0 %v5408
      %5431 = vmatprep.subr.bf16.mxu0 0
      %5432 = vmatpush1.bf16.msra.mxu0 %v5409
      %5433 = vmatprep.subr.bf16.mxu0 0
      %5434 = vmatpush1.bf16.msra.mxu0 %v5410
      %5435 = vmatprep.subr.bf16.mxu0 0
      %5436 = vmatpush1.bf16.msra.mxu0 0
      %5437 = vmatprep.subr.bf16.mxu0 0
      %5438 = vmatpush1.bf16.msra.mxu0 0
      %5439 = vmatprep.subr.bf16.mxu0 0
      %5440 = vmatpush1.bf16.msra.mxu0 0
      %5441 = vmatprep.subr.bf16.mxu0 0
      %5442 = vmatpush1.bf16.msra.mxu0 0
      %5443 = vmatprep.subr.bf16.mxu0 0
      %5444 = vmatpush1.bf16.msra.mxu0 0
      %5445 = vmatprep.subr.bf16.mxu0 0
      %5446 = vmatpush1.bf16.msra.mxu0 0
      %5447 = vmatprep.subr.bf16.mxu0 0
      %5448 = vmatpush1.bf16.msra.mxu0 0
      %5449 = vmatprep.subr.bf16.mxu0 0
      %5450 = vmatpush1.bf16.msra.mxu0 0
      %5451 = vmatprep.mubr.bf16.mxu0 0
      %5452 = vmatmul.mubr.bf16.gmra.mrb[0].mxu0 %v5339
      %v5453 = vpop.f32.mrb[0].mxu0
      %v5454 = vadd.f32 0.0, %v5453
      %v5455 = vpop.f32.mrb[0].mxu0
      %v5456 = vpop.f32.mrb[0].mxu0
      %v5457 = vadd.f32 0.0, %v5456
      %v5458 = vpop.f32.mrb[0].mxu0
      %5459 = vmatprep.mubr.bf16.mxu0 0
      %5460 = vmatmul.mubr.bf16.gmra.mrb[0].mxu0 %v5340
      %v5461 = vpop.f32.mrb[0].mxu0
      %v5462 = vadd.f32 0.0, %v5461
      %v5463 = vpop.f32.mrb[0].mxu0
      %v5464 = vpop.f32.mrb[0].mxu0
      %v5465 = vadd.f32 0.0, %v5464
      %v5466 = vpop.f32.mrb[0].mxu0
      %5467 = vmatprep.mubr.bf16.mxu0 0
      %5468 = vmatmul.mubr.bf16.gmra.mrb[0].mxu0 %v5341
      %v5469 = vpop.f32.mrb[0].mxu0
      %v5470 = vadd.f32 0.0, %v5469
      %v5471 = vpop.f32.mrb[0].mxu0
      %v5472 = vpop.f32.mrb[0].mxu0
      %v5473 = vadd.f32 0.0, %v5472
      %v5474 = vpop.f32.mrb[0].mxu0
      %5475 = vmatprep.mubr.bf16.mxu0 0
      %5476 = vmatmul.mubr.bf16.gmra.mrb[0].mxu0 %v5342
      %v5477 = vpop.f32.mrb[0].mxu0
      %v5478 = vadd.f32 0.0, %v5477
      %v5479 = vpop.f32.mrb[0].mxu0
      %v5480 = vpop.f32.mrb[0].mxu0
      %v5481 = vadd.f32 0.0, %v5480
      %v5482 = vpop.f32.mrb[0].mxu0
      %5483 = vmatprep.mubr.bf16.mxu0 0
      %5484 = vmatmul.mubr.bf16.gmra.mrb[0].mxu0 %v5343
      %v5485 = vpop.f32.mrb[0].mxu0
      %v5486 = vadd.f32 0.0, %v5485
      %v5487 = vpop.f32.mrb[0].mxu0
      %v5488 = vpop.f32.mrb[0].mxu0
      %v5489 = vadd.f32 0.0, %v5488
      %v5490 = vpop.f32.mrb[0].mxu0
      %5491 = vmatprep.mubr.bf16.mxu0 0
      %5492 = vmatmul.mubr.bf16.gmra.mrb[0].mxu0 %v5344
      %v5493 = vpop.f32.mrb[0].mxu0
      %v5494 = vadd.f32 0.0, %v5493
      %v5495 = vpop.f32.mrb[0].mxu0
      %v5496 = vpop.f32.mrb[0].mxu0
      %v5497 = vadd.f32 0.0, %v5496
      %v5498 = vpop.f32.mrb[0].mxu0
      %5499 = vmatprep.mubr.bf16.mxu0 0
      %5500 = vmatmul.mubr.bf16.gmra.mrb[0].mxu0 %v5345
      %v5501 = vpop.f32.mrb[0].mxu0
      %v5502 = vadd.f32 0.0, %v5501
      %v5503 = vpop.f32.mrb[0].mxu0
      %v5504 = vpop.f32.mrb[0].mxu0
      %v5505 = vadd.f32 0.0, %v5504
      %v5506 = vpop.f32.mrb[0].mxu0
      %5507 = vmatprep.mubr.bf16.mxu0 0
      %5508 = vmatmul.mubr.bf16.gmra.mrb[0].mxu0 %v5346
      %v5509 = vpop.f32.mrb[0].mxu0
      %v5510 = vadd.f32 0.0, %v5509
      %v5511 = vpop.f32.mrb[0].mxu0
      %v5512 = vpop.f32.mrb[0].mxu0
      %v5513 = vadd.f32 0.0, %v5512
      %v5514 = vpop.f32.mrb[0].mxu0
      %5515 = vmatprep.mubr.bf16.mxu0 0
      %5516 = vmatmul.mubr.bf16.gmra.mrb[0].mxu0 %v5347
      %v5517 = vpop.f32.mrb[0].mxu0
      %v5518 = vadd.f32 0.0, %v5517
      %v5519 = vpop.f32.mrb[0].mxu0
      %v5520 = vpop.f32.mrb[0].mxu0
      %v5521 = vadd.f32 0.0, %v5520
      %v5522 = vpop.f32.mrb[0].mxu0
      %5523 = vmatprep.mubr.bf16.mxu0 0
      %5524 = vmatmul.mubr.bf16.gmra.mrb[0].mxu0 %v5348
      %v5525 = vpop.f32.mrb[0].mxu0
      %v5526 = vadd.f32 0.0, %v5525
      %v5527 = vpop.f32.mrb[0].mxu0
      %v5528 = vpop.f32.mrb[0].mxu0
      %v5529 = vadd.f32 0.0, %v5528
      %v5530 = vpop.f32.mrb[0].mxu0
      %5531 = vmatprep.mubr.bf16.mxu0 0
      %5532 = vmatmul.mubr.bf16.gmra.mrb[0].mxu0 %v5349
      %v5533 = vpop.f32.mrb[0].mxu0
      %v5534 = vadd.f32 0.0, %v5533
      %v5535 = vpop.f32.mrb[0].mxu0
      %v5536 = vpop.f32.mrb[0].mxu0
      %v5537 = vadd.f32 0.0, %v5536
      %v5538 = vpop.f32.mrb[0].mxu0
      %5539 = vmatprep.mubr.bf16.mxu0 0
      %5540 = vmatmul.mubr.bf16.gmra.mrb[0].mxu0 %v5350
      %v5541 = vpop.f32.mrb[0].mxu0
      %v5542 = vadd.f32 0.0, %v5541
      %v5543 = vpop.f32.mrb[0].mxu0
      %v5544 = vpop.f32.mrb[0].mxu0
      %v5545 = vadd.f32 0.0, %v5544
      %v5546 = vpop.f32.mrb[0].mxu0
      %5547 = vmatprep.mubr.bf16.mxu0 0
      %5548 = vmatmul.mubr.bf16.gmra.mrb[0].mxu0 %v5351
      %v5549 = vpop.f32.mrb[0].mxu0
      %v5550 = vadd.f32 0.0, %v5549
      %v5551 = vpop.f32.mrb[0].mxu0
      %v5552 = vpop.f32.mrb[0].mxu0
      %v5553 = vadd.f32 0.0, %v5552
      %v5554 = vpop.f32.mrb[0].mxu0
      %5555 = vmatprep.mubr.bf16.mxu0 0
      %5556 = vmatmul.mubr.bf16.gmra.mrb[0].mxu0 %v5352
      %v5557 = vpop.f32.mrb[0].mxu0
      %v5558 = vadd.f32 0.0, %v5557
      %v5559 = vpop.f32.mrb[0].mxu0
      %v5560 = vpop.f32.mrb[0].mxu0
      %v5561 = vadd.f32 0.0, %v5560
      %v5562 = vpop.f32.mrb[0].mxu0
      %5563 = vmatprep.mubr.bf16.mxu0 0
      %5564 = vmatmul.mubr.bf16.gmra.mrb[0].mxu0 %v5353
      %v5565 = vpop.f32.mrb[0].mxu0
      %v5566 = vadd.f32 0.0, %v5565
      %v5567 = vpop.f32.mrb[0].mxu0
      %v5568 = vpop.f32.mrb[0].mxu0
      %v5569 = vadd.f32 0.0, %v5568
      %v5570 = vpop.f32.mrb[0].mxu0
      %5571 = vmatprep.mubr.bf16.mxu0 0
      %5572 = vmatmul.mubr.bf16.gmra.mrb[0].mxu0 %v5354
      %v5573 = vpop.f32.mrb[0].mxu0
      %v5574 = vadd.f32 0.0, %v5573
      %v5575 = vpop.f32.mrb[0].mxu0
      %v5576 = vpop.f32.mrb[0].mxu0
      %v5577 = vadd.f32 0.0, %v5576
      %v5578 = vpop.f32.mrb[0].mxu0
      %5579 = vdwg.mxu0
      %v5580 = vadd.f32 %v5082, %v5454
      %v5581 = vadd.f32 %v5083, %v5457
      %v5582 = vadd.f32 %v5084, %v5462
      %v5583 = vadd.f32 %v5085, %v5465
      %v5584 = vadd.f32 %v5086, %v5470
      %v5585 = vadd.f32 %v5087, %v5473
      %v5586 = vadd.f32 %v5088, %v5478
      %v5587 = vadd.f32 %v5089, %v5481
      %v5588 = vadd.f32 %v5090, %v5486
      %v5589 = vadd.f32 %v5091, %v5489
      %v5590 = vadd.f32 %v5092, %v5494
      %v5591 = vadd.f32 %v5093, %v5497
      %v5592 = vadd.f32 %v5094, %v5502
      %v5593 = vadd.f32 %v5095, %v5505
      %v5594 = vadd.f32 %v5096, %v5510
      %v5595 = vadd.f32 %v5097, %v5513
      %v5596 = vadd.f32 %v5098, %v5518
      %v5597 = vadd.f32 %v5099, %v5521
      %v5598 = vadd.f32 %v5100, %v5526
      %v5599 = vadd.f32 %v5101, %v5529
      %v5600 = vadd.f32 %v5102, %v5534
      %v5601 = vadd.f32 %v5103, %v5537
      %v5602 = vadd.f32 %v5104, %v5542
      %v5603 = vadd.f32 %v5105, %v5545
      %v5604 = vadd.f32 %v5106, %v5550
      %v5605 = vadd.f32 %v5107, %v5553
      %v5606 = vadd.f32 %v5108, %v5558
      %v5607 = vadd.f32 %v5109, %v5561
      %v5608 = vadd.f32 %v5110, %v5566
      %v5609 = vadd.f32 %v5111, %v5569
      %v5610 = vadd.f32 %v5112, %v5574
      %v5611 = vadd.f32 %v5113, %v5577
      %v5612 = vld [vmem:[%s2] sm:$0x1]
      %v5614 = vlaneseq
      %v5615 = vshrl.u32 %v5614, 7
      %v5616 = vsub.s32 0, %v5615
      %v5617 = vrot.slane %v5612, %v5616
      %v5619 = vadd.f32 %v5580, %v5617
      %v5620 = vadd.f32 %v5581, %v5617
      %v5621 = vadd.f32 %v5582, %v5617
      %v5622 = vadd.f32 %v5583, %v5617
      %v5623 = vadd.f32 %v5584, %v5617
      %v5624 = vadd.f32 %v5585, %v5617
      %v5625 = vadd.f32 %v5586, %v5617
      %v5626 = vadd.f32 %v5587, %v5617
      %v5627 = vadd.f32 %v5588, %v5617
      %v5628 = vadd.f32 %v5589, %v5617
      %v5629 = vadd.f32 %v5590, %v5617
      %v5630 = vadd.f32 %v5591, %v5617
      %v5631 = vadd.f32 %v5592, %v5617
      %v5632 = vadd.f32 %v5593, %v5617
      %v5633 = vadd.f32 %v5594, %v5617
      %v5634 = vadd.f32 %v5595, %v5617
      %v5635 = vadd.f32 %v5596, %v5617
      %v5636 = vadd.f32 %v5597, %v5617
      %v5637 = vadd.f32 %v5598, %v5617
      %v5638 = vadd.f32 %v5599, %v5617
      %v5639 = vadd.f32 %v5600, %v5617
      %v5640 = vadd.f32 %v5601, %v5617
      %v5641 = vadd.f32 %v5602, %v5617
      %v5642 = vadd.f32 %v5603, %v5617
      %v5643 = vadd.f32 %v5604, %v5617
      %v5644 = vadd.f32 %v5605, %v5617
      %v5645 = vadd.f32 %v5606, %v5617
      %v5646 = vadd.f32 %v5607, %v5617
      %v5647 = vadd.f32 %v5608, %v5617
      %v5648 = vadd.f32 %v5609, %v5617
      %v5649 = vadd.f32 %v5610, %v5617
      %v5650 = vadd.f32 %v5611, %v5617
      %v5651 = vmax.f32 %v5619, 0.0
      %v5652 = vmax.f32 %v5620, 0.0
      %v5653 = vmax.f32 %v5621, 0.0
      %v5654 = vmax.f32 %v5622, 0.0
      %v5655 = vmax.f32 %v5623, 0.0
      %v5656 = vmax.f32 %v5624, 0.0
      %v5657 = vmax.f32 %v5625, 0.0
      %v5658 = vmax.f32 %v5626, 0.0
      %v5659 = vmax.f32 %v5627, 0.0
      %v5660 = vmax.f32 %v5628, 0.0
      %v5661 = vmax.f32 %v5629, 0.0
      %v5662 = vmax.f32 %v5630, 0.0
      %v5663 = vmax.f32 %v5631, 0.0
      %v5664 = vmax.f32 %v5632, 0.0
      %v5665 = vmax.f32 %v5633, 0.0
      %v5666 = vmax.f32 %v5634, 0.0
      %v5667 = vmax.f32 %v5635, 0.0
      %v5668 = vmax.f32 %v5636, 0.0
      %v5669 = vmax.f32 %v5637, 0.0
      %v5670 = vmax.f32 %v5638, 0.0
      %v5671 = vmax.f32 %v5639, 0.0
      %v5672 = vmax.f32 %v5640, 0.0
      %v5673 = vmax.f32 %v5641, 0.0
      %v5674 = vmax.f32 %v5642, 0.0
      %v5675 = vmax.f32 %v5643, 0.0
      %v5676 = vmax.f32 %v5644, 0.0
      %v5677 = vmax.f32 %v5645, 0.0
      %v5678 = vmax.f32 %v5646, 0.0
      %v5679 = vmax.f32 %v5647, 0.0
      %v5680 = vmax.f32 %v5648, 0.0
      %v5681 = vmax.f32 %v5649, 0.0
      %v5682 = vmax.f32 %v5650, 0.0
      %v5683 = vpack.c.bf16 %v5652, %v5651
      %v5684 = vpack.c.bf16 %v5654, %v5653
      %v5685 = vpack.c.bf16 %v5656, %v5655
      %v5686 = vpack.c.bf16 %v5658, %v5657
      %v5687 = vpack.c.bf16 %v5660, %v5659
      %v5688 = vpack.c.bf16 %v5662, %v5661
      %v5689 = vpack.c.bf16 %v5664, %v5663
      %v5690 = vpack.c.bf16 %v5666, %v5665
      %v5691 = vpack.c.bf16 %v5668, %v5667
      %v5692 = vpack.c.bf16 %v5670, %v5669
      %v5693 = vpack.c.bf16 %v5672, %v5671
      %v5694 = vpack.c.bf16 %v5674, %v5673
      %v5695 = vpack.c.bf16 %v5676, %v5675
      %v5696 = vpack.c.bf16 %v5678, %v5677
      %v5697 = vpack.c.bf16 %v5680, %v5679
      %v5698 = vpack.c.bf16 %v5682, %v5681
      %v5715 = vunpack.c.l.b16 %v5683
      %v5716 = vunpack.c.h.b16 %v5683
      %v5717 = vunpack.c.l.b16 %v5684
      %v5718 = vunpack.c.h.b16 %v5684
      %v5719 = vunpack.c.l.b16 %v5685
      %v5720 = vunpack.c.h.b16 %v5685
      %v5721 = vunpack.c.l.b16 %v5686
      %v5722 = vunpack.c.h.b16 %v5686
      %v5723 = vunpack.c.l.b16 %v5687
      %v5724 = vunpack.c.h.b16 %v5687
      %v5725 = vunpack.c.l.b16 %v5688
      %v5726 = vunpack.c.h.b16 %v5688
      %v5727 = vunpack.c.l.b16 %v5689
      %v5728 = vunpack.c.h.b16 %v5689
      %v5729 = vunpack.c.l.b16 %v5690
      %v5730 = vunpack.c.h.b16 %v5690
      %v5731 = vunpack.c.l.b16 %v5691
      %v5732 = vunpack.c.h.b16 %v5691
      %v5733 = vunpack.c.l.b16 %v5692
      %v5734 = vunpack.c.h.b16 %v5692
      %v5735 = vunpack.c.l.b16 %v5693
      %v5736 = vunpack.c.h.b16 %v5693
      %v5737 = vunpack.c.l.b16 %v5694
      %v5738 = vunpack.c.h.b16 %v5694
      %v5739 = vunpack.c.l.b16 %v5695
      %v5740 = vunpack.c.h.b16 %v5695
      %v5741 = vunpack.c.l.b16 %v5696
      %v5742 = vunpack.c.h.b16 %v5696
      %v5743 = vunpack.c.l.b16 %v5697
      %v5744 = vunpack.c.h.b16 %v5697
      %v5745 = vunpack.c.l.b16 %v5698
      %v5746 = vunpack.c.h.b16 %v5698
      %v5747 = vpack.c.b16 %v5715, %v5715
      %v5748 = vpack.c.b16 %v5716, %v5716
      %v5749 = vpack.c.b16 %v5717, %v5717
      %v5750 = vpack.c.b16 %v5718, %v5718
      %v5751 = vpack.c.b16 %v5719, %v5719
      %v5752 = vpack.c.b16 %v5720, %v5720
      %v5753 = vpack.c.b16 %v5721, %v5721
      %v5754 = vpack.c.b16 %v5722, %v5722
      %v5755 = vpack.c.b16 %v5723, %v5723
      %v5756 = vpack.c.b16 %v5724, %v5724
      %v5757 = vpack.c.b16 %v5725, %v5725
      %v5758 = vpack.c.b16 %v5726, %v5726
      %v5759 = vpack.c.b16 %v5727, %v5727
      %v5760 = vpack.c.b16 %v5728, %v5728
      %v5761 = vpack.c.b16 %v5729, %v5729
      %v5762 = vpack.c.b16 %v5730, %v5730
      %v5763 = vpack.c.b16 %v5731, %v5731
      %v5764 = vpack.c.b16 %v5732, %v5732
      %v5765 = vpack.c.b16 %v5733, %v5733
      %v5766 = vpack.c.b16 %v5734, %v5734
      %v5767 = vpack.c.b16 %v5735, %v5735
      %v5768 = vpack.c.b16 %v5736, %v5736
      %v5769 = vpack.c.b16 %v5737, %v5737
      %v5770 = vpack.c.b16 %v5738, %v5738
      %v5771 = vpack.c.b16 %v5739, %v5739
      %v5772 = vpack.c.b16 %v5740, %v5740
      %v5773 = vpack.c.b16 %v5741, %v5741
      %v5774 = vpack.c.b16 %v5742, %v5742
      %v5775 = vpack.c.b16 %v5743, %v5743
      %v5776 = vpack.c.b16 %v5744, %v5744
      %v5777 = vpack.c.b16 %v5745, %v5745
      %v5778 = vpack.c.b16 %v5746, %v5746
      %v5780 = vshrl.u32 %v5747, 16
      %v5782 = vrot.slane %v5780, 7
      %v5783 = vshll.u32 %v5747, 16
      %v5785 = vor.u32 %v5782, %v5783
      %v5786 = vrot.slane %v5782, 4
      %v5788 = vshrl.u32 %v5748, 16
      %v5790 = vrot.slane %v5788, 7
      %v5791 = vshll.u32 %v5748, 16
      %v5793 = vor.u32 %v5790, %v5791
      %v5794 = vsel %vm365, %v5786, %v5793
      %v5795 = vrot.slane %v5790, 4
      %v5797 = vshrl.u32 %v5749, 16
      %v5799 = vrot.slane %v5797, 7
      %v5800 = vshll.u32 %v5749, 16
      %v5802 = vor.u32 %v5799, %v5800
      %v5803 = vrot.slane %v5799, 4
      %v5805 = vshrl.u32 %v5750, 16
      %v5807 = vrot.slane %v5805, 7
      %v5808 = vshll.u32 %v5750, 16
      %v5810 = vor.u32 %v5807, %v5808
      %v5811 = vsel %vm365, %v5803, %v5810
      %v5812 = vrot.slane %v5807, 4
      %v5814 = vshrl.u32 %v5751, 16
      %v5816 = vrot.slane %v5814, 7
      %v5817 = vshll.u32 %v5751, 16
      %v5819 = vor.u32 %v5816, %v5817
      %v5820 = vrot.slane %v5816, 4
      %v5822 = vshrl.u32 %v5752, 16
      %v5824 = vrot.slane %v5822, 7
      %v5825 = vshll.u32 %v5752, 16
      %v5827 = vor.u32 %v5824, %v5825
      %v5828 = vsel %vm365, %v5820, %v5827
      %v5829 = vrot.slane %v5824, 4
      %v5831 = vshrl.u32 %v5753, 16
      %v5833 = vrot.slane %v5831, 7
      %v5834 = vshll.u32 %v5753, 16
      %v5836 = vor.u32 %v5833, %v5834
      %v5837 = vrot.slane %v5833, 4
      %v5839 = vshrl.u32 %v5754, 16
      %v5841 = vrot.slane %v5839, 7
      %v5842 = vshll.u32 %v5754, 16
      %v5844 = vor.u32 %v5841, %v5842
      %v5845 = vsel %vm365, %v5837, %v5844
      %v5846 = vrot.slane %v5841, 4
      %v5848 = vshrl.u32 %v5755, 16
      %v5850 = vrot.slane %v5848, 7
      %v5851 = vshll.u32 %v5755, 16
      %v5853 = vor.u32 %v5850, %v5851
      %v5854 = vrot.slane %v5850, 4
      %v5856 = vshrl.u32 %v5756, 16
      %v5858 = vrot.slane %v5856, 7
      %v5859 = vshll.u32 %v5756, 16
      %v5861 = vor.u32 %v5858, %v5859
      %v5862 = vsel %vm365, %v5854, %v5861
      %v5863 = vrot.slane %v5858, 4
      %v5865 = vshrl.u32 %v5757, 16
      %v5867 = vrot.slane %v5865, 7
      %v5868 = vshll.u32 %v5757, 16
      %v5870 = vor.u32 %v5867, %v5868
      %v5871 = vrot.slane %v5867, 4
      %v5873 = vshrl.u32 %v5758, 16
      %v5875 = vrot.slane %v5873, 7
      %v5876 = vshll.u32 %v5758, 16
      %v5878 = vor.u32 %v5875, %v5876
      %v5879 = vsel %vm365, %v5871, %v5878
      %v5880 = vrot.slane %v5875, 4
      %v5882 = vshrl.u32 %v5759, 16
      %v5884 = vrot.slane %v5882, 7
      %v5885 = vshll.u32 %v5759, 16
      %v5887 = vor.u32 %v5884, %v5885
      %v5888 = vrot.slane %v5884, 4
      %v5890 = vshrl.u32 %v5760, 16
      %v5892 = vrot.slane %v5890, 7
      %v5893 = vshll.u32 %v5760, 16
      %v5895 = vor.u32 %v5892, %v5893
      %v5896 = vsel %vm365, %v5888, %v5895
      %v5897 = vrot.slane %v5892, 4
      %v5899 = vshrl.u32 %v5761, 16
      %v5901 = vrot.slane %v5899, 7
      %v5902 = vshll.u32 %v5761, 16
      %v5904 = vor.u32 %v5901, %v5902
      %v5905 = vrot.slane %v5901, 4
      %v5907 = vshrl.u32 %v5762, 16
      %v5909 = vrot.slane %v5907, 7
      %v5910 = vshll.u32 %v5762, 16
      %v5912 = vor.u32 %v5909, %v5910
      %v5913 = vsel %vm365, %v5905, %v5912
      %v5914 = vrot.slane %v5909, 4
      %v5916 = vshrl.u32 %v5763, 16
      %v5918 = vrot.slane %v5916, 7
      %v5919 = vshll.u32 %v5763, 16
      %v5921 = vor.u32 %v5918, %v5919
      %v5922 = vrot.slane %v5918, 4
      %v5924 = vshrl.u32 %v5764, 16
      %v5926 = vrot.slane %v5924, 7
      %v5927 = vshll.u32 %v5764, 16
      %v5929 = vor.u32 %v5926, %v5927
      %v5930 = vsel %vm365, %v5922, %v5929
      %v5931 = vrot.slane %v5926, 4
      %v5933 = vshrl.u32 %v5765, 16
      %v5935 = vrot.slane %v5933, 7
      %v5936 = vshll.u32 %v5765, 16
      %v5938 = vor.u32 %v5935, %v5936
      %v5939 = vrot.slane %v5935, 4
      %v5941 = vshrl.u32 %v5766, 16
      %v5943 = vrot.slane %v5941, 7
      %v5944 = vshll.u32 %v5766, 16
      %v5946 = vor.u32 %v5943, %v5944
      %v5947 = vsel %vm365, %v5939, %v5946
      %v5948 = vrot.slane %v5943, 4
      %v5950 = vshrl.u32 %v5767, 16
      %v5952 = vrot.slane %v5950, 7
      %v5953 = vshll.u32 %v5767, 16
      %v5955 = vor.u32 %v5952, %v5953
      %v5956 = vrot.slane %v5952, 4
      %v5958 = vshrl.u32 %v5768, 16
      %v5960 = vrot.slane %v5958, 7
      %v5961 = vshll.u32 %v5768, 16
      %v5963 = vor.u32 %v5960, %v5961
      %v5964 = vsel %vm365, %v5956, %v5963
      %v5965 = vrot.slane %v5960, 4
      %v5967 = vshrl.u32 %v5769, 16
      %v5969 = vrot.slane %v5967, 7
      %v5970 = vshll.u32 %v5769, 16
      %v5972 = vor.u32 %v5969, %v5970
      %v5973 = vrot.slane %v5969, 4
      %v5975 = vshrl.u32 %v5770, 16
      %v5977 = vrot.slane %v5975, 7
      %v5978 = vshll.u32 %v5770, 16
      %v5980 = vor.u32 %v5977, %v5978
      %v5981 = vsel %vm365, %v5973, %v5980
      %v5982 = vrot.slane %v5977, 4
      %v5984 = vshrl.u32 %v5771, 16
      %v5986 = vrot.slane %v5984, 7
      %v5987 = vshll.u32 %v5771, 16
      %v5989 = vor.u32 %v5986, %v5987
      %v5990 = vrot.slane %v5986, 4
      %v5992 = vshrl.u32 %v5772, 16
      %v5994 = vrot.slane %v5992, 7
      %v5995 = vshll.u32 %v5772, 16
      %v5997 = vor.u32 %v5994, %v5995
      %v5998 = vsel %vm365, %v5990, %v5997
      %v5999 = vrot.slane %v5994, 4
      %v6001 = vshrl.u32 %v5773, 16
      %v6003 = vrot.slane %v6001, 7
      %v6004 = vshll.u32 %v5773, 16
      %v6006 = vor.u32 %v6003, %v6004
      %v6007 = vrot.slane %v6003, 4
      %v6009 = vshrl.u32 %v5774, 16
      %v6011 = vrot.slane %v6009, 7
      %v6012 = vshll.u32 %v5774, 16
      %v6014 = vor.u32 %v6011, %v6012
      %v6015 = vsel %vm365, %v6007, %v6014
      %v6016 = vrot.slane %v6011, 4
      %v6018 = vshrl.u32 %v5775, 16
      %v6020 = vrot.slane %v6018, 7
      %v6021 = vshll.u32 %v5775, 16
      %v6023 = vor.u32 %v6020, %v6021
      %v6024 = vrot.slane %v6020, 4
      %v6026 = vshrl.u32 %v5776, 16
      %v6028 = vrot.slane %v6026, 7
      %v6029 = vshll.u32 %v5776, 16
      %v6031 = vor.u32 %v6028, %v6029
      %v6032 = vsel %vm365, %v6024, %v6031
      %v6033 = vrot.slane %v6028, 4
      %v6035 = vshrl.u32 %v5777, 16
      %v6037 = vrot.slane %v6035, 7
      %v6038 = vshll.u32 %v5777, 16
      %v6040 = vor.u32 %v6037, %v6038
      %v6041 = vrot.slane %v6037, 4
      %v6043 = vshrl.u32 %v5778, 16
      %v6045 = vrot.slane %v6043, 7
      %v6046 = vshll.u32 %v5778, 16
      %v6048 = vor.u32 %v6045, %v6046
      %v6049 = vsel %vm365, %v6041, %v6048
      %v6050 = vrot.slane %v6045, 4
      %v6099 = vsel %vm689, %v5785, %v2721
      %6100 = vst [vmem:[%s686] sm:$0xf] %v6099
      %6101 = vst [vmem:[%s686 + $0x4] sm:$0xf] %v5794
      %v6102 = vld [vmem:[%s686 + $0x8] sm:$0x1]
      %v6103 = vsel %vm695, %v5795, %v6102
      %6104 = vst [vmem:[%s686 + $0x8] sm:$0x1] %v6103
      %v6105 = vld [vmem:[%s686 + $0xc] sm:$0xf]
      %v6106 = vsel %vm689, %v5802, %v6105
      %6107 = vst [vmem:[%s686 + $0xc] sm:$0xf] %v6106
      %6108 = vst [vmem:[%s686 + $0x10] sm:$0xf] %v5811
      %v6109 = vld [vmem:[%s686 + $0x14] sm:$0x1]
      %v6110 = vsel %vm695, %v5812, %v6109
      %6111 = vst [vmem:[%s686 + $0x14] sm:$0x1] %v6110
      %v6112 = vld [vmem:[%s686 + $0x18] sm:$0xf]
      %v6113 = vsel %vm689, %v5819, %v6112
      %6114 = vst [vmem:[%s686 + $0x18] sm:$0xf] %v6113
      %6115 = vst [vmem:[%s686 + $0x1c] sm:$0xf] %v5828
      %v6116 = vld [vmem:[%s686 + $0x20] sm:$0x1]
      %v6117 = vsel %vm695, %v5829, %v6116
      %6118 = vst [vmem:[%s686 + $0x20] sm:$0x1] %v6117
      %v6119 = vld [vmem:[%s686 + $0x24] sm:$0xf]
      %v6120 = vsel %vm689, %v5836, %v6119
      %6121 = vst [vmem:[%s686 + $0x24] sm:$0xf] %v6120
      %6122 = vst [vmem:[%s686 + $0x28] sm:$0xf] %v5845
      %v6123 = vld [vmem:[%s686 + $0x2c] sm:$0x1]
      %v6124 = vsel %vm695, %v5846, %v6123
      %6125 = vst [vmem:[%s686 + $0x2c] sm:$0x1] %v6124
      %v6126 = vld [vmem:[%s686 + $0x30] sm:$0xf]
      %v6127 = vsel %vm689, %v5853, %v6126
      %6128 = vst [vmem:[%s686 + $0x30] sm:$0xf] %v6127
      %6129 = vst [vmem:[%s686 + $0x34] sm:$0xf] %v5862
      %v6130 = vld [vmem:[%s686 + $0x38] sm:$0x1]
      %v6131 = vsel %vm695, %v5863, %v6130
      %6132 = vst [vmem:[%s686 + $0x38] sm:$0x1] %v6131
      %v6133 = vld [vmem:[%s686 + $0x3c] sm:$0xf]
      %v6134 = vsel %vm689, %v5870, %v6133
      %6135 = vst [vmem:[%s686 + $0x3c] sm:$0xf] %v6134
      %6136 = vst [vmem:[%s686 + $0x40] sm:$0xf] %v5879
      %v6137 = vld [vmem:[%s686 + $0x44] sm:$0x1]
      %v6138 = vsel %vm695, %v5880, %v6137
      %6139 = vst [vmem:[%s686 + $0x44] sm:$0x1] %v6138
      %v6140 = vld [vmem:[%s686 + $0x48] sm:$0xf]
      %v6141 = vsel %vm689, %v5887, %v6140
      %6142 = vst [vmem:[%s686 + $0x48] sm:$0xf] %v6141
      %6143 = vst [vmem:[%s686 + $0x4c] sm:$0xf] %v5896
      %v6144 = vld [vmem:[%s686 + $0x50] sm:$0x1]
      %v6145 = vsel %vm695, %v5897, %v6144
      %6146 = vst [vmem:[%s686 + $0x50] sm:$0x1] %v6145
      %v6147 = vld [vmem:[%s686 + $0x54] sm:$0xf]
      %v6148 = vsel %vm689, %v5904, %v6147
      %6149 = vst [vmem:[%s686 + $0x54] sm:$0xf] %v6148
      %6150 = vst [vmem:[%s686 + $0x58] sm:$0xf] %v5913
      %v6151 = vld [vmem:[%s686 + $0x5c] sm:$0x1]
      %v6152 = vsel %vm695, %v5914, %v6151
      %6153 = vst [vmem:[%s686 + $0x5c] sm:$0x1] %v6152
      %v6154 = vld [vmem:[%s686 + $0x60] sm:$0xf]
      %v6155 = vsel %vm689, %v5921, %v6154
      %6156 = vst [vmem:[%s686 + $0x60] sm:$0xf] %v6155
      %6157 = vst [vmem:[%s686 + $0x64] sm:$0xf] %v5930
      %v6158 = vld [vmem:[%s686 + $0x68] sm:$0x1]
      %v6159 = vsel %vm695, %v5931, %v6158
      %6160 = vst [vmem:[%s686 + $0x68] sm:$0x1] %v6159
      %v6161 = vld [vmem:[%s686 + $0x6c] sm:$0xf]
      %v6162 = vsel %vm689, %v5938, %v6161
      %6163 = vst [vmem:[%s686 + $0x6c] sm:$0xf] %v6162
      %6164 = vst [vmem:[%s686 + $0x70] sm:$0xf] %v5947
      %v6165 = vld [vmem:[%s686 + $0x74] sm:$0x1]
      %v6166 = vsel %vm695, %v5948, %v6165
      %6167 = vst [vmem:[%s686 + $0x74] sm:$0x1] %v6166
      %v6168 = vld [vmem:[%s686 + $0x78] sm:$0xf]
      %v6169 = vsel %vm689, %v5955, %v6168
      %6170 = vst [vmem:[%s686 + $0x78] sm:$0xf] %v6169
      %6171 = vst [vmem:[%s686 + $0x7c] sm:$0xf] %v5964
      %v6172 = vld [vmem:[%s686 + $0x80] sm:$0x1]
      %v6173 = vsel %vm695, %v5965, %v6172
      %6174 = vst [vmem:[%s686 + $0x80] sm:$0x1] %v6173
      %v6175 = vld [vmem:[%s686 + $0x84] sm:$0xf]
      %v6176 = vsel %vm689, %v5972, %v6175
      %6177 = vst [vmem:[%s686 + $0x84] sm:$0xf] %v6176
      %6178 = vst [vmem:[%s686 + $0x88] sm:$0xf] %v5981
      %v6179 = vld [vmem:[%s686 + $0x8c] sm:$0x1]
      %v6180 = vsel %vm695, %v5982, %v6179
      %6181 = vst [vmem:[%s686 + $0x8c] sm:$0x1] %v6180
      %v6182 = vld [vmem:[%s686 + $0x90] sm:$0xf]
      %v6183 = vsel %vm689, %v5989, %v6182
      %6184 = vst [vmem:[%s686 + $0x90] sm:$0xf] %v6183
      %6185 = vst [vmem:[%s686 + $0x94] sm:$0xf] %v5998
      %v6186 = vld [vmem:[%s686 + $0x98] sm:$0x1]
      %v6187 = vsel %vm695, %v5999, %v6186
      %6188 = vst [vmem:[%s686 + $0x98] sm:$0x1] %v6187
      %v6189 = vld [vmem:[%s686 + $0x9c] sm:$0xf]
      %v6190 = vsel %vm689, %v6006, %v6189
      %6191 = vst [vmem:[%s686 + $0x9c] sm:$0xf] %v6190
      %6192 = vst [vmem:[%s686 + $0xa0] sm:$0xf] %v6015
      %v6193 = vld [vmem:[%s686 + $0xa4] sm:$0x1]
      %v6194 = vsel %vm695, %v6016, %v6193
      %6195 = vst [vmem:[%s686 + $0xa4] sm:$0x1] %v6194
      %v6196 = vld [vmem:[%s686 + $0xa8] sm:$0xf]
      %v6197 = vsel %vm689, %v6023, %v6196
      %6198 = vst [vmem:[%s686 + $0xa8] sm:$0xf] %v6197
      %6199 = vst [vmem:[%s686 + $0xac] sm:$0xf] %v6032
      %v6200 = vld [vmem:[%s686 + $0xb0] sm:$0x1]
      %v6201 = vsel %vm695, %v6033, %v6200
      %6202 = vst [vmem:[%s686 + $0xb0] sm:$0x1] %v6201
      %v6203 = vld [vmem:[%s686 + $0xb4] sm:$0xf]
      %v6204 = vsel %vm689, %v6040, %v6203
      %6205 = vst [vmem:[%s686 + $0xb4] sm:$0xf] %v6204
      %6206 = vst [vmem:[%s686 + $0xb8] sm:$0xf] %v6049
      %v6207 = vld [vmem:[%s686 + $0xbc] sm:$0x1]
      %v6208 = vsel %vm695, %v6050, %v6207
      %6209 = vst [vmem:[%s686 + $0xbc] sm:$0x1] %v6208
      %v6210 = vld [vmem:[#allocation2] sm:$0xf]
      %v6211 = vld [vmem:[#allocation2 + $0x4] sm:$0xf]
      %v6212 = vld [vmem:[#allocation2 + $0xc] sm:$0xf]
      %v6213 = vld [vmem:[#allocation2 + $0x10] sm:$0xf]
      %v6214 = vld [vmem:[#allocation2 + $0x18] sm:$0xf]
      %v6215 = vld [vmem:[#allocation2 + $0x1c] sm:$0xf]
      %v6216 = vld [vmem:[#allocation2 + $0x24] sm:$0xf]
      %v6217 = vld [vmem:[#allocation2 + $0x28] sm:$0xf]
      %v6218 = vld [vmem:[#allocation2 + $0x30] sm:$0xf]
      %v6219 = vld [vmem:[#allocation2 + $0x34] sm:$0xf]
      %v6220 = vld [vmem:[#allocation2 + $0x3c] sm:$0xf]
      %v6221 = vld [vmem:[#allocation2 + $0x40] sm:$0xf]
      %v6222 = vld [vmem:[#allocation2 + $0x48] sm:$0xf]
      %v6223 = vld [vmem:[#allocation2 + $0x4c] sm:$0xf]
      %v6224 = vld [vmem:[#allocation2 + $0x54] sm:$0xf]
      %v6225 = vld [vmem:[#allocation2 + $0x58] sm:$0xf]
      %v6226 = vld [vmem:[#allocation2 + $0x60] sm:$0xf]
      %v6227 = vld [vmem:[#allocation2 + $0x64] sm:$0xf]
      %v6228 = vld [vmem:[#allocation2 + $0x6c] sm:$0xf]
      %v6229 = vld [vmem:[#allocation2 + $0x70] sm:$0xf]
      %v6230 = vld [vmem:[#allocation2 + $0x78] sm:$0xf]
      %v6231 = vld [vmem:[#allocation2 + $0x7c] sm:$0xf]
      %v6232 = vld [vmem:[#allocation2 + $0x84] sm:$0xf]
      %v6233 = vld [vmem:[#allocation2 + $0x88] sm:$0xf]
      %v6234 = vld [vmem:[#allocation2 + $0x90] sm:$0xf]
      %v6235 = vld [vmem:[#allocation2 + $0x94] sm:$0xf]
      %v6236 = vld [vmem:[#allocation2 + $0x9c] sm:$0xf]
      %v6237 = vld [vmem:[#allocation2 + $0xa0] sm:$0xf]
      %v6238 = vld [vmem:[#allocation2 + $0xa8] sm:$0xf]
      %v6239 = vld [vmem:[#allocation2 + $0xac] sm:$0xf]
      %v6240 = vld [vmem:[#allocation2 + $0xb4] sm:$0xf]
      %v6241 = vld [vmem:[#allocation2 + $0xb8] sm:$0xf]
      %v6242 = vld [vmem:[%s3] sm:$0xf]
      %v6243 = vld [vmem:[%s3 + $0x4] sm:$0xf]
      %v6244 = vld [vmem:[%s3 + $0x8] sm:$0xf]
      %v6245 = vld [vmem:[%s3 + $0xc] sm:$0xf]
      %v6246 = vld [vmem:[%s3 + $0x10] sm:$0xf]
      %v6247 = vld [vmem:[%s3 + $0x14] sm:$0xf]
      %v6248 = vld [vmem:[%s3 + $0x18] sm:$0xf]
      %v6249 = vld [vmem:[%s3 + $0x1c] sm:$0xf]
      %v6250 = vld [vmem:[%s3 + $0x20] sm:$0xf]
      %v6251 = vld [vmem:[%s3 + $0x24] sm:$0xf]
      %v6252 = vld [vmem:[%s3 + $0x28] sm:$0xf]
      %v6253 = vld [vmem:[%s3 + $0x2c] sm:$0xf]
      %v6254 = vld [vmem:[%s3 + $0x30] sm:$0xf]
      %v6255 = vld [vmem:[%s3 + $0x34] sm:$0xf]
      %v6256 = vld [vmem:[%s3 + $0x38] sm:$0xf]
      %v6257 = vld [vmem:[%s3 + $0x3c] sm:$0xf]
      %v6258 = vld [vmem:[#allocation2 + $0x8] sm:$0x1]
      %v6259 = vld [vmem:[#allocation2 + $0x14] sm:$0x1]
      %v6260 = vld [vmem:[#allocation2 + $0x20] sm:$0x1]
      %v6261 = vld [vmem:[#allocation2 + $0x2c] sm:$0x1]
      %v6262 = vld [vmem:[#allocation2 + $0x38] sm:$0x1]
      %v6263 = vld [vmem:[#allocation2 + $0x44] sm:$0x1]
      %v6264 = vld [vmem:[#allocation2 + $0x50] sm:$0x1]
      %v6265 = vld [vmem:[#allocation2 + $0x5c] sm:$0x1]
      %v6266 = vld [vmem:[#allocation2 + $0x68] sm:$0x1]
      %v6267 = vld [vmem:[#allocation2 + $0x74] sm:$0x1]
      %v6268 = vld [vmem:[#allocation2 + $0x80] sm:$0x1]
      %v6269 = vld [vmem:[#allocation2 + $0x8c] sm:$0x1]
      %v6270 = vld [vmem:[#allocation2 + $0x98] sm:$0x1]
      %v6271 = vld [vmem:[#allocation2 + $0xa4] sm:$0x1]
      %v6272 = vld [vmem:[#allocation2 + $0xb0] sm:$0x1]
      %v6273 = vld [vmem:[#allocation2 + $0xbc] sm:$0x1]
      %v6275 = vshrl.u32 %v6210, 16
      %v6277 = vrot.slane %v6275, 4
      %v6278 = vshll.u32 %v6210, 16
      %v6280 = vrot.slane %v6278, 5
      %v6281 = vor.u32 %v6277, %v6280
      %v6282 = vrot.slane %v6281, 4
      %v6284 = vshll.u32 %v6211, 16
      %v6286 = vrot.slane %v6284, 5
      %v6287 = vsel %vm870, %v6282, %v6286
      %v6288 = vshrl.u32 %v6211, 16
      %v6290 = vrot.slane %v6288, 4
      %v6291 = vor.u32 %v6290, %v6286
      %v6292 = vrot.slane %v6291, 4
      %v6294 = vshll.u32 %v6258, 16
      %v6296 = vrot.slane %v6294, 5
      %v6297 = vsel %vm870, %v6292, %v6296
      %v6299 = vshrl.u32 %v6212, 16
      %v6301 = vrot.slane %v6299, 4
      %v6302 = vshll.u32 %v6212, 16
      %v6304 = vrot.slane %v6302, 5
      %v6305 = vor.u32 %v6301, %v6304
      %v6306 = vrot.slane %v6305, 4
      %v6308 = vshll.u32 %v6213, 16
      %v6310 = vrot.slane %v6308, 5
      %v6311 = vsel %vm870, %v6306, %v6310
      %v6312 = vshrl.u32 %v6213, 16
      %v6314 = vrot.slane %v6312, 4
      %v6315 = vor.u32 %v6314, %v6310
      %v6316 = vrot.slane %v6315, 4
      %v6318 = vshll.u32 %v6259, 16
      %v6320 = vrot.slane %v6318, 5
      %v6321 = vsel %vm870, %v6316, %v6320
      %v6323 = vshrl.u32 %v6214, 16
      %v6325 = vrot.slane %v6323, 4
      %v6326 = vshll.u32 %v6214, 16
      %v6328 = vrot.slane %v6326, 5
      %v6329 = vor.u32 %v6325, %v6328
      %v6330 = vrot.slane %v6329, 4
      %v6332 = vshll.u32 %v6215, 16
      %v6334 = vrot.slane %v6332, 5
      %v6335 = vsel %vm870, %v6330, %v6334
      %v6336 = vshrl.u32 %v6215, 16
      %v6338 = vrot.slane %v6336, 4
      %v6339 = vor.u32 %v6338, %v6334
      %v6340 = vrot.slane %v6339, 4
      %v6342 = vshll.u32 %v6260, 16
      %v6344 = vrot.slane %v6342, 5
      %v6345 = vsel %vm870, %v6340, %v6344
      %v6347 = vshrl.u32 %v6216, 16
      %v6349 = vrot.slane %v6347, 4
      %v6350 = vshll.u32 %v6216, 16
      %v6352 = vrot.slane %v6350, 5
      %v6353 = vor.u32 %v6349, %v6352
      %v6354 = vrot.slane %v6353, 4
      %v6356 = vshll.u32 %v6217, 16
      %v6358 = vrot.slane %v6356, 5
      %v6359 = vsel %vm870, %v6354, %v6358
      %v6360 = vshrl.u32 %v6217, 16
      %v6362 = vrot.slane %v6360, 4
      %v6363 = vor.u32 %v6362, %v6358
      %v6364 = vrot.slane %v6363, 4
      %v6366 = vshll.u32 %v6261, 16
      %v6368 = vrot.slane %v6366, 5
      %v6369 = vsel %vm870, %v6364, %v6368
      %v6371 = vshrl.u32 %v6218, 16
      %v6373 = vrot.slane %v6371, 4
      %v6374 = vshll.u32 %v6218, 16
      %v6376 = vrot.slane %v6374, 5
      %v6377 = vor.u32 %v6373, %v6376
      %v6378 = vrot.slane %v6377, 4
      %v6380 = vshll.u32 %v6219, 16
      %v6382 = vrot.slane %v6380, 5
      %v6383 = vsel %vm870, %v6378, %v6382
      %v6384 = vshrl.u32 %v6219, 16
      %v6386 = vrot.slane %v6384, 4
      %v6387 = vor.u32 %v6386, %v6382
      %v6388 = vrot.slane %v6387, 4
      %v6390 = vshll.u32 %v6262, 16
      %v6392 = vrot.slane %v6390, 5
      %v6393 = vsel %vm870, %v6388, %v6392
      %v6395 = vshrl.u32 %v6220, 16
      %v6397 = vrot.slane %v6395, 4
      %v6398 = vshll.u32 %v6220, 16
      %v6400 = vrot.slane %v6398, 5
      %v6401 = vor.u32 %v6397, %v6400
      %v6402 = vrot.slane %v6401, 4
      %v6404 = vshll.u32 %v6221, 16
      %v6406 = vrot.slane %v6404, 5
      %v6407 = vsel %vm870, %v6402, %v6406
      %v6408 = vshrl.u32 %v6221, 16
      %v6410 = vrot.slane %v6408, 4
      %v6411 = vor.u32 %v6410, %v6406
      %v6412 = vrot.slane %v6411, 4
      %v6414 = vshll.u32 %v6263, 16
      %v6416 = vrot.slane %v6414, 5
      %v6417 = vsel %vm870, %v6412, %v6416
      %v6419 = vshrl.u32 %v6222, 16
      %v6421 = vrot.slane %v6419, 4
      %v6422 = vshll.u32 %v6222, 16
      %v6424 = vrot.slane %v6422, 5
      %v6425 = vor.u32 %v6421, %v6424
      %v6426 = vrot.slane %v6425, 4
      %v6428 = vshll.u32 %v6223, 16
      %v6430 = vrot.slane %v6428, 5
      %v6431 = vsel %vm870, %v6426, %v6430
      %v6432 = vshrl.u32 %v6223, 16
      %v6434 = vrot.slane %v6432, 4
      %v6435 = vor.u32 %v6434, %v6430
      %v6436 = vrot.slane %v6435, 4
      %v6438 = vshll.u32 %v6264, 16
      %v6440 = vrot.slane %v6438, 5
      %v6441 = vsel %vm870, %v6436, %v6440
      %v6443 = vshrl.u32 %v6224, 16
      %v6445 = vrot.slane %v6443, 4
      %v6446 = vshll.u32 %v6224, 16
      %v6448 = vrot.slane %v6446, 5
      %v6449 = vor.u32 %v6445, %v6448
      %v6450 = vrot.slane %v6449, 4
      %v6452 = vshll.u32 %v6225, 16
      %v6454 = vrot.slane %v6452, 5
      %v6455 = vsel %vm870, %v6450, %v6454
      %v6456 = vshrl.u32 %v6225, 16
      %v6458 = vrot.slane %v6456, 4
      %v6459 = vor.u32 %v6458, %v6454
      %v6460 = vrot.slane %v6459, 4
      %v6462 = vshll.u32 %v6265, 16
      %v6464 = vrot.slane %v6462, 5
      %v6465 = vsel %vm870, %v6460, %v6464
      %v6467 = vshrl.u32 %v6226, 16
      %v6469 = vrot.slane %v6467, 4
      %v6470 = vshll.u32 %v6226, 16
      %v6472 = vrot.slane %v6470, 5
      %v6473 = vor.u32 %v6469, %v6472
      %v6474 = vrot.slane %v6473, 4
      %v6476 = vshll.u32 %v6227, 16
      %v6478 = vrot.slane %v6476, 5
      %v6479 = vsel %vm870, %v6474, %v6478
      %v6480 = vshrl.u32 %v6227, 16
      %v6482 = vrot.slane %v6480, 4
      %v6483 = vor.u32 %v6482, %v6478
      %v6484 = vrot.slane %v6483, 4
      %v6486 = vshll.u32 %v6266, 16
      %v6488 = vrot.slane %v6486, 5
      %v6489 = vsel %vm870, %v6484, %v6488
      %v6491 = vshrl.u32 %v6228, 16
      %v6493 = vrot.slane %v6491, 4
      %v6494 = vshll.u32 %v6228, 16
      %v6496 = vrot.slane %v6494, 5
      %v6497 = vor.u32 %v6493, %v6496
      %v6498 = vrot.slane %v6497, 4
      %v6500 = vshll.u32 %v6229, 16
      %v6502 = vrot.slane %v6500, 5
      %v6503 = vsel %vm870, %v6498, %v6502
      %v6504 = vshrl.u32 %v6229, 16
      %v6506 = vrot.slane %v6504, 4
      %v6507 = vor.u32 %v6506, %v6502
      %v6508 = vrot.slane %v6507, 4
      %v6510 = vshll.u32 %v6267, 16
      %v6512 = vrot.slane %v6510, 5
      %v6513 = vsel %vm870, %v6508, %v6512
      %v6515 = vshrl.u32 %v6230, 16
      %v6517 = vrot.slane %v6515, 4
      %v6518 = vshll.u32 %v6230, 16
      %v6520 = vrot.slane %v6518, 5
      %v6521 = vor.u32 %v6517, %v6520
      %v6522 = vrot.slane %v6521, 4
      %v6524 = vshll.u32 %v6231, 16
      %v6526 = vrot.slane %v6524, 5
      %v6527 = vsel %vm870, %v6522, %v6526
      %v6528 = vshrl.u32 %v6231, 16
      %v6530 = vrot.slane %v6528, 4
      %v6531 = vor.u32 %v6530, %v6526
      %v6532 = vrot.slane %v6531, 4
      %v6534 = vshll.u32 %v6268, 16
      %v6536 = vrot.slane %v6534, 5
      %v6537 = vsel %vm870, %v6532, %v6536
      %v6539 = vshrl.u32 %v6232, 16
      %v6541 = vrot.slane %v6539, 4
      %v6542 = vshll.u32 %v6232, 16
      %v6544 = vrot.slane %v6542, 5
      %v6545 = vor.u32 %v6541, %v6544
      %v6546 = vrot.slane %v6545, 4
      %v6548 = vshll.u32 %v6233, 16
      %v6550 = vrot.slane %v6548, 5
      %v6551 = vsel %vm870, %v6546, %v6550
      %v6552 = vshrl.u32 %v6233, 16
      %v6554 = vrot.slane %v6552, 4
      %v6555 = vor.u32 %v6554, %v6550
      %v6556 = vrot.slane %v6555, 4
      %v6558 = vshll.u32 %v6269, 16
      %v6560 = vrot.slane %v6558, 5
      %v6561 = vsel %vm870, %v6556, %v6560
      %v6563 = vshrl.u32 %v6234, 16
      %v6565 = vrot.slane %v6563, 4
      %v6566 = vshll.u32 %v6234, 16
      %v6568 = vrot.slane %v6566, 5
      %v6569 = vor.u32 %v6565, %v6568
      %v6570 = vrot.slane %v6569, 4
      %v6572 = vshll.u32 %v6235, 16
      %v6574 = vrot.slane %v6572, 5
      %v6575 = vsel %vm870, %v6570, %v6574
      %v6576 = vshrl.u32 %v6235, 16
      %v6578 = vrot.slane %v6576, 4
      %v6579 = vor.u32 %v6578, %v6574
      %v6580 = vrot.slane %v6579, 4
      %v6582 = vshll.u32 %v6270, 16
      %v6584 = vrot.slane %v6582, 5
      %v6585 = vsel %vm870, %v6580, %v6584
      %v6587 = vshrl.u32 %v6236, 16
      %v6589 = vrot.slane %v6587, 4
      %v6590 = vshll.u32 %v6236, 16
      %v6592 = vrot.slane %v6590, 5
      %v6593 = vor.u32 %v6589, %v6592
      %v6594 = vrot.slane %v6593, 4
      %v6596 = vshll.u32 %v6237, 16
      %v6598 = vrot.slane %v6596, 5
      %v6599 = vsel %vm870, %v6594, %v6598
      %v6600 = vshrl.u32 %v6237, 16
      %v6602 = vrot.slane %v6600, 4
      %v6603 = vor.u32 %v6602, %v6598
      %v6604 = vrot.slane %v6603, 4
      %v6606 = vshll.u32 %v6271, 16
      %v6608 = vrot.slane %v6606, 5
      %v6609 = vsel %vm870, %v6604, %v6608
      %v6611 = vshrl.u32 %v6238, 16
      %v6613 = vrot.slane %v6611, 4
      %v6614 = vshll.u32 %v6238, 16
      %v6616 = vrot.slane %v6614, 5
      %v6617 = vor.u32 %v6613, %v6616
      %v6618 = vrot.slane %v6617, 4
      %v6620 = vshll.u32 %v6239, 16
      %v6622 = vrot.slane %v6620, 5
      %v6623 = vsel %vm870, %v6618, %v6622
      %v6624 = vshrl.u32 %v6239, 16
      %v6626 = vrot.slane %v6624, 4
      %v6627 = vor.u32 %v6626, %v6622
      %v6628 = vrot.slane %v6627, 4
      %v6630 = vshll.u32 %v6272, 16
      %v6632 = vrot.slane %v6630, 5
      %v6633 = vsel %vm870, %v6628, %v6632
      %v6635 = vshrl.u32 %v6240, 16
      %v6637 = vrot.slane %v6635, 4
      %v6638 = vshll.u32 %v6240, 16
      %v6640 = vrot.slane %v6638, 5
      %v6641 = vor.u32 %v6637, %v6640
      %v6642 = vrot.slane %v6641, 4
      %v6644 = vshll.u32 %v6241, 16
      %v6646 = vrot.slane %v6644, 5
      %v6647 = vsel %vm870, %v6642, %v6646
      %v6648 = vshrl.u32 %v6241, 16
      %v6650 = vrot.slane %v6648, 4
      %v6651 = vor.u32 %v6650, %v6646
      %v6652 = vrot.slane %v6651, 4
      %v6654 = vshll.u32 %v6273, 16
      %v6656 = vrot.slane %v6654, 5
      %v6657 = vsel %vm870, %v6652, %v6656
      %s6658 = scalar_lea.vmem %s3, 64
      %v6659 = vld [vmem:[%s6658] sm:$0xf]
      %v6660 = vld [vmem:[%s6658 + $0x4] sm:$0xf]
      %v6661 = vld [vmem:[%s6658 + $0x8] sm:$0xf]
      %v6662 = vld [vmem:[%s6658 + $0xc] sm:$0xf]
      %v6663 = vld [vmem:[%s6658 + $0x10] sm:$0xf]
      %v6664 = vld [vmem:[%s6658 + $0x14] sm:$0xf]
      %v6665 = vld [vmem:[%s6658 + $0x18] sm:$0xf]
      %v6666 = vld [vmem:[%s6658 + $0x1c] sm:$0xf]
      %v6667 = vld [vmem:[%s6658 + $0x20] sm:$0xf]
      %v6668 = vld [vmem:[%s6658 + $0x24] sm:$0xf]
      %v6669 = vld [vmem:[%s6658 + $0x28] sm:$0xf]
      %v6670 = vld [vmem:[%s6658 + $0x2c] sm:$0xf]
      %v6671 = vld [vmem:[%s6658 + $0x30] sm:$0xf]
      %v6672 = vld [vmem:[%s6658 + $0x34] sm:$0xf]
      %v6673 = vld [vmem:[%s6658 + $0x38] sm:$0xf]
      %v6674 = vld [vmem:[%s6658 + $0x3c] sm:$0xf]
      %v6675 = vunpack.c.l.b16 %v6287
      %v6676 = vunpack.c.l.b16 %v6297
      %v6677 = vunpack.c.l.b16 %v6311
      %v6678 = vunpack.c.l.b16 %v6321
      %v6679 = vunpack.c.l.b16 %v6335
      %v6680 = vunpack.c.l.b16 %v6345
      %v6681 = vunpack.c.l.b16 %v6359
      %v6682 = vunpack.c.l.b16 %v6369
      %v6683 = vunpack.c.l.b16 %v6383
      %v6684 = vunpack.c.l.b16 %v6393
      %v6685 = vunpack.c.l.b16 %v6407
      %v6686 = vunpack.c.l.b16 %v6417
      %v6687 = vunpack.c.l.b16 %v6431
      %v6688 = vunpack.c.l.b16 %v6441
      %v6689 = vunpack.c.l.b16 %v6455
      %v6690 = vunpack.c.l.b16 %v6465
      %v6691 = vunpack.c.l.b16 %v6479
      %v6692 = vunpack.c.l.b16 %v6489
      %v6693 = vunpack.c.l.b16 %v6503
      %v6694 = vunpack.c.l.b16 %v6513
      %v6695 = vunpack.c.l.b16 %v6527
      %v6696 = vunpack.c.l.b16 %v6537
      %v6697 = vunpack.c.l.b16 %v6551
      %v6698 = vunpack.c.l.b16 %v6561
      %v6699 = vunpack.c.l.b16 %v6575
      %v6700 = vunpack.c.l.b16 %v6585
      %v6701 = vunpack.c.l.b16 %v6599
      %v6702 = vunpack.c.l.b16 %v6609
      %v6703 = vunpack.c.l.b16 %v6623
      %v6704 = vunpack.c.l.b16 %v6633
      %v6705 = vunpack.c.l.b16 %v6647
      %v6706 = vunpack.c.l.b16 %v6657
      %v6707 = vpack.c.b16 %v6676, %v6675
      %v6708 = vpack.c.b16 %v6678, %v6677
      %v6709 = vpack.c.b16 %v6680, %v6679
      %v6710 = vpack.c.b16 %v6682, %v6681
      %v6711 = vpack.c.b16 %v6684, %v6683
      %v6712 = vpack.c.b16 %v6686, %v6685
      %v6713 = vpack.c.b16 %v6688, %v6687
      %v6714 = vpack.c.b16 %v6690, %v6689
      %v6715 = vpack.c.b16 %v6692, %v6691
      %v6716 = vpack.c.b16 %v6694, %v6693
      %v6717 = vpack.c.b16 %v6696, %v6695
      %v6718 = vpack.c.b16 %v6698, %v6697
      %v6719 = vpack.c.b16 %v6700, %v6699
      %v6720 = vpack.c.b16 %v6702, %v6701
      %v6721 = vpack.c.b16 %v6704, %v6703
      %v6722 = vpack.c.b16 %v6706, %v6705
      %v6755 = vunpack.c.l.b16 %v6659
      %v6756 = vunpack.c.l.b16 %v6660
      %v6757 = vunpack.c.l.b16 %v6661
      %v6758 = vunpack.c.l.b16 %v6662
      %v6759 = vunpack.c.l.b16 %v6663
      %v6760 = vunpack.c.l.b16 %v6664
      %v6761 = vunpack.c.l.b16 %v6665
      %v6762 = vunpack.c.l.b16 %v6666
      %v6763 = vunpack.c.l.b16 %v6667
      %v6764 = vunpack.c.l.b16 %v6668
      %v6765 = vunpack.c.l.b16 %v6669
      %v6766 = vunpack.c.l.b16 %v6670
      %v6767 = vunpack.c.l.b16 %v6671
      %v6768 = vunpack.c.l.b16 %v6672
      %v6769 = vunpack.c.l.b16 %v6673
      %v6770 = vunpack.c.l.b16 %v6674
      %v6771 = vpack.c.b16 %v6756, %v6755
      %v6772 = vpack.c.b16 %v6758, %v6757
      %v6773 = vpack.c.b16 %v6760, %v6759
      %v6774 = vpack.c.b16 %v6762, %v6761
      %v6775 = vpack.c.b16 %v6764, %v6763
      %v6776 = vpack.c.b16 %v6766, %v6765
      %v6777 = vpack.c.b16 %v6768, %v6767
      %v6778 = vpack.c.b16 %v6770, %v6769
      %6787 = vmatprep.subr.bf16.mxu0 0
      %6788 = vmatpush1.bf16.msra.mxu0 %v6771
      %6789 = vmatprep.subr.bf16.mxu0 0
      %6790 = vmatpush1.bf16.msra.mxu0 %v6772
      %6791 = vmatprep.subr.bf16.mxu0 0
      %6792 = vmatpush1.bf16.msra.mxu0 %v6773
      %6793 = vmatprep.subr.bf16.mxu0 0
      %6794 = vmatpush1.bf16.msra.mxu0 %v6774
      %6795 = vmatprep.subr.bf16.mxu0 0
      %6796 = vmatpush1.bf16.msra.mxu0 %v6775
      %6797 = vmatprep.subr.bf16.mxu0 0
      %6798 = vmatpush1.bf16.msra.mxu0 %v6776
      %6799 = vmatprep.subr.bf16.mxu0 0
      %6800 = vmatpush1.bf16.msra.mxu0 %v6777
      %6801 = vmatprep.subr.bf16.mxu0 0
      %6802 = vmatpush1.bf16.msra.mxu0 %v6778
      %6803 = vmatprep.subr.bf16.mxu0 0
      %6804 = vmatpush1.bf16.msra.mxu0 0
      %6805 = vmatprep.subr.bf16.mxu0 0
      %6806 = vmatpush1.bf16.msra.mxu0 0
      %6807 = vmatprep.subr.bf16.mxu0 0
      %6808 = vmatpush1.bf16.msra.mxu0 0
      %6809 = vmatprep.subr.bf16.mxu0 0
      %6810 = vmatpush1.bf16.msra.mxu0 0
      %6811 = vmatprep.subr.bf16.mxu0 0
      %6812 = vmatpush1.bf16.msra.mxu0 0
      %6813 = vmatprep.subr.bf16.mxu0 0
      %6814 = vmatpush1.bf16.msra.mxu0 0
      %6815 = vmatprep.subr.bf16.mxu0 0
      %6816 = vmatpush1.bf16.msra.mxu0 0
      %6817 = vmatprep.subr.bf16.mxu0 0
      %6818 = vmatpush1.bf16.msra.mxu0 0
      %6819 = vmatprep.mubr.bf16.mxu0 0
      %6820 = vmatmul.mubr.bf16.gmra.mrb[0].mxu0 %v6707
      %v6821 = vpop.f32.mrb[0].mxu0
      %v6822 = vadd.f32 0.0, %v6821
      %v6823 = vpop.f32.mrb[0].mxu0
      %v6824 = vpop.f32.mrb[0].mxu0
      %v6825 = vadd.f32 0.0, %v6824
      %v6826 = vpop.f32.mrb[0].mxu0
      %6827 = vmatprep.mubr.bf16.mxu0 0
      %6828 = vmatmul.mubr.bf16.gmra.mrb[0].mxu0 %v6708
      %v6829 = vpop.f32.mrb[0].mxu0
      %v6830 = vadd.f32 0.0, %v6829
      %v6831 = vpop.f32.mrb[0].mxu0
      %v6832 = vpop.f32.mrb[0].mxu0
      %v6833 = vadd.f32 0.0, %v6832
      %v6834 = vpop.f32.mrb[0].mxu0
      %6835 = vmatprep.mubr.bf16.mxu0 0
      %6836 = vmatmul.mubr.bf16.gmra.mrb[0].mxu0 %v6709
      %v6837 = vpop.f32.mrb[0].mxu0
      %v6838 = vadd.f32 0.0, %v6837
      %v6839 = vpop.f32.mrb[0].mxu0
      %v6840 = vpop.f32.mrb[0].mxu0
      %v6841 = vadd.f32 0.0, %v6840
      %v6842 = vpop.f32.mrb[0].mxu0
      %6843 = vmatprep.mubr.bf16.mxu0 0
      %6844 = vmatmul.mubr.bf16.gmra.mrb[0].mxu0 %v6710
      %v6845 = vpop.f32.mrb[0].mxu0
      %v6846 = vadd.f32 0.0, %v6845
      %v6847 = vpop.f32.mrb[0].mxu0
      %v6848 = vpop.f32.mrb[0].mxu0
      %v6849 = vadd.f32 0.0, %v6848
      %v6850 = vpop.f32.mrb[0].mxu0
      %6851 = vmatprep.mubr.bf16.mxu0 0
      %6852 = vmatmul.mubr.bf16.gmra.mrb[0].mxu0 %v6711
      %v6853 = vpop.f32.mrb[0].mxu0
      %v6854 = vadd.f32 0.0, %v6853
      %v6855 = vpop.f32.mrb[0].mxu0
      %v6856 = vpop.f32.mrb[0].mxu0
      %v6857 = vadd.f32 0.0, %v6856
      %v6858 = vpop.f32.mrb[0].mxu0
      %6859 = vmatprep.mubr.bf16.mxu0 0
      %6860 = vmatmul.mubr.bf16.gmra.mrb[0].mxu0 %v6712
      %v6861 = vpop.f32.mrb[0].mxu0
      %v6862 = vadd.f32 0.0, %v6861
      %v6863 = vpop.f32.mrb[0].mxu0
      %v6864 = vpop.f32.mrb[0].mxu0
      %v6865 = vadd.f32 0.0, %v6864
      %v6866 = vpop.f32.mrb[0].mxu0
      %6867 = vmatprep.mubr.bf16.mxu0 0
      %6868 = vmatmul.mubr.bf16.gmra.mrb[0].mxu0 %v6713
      %v6869 = vpop.f32.mrb[0].mxu0
      %v6870 = vadd.f32 0.0, %v6869
      %v6871 = vpop.f32.mrb[0].mxu0
      %v6872 = vpop.f32.mrb[0].mxu0
      %v6873 = vadd.f32 0.0, %v6872
      %v6874 = vpop.f32.mrb[0].mxu0
      %6875 = vmatprep.mubr.bf16.mxu0 0
      %6876 = vmatmul.mubr.bf16.gmra.mrb[0].mxu0 %v6714
      %v6877 = vpop.f32.mrb[0].mxu0
      %v6878 = vadd.f32 0.0, %v6877
      %v6879 = vpop.f32.mrb[0].mxu0
      %v6880 = vpop.f32.mrb[0].mxu0
      %v6881 = vadd.f32 0.0, %v6880
      %v6882 = vpop.f32.mrb[0].mxu0
      %6883 = vmatprep.mubr.bf16.mxu0 0
      %6884 = vmatmul.mubr.bf16.gmra.mrb[0].mxu0 %v6715
      %v6885 = vpop.f32.mrb[0].mxu0
      %v6886 = vadd.f32 0.0, %v6885
      %v6887 = vpop.f32.mrb[0].mxu0
      %v6888 = vpop.f32.mrb[0].mxu0
      %v6889 = vadd.f32 0.0, %v6888
      %v6890 = vpop.f32.mrb[0].mxu0
      %6891 = vmatprep.mubr.bf16.mxu0 0
      %6892 = vmatmul.mubr.bf16.gmra.mrb[0].mxu0 %v6716
      %v6893 = vpop.f32.mrb[0].mxu0
      %v6894 = vadd.f32 0.0, %v6893
      %v6895 = vpop.f32.mrb[0].mxu0
      %v6896 = vpop.f32.mrb[0].mxu0
      %v6897 = vadd.f32 0.0, %v6896
      %v6898 = vpop.f32.mrb[0].mxu0
      %6899 = vmatprep.mubr.bf16.mxu0 0
      %6900 = vmatmul.mubr.bf16.gmra.mrb[0].mxu0 %v6717
      %v6901 = vpop.f32.mrb[0].mxu0
      %v6902 = vadd.f32 0.0, %v6901
      %v6903 = vpop.f32.mrb[0].mxu0
      %v6904 = vpop.f32.mrb[0].mxu0
      %v6905 = vadd.f32 0.0, %v6904
      %v6906 = vpop.f32.mrb[0].mxu0
      %6907 = vmatprep.mubr.bf16.mxu0 0
      %6908 = vmatmul.mubr.bf16.gmra.mrb[0].mxu0 %v6718
      %v6909 = vpop.f32.mrb[0].mxu0
      %v6910 = vadd.f32 0.0, %v6909
      %v6911 = vpop.f32.mrb[0].mxu0
      %v6912 = vpop.f32.mrb[0].mxu0
      %v6913 = vadd.f32 0.0, %v6912
      %v6914 = vpop.f32.mrb[0].mxu0
      %6915 = vmatprep.mubr.bf16.mxu0 0
      %6916 = vmatmul.mubr.bf16.gmra.mrb[0].mxu0 %v6719
      %v6917 = vpop.f32.mrb[0].mxu0
      %v6918 = vadd.f32 0.0, %v6917
      %v6919 = vpop.f32.mrb[0].mxu0
      %v6920 = vpop.f32.mrb[0].mxu0
      %v6921 = vadd.f32 0.0, %v6920
      %v6922 = vpop.f32.mrb[0].mxu0
      %6923 = vmatprep.mubr.bf16.mxu0 0
      %6924 = vmatmul.mubr.bf16.gmra.mrb[0].mxu0 %v6720
      %v6925 = vpop.f32.mrb[0].mxu0
      %v6926 = vadd.f32 0.0, %v6925
      %v6927 = vpop.f32.mrb[0].mxu0
      %v6928 = vpop.f32.mrb[0].mxu0
      %v6929 = vadd.f32 0.0, %v6928
      %v6930 = vpop.f32.mrb[0].mxu0
      %6931 = vmatprep.mubr.bf16.mxu0 0
      %6932 = vmatmul.mubr.bf16.gmra.mrb[0].mxu0 %v6721
      %v6933 = vpop.f32.mrb[0].mxu0
      %v6934 = vadd.f32 0.0, %v6933
      %v6935 = vpop.f32.mrb[0].mxu0
      %v6936 = vpop.f32.mrb[0].mxu0
      %v6937 = vadd.f32 0.0, %v6936
      %v6938 = vpop.f32.mrb[0].mxu0
      %6939 = vmatprep.mubr.bf16.mxu0 0
      %6940 = vmatmul.mubr.bf16.gmra.mrb[0].mxu0 %v6722
      %v6941 = vpop.f32.mrb[0].mxu0
      %v6942 = vadd.f32 0.0, %v6941
      %v6943 = vpop.f32.mrb[0].mxu0
      %v6944 = vpop.f32.mrb[0].mxu0
      %v6945 = vadd.f32 0.0, %v6944
      %v6946 = vpop.f32.mrb[0].mxu0
      %6947 = vdwg.mxu0
      %v6980 = vunpack.c.l.b16 %v6210
      %v6981 = vunpack.c.l.b16 %v6211
      %v6982 = vunpack.c.l.b16 %v6212
      %v6983 = vunpack.c.l.b16 %v6213
      %v6984 = vunpack.c.l.b16 %v6214
      %v6985 = vunpack.c.l.b16 %v6215
      %v6986 = vunpack.c.l.b16 %v6216
      %v6987 = vunpack.c.l.b16 %v6217
      %v6988 = vunpack.c.l.b16 %v6218
      %v6989 = vunpack.c.l.b16 %v6219
      %v6990 = vunpack.c.l.b16 %v6220
      %v6991 = vunpack.c.l.b16 %v6221
      %v6992 = vunpack.c.l.b16 %v6222
      %v6993 = vunpack.c.l.b16 %v6223
      %v6994 = vunpack.c.l.b16 %v6224
      %v6995 = vunpack.c.l.b16 %v6225
      %v6996 = vunpack.c.l.b16 %v6226
      %v6997 = vunpack.c.l.b16 %v6227
      %v6998 = vunpack.c.l.b16 %v6228
      %v6999 = vunpack.c.l.b16 %v6229
      %v7000 = vunpack.c.l.b16 %v6230
      %v7001 = vunpack.c.l.b16 %v6231
      %v7002 = vunpack.c.l.b16 %v6232
      %v7003 = vunpack.c.l.b16 %v6233
      %v7004 = vunpack.c.l.b16 %v6234
      %v7005 = vunpack.c.l.b16 %v6235
      %v7006 = vunpack.c.l.b16 %v6236
      %v7007 = vunpack.c.l.b16 %v6237
      %v7008 = vunpack.c.l.b16 %v6238
      %v7009 = vunpack.c.l.b16 %v6239
      %v7010 = vunpack.c.l.b16 %v6240
      %v7011 = vunpack.c.l.b16 %v6241
      %v7012 = vpack.c.b16 %v6981, %v6980
      %v7013 = vpack.c.b16 %v6983, %v6982
      %v7014 = vpack.c.b16 %v6985, %v6984
      %v7015 = vpack.c.b16 %v6987, %v6986
      %v7016 = vpack.c.b16 %v6989, %v6988
      %v7017 = vpack.c.b16 %v6991, %v6990
      %v7018 = vpack.c.b16 %v6993, %v6992
      %v7019 = vpack.c.b16 %v6995, %v6994
      %v7020 = vpack.c.b16 %v6997, %v6996
      %v7021 = vpack.c.b16 %v6999, %v6998
      %v7022 = vpack.c.b16 %v7001, %v7000
      %v7023 = vpack.c.b16 %v7003, %v7002
      %v7024 = vpack.c.b16 %v7005, %v7004
      %v7025 = vpack.c.b16 %v7007, %v7006
      %v7026 = vpack.c.b16 %v7009, %v7008
      %v7027 = vpack.c.b16 %v7011, %v7010
      %v7060 = vunpack.c.l.b16 %v6242
      %v7061 = vunpack.c.l.b16 %v6243
      %v7062 = vunpack.c.l.b16 %v6244
      %v7063 = vunpack.c.l.b16 %v6245
      %v7064 = vunpack.c.l.b16 %v6246
      %v7065 = vunpack.c.l.b16 %v6247
      %v7066 = vunpack.c.l.b16 %v6248
      %v7067 = vunpack.c.l.b16 %v6249
      %v7068 = vunpack.c.l.b16 %v6250
      %v7069 = vunpack.c.l.b16 %v6251
      %v7070 = vunpack.c.l.b16 %v6252
      %v7071 = vunpack.c.l.b16 %v6253
      %v7072 = vunpack.c.l.b16 %v6254
      %v7073 = vunpack.c.l.b16 %v6255
      %v7074 = vunpack.c.l.b16 %v6256
      %v7075 = vunpack.c.l.b16 %v6257
      %v7076 = vpack.c.b16 %v7061, %v7060
      %v7077 = vpack.c.b16 %v7063, %v7062
      %v7078 = vpack.c.b16 %v7065, %v7064
      %v7079 = vpack.c.b16 %v7067, %v7066
      %v7080 = vpack.c.b16 %v7069, %v7068
      %v7081 = vpack.c.b16 %v7071, %v7070
      %v7082 = vpack.c.b16 %v7073, %v7072
      %v7083 = vpack.c.b16 %v7075, %v7074
      %7092 = vmatprep.subr.bf16.mxu0 0
      %7093 = vmatpush1.bf16.msra.mxu0 %v7076
      %7094 = vmatprep.subr.bf16.mxu0 0
      %7095 = vmatpush1.bf16.msra.mxu0 %v7077
      %7096 = vmatprep.subr.bf16.mxu0 0
      %7097 = vmatpush1.bf16.msra.mxu0 %v7078
      %7098 = vmatprep.subr.bf16.mxu0 0
      %7099 = vmatpush1.bf16.msra.mxu0 %v7079
      %7100 = vmatprep.subr.bf16.mxu0 0
      %7101 = vmatpush1.bf16.msra.mxu0 %v7080
      %7102 = vmatprep.subr.bf16.mxu0 0
      %7103 = vmatpush1.bf16.msra.mxu0 %v7081
      %7104 = vmatprep.subr.bf16.mxu0 0
      %7105 = vmatpush1.bf16.msra.mxu0 %v7082
      %7106 = vmatprep.subr.bf16.mxu0 0
      %7107 = vmatpush1.bf16.msra.mxu0 %v7083
      %7108 = vmatprep.subr.bf16.mxu0 0
      %7109 = vmatpush1.bf16.msra.mxu0 0
      %7110 = vmatprep.subr.bf16.mxu0 0
      %7111 = vmatpush1.bf16.msra.mxu0 0
      %7112 = vmatprep.subr.bf16.mxu0 0
      %7113 = vmatpush1.bf16.msra.mxu0 0
      %7114 = vmatprep.subr.bf16.mxu0 0
      %7115 = vmatpush1.bf16.msra.mxu0 0
      %7116 = vmatprep.subr.bf16.mxu0 0
      %7117 = vmatpush1.bf16.msra.mxu0 0
      %7118 = vmatprep.subr.bf16.mxu0 0
      %7119 = vmatpush1.bf16.msra.mxu0 0
      %7120 = vmatprep.subr.bf16.mxu0 0
      %7121 = vmatpush1.bf16.msra.mxu0 0
      %7122 = vmatprep.subr.bf16.mxu0 0
      %7123 = vmatpush1.bf16.msra.mxu0 0
      %7124 = vmatprep.mubr.bf16.mxu0 0
      %7125 = vmatmul.mubr.bf16.gmra.mrb[0].mxu0 %v7012
      %v7126 = vpop.f32.mrb[0].mxu0
      %v7127 = vadd.f32 %v6822, %v7126
      %v7128 = vpop.f32.mrb[0].mxu0
      %v7129 = vpop.f32.mrb[0].mxu0
      %v7130 = vadd.f32 %v6825, %v7129
      %v7131 = vpop.f32.mrb[0].mxu0
      %7132 = vmatprep.mubr.bf16.mxu0 0
      %7133 = vmatmul.mubr.bf16.gmra.mrb[0].mxu0 %v7013
      %v7134 = vpop.f32.mrb[0].mxu0
      %v7135 = vadd.f32 %v6830, %v7134
      %v7136 = vpop.f32.mrb[0].mxu0
      %v7137 = vpop.f32.mrb[0].mxu0
      %v7138 = vadd.f32 %v6833, %v7137
      %v7139 = vpop.f32.mrb[0].mxu0
      %7140 = vmatprep.mubr.bf16.mxu0 0
      %7141 = vmatmul.mubr.bf16.gmra.mrb[0].mxu0 %v7014
      %v7142 = vpop.f32.mrb[0].mxu0
      %v7143 = vadd.f32 %v6838, %v7142
      %v7144 = vpop.f32.mrb[0].mxu0
      %v7145 = vpop.f32.mrb[0].mxu0
      %v7146 = vadd.f32 %v6841, %v7145
      %v7147 = vpop.f32.mrb[0].mxu0
      %7148 = vmatprep.mubr.bf16.mxu0 0
      %7149 = vmatmul.mubr.bf16.gmra.mrb[0].mxu0 %v7015
      %v7150 = vpop.f32.mrb[0].mxu0
      %v7151 = vadd.f32 %v6846, %v7150
      %v7152 = vpop.f32.mrb[0].mxu0
      %v7153 = vpop.f32.mrb[0].mxu0
      %v7154 = vadd.f32 %v6849, %v7153
      %v7155 = vpop.f32.mrb[0].mxu0
      %7156 = vmatprep.mubr.bf16.mxu0 0
      %7157 = vmatmul.mubr.bf16.gmra.mrb[0].mxu0 %v7016
      %v7158 = vpop.f32.mrb[0].mxu0
      %v7159 = vadd.f32 %v6854, %v7158
      %v7160 = vpop.f32.mrb[0].mxu0
      %v7161 = vpop.f32.mrb[0].mxu0
      %v7162 = vadd.f32 %v6857, %v7161
      %v7163 = vpop.f32.mrb[0].mxu0
      %7164 = vmatprep.mubr.bf16.mxu0 0
      %7165 = vmatmul.mubr.bf16.gmra.mrb[0].mxu0 %v7017
      %v7166 = vpop.f32.mrb[0].mxu0
      %v7167 = vadd.f32 %v6862, %v7166
      %v7168 = vpop.f32.mrb[0].mxu0
      %v7169 = vpop.f32.mrb[0].mxu0
      %v7170 = vadd.f32 %v6865, %v7169
      %v7171 = vpop.f32.mrb[0].mxu0
      %7172 = vmatprep.mubr.bf16.mxu0 0
      %7173 = vmatmul.mubr.bf16.gmra.mrb[0].mxu0 %v7018
      %v7174 = vpop.f32.mrb[0].mxu0
      %v7175 = vadd.f32 %v6870, %v7174
      %v7176 = vpop.f32.mrb[0].mxu0
      %v7177 = vpop.f32.mrb[0].mxu0
      %v7178 = vadd.f32 %v6873, %v7177
      %v7179 = vpop.f32.mrb[0].mxu0
      %7180 = vmatprep.mubr.bf16.mxu0 0
      %7181 = vmatmul.mubr.bf16.gmra.mrb[0].mxu0 %v7019
      %v7182 = vpop.f32.mrb[0].mxu0
      %v7183 = vadd.f32 %v6878, %v7182
      %v7184 = vpop.f32.mrb[0].mxu0
      %v7185 = vpop.f32.mrb[0].mxu0
      %v7186 = vadd.f32 %v6881, %v7185
      %v7187 = vpop.f32.mrb[0].mxu0
      %7188 = vmatprep.mubr.bf16.mxu0 0
      %7189 = vmatmul.mubr.bf16.gmra.mrb[0].mxu0 %v7020
      %v7190 = vpop.f32.mrb[0].mxu0
      %v7191 = vadd.f32 %v6886, %v7190
      %v7192 = vpop.f32.mrb[0].mxu0
      %v7193 = vpop.f32.mrb[0].mxu0
      %v7194 = vadd.f32 %v6889, %v7193
      %v7195 = vpop.f32.mrb[0].mxu0
      %7196 = vmatprep.mubr.bf16.mxu0 0
      %7197 = vmatmul.mubr.bf16.gmra.mrb[0].mxu0 %v7021
      %v7198 = vpop.f32.mrb[0].mxu0
      %v7199 = vadd.f32 %v6894, %v7198
      %v7200 = vpop.f32.mrb[0].mxu0
      %v7201 = vpop.f32.mrb[0].mxu0
      %v7202 = vadd.f32 %v6897, %v7201
      %v7203 = vpop.f32.mrb[0].mxu0
      %7204 = vmatprep.mubr.bf16.mxu0 0
      %7205 = vmatmul.mubr.bf16.gmra.mrb[0].mxu0 %v7022
      %v7206 = vpop.f32.mrb[0].mxu0
      %v7207 = vadd.f32 %v6902, %v7206
      %v7208 = vpop.f32.mrb[0].mxu0
      %v7209 = vpop.f32.mrb[0].mxu0
      %v7210 = vadd.f32 %v6905, %v7209
      %v7211 = vpop.f32.mrb[0].mxu0
      %7212 = vmatprep.mubr.bf16.mxu0 0
      %7213 = vmatmul.mubr.bf16.gmra.mrb[0].mxu0 %v7023
      %v7214 = vpop.f32.mrb[0].mxu0
      %v7215 = vadd.f32 %v6910, %v7214
      %v7216 = vpop.f32.mrb[0].mxu0
      %v7217 = vpop.f32.mrb[0].mxu0
      %v7218 = vadd.f32 %v6913, %v7217
      %v7219 = vpop.f32.mrb[0].mxu0
      %7220 = vmatprep.mubr.bf16.mxu0 0
      %7221 = vmatmul.mubr.bf16.gmra.mrb[0].mxu0 %v7024
      %v7222 = vpop.f32.mrb[0].mxu0
      %v7223 = vadd.f32 %v6918, %v7222
      %v7224 = vpop.f32.mrb[0].mxu0
      %v7225 = vpop.f32.mrb[0].mxu0
      %v7226 = vadd.f32 %v6921, %v7225
      %v7227 = vpop.f32.mrb[0].mxu0
      %7228 = vmatprep.mubr.bf16.mxu0 0
      %7229 = vmatmul.mubr.bf16.gmra.mrb[0].mxu0 %v7025
      %v7230 = vpop.f32.mrb[0].mxu0
      %v7231 = vadd.f32 %v6926, %v7230
      %v7232 = vpop.f32.mrb[0].mxu0
      %v7233 = vpop.f32.mrb[0].mxu0
      %v7234 = vadd.f32 %v6929, %v7233
      %v7235 = vpop.f32.mrb[0].mxu0
      %7236 = vmatprep.mubr.bf16.mxu0 0
      %7237 = vmatmul.mubr.bf16.gmra.mrb[0].mxu0 %v7026
      %v7238 = vpop.f32.mrb[0].mxu0
      %v7239 = vadd.f32 %v6934, %v7238
      %v7240 = vpop.f32.mrb[0].mxu0
      %v7241 = vpop.f32.mrb[0].mxu0
      %v7242 = vadd.f32 %v6937, %v7241
      %v7243 = vpop.f32.mrb[0].mxu0
      %7244 = vmatprep.mubr.bf16.mxu0 0
      %7245 = vmatmul.mubr.bf16.gmra.mrb[0].mxu0 %v7027
      %v7246 = vpop.f32.mrb[0].mxu0
      %v7247 = vadd.f32 %v6942, %v7246
      %v7248 = vpop.f32.mrb[0].mxu0
      %v7249 = vpop.f32.mrb[0].mxu0
      %v7250 = vadd.f32 %v6945, %v7249
      %v7251 = vpop.f32.mrb[0].mxu0
      %7252 = vdwg.mxu0
      %v7253 = vld [vmem:[#allocation2] sm:$0xe]
      %v7254 = vld [vmem:[#allocation2 + $0xc] sm:$0xe]
      %v7255 = vld [vmem:[#allocation2 + $0x18] sm:$0xe]
      %v7256 = vld [vmem:[#allocation2 + $0x24] sm:$0xe]
      %v7257 = vld [vmem:[#allocation2 + $0x30] sm:$0xe]
      %v7258 = vld [vmem:[#allocation2 + $0x3c] sm:$0xe]
      %v7259 = vld [vmem:[#allocation2 + $0x48] sm:$0xe]
      %v7260 = vld [vmem:[#allocation2 + $0x54] sm:$0xe]
      %v7261 = vld [vmem:[#allocation2 + $0x60] sm:$0xe]
      %v7262 = vld [vmem:[#allocation2 + $0x6c] sm:$0xe]
      %v7263 = vld [vmem:[#allocation2 + $0x78] sm:$0xe]
      %v7264 = vld [vmem:[#allocation2 + $0x84] sm:$0xe]
      %v7265 = vld [vmem:[#allocation2 + $0x90] sm:$0xe]
      %v7266 = vld [vmem:[#allocation2 + $0x9c] sm:$0xe]
      %v7267 = vld [vmem:[#allocation2 + $0xa8] sm:$0xe]
      %v7268 = vld [vmem:[#allocation2 + $0xb4] sm:$0xe]
      %v7301 = vrot.slane %v7253, 5
      %v7302 = vrot.slane %v7301, 4
      %v7303 = vrot.slane %v6211, 5
      %v7304 = vsel %vm1900, %v7302, %v7303
      %v7305 = vrot.slane %v7303, 4
      %v7306 = vrot.slane %v6258, 5
      %v7307 = vsel %vm1900, %v7305, %v7306
      %v7308 = vrot.slane %v7254, 5
      %v7309 = vrot.slane %v7308, 4
      %v7310 = vrot.slane %v6213, 5
      %v7311 = vsel %vm1900, %v7309, %v7310
      %v7312 = vrot.slane %v7310, 4
      %v7313 = vrot.slane %v6259, 5
      %v7314 = vsel %vm1900, %v7312, %v7313
      %v7315 = vrot.slane %v7255, 5
      %v7316 = vrot.slane %v7315, 4
      %v7317 = vrot.slane %v6215, 5
      %v7318 = vsel %vm1900, %v7316, %v7317
      %v7319 = vrot.slane %v7317, 4
      %v7320 = vrot.slane %v6260, 5
      %v7321 = vsel %vm1900, %v7319, %v7320
      %v7322 = vrot.slane %v7256, 5
      %v7323 = vrot.slane %v7322, 4
      %v7324 = vrot.slane %v6217, 5
      %v7325 = vsel %vm1900, %v7323, %v7324
      %v7326 = vrot.slane %v7324, 4
      %v7327 = vrot.slane %v6261, 5
      %v7328 = vsel %vm1900, %v7326, %v7327
      %v7329 = vrot.slane %v7257, 5
      %v7330 = vrot.slane %v7329, 4
      %v7331 = vrot.slane %v6219, 5
      %v7332 = vsel %vm1900, %v7330, %v7331
      %v7333 = vrot.slane %v7331, 4
      %v7334 = vrot.slane %v6262, 5
      %v7335 = vsel %vm1900, %v7333, %v7334
      %v7336 = vrot.slane %v7258, 5
      %v7337 = vrot.slane %v7336, 4
      %v7338 = vrot.slane %v6221, 5
      %v7339 = vsel %vm1900, %v7337, %v7338
      %v7340 = vrot.slane %v7338, 4
      %v7341 = vrot.slane %v6263, 5
      %v7342 = vsel %vm1900, %v7340, %v7341
      %v7343 = vrot.slane %v7259, 5
      %v7344 = vrot.slane %v7343, 4
      %v7345 = vrot.slane %v6223, 5
      %v7346 = vsel %vm1900, %v7344, %v7345
      %v7347 = vrot.slane %v7345, 4
      %v7348 = vrot.slane %v6264, 5
      %v7349 = vsel %vm1900, %v7347, %v7348
      %v7350 = vrot.slane %v7260, 5
      %v7351 = vrot.slane %v7350, 4
      %v7352 = vrot.slane %v6225, 5
      %v7353 = vsel %vm1900, %v7351, %v7352
      %v7354 = vrot.slane %v7352, 4
      %v7355 = vrot.slane %v6265, 5
      %v7356 = vsel %vm1900, %v7354, %v7355
      %v7357 = vrot.slane %v7261, 5
      %v7358 = vrot.slane %v7357, 4
      %v7359 = vrot.slane %v6227, 5
      %v7360 = vsel %vm1900, %v7358, %v7359
      %v7361 = vrot.slane %v7359, 4
      %v7362 = vrot.slane %v6266, 5
      %v7363 = vsel %vm1900, %v7361, %v7362
      %v7364 = vrot.slane %v7262, 5
      %v7365 = vrot.slane %v7364, 4
      %v7366 = vrot.slane %v6229, 5
      %v7367 = vsel %vm1900, %v7365, %v7366
      %v7368 = vrot.slane %v7366, 4
      %v7369 = vrot.slane %v6267, 5
      %v7370 = vsel %vm1900, %v7368, %v7369
      %v7371 = vrot.slane %v7263, 5
      %v7372 = vrot.slane %v7371, 4
      %v7373 = vrot.slane %v6231, 5
      %v7374 = vsel %vm1900, %v7372, %v7373
      %v7375 = vrot.slane %v7373, 4
      %v7376 = vrot.slane %v6268, 5
      %v7377 = vsel %vm1900, %v7375, %v7376
      %v7378 = vrot.slane %v7264, 5
      %v7379 = vrot.slane %v7378, 4
      %v7380 = vrot.slane %v6233, 5
      %v7381 = vsel %vm1900, %v7379, %v7380
      %v7382 = vrot.slane %v7380, 4
      %v7383 = vrot.slane %v6269, 5
      %v7384 = vsel %vm1900, %v7382, %v7383
      %v7385 = vrot.slane %v7265, 5
      %v7386 = vrot.slane %v7385, 4
      %v7387 = vrot.slane %v6235, 5
      %v7388 = vsel %vm1900, %v7386, %v7387
      %v7389 = vrot.slane %v7387, 4
      %v7390 = vrot.slane %v6270, 5
      %v7391 = vsel %vm1900, %v7389, %v7390
      %v7392 = vrot.slane %v7266, 5
      %v7393 = vrot.slane %v7392, 4
      %v7394 = vrot.slane %v6237, 5
      %v7395 = vsel %vm1900, %v7393, %v7394
      %v7396 = vrot.slane %v7394, 4
      %v7397 = vrot.slane %v6271, 5
      %v7398 = vsel %vm1900, %v7396, %v7397
      %v7399 = vrot.slane %v7267, 5
      %v7400 = vrot.slane %v7399, 4
      %v7401 = vrot.slane %v6239, 5
      %v7402 = vsel %vm1900, %v7400, %v7401
      %v7403 = vrot.slane %v7401, 4
      %v7404 = vrot.slane %v6272, 5
      %v7405 = vsel %vm1900, %v7403, %v7404
      %v7406 = vrot.slane %v7268, 5
      %v7407 = vrot.slane %v7406, 4
      %v7408 = vrot.slane %v6241, 5
      %v7409 = vsel %vm1900, %v7407, %v7408
      %v7410 = vrot.slane %v7408, 4
      %v7411 = vrot.slane %v6273, 5
      %v7412 = vsel %vm1900, %v7410, %v7411
      %s7413 = scalar_lea.vmem %s3, 128
      %v7414 = vld [vmem:[%s7413] sm:$0xf]
      %v7415 = vld [vmem:[%s7413 + $0x4] sm:$0xf]
      %v7416 = vld [vmem:[%s7413 + $0x8] sm:$0xf]
      %v7417 = vld [vmem:[%s7413 + $0xc] sm:$0xf]
      %v7418 = vld [vmem:[%s7413 + $0x10] sm:$0xf]
      %v7419 = vld [vmem:[%s7413 + $0x14] sm:$0xf]
      %v7420 = vld [vmem:[%s7413 + $0x18] sm:$0xf]
      %v7421 = vld [vmem:[%s7413 + $0x1c] sm:$0xf]
      %v7422 = vld [vmem:[%s7413 + $0x20] sm:$0xf]
      %v7423 = vld [vmem:[%s7413 + $0x24] sm:$0xf]
      %v7424 = vld [vmem:[%s7413 + $0x28] sm:$0xf]
      %v7425 = vld [vmem:[%s7413 + $0x2c] sm:$0xf]
      %v7426 = vld [vmem:[%s7413 + $0x30] sm:$0xf]
      %v7427 = vld [vmem:[%s7413 + $0x34] sm:$0xf]
      %v7428 = vld [vmem:[%s7413 + $0x38] sm:$0xf]
      %v7429 = vld [vmem:[%s7413 + $0x3c] sm:$0xf]
      %v7430 = vunpack.c.l.b16 %v7304
      %v7431 = vunpack.c.l.b16 %v7307
      %v7432 = vunpack.c.l.b16 %v7311
      %v7433 = vunpack.c.l.b16 %v7314
      %v7434 = vunpack.c.l.b16 %v7318
      %v7435 = vunpack.c.l.b16 %v7321
      %v7436 = vunpack.c.l.b16 %v7325
      %v7437 = vunpack.c.l.b16 %v7328
      %v7438 = vunpack.c.l.b16 %v7332
      %v7439 = vunpack.c.l.b16 %v7335
      %v7440 = vunpack.c.l.b16 %v7339
      %v7441 = vunpack.c.l.b16 %v7342
      %v7442 = vunpack.c.l.b16 %v7346
      %v7443 = vunpack.c.l.b16 %v7349
      %v7444 = vunpack.c.l.b16 %v7353
      %v7445 = vunpack.c.l.b16 %v7356
      %v7446 = vunpack.c.l.b16 %v7360
      %v7447 = vunpack.c.l.b16 %v7363
      %v7448 = vunpack.c.l.b16 %v7367
      %v7449 = vunpack.c.l.b16 %v7370
      %v7450 = vunpack.c.l.b16 %v7374
      %v7451 = vunpack.c.l.b16 %v7377
      %v7452 = vunpack.c.l.b16 %v7381
      %v7453 = vunpack.c.l.b16 %v7384
      %v7454 = vunpack.c.l.b16 %v7388
      %v7455 = vunpack.c.l.b16 %v7391
      %v7456 = vunpack.c.l.b16 %v7395
      %v7457 = vunpack.c.l.b16 %v7398
      %v7458 = vunpack.c.l.b16 %v7402
      %v7459 = vunpack.c.l.b16 %v7405
      %v7460 = vunpack.c.l.b16 %v7409
      %v7461 = vunpack.c.l.b16 %v7412
      %v7462 = vpack.c.b16 %v7431, %v7430
      %v7463 = vpack.c.b16 %v7433, %v7432
      %v7464 = vpack.c.b16 %v7435, %v7434
      %v7465 = vpack.c.b16 %v7437, %v7436
      %v7466 = vpack.c.b16 %v7439, %v7438
      %v7467 = vpack.c.b16 %v7441, %v7440
      %v7468 = vpack.c.b16 %v7443, %v7442
      %v7469 = vpack.c.b16 %v7445, %v7444
      %v7470 = vpack.c.b16 %v7447, %v7446
      %v7471 = vpack.c.b16 %v7449, %v7448
      %v7472 = vpack.c.b16 %v7451, %v7450
      %v7473 = vpack.c.b16 %v7453, %v7452
      %v7474 = vpack.c.b16 %v7455, %v7454
      %v7475 = vpack.c.b16 %v7457, %v7456
      %v7476 = vpack.c.b16 %v7459, %v7458
      %v7477 = vpack.c.b16 %v7461, %v7460
      %v7510 = vunpack.c.l.b16 %v7414
      %v7511 = vunpack.c.l.b16 %v7415
      %v7512 = vunpack.c.l.b16 %v7416
      %v7513 = vunpack.c.l.b16 %v7417
      %v7514 = vunpack.c.l.b16 %v7418
      %v7515 = vunpack.c.l.b16 %v7419
      %v7516 = vunpack.c.l.b16 %v7420
      %v7517 = vunpack.c.l.b16 %v7421
      %v7518 = vunpack.c.l.b16 %v7422
      %v7519 = vunpack.c.l.b16 %v7423
      %v7520 = vunpack.c.l.b16 %v7424
      %v7521 = vunpack.c.l.b16 %v7425
      %v7522 = vunpack.c.l.b16 %v7426
      %v7523 = vunpack.c.l.b16 %v7427
      %v7524 = vunpack.c.l.b16 %v7428
      %v7525 = vunpack.c.l.b16 %v7429
      %v7526 = vpack.c.b16 %v7511, %v7510
      %v7527 = vpack.c.b16 %v7513, %v7512
      %v7528 = vpack.c.b16 %v7515, %v7514
      %v7529 = vpack.c.b16 %v7517, %v7516
      %v7530 = vpack.c.b16 %v7519, %v7518
      %v7531 = vpack.c.b16 %v7521, %v7520
      %v7532 = vpack.c.b16 %v7523, %v7522
      %v7533 = vpack.c.b16 %v7525, %v7524
      %7542 = vmatprep.subr.bf16.mxu0 0
      %7543 = vmatpush1.bf16.msra.mxu0 %v7526
      %7544 = vmatprep.subr.bf16.mxu0 0
      %7545 = vmatpush1.bf16.msra.mxu0 %v7527
      %7546 = vmatprep.subr.bf16.mxu0 0
      %7547 = vmatpush1.bf16.msra.mxu0 %v7528
      %7548 = vmatprep.subr.bf16.mxu0 0
      %7549 = vmatpush1.bf16.msra.mxu0 %v7529
      %7550 = vmatprep.subr.bf16.mxu0 0
      %7551 = vmatpush1.bf16.msra.mxu0 %v7530
      %7552 = vmatprep.subr.bf16.mxu0 0
      %7553 = vmatpush1.bf16.msra.mxu0 %v7531
      %7554 = vmatprep.subr.bf16.mxu0 0
      %7555 = vmatpush1.bf16.msra.mxu0 %v7532
      %7556 = vmatprep.subr.bf16.mxu0 0
      %7557 = vmatpush1.bf16.msra.mxu0 %v7533
      %7558 = vmatprep.subr.bf16.mxu0 0
      %7559 = vmatpush1.bf16.msra.mxu0 0
      %7560 = vmatprep.subr.bf16.mxu0 0
      %7561 = vmatpush1.bf16.msra.mxu0 0
      %7562 = vmatprep.subr.bf16.mxu0 0
      %7563 = vmatpush1.bf16.msra.mxu0 0
      %7564 = vmatprep.subr.bf16.mxu0 0
      %7565 = vmatpush1.bf16.msra.mxu0 0
      %7566 = vmatprep.subr.bf16.mxu0 0
      %7567 = vmatpush1.bf16.msra.mxu0 0
      %7568 = vmatprep.subr.bf16.mxu0 0
      %7569 = vmatpush1.bf16.msra.mxu0 0
      %7570 = vmatprep.subr.bf16.mxu0 0
      %7571 = vmatpush1.bf16.msra.mxu0 0
      %7572 = vmatprep.subr.bf16.mxu0 0
      %7573 = vmatpush1.bf16.msra.mxu0 0
      %7574 = vmatprep.mubr.bf16.mxu0 0
      %7575 = vmatmul.mubr.bf16.gmra.mrb[0].mxu0 %v7462
      %v7576 = vpop.f32.mrb[0].mxu0
      %v7577 = vadd.f32 0.0, %v7576
      %v7578 = vpop.f32.mrb[0].mxu0
      %v7579 = vpop.f32.mrb[0].mxu0
      %v7580 = vadd.f32 0.0, %v7579
      %v7581 = vpop.f32.mrb[0].mxu0
      %7582 = vmatprep.mubr.bf16.mxu0 0
      %7583 = vmatmul.mubr.bf16.gmra.mrb[0].mxu0 %v7463
      %v7584 = vpop.f32.mrb[0].mxu0
      %v7585 = vadd.f32 0.0, %v7584
      %v7586 = vpop.f32.mrb[0].mxu0
      %v7587 = vpop.f32.mrb[0].mxu0
      %v7588 = vadd.f32 0.0, %v7587
      %v7589 = vpop.f32.mrb[0].mxu0
      %7590 = vmatprep.mubr.bf16.mxu0 0
      %7591 = vmatmul.mubr.bf16.gmra.mrb[0].mxu0 %v7464
      %v7592 = vpop.f32.mrb[0].mxu0
      %v7593 = vadd.f32 0.0, %v7592
      %v7594 = vpop.f32.mrb[0].mxu0
      %v7595 = vpop.f32.mrb[0].mxu0
      %v7596 = vadd.f32 0.0, %v7595
      %v7597 = vpop.f32.mrb[0].mxu0
      %7598 = vmatprep.mubr.bf16.mxu0 0
      %7599 = vmatmul.mubr.bf16.gmra.mrb[0].mxu0 %v7465
      %v7600 = vpop.f32.mrb[0].mxu0
      %v7601 = vadd.f32 0.0, %v7600
      %v7602 = vpop.f32.mrb[0].mxu0
      %v7603 = vpop.f32.mrb[0].mxu0
      %v7604 = vadd.f32 0.0, %v7603
      %v7605 = vpop.f32.mrb[0].mxu0
      %7606 = vmatprep.mubr.bf16.mxu0 0
      %7607 = vmatmul.mubr.bf16.gmra.mrb[0].mxu0 %v7466
      %v7608 = vpop.f32.mrb[0].mxu0
      %v7609 = vadd.f32 0.0, %v7608
      %v7610 = vpop.f32.mrb[0].mxu0
      %v7611 = vpop.f32.mrb[0].mxu0
      %v7612 = vadd.f32 0.0, %v7611
      %v7613 = vpop.f32.mrb[0].mxu0
      %7614 = vmatprep.mubr.bf16.mxu0 0
      %7615 = vmatmul.mubr.bf16.gmra.mrb[0].mxu0 %v7467
      %v7616 = vpop.f32.mrb[0].mxu0
      %v7617 = vadd.f32 0.0, %v7616
      %v7618 = vpop.f32.mrb[0].mxu0
      %v7619 = vpop.f32.mrb[0].mxu0
      %v7620 = vadd.f32 0.0, %v7619
      %v7621 = vpop.f32.mrb[0].mxu0
      %7622 = vmatprep.mubr.bf16.mxu0 0
      %7623 = vmatmul.mubr.bf16.gmra.mrb[0].mxu0 %v7468
      %v7624 = vpop.f32.mrb[0].mxu0
      %v7625 = vadd.f32 0.0, %v7624
      %v7626 = vpop.f32.mrb[0].mxu0
      %v7627 = vpop.f32.mrb[0].mxu0
      %v7628 = vadd.f32 0.0, %v7627
      %v7629 = vpop.f32.mrb[0].mxu0
      %7630 = vmatprep.mubr.bf16.mxu0 0
      %7631 = vmatmul.mubr.bf16.gmra.mrb[0].mxu0 %v7469
      %v7632 = vpop.f32.mrb[0].mxu0
      %v7633 = vadd.f32 0.0, %v7632
      %v7634 = vpop.f32.mrb[0].mxu0
      %v7635 = vpop.f32.mrb[0].mxu0
      %v7636 = vadd.f32 0.0, %v7635
      %v7637 = vpop.f32.mrb[0].mxu0
      %7638 = vmatprep.mubr.bf16.mxu0 0
      %7639 = vmatmul.mubr.bf16.gmra.mrb[0].mxu0 %v7470
      %v7640 = vpop.f32.mrb[0].mxu0
      %v7641 = vadd.f32 0.0, %v7640
      %v7642 = vpop.f32.mrb[0].mxu0
      %v7643 = vpop.f32.mrb[0].mxu0
      %v7644 = vadd.f32 0.0, %v7643
      %v7645 = vpop.f32.mrb[0].mxu0
      %7646 = vmatprep.mubr.bf16.mxu0 0
      %7647 = vmatmul.mubr.bf16.gmra.mrb[0].mxu0 %v7471
      %v7648 = vpop.f32.mrb[0].mxu0
      %v7649 = vadd.f32 0.0, %v7648
      %v7650 = vpop.f32.mrb[0].mxu0
      %v7651 = vpop.f32.mrb[0].mxu0
      %v7652 = vadd.f32 0.0, %v7651
      %v7653 = vpop.f32.mrb[0].mxu0
      %7654 = vmatprep.mubr.bf16.mxu0 0
      %7655 = vmatmul.mubr.bf16.gmra.mrb[0].mxu0 %v7472
      %v7656 = vpop.f32.mrb[0].mxu0
      %v7657 = vadd.f32 0.0, %v7656
      %v7658 = vpop.f32.mrb[0].mxu0
      %v7659 = vpop.f32.mrb[0].mxu0
      %v7660 = vadd.f32 0.0, %v7659
      %v7661 = vpop.f32.mrb[0].mxu0
      %7662 = vmatprep.mubr.bf16.mxu0 0
      %7663 = vmatmul.mubr.bf16.gmra.mrb[0].mxu0 %v7473
      %v7664 = vpop.f32.mrb[0].mxu0
      %v7665 = vadd.f32 0.0, %v7664
      %v7666 = vpop.f32.mrb[0].mxu0
      %v7667 = vpop.f32.mrb[0].mxu0
      %v7668 = vadd.f32 0.0, %v7667
      %v7669 = vpop.f32.mrb[0].mxu0
      %7670 = vmatprep.mubr.bf16.mxu0 0
      %7671 = vmatmul.mubr.bf16.gmra.mrb[0].mxu0 %v7474
      %v7672 = vpop.f32.mrb[0].mxu0
      %v7673 = vadd.f32 0.0, %v7672
      %v7674 = vpop.f32.mrb[0].mxu0
      %v7675 = vpop.f32.mrb[0].mxu0
      %v7676 = vadd.f32 0.0, %v7675
      %v7677 = vpop.f32.mrb[0].mxu0
      %7678 = vmatprep.mubr.bf16.mxu0 0
      %7679 = vmatmul.mubr.bf16.gmra.mrb[0].mxu0 %v7475
      %v7680 = vpop.f32.mrb[0].mxu0
      %v7681 = vadd.f32 0.0, %v7680
      %v7682 = vpop.f32.mrb[0].mxu0
      %v7683 = vpop.f32.mrb[0].mxu0
      %v7684 = vadd.f32 0.0, %v7683
      %v7685 = vpop.f32.mrb[0].mxu0
      %7686 = vmatprep.mubr.bf16.mxu0 0
      %7687 = vmatmul.mubr.bf16.gmra.mrb[0].mxu0 %v7476
      %v7688 = vpop.f32.mrb[0].mxu0
      %v7689 = vadd.f32 0.0, %v7688
      %v7690 = vpop.f32.mrb[0].mxu0
      %v7691 = vpop.f32.mrb[0].mxu0
      %v7692 = vadd.f32 0.0, %v7691
      %v7693 = vpop.f32.mrb[0].mxu0
      %7694 = vmatprep.mubr.bf16.mxu0 0
      %7695 = vmatmul.mubr.bf16.gmra.mrb[0].mxu0 %v7477
      %v7696 = vpop.f32.mrb[0].mxu0
      %v7697 = vadd.f32 0.0, %v7696
      %v7698 = vpop.f32.mrb[0].mxu0
      %v7699 = vpop.f32.mrb[0].mxu0
      %v7700 = vadd.f32 0.0, %v7699
      %v7701 = vpop.f32.mrb[0].mxu0
      %7702 = vdwg.mxu0
      %v7703 = vadd.f32 %v7127, %v7577
      %v7704 = vadd.f32 %v7130, %v7580
      %v7705 = vadd.f32 %v7135, %v7585
      %v7706 = vadd.f32 %v7138, %v7588
      %v7707 = vadd.f32 %v7143, %v7593
      %v7708 = vadd.f32 %v7146, %v7596
      %v7709 = vadd.f32 %v7151, %v7601
      %v7710 = vadd.f32 %v7154, %v7604
      %v7711 = vadd.f32 %v7159, %v7609
      %v7712 = vadd.f32 %v7162, %v7612
      %v7713 = vadd.f32 %v7167, %v7617
      %v7714 = vadd.f32 %v7170, %v7620
      %v7715 = vadd.f32 %v7175, %v7625
      %v7716 = vadd.f32 %v7178, %v7628
      %v7717 = vadd.f32 %v7183, %v7633
      %v7718 = vadd.f32 %v7186, %v7636
      %v7719 = vadd.f32 %v7191, %v7641
      %v7720 = vadd.f32 %v7194, %v7644
      %v7721 = vadd.f32 %v7199, %v7649
      %v7722 = vadd.f32 %v7202, %v7652
      %v7723 = vadd.f32 %v7207, %v7657
      %v7724 = vadd.f32 %v7210, %v7660
      %v7725 = vadd.f32 %v7215, %v7665
      %v7726 = vadd.f32 %v7218, %v7668
      %v7727 = vadd.f32 %v7223, %v7673
      %v7728 = vadd.f32 %v7226, %v7676
      %v7729 = vadd.f32 %v7231, %v7681
      %v7730 = vadd.f32 %v7234, %v7684
      %v7731 = vadd.f32 %v7239, %v7689
      %v7732 = vadd.f32 %v7242, %v7692
      %v7733 = vadd.f32 %v7247, %v7697
      %v7734 = vadd.f32 %v7250, %v7700
      %v7735 = vld [vmem:[%s686] sm:$0xf]
      %v7736 = vld [vmem:[%s686 + $0x4] sm:$0xf]
      %v7737 = vld [vmem:[%s686 + $0xc] sm:$0xf]
      %v7738 = vld [vmem:[%s686 + $0x10] sm:$0xf]
      %v7739 = vld [vmem:[%s686 + $0x18] sm:$0xf]
      %v7740 = vld [vmem:[%s686 + $0x1c] sm:$0xf]
      %v7741 = vld [vmem:[%s686 + $0x24] sm:$0xf]
      %v7742 = vld [vmem:[%s686 + $0x28] sm:$0xf]
      %v7743 = vld [vmem:[%s686 + $0x30] sm:$0xf]
      %v7744 = vld [vmem:[%s686 + $0x34] sm:$0xf]
      %v7745 = vld [vmem:[%s686 + $0x3c] sm:$0xf]
      %v7746 = vld [vmem:[%s686 + $0x40] sm:$0xf]
      %v7747 = vld [vmem:[%s686 + $0x48] sm:$0xf]
      %v7748 = vld [vmem:[%s686 + $0x4c] sm:$0xf]
      %v7749 = vld [vmem:[%s686 + $0x54] sm:$0xf]
      %v7750 = vld [vmem:[%s686 + $0x58] sm:$0xf]
      %v7751 = vld [vmem:[%s686 + $0x60] sm:$0xf]
      %v7752 = vld [vmem:[%s686 + $0x64] sm:$0xf]
      %v7753 = vld [vmem:[%s686 + $0x6c] sm:$0xf]
      %v7754 = vld [vmem:[%s686 + $0x70] sm:$0xf]
      %v7755 = vld [vmem:[%s686 + $0x78] sm:$0xf]
      %v7756 = vld [vmem:[%s686 + $0x7c] sm:$0xf]
      %v7757 = vld [vmem:[%s686 + $0x84] sm:$0xf]
      %v7758 = vld [vmem:[%s686 + $0x88] sm:$0xf]
      %v7759 = vld [vmem:[%s686 + $0x90] sm:$0xf]
      %v7760 = vld [vmem:[%s686 + $0x94] sm:$0xf]
      %v7761 = vld [vmem:[%s686 + $0x9c] sm:$0xf]
      %v7762 = vld [vmem:[%s686 + $0xa0] sm:$0xf]
      %v7763 = vld [vmem:[%s686 + $0xa8] sm:$0xf]
      %v7764 = vld [vmem:[%s686 + $0xac] sm:$0xf]
      %v7765 = vld [vmem:[%s686 + $0xb4] sm:$0xf]
      %v7766 = vld [vmem:[%s686 + $0xb8] sm:$0xf]
      %s7767 = scalar_lea.vmem %s3, 192
      %v7768 = vld [vmem:[%s7767] sm:$0xf]
      %v7769 = vld [vmem:[%s7767 + $0x4] sm:$0xf]
      %v7770 = vld [vmem:[%s7767 + $0x8] sm:$0xf]
      %v7771 = vld [vmem:[%s7767 + $0xc] sm:$0xf]
      %v7772 = vld [vmem:[%s7767 + $0x10] sm:$0xf]
      %v7773 = vld [vmem:[%s7767 + $0x14] sm:$0xf]
      %v7774 = vld [vmem:[%s7767 + $0x18] sm:$0xf]
      %v7775 = vld [vmem:[%s7767 + $0x1c] sm:$0xf]
      %v7776 = vld [vmem:[%s7767 + $0x20] sm:$0xf]
      %v7777 = vld [vmem:[%s7767 + $0x24] sm:$0xf]
      %v7778 = vld [vmem:[%s7767 + $0x28] sm:$0xf]
      %v7779 = vld [vmem:[%s7767 + $0x2c] sm:$0xf]
      %v7780 = vld [vmem:[%s7767 + $0x30] sm:$0xf]
      %v7781 = vld [vmem:[%s7767 + $0x34] sm:$0xf]
      %v7782 = vld [vmem:[%s7767 + $0x38] sm:$0xf]
      %v7783 = vld [vmem:[%s7767 + $0x3c] sm:$0xf]
      %v7816 = vunpack.c.l.b16 %v7735
      %v7817 = vunpack.c.l.b16 %v7736
      %v7818 = vunpack.c.l.b16 %v7737
      %v7819 = vunpack.c.l.b16 %v7738
      %v7820 = vunpack.c.l.b16 %v7739
      %v7821 = vunpack.c.l.b16 %v7740
      %v7822 = vunpack.c.l.b16 %v7741
      %v7823 = vunpack.c.l.b16 %v7742
      %v7824 = vunpack.c.l.b16 %v7743
      %v7825 = vunpack.c.l.b16 %v7744
      %v7826 = vunpack.c.l.b16 %v7745
      %v7827 = vunpack.c.l.b16 %v7746
      %v7828 = vunpack.c.l.b16 %v7747
      %v7829 = vunpack.c.l.b16 %v7748
      %v7830 = vunpack.c.l.b16 %v7749
      %v7831 = vunpack.c.l.b16 %v7750
      %v7832 = vunpack.c.l.b16 %v7751
      %v7833 = vunpack.c.l.b16 %v7752
      %v7834 = vunpack.c.l.b16 %v7753
      %v7835 = vunpack.c.l.b16 %v7754
      %v7836 = vunpack.c.l.b16 %v7755
      %v7837 = vunpack.c.l.b16 %v7756
      %v7838 = vunpack.c.l.b16 %v7757
      %v7839 = vunpack.c.l.b16 %v7758
      %v7840 = vunpack.c.l.b16 %v7759
      %v7841 = vunpack.c.l.b16 %v7760
      %v7842 = vunpack.c.l.b16 %v7761
      %v7843 = vunpack.c.l.b16 %v7762
      %v7844 = vunpack.c.l.b16 %v7763
      %v7845 = vunpack.c.l.b16 %v7764
      %v7846 = vunpack.c.l.b16 %v7765
      %v7847 = vunpack.c.l.b16 %v7766
      %v7848 = vpack.c.b16 %v7817, %v7816
      %v7849 = vpack.c.b16 %v7819, %v7818
      %v7850 = vpack.c.b16 %v7821, %v7820
      %v7851 = vpack.c.b16 %v7823, %v7822
      %v7852 = vpack.c.b16 %v7825, %v7824
      %v7853 = vpack.c.b16 %v7827, %v7826
      %v7854 = vpack.c.b16 %v7829, %v7828
      %v7855 = vpack.c.b16 %v7831, %v7830
      %v7856 = vpack.c.b16 %v7833, %v7832
      %v7857 = vpack.c.b16 %v7835, %v7834
      %v7858 = vpack.c.b16 %v7837, %v7836
      %v7859 = vpack.c.b16 %v7839, %v7838
      %v7860 = vpack.c.b16 %v7841, %v7840
      %v7861 = vpack.c.b16 %v7843, %v7842
      %v7862 = vpack.c.b16 %v7845, %v7844
      %v7863 = vpack.c.b16 %v7847, %v7846
      %v7896 = vunpack.c.l.b16 %v7768
      %v7897 = vunpack.c.l.b16 %v7769
      %v7898 = vunpack.c.l.b16 %v7770
      %v7899 = vunpack.c.l.b16 %v7771
      %v7900 = vunpack.c.l.b16 %v7772
      %v7901 = vunpack.c.l.b16 %v7773
      %v7902 = vunpack.c.l.b16 %v7774
      %v7903 = vunpack.c.l.b16 %v7775
      %v7904 = vunpack.c.l.b16 %v7776
      %v7905 = vunpack.c.l.b16 %v7777
      %v7906 = vunpack.c.l.b16 %v7778
      %v7907 = vunpack.c.l.b16 %v7779
      %v7908 = vunpack.c.l.b16 %v7780
      %v7909 = vunpack.c.l.b16 %v7781
      %v7910 = vunpack.c.l.b16 %v7782
      %v7911 = vunpack.c.l.b16 %v7783
      %v7912 = vpack.c.b16 %v7897, %v7896
      %v7913 = vpack.c.b16 %v7899, %v7898
      %v7914 = vpack.c.b16 %v7901, %v7900
      %v7915 = vpack.c.b16 %v7903, %v7902
      %v7916 = vpack.c.b16 %v7905, %v7904
      %v7917 = vpack.c.b16 %v7907, %v7906
      %v7918 = vpack.c.b16 %v7909, %v7908
      %v7919 = vpack.c.b16 %v7911, %v7910
      %7928 = vmatprep.subr.bf16.mxu0 0
      %7929 = vmatpush1.bf16.msra.mxu0 %v7912
      %7930 = vmatprep.subr.bf16.mxu0 0
      %7931 = vmatpush1.bf16.msra.mxu0 %v7913
      %7932 = vmatprep.subr.bf16.mxu0 0
      %7933 = vmatpush1.bf16.msra.mxu0 %v7914
      %7934 = vmatprep.subr.bf16.mxu0 0
      %7935 = vmatpush1.bf16.msra.mxu0 %v7915
      %7936 = vmatprep.subr.bf16.mxu0 0
      %7937 = vmatpush1.bf16.msra.mxu0 %v7916
      %7938 = vmatprep.subr.bf16.mxu0 0
      %7939 = vmatpush1.bf16.msra.mxu0 %v7917
      %7940 = vmatprep.subr.bf16.mxu0 0
      %7941 = vmatpush1.bf16.msra.mxu0 %v7918
      %7942 = vmatprep.subr.bf16.mxu0 0
      %7943 = vmatpush1.bf16.msra.mxu0 %v7919
      %7944 = vmatprep.subr.bf16.mxu0 0
      %7945 = vmatpush1.bf16.msra.mxu0 0
      %7946 = vmatprep.subr.bf16.mxu0 0
      %7947 = vmatpush1.bf16.msra.mxu0 0
      %7948 = vmatprep.subr.bf16.mxu0 0
      %7949 = vmatpush1.bf16.msra.mxu0 0
      %7950 = vmatprep.subr.bf16.mxu0 0
      %7951 = vmatpush1.bf16.msra.mxu0 0
      %7952 = vmatprep.subr.bf16.mxu0 0
      %7953 = vmatpush1.bf16.msra.mxu0 0
      %7954 = vmatprep.subr.bf16.mxu0 0
      %7955 = vmatpush1.bf16.msra.mxu0 0
      %7956 = vmatprep.subr.bf16.mxu0 0
      %7957 = vmatpush1.bf16.msra.mxu0 0
      %7958 = vmatprep.subr.bf16.mxu0 0
      %7959 = vmatpush1.bf16.msra.mxu0 0
      %7960 = vmatprep.mubr.bf16.mxu0 0
      %7961 = vmatmul.mubr.bf16.gmra.mrb[0].mxu0 %v7848
      %v7962 = vpop.f32.mrb[0].mxu0
      %v7963 = vadd.f32 0.0, %v7962
      %v7964 = vpop.f32.mrb[0].mxu0
      %v7965 = vpop.f32.mrb[0].mxu0
      %v7966 = vadd.f32 0.0, %v7965
      %v7967 = vpop.f32.mrb[0].mxu0
      %7968 = vmatprep.mubr.bf16.mxu0 0
      %7969 = vmatmul.mubr.bf16.gmra.mrb[0].mxu0 %v7849
      %v7970 = vpop.f32.mrb[0].mxu0
      %v7971 = vadd.f32 0.0, %v7970
      %v7972 = vpop.f32.mrb[0].mxu0
      %v7973 = vpop.f32.mrb[0].mxu0
      %v7974 = vadd.f32 0.0, %v7973
      %v7975 = vpop.f32.mrb[0].mxu0
      %7976 = vmatprep.mubr.bf16.mxu0 0
      %7977 = vmatmul.mubr.bf16.gmra.mrb[0].mxu0 %v7850
      %v7978 = vpop.f32.mrb[0].mxu0
      %v7979 = vadd.f32 0.0, %v7978
      %v7980 = vpop.f32.mrb[0].mxu0
      %v7981 = vpop.f32.mrb[0].mxu0
      %v7982 = vadd.f32 0.0, %v7981
      %v7983 = vpop.f32.mrb[0].mxu0
      %7984 = vmatprep.mubr.bf16.mxu0 0
      %7985 = vmatmul.mubr.bf16.gmra.mrb[0].mxu0 %v7851
      %v7986 = vpop.f32.mrb[0].mxu0
      %v7987 = vadd.f32 0.0, %v7986
      %v7988 = vpop.f32.mrb[0].mxu0
      %v7989 = vpop.f32.mrb[0].mxu0
      %v7990 = vadd.f32 0.0, %v7989
      %v7991 = vpop.f32.mrb[0].mxu0
      %7992 = vmatprep.mubr.bf16.mxu0 0
      %7993 = vmatmul.mubr.bf16.gmra.mrb[0].mxu0 %v7852
      %v7994 = vpop.f32.mrb[0].mxu0
      %v7995 = vadd.f32 0.0, %v7994
      %v7996 = vpop.f32.mrb[0].mxu0
      %v7997 = vpop.f32.mrb[0].mxu0
      %v7998 = vadd.f32 0.0, %v7997
      %v7999 = vpop.f32.mrb[0].mxu0
      %8000 = vmatprep.mubr.bf16.mxu0 0
      %8001 = vmatmul.mubr.bf16.gmra.mrb[0].mxu0 %v7853
      %v8002 = vpop.f32.mrb[0].mxu0
      %v8003 = vadd.f32 0.0, %v8002
      %v8004 = vpop.f32.mrb[0].mxu0
      %v8005 = vpop.f32.mrb[0].mxu0
      %v8006 = vadd.f32 0.0, %v8005
      %v8007 = vpop.f32.mrb[0].mxu0
      %8008 = vmatprep.mubr.bf16.mxu0 0
      %8009 = vmatmul.mubr.bf16.gmra.mrb[0].mxu0 %v7854
      %v8010 = vpop.f32.mrb[0].mxu0
      %v8011 = vadd.f32 0.0, %v8010
      %v8012 = vpop.f32.mrb[0].mxu0
      %v8013 = vpop.f32.mrb[0].mxu0
      %v8014 = vadd.f32 0.0, %v8013
      %v8015 = vpop.f32.mrb[0].mxu0
      %8016 = vmatprep.mubr.bf16.mxu0 0
      %8017 = vmatmul.mubr.bf16.gmra.mrb[0].mxu0 %v7855
      %v8018 = vpop.f32.mrb[0].mxu0
      %v8019 = vadd.f32 0.0, %v8018
      %v8020 = vpop.f32.mrb[0].mxu0
      %v8021 = vpop.f32.mrb[0].mxu0
      %v8022 = vadd.f32 0.0, %v8021
      %v8023 = vpop.f32.mrb[0].mxu0
      %8024 = vmatprep.mubr.bf16.mxu0 0
      %8025 = vmatmul.mubr.bf16.gmra.mrb[0].mxu0 %v7856
      %v8026 = vpop.f32.mrb[0].mxu0
      %v8027 = vadd.f32 0.0, %v8026
      %v8028 = vpop.f32.mrb[0].mxu0
      %v8029 = vpop.f32.mrb[0].mxu0
      %v8030 = vadd.f32 0.0, %v8029
      %v8031 = vpop.f32.mrb[0].mxu0
      %8032 = vmatprep.mubr.bf16.mxu0 0
      %8033 = vmatmul.mubr.bf16.gmra.mrb[0].mxu0 %v7857
      %v8034 = vpop.f32.mrb[0].mxu0
      %v8035 = vadd.f32 0.0, %v8034
      %v8036 = vpop.f32.mrb[0].mxu0
      %v8037 = vpop.f32.mrb[0].mxu0
      %v8038 = vadd.f32 0.0, %v8037
      %v8039 = vpop.f32.mrb[0].mxu0
      %8040 = vmatprep.mubr.bf16.mxu0 0
      %8041 = vmatmul.mubr.bf16.gmra.mrb[0].mxu0 %v7858
      %v8042 = vpop.f32.mrb[0].mxu0
      %v8043 = vadd.f32 0.0, %v8042
      %v8044 = vpop.f32.mrb[0].mxu0
      %v8045 = vpop.f32.mrb[0].mxu0
      %v8046 = vadd.f32 0.0, %v8045
      %v8047 = vpop.f32.mrb[0].mxu0
      %8048 = vmatprep.mubr.bf16.mxu0 0
      %8049 = vmatmul.mubr.bf16.gmra.mrb[0].mxu0 %v7859
      %v8050 = vpop.f32.mrb[0].mxu0
      %v8051 = vadd.f32 0.0, %v8050
      %v8052 = vpop.f32.mrb[0].mxu0
      %v8053 = vpop.f32.mrb[0].mxu0
      %v8054 = vadd.f32 0.0, %v8053
      %v8055 = vpop.f32.mrb[0].mxu0
      %8056 = vmatprep.mubr.bf16.mxu0 0
      %8057 = vmatmul.mubr.bf16.gmra.mrb[0].mxu0 %v7860
      %v8058 = vpop.f32.mrb[0].mxu0
      %v8059 = vadd.f32 0.0, %v8058
      %v8060 = vpop.f32.mrb[0].mxu0
      %v8061 = vpop.f32.mrb[0].mxu0
      %v8062 = vadd.f32 0.0, %v8061
      %v8063 = vpop.f32.mrb[0].mxu0
      %8064 = vmatprep.mubr.bf16.mxu0 0
      %8065 = vmatmul.mubr.bf16.gmra.mrb[0].mxu0 %v7861
      %v8066 = vpop.f32.mrb[0].mxu0
      %v8067 = vadd.f32 0.0, %v8066
      %v8068 = vpop.f32.mrb[0].mxu0
      %v8069 = vpop.f32.mrb[0].mxu0
      %v8070 = vadd.f32 0.0, %v8069
      %v8071 = vpop.f32.mrb[0].mxu0
      %8072 = vmatprep.mubr.bf16.mxu0 0
      %8073 = vmatmul.mubr.bf16.gmra.mrb[0].mxu0 %v7862
      %v8074 = vpop.f32.mrb[0].mxu0
      %v8075 = vadd.f32 0.0, %v8074
      %v8076 = vpop.f32.mrb[0].mxu0
      %v8077 = vpop.f32.mrb[0].mxu0
      %v8078 = vadd.f32 0.0, %v8077
      %v8079 = vpop.f32.mrb[0].mxu0
      %8080 = vmatprep.mubr.bf16.mxu0 0
      %8081 = vmatmul.mubr.bf16.gmra.mrb[0].mxu0 %v7863
      %v8082 = vpop.f32.mrb[0].mxu0
      %v8083 = vadd.f32 0.0, %v8082
      %v8084 = vpop.f32.mrb[0].mxu0
      %v8085 = vpop.f32.mrb[0].mxu0
      %v8086 = vadd.f32 0.0, %v8085
      %v8087 = vpop.f32.mrb[0].mxu0
      %8088 = vdwg.mxu0
      %v8089 = vadd.f32 %v7703, %v7963
      %v8090 = vadd.f32 %v7704, %v7966
      %v8091 = vadd.f32 %v7705, %v7971
      %v8092 = vadd.f32 %v7706, %v7974
      %v8093 = vadd.f32 %v7707, %v7979
      %v8094 = vadd.f32 %v7708, %v7982
      %v8095 = vadd.f32 %v7709, %v7987
      %v8096 = vadd.f32 %v7710, %v7990
      %v8097 = vadd.f32 %v7711, %v7995
      %v8098 = vadd.f32 %v7712, %v7998
      %v8099 = vadd.f32 %v7713, %v8003
      %v8100 = vadd.f32 %v7714, %v8006
      %v8101 = vadd.f32 %v7715, %v8011
      %v8102 = vadd.f32 %v7716, %v8014
      %v8103 = vadd.f32 %v7717, %v8019
      %v8104 = vadd.f32 %v7718, %v8022
      %v8105 = vadd.f32 %v7719, %v8027
      %v8106 = vadd.f32 %v7720, %v8030
      %v8107 = vadd.f32 %v7721, %v8035
      %v8108 = vadd.f32 %v7722, %v8038
      %v8109 = vadd.f32 %v7723, %v8043
      %v8110 = vadd.f32 %v7724, %v8046
      %v8111 = vadd.f32 %v7725, %v8051
      %v8112 = vadd.f32 %v7726, %v8054
      %v8113 = vadd.f32 %v7727, %v8059
      %v8114 = vadd.f32 %v7728, %v8062
      %v8115 = vadd.f32 %v7729, %v8067
      %v8116 = vadd.f32 %v7730, %v8070
      %v8117 = vadd.f32 %v7731, %v8075
      %v8118 = vadd.f32 %v7732, %v8078
      %v8119 = vadd.f32 %v7733, %v8083
      %v8120 = vadd.f32 %v7734, %v8086
      %v8121 = vld [vmem:[%s686] sm:$0xf]
      %v8122 = vld [vmem:[%s686 + $0x4] sm:$0xf]
      %v8123 = vld [vmem:[%s686 + $0x8] sm:$0x1]
      %v8124 = vld [vmem:[%s686 + $0xc] sm:$0xf]
      %v8125 = vld [vmem:[%s686 + $0x10] sm:$0xf]
      %v8126 = vld [vmem:[%s686 + $0x14] sm:$0x1]
      %v8127 = vld [vmem:[%s686 + $0x18] sm:$0xf]
      %v8128 = vld [vmem:[%s686 + $0x1c] sm:$0xf]
      %v8129 = vld [vmem:[%s686 + $0x20] sm:$0x1]
      %v8130 = vld [vmem:[%s686 + $0x24] sm:$0xf]
      %v8131 = vld [vmem:[%s686 + $0x28] sm:$0xf]
      %v8132 = vld [vmem:[%s686 + $0x2c] sm:$0x1]
      %v8133 = vld [vmem:[%s686 + $0x30] sm:$0xf]
      %v8134 = vld [vmem:[%s686 + $0x34] sm:$0xf]
      %v8135 = vld [vmem:[%s686 + $0x38] sm:$0x1]
      %v8136 = vld [vmem:[%s686 + $0x3c] sm:$0xf]
      %v8137 = vld [vmem:[%s686 + $0x40] sm:$0xf]
      %v8138 = vld [vmem:[%s686 + $0x44] sm:$0x1]
      %v8139 = vld [vmem:[%s686 + $0x48] sm:$0xf]
      %v8140 = vld [vmem:[%s686 + $0x4c] sm:$0xf]
      %v8141 = vld [vmem:[%s686 + $0x50] sm:$0x1]
      %v8142 = vld [vmem:[%s686 + $0x54] sm:$0xf]
      %v8143 = vld [vmem:[%s686 + $0x58] sm:$0xf]
      %v8144 = vld [vmem:[%s686 + $0x5c] sm:$0x1]
      %v8145 = vld [vmem:[%s686 + $0x60] sm:$0xf]
      %v8146 = vld [vmem:[%s686 + $0x64] sm:$0xf]
      %v8147 = vld [vmem:[%s686 + $0x68] sm:$0x1]
      %v8148 = vld [vmem:[%s686 + $0x6c] sm:$0xf]
      %v8149 = vld [vmem:[%s686 + $0x70] sm:$0xf]
      %v8150 = vld [vmem:[%s686 + $0x74] sm:$0x1]
      %v8151 = vld [vmem:[%s686 + $0x78] sm:$0xf]
      %v8152 = vld [vmem:[%s686 + $0x7c] sm:$0xf]
      %v8153 = vld [vmem:[%s686 + $0x80] sm:$0x1]
      %v8154 = vld [vmem:[%s686 + $0x84] sm:$0xf]
      %v8155 = vld [vmem:[%s686 + $0x88] sm:$0xf]
      %v8156 = vld [vmem:[%s686 + $0x8c] sm:$0x1]
      %v8157 = vld [vmem:[%s686 + $0x90] sm:$0xf]
      %v8158 = vld [vmem:[%s686 + $0x94] sm:$0xf]
      %v8159 = vld [vmem:[%s686 + $0x98] sm:$0x1]
      %v8160 = vld [vmem:[%s686 + $0x9c] sm:$0xf]
      %v8161 = vld [vmem:[%s686 + $0xa0] sm:$0xf]
      %v8162 = vld [vmem:[%s686 + $0xa4] sm:$0x1]
      %v8163 = vld [vmem:[%s686 + $0xa8] sm:$0xf]
      %v8164 = vld [vmem:[%s686 + $0xac] sm:$0xf]
      %v8165 = vld [vmem:[%s686 + $0xb0] sm:$0x1]
      %v8166 = vld [vmem:[%s686 + $0xb4] sm:$0xf]
      %v8167 = vld [vmem:[%s686 + $0xb8] sm:$0xf]
      %v8168 = vld [vmem:[%s686 + $0xbc] sm:$0x1]
      %v8170 = vshrl.u32 %v8121, 16
      %v8172 = vrot.slane %v8170, 4
      %v8173 = vshll.u32 %v8121, 16
      %v8175 = vrot.slane %v8173, 5
      %v8176 = vor.u32 %v8172, %v8175
      %v8177 = vrot.slane %v8176, 4
      %v8179 = vshll.u32 %v8122, 16
      %v8181 = vrot.slane %v8179, 5
      %v8182 = vsel %vm870, %v8177, %v8181
      %v8183 = vshrl.u32 %v8122, 16
      %v8185 = vrot.slane %v8183, 4
      %v8186 = vor.u32 %v8185, %v8181
      %v8187 = vrot.slane %v8186, 4
      %v8189 = vshll.u32 %v8123, 16
      %v8191 = vrot.slane %v8189, 5
      %v8192 = vsel %vm870, %v8187, %v8191
      %v8194 = vshrl.u32 %v8124, 16
      %v8196 = vrot.slane %v8194, 4
      %v8197 = vshll.u32 %v8124, 16
      %v8199 = vrot.slane %v8197, 5
      %v8200 = vor.u32 %v8196, %v8199
      %v8201 = vrot.slane %v8200, 4
      %v8203 = vshll.u32 %v8125, 16
      %v8205 = vrot.slane %v8203, 5
      %v8206 = vsel %vm870, %v8201, %v8205
      %v8207 = vshrl.u32 %v8125, 16
      %v8209 = vrot.slane %v8207, 4
      %v8210 = vor.u32 %v8209, %v8205
      %v8211 = vrot.slane %v8210, 4
      %v8213 = vshll.u32 %v8126, 16
      %v8215 = vrot.slane %v8213, 5
      %v8216 = vsel %vm870, %v8211, %v8215
      %v8218 = vshrl.u32 %v8127, 16
      %v8220 = vrot.slane %v8218, 4
      %v8221 = vshll.u32 %v8127, 16
      %v8223 = vrot.slane %v8221, 5
      %v8224 = vor.u32 %v8220, %v8223
      %v8225 = vrot.slane %v8224, 4
      %v8227 = vshll.u32 %v8128, 16
      %v8229 = vrot.slane %v8227, 5
      %v8230 = vsel %vm870, %v8225, %v8229
      %v8231 = vshrl.u32 %v8128, 16
      %v8233 = vrot.slane %v8231, 4
      %v8234 = vor.u32 %v8233, %v8229
      %v8235 = vrot.slane %v8234, 4
      %v8237 = vshll.u32 %v8129, 16
      %v8239 = vrot.slane %v8237, 5
      %v8240 = vsel %vm870, %v8235, %v8239
      %v8242 = vshrl.u32 %v8130, 16
      %v8244 = vrot.slane %v8242, 4
      %v8245 = vshll.u32 %v8130, 16
      %v8247 = vrot.slane %v8245, 5
      %v8248 = vor.u32 %v8244, %v8247
      %v8249 = vrot.slane %v8248, 4
      %v8251 = vshll.u32 %v8131, 16
      %v8253 = vrot.slane %v8251, 5
      %v8254 = vsel %vm870, %v8249, %v8253
      %v8255 = vshrl.u32 %v8131, 16
      %v8257 = vrot.slane %v8255, 4
      %v8258 = vor.u32 %v8257, %v8253
      %v8259 = vrot.slane %v8258, 4
      %v8261 = vshll.u32 %v8132, 16
      %v8263 = vrot.slane %v8261, 5
      %v8264 = vsel %vm870, %v8259, %v8263
      %v8266 = vshrl.u32 %v8133, 16
      %v8268 = vrot.slane %v8266, 4
      %v8269 = vshll.u32 %v8133, 16
      %v8271 = vrot.slane %v8269, 5
      %v8272 = vor.u32 %v8268, %v8271
      %v8273 = vrot.slane %v8272, 4
      %v8275 = vshll.u32 %v8134, 16
      %v8277 = vrot.slane %v8275, 5
      %v8278 = vsel %vm870, %v8273, %v8277
      %v8279 = vshrl.u32 %v8134, 16
      %v8281 = vrot.slane %v8279, 4
      %v8282 = vor.u32 %v8281, %v8277
      %v8283 = vrot.slane %v8282, 4
      %v8285 = vshll.u32 %v8135, 16
      %v8287 = vrot.slane %v8285, 5
      %v8288 = vsel %vm870, %v8283, %v8287
      %v8290 = vshrl.u32 %v8136, 16
      %v8292 = vrot.slane %v8290, 4
      %v8293 = vshll.u32 %v8136, 16
      %v8295 = vrot.slane %v8293, 5
      %v8296 = vor.u32 %v8292, %v8295
      %v8297 = vrot.slane %v8296, 4
      %v8299 = vshll.u32 %v8137, 16
      %v8301 = vrot.slane %v8299, 5
      %v8302 = vsel %vm870, %v8297, %v8301
      %v8303 = vshrl.u32 %v8137, 16
      %v8305 = vrot.slane %v8303, 4
      %v8306 = vor.u32 %v8305, %v8301
      %v8307 = vrot.slane %v8306, 4
      %v8309 = vshll.u32 %v8138, 16
      %v8311 = vrot.slane %v8309, 5
      %v8312 = vsel %vm870, %v8307, %v8311
      %v8314 = vshrl.u32 %v8139, 16
      %v8316 = vrot.slane %v8314, 4
      %v8317 = vshll.u32 %v8139, 16
      %v8319 = vrot.slane %v8317, 5
      %v8320 = vor.u32 %v8316, %v8319
      %v8321 = vrot.slane %v8320, 4
      %v8323 = vshll.u32 %v8140, 16
      %v8325 = vrot.slane %v8323, 5
      %v8326 = vsel %vm870, %v8321, %v8325
      %v8327 = vshrl.u32 %v8140, 16
      %v8329 = vrot.slane %v8327, 4
      %v8330 = vor.u32 %v8329, %v8325
      %v8331 = vrot.slane %v8330, 4
      %v8333 = vshll.u32 %v8141, 16
      %v8335 = vrot.slane %v8333, 5
      %v8336 = vsel %vm870, %v8331, %v8335
      %v8338 = vshrl.u32 %v8142, 16
      %v8340 = vrot.slane %v8338, 4
      %v8341 = vshll.u32 %v8142, 16
      %v8343 = vrot.slane %v8341, 5
      %v8344 = vor.u32 %v8340, %v8343
      %v8345 = vrot.slane %v8344, 4
      %v8347 = vshll.u32 %v8143, 16
      %v8349 = vrot.slane %v8347, 5
      %v8350 = vsel %vm870, %v8345, %v8349
      %v8351 = vshrl.u32 %v8143, 16
      %v8353 = vrot.slane %v8351, 4
      %v8354 = vor.u32 %v8353, %v8349
      %v8355 = vrot.slane %v8354, 4
      %v8357 = vshll.u32 %v8144, 16
      %v8359 = vrot.slane %v8357, 5
      %v8360 = vsel %vm870, %v8355, %v8359
      %v8362 = vshrl.u32 %v8145, 16
      %v8364 = vrot.slane %v8362, 4
      %v8365 = vshll.u32 %v8145, 16
      %v8367 = vrot.slane %v8365, 5
      %v8368 = vor.u32 %v8364, %v8367
      %v8369 = vrot.slane %v8368, 4
      %v8371 = vshll.u32 %v8146, 16
      %v8373 = vrot.slane %v8371, 5
      %v8374 = vsel %vm870, %v8369, %v8373
      %v8375 = vshrl.u32 %v8146, 16
      %v8377 = vrot.slane %v8375, 4
      %v8378 = vor.u32 %v8377, %v8373
      %v8379 = vrot.slane %v8378, 4
      %v8381 = vshll.u32 %v8147, 16
      %v8383 = vrot.slane %v8381, 5
      %v8384 = vsel %vm870, %v8379, %v8383
      %v8386 = vshrl.u32 %v8148, 16
      %v8388 = vrot.slane %v8386, 4
      %v8389 = vshll.u32 %v8148, 16
      %v8391 = vrot.slane %v8389, 5
      %v8392 = vor.u32 %v8388, %v8391
      %v8393 = vrot.slane %v8392, 4
      %v8395 = vshll.u32 %v8149, 16
      %v8397 = vrot.slane %v8395, 5
      %v8398 = vsel %vm870, %v8393, %v8397
      %v8399 = vshrl.u32 %v8149, 16
      %v8401 = vrot.slane %v8399, 4
      %v8402 = vor.u32 %v8401, %v8397
      %v8403 = vrot.slane %v8402, 4
      %v8405 = vshll.u32 %v8150, 16
      %v8407 = vrot.slane %v8405, 5
      %v8408 = vsel %vm870, %v8403, %v8407
      %v8410 = vshrl.u32 %v8151, 16
      %v8412 = vrot.slane %v8410, 4
      %v8413 = vshll.u32 %v8151, 16
      %v8415 = vrot.slane %v8413, 5
      %v8416 = vor.u32 %v8412, %v8415
      %v8417 = vrot.slane %v8416, 4
      %v8419 = vshll.u32 %v8152, 16
      %v8421 = vrot.slane %v8419, 5
      %v8422 = vsel %vm870, %v8417, %v8421
      %v8423 = vshrl.u32 %v8152, 16
      %v8425 = vrot.slane %v8423, 4
      %v8426 = vor.u32 %v8425, %v8421
      %v8427 = vrot.slane %v8426, 4
      %v8429 = vshll.u32 %v8153, 16
      %v8431 = vrot.slane %v8429, 5
      %v8432 = vsel %vm870, %v8427, %v8431
      %v8434 = vshrl.u32 %v8154, 16
      %v8436 = vrot.slane %v8434, 4
      %v8437 = vshll.u32 %v8154, 16
      %v8439 = vrot.slane %v8437, 5
      %v8440 = vor.u32 %v8436, %v8439
      %v8441 = vrot.slane %v8440, 4
      %v8443 = vshll.u32 %v8155, 16
      %v8445 = vrot.slane %v8443, 5
      %v8446 = vsel %vm870, %v8441, %v8445
      %v8447 = vshrl.u32 %v8155, 16
      %v8449 = vrot.slane %v8447, 4
      %v8450 = vor.u32 %v8449, %v8445
      %v8451 = vrot.slane %v8450, 4
      %v8453 = vshll.u32 %v8156, 16
      %v8455 = vrot.slane %v8453, 5
      %v8456 = vsel %vm870, %v8451, %v8455
      %v8458 = vshrl.u32 %v8157, 16
      %v8460 = vrot.slane %v8458, 4
      %v8461 = vshll.u32 %v8157, 16
      %v8463 = vrot.slane %v8461, 5
      %v8464 = vor.u32 %v8460, %v8463
      %v8465 = vrot.slane %v8464, 4
      %v8467 = vshll.u32 %v8158, 16
      %v8469 = vrot.slane %v8467, 5
      %v8470 = vsel %vm870, %v8465, %v8469
      %v8471 = vshrl.u32 %v8158, 16
      %v8473 = vrot.slane %v8471, 4
      %v8474 = vor.u32 %v8473, %v8469
      %v8475 = vrot.slane %v8474, 4
      %v8477 = vshll.u32 %v8159, 16
      %v8479 = vrot.slane %v8477, 5
      %v8480 = vsel %vm870, %v8475, %v8479
      %v8482 = vshrl.u32 %v8160, 16
      %v8484 = vrot.slane %v8482, 4
      %v8485 = vshll.u32 %v8160, 16
      %v8487 = vrot.slane %v8485, 5
      %v8488 = vor.u32 %v8484, %v8487
      %v8489 = vrot.slane %v8488, 4
      %v8491 = vshll.u32 %v8161, 16
      %v8493 = vrot.slane %v8491, 5
      %v8494 = vsel %vm870, %v8489, %v8493
      %v8495 = vshrl.u32 %v8161, 16
      %v8497 = vrot.slane %v8495, 4
      %v8498 = vor.u32 %v8497, %v8493
      %v8499 = vrot.slane %v8498, 4
      %v8501 = vshll.u32 %v8162, 16
      %v8503 = vrot.slane %v8501, 5
      %v8504 = vsel %vm870, %v8499, %v8503
      %v8506 = vshrl.u32 %v8163, 16
      %v8508 = vrot.slane %v8506, 4
      %v8509 = vshll.u32 %v8163, 16
      %v8511 = vrot.slane %v8509, 5
      %v8512 = vor.u32 %v8508, %v8511
      %v8513 = vrot.slane %v8512, 4
      %v8515 = vshll.u32 %v8164, 16
      %v8517 = vrot.slane %v8515, 5
      %v8518 = vsel %vm870, %v8513, %v8517
      %v8519 = vshrl.u32 %v8164, 16
      %v8521 = vrot.slane %v8519, 4
      %v8522 = vor.u32 %v8521, %v8517
      %v8523 = vrot.slane %v8522, 4
      %v8525 = vshll.u32 %v8165, 16
      %v8527 = vrot.slane %v8525, 5
      %v8528 = vsel %vm870, %v8523, %v8527
      %v8530 = vshrl.u32 %v8166, 16
      %v8532 = vrot.slane %v8530, 4
      %v8533 = vshll.u32 %v8166, 16
      %v8535 = vrot.slane %v8533, 5
      %v8536 = vor.u32 %v8532, %v8535
      %v8537 = vrot.slane %v8536, 4
      %v8539 = vshll.u32 %v8167, 16
      %v8541 = vrot.slane %v8539, 5
      %v8542 = vsel %vm870, %v8537, %v8541
      %v8543 = vshrl.u32 %v8167, 16
      %v8545 = vrot.slane %v8543, 4
      %v8546 = vor.u32 %v8545, %v8541
      %v8547 = vrot.slane %v8546, 4
      %v8549 = vshll.u32 %v8168, 16
      %v8551 = vrot.slane %v8549, 5
      %v8552 = vsel %vm870, %v8547, %v8551
      %s8553 = scalar_lea.vmem %s3, 256
      %v8554 = vld [vmem:[%s8553] sm:$0xf]
      %v8555 = vld [vmem:[%s8553 + $0x4] sm:$0xf]
      %v8556 = vld [vmem:[%s8553 + $0x8] sm:$0xf]
      %v8557 = vld [vmem:[%s8553 + $0xc] sm:$0xf]
      %v8558 = vld [vmem:[%s8553 + $0x10] sm:$0xf]
      %v8559 = vld [vmem:[%s8553 + $0x14] sm:$0xf]
      %v8560 = vld [vmem:[%s8553 + $0x18] sm:$0xf]
      %v8561 = vld [vmem:[%s8553 + $0x1c] sm:$0xf]
      %v8562 = vld [vmem:[%s8553 + $0x20] sm:$0xf]
      %v8563 = vld [vmem:[%s8553 + $0x24] sm:$0xf]
      %v8564 = vld [vmem:[%s8553 + $0x28] sm:$0xf]
      %v8565 = vld [vmem:[%s8553 + $0x2c] sm:$0xf]
      %v8566 = vld [vmem:[%s8553 + $0x30] sm:$0xf]
      %v8567 = vld [vmem:[%s8553 + $0x34] sm:$0xf]
      %v8568 = vld [vmem:[%s8553 + $0x38] sm:$0xf]
      %v8569 = vld [vmem:[%s8553 + $0x3c] sm:$0xf]
      %v8570 = vunpack.c.l.b16 %v8182
      %v8571 = vunpack.c.l.b16 %v8192
      %v8572 = vunpack.c.l.b16 %v8206
      %v8573 = vunpack.c.l.b16 %v8216
      %v8574 = vunpack.c.l.b16 %v8230
      %v8575 = vunpack.c.l.b16 %v8240
      %v8576 = vunpack.c.l.b16 %v8254
      %v8577 = vunpack.c.l.b16 %v8264
      %v8578 = vunpack.c.l.b16 %v8278
      %v8579 = vunpack.c.l.b16 %v8288
      %v8580 = vunpack.c.l.b16 %v8302
      %v8581 = vunpack.c.l.b16 %v8312
      %v8582 = vunpack.c.l.b16 %v8326
      %v8583 = vunpack.c.l.b16 %v8336
      %v8584 = vunpack.c.l.b16 %v8350
      %v8585 = vunpack.c.l.b16 %v8360
      %v8586 = vunpack.c.l.b16 %v8374
      %v8587 = vunpack.c.l.b16 %v8384
      %v8588 = vunpack.c.l.b16 %v8398
      %v8589 = vunpack.c.l.b16 %v8408
      %v8590 = vunpack.c.l.b16 %v8422
      %v8591 = vunpack.c.l.b16 %v8432
      %v8592 = vunpack.c.l.b16 %v8446
      %v8593 = vunpack.c.l.b16 %v8456
      %v8594 = vunpack.c.l.b16 %v8470
      %v8595 = vunpack.c.l.b16 %v8480
      %v8596 = vunpack.c.l.b16 %v8494
      %v8597 = vunpack.c.l.b16 %v8504
      %v8598 = vunpack.c.l.b16 %v8518
      %v8599 = vunpack.c.l.b16 %v8528
      %v8600 = vunpack.c.l.b16 %v8542
      %v8601 = vunpack.c.l.b16 %v8552
      %v8602 = vpack.c.b16 %v8571, %v8570
      %v8603 = vpack.c.b16 %v8573, %v8572
      %v8604 = vpack.c.b16 %v8575, %v8574
      %v8605 = vpack.c.b16 %v8577, %v8576
      %v8606 = vpack.c.b16 %v8579, %v8578
      %v8607 = vpack.c.b16 %v8581, %v8580
      %v8608 = vpack.c.b16 %v8583, %v8582
      %v8609 = vpack.c.b16 %v8585, %v8584
      %v8610 = vpack.c.b16 %v8587, %v8586
      %v8611 = vpack.c.b16 %v8589, %v8588
      %v8612 = vpack.c.b16 %v8591, %v8590
      %v8613 = vpack.c.b16 %v8593, %v8592
      %v8614 = vpack.c.b16 %v8595, %v8594
      %v8615 = vpack.c.b16 %v8597, %v8596
      %v8616 = vpack.c.b16 %v8599, %v8598
      %v8617 = vpack.c.b16 %v8601, %v8600
      %v8650 = vunpack.c.l.b16 %v8554
      %v8651 = vunpack.c.l.b16 %v8555
      %v8652 = vunpack.c.l.b16 %v8556
      %v8653 = vunpack.c.l.b16 %v8557
      %v8654 = vunpack.c.l.b16 %v8558
      %v8655 = vunpack.c.l.b16 %v8559
      %v8656 = vunpack.c.l.b16 %v8560
      %v8657 = vunpack.c.l.b16 %v8561
      %v8658 = vunpack.c.l.b16 %v8562
      %v8659 = vunpack.c.l.b16 %v8563
      %v8660 = vunpack.c.l.b16 %v8564
      %v8661 = vunpack.c.l.b16 %v8565
      %v8662 = vunpack.c.l.b16 %v8566
      %v8663 = vunpack.c.l.b16 %v8567
      %v8664 = vunpack.c.l.b16 %v8568
      %v8665 = vunpack.c.l.b16 %v8569
      %v8666 = vpack.c.b16 %v8651, %v8650
      %v8667 = vpack.c.b16 %v8653, %v8652
      %v8668 = vpack.c.b16 %v8655, %v8654
      %v8669 = vpack.c.b16 %v8657, %v8656
      %v8670 = vpack.c.b16 %v8659, %v8658
      %v8671 = vpack.c.b16 %v8661, %v8660
      %v8672 = vpack.c.b16 %v8663, %v8662
      %v8673 = vpack.c.b16 %v8665, %v8664
      %8682 = vmatprep.subr.bf16.mxu0 0
      %8683 = vmatpush1.bf16.msra.mxu0 %v8666
      %8684 = vmatprep.subr.bf16.mxu0 0
      %8685 = vmatpush1.bf16.msra.mxu0 %v8667
      %8686 = vmatprep.subr.bf16.mxu0 0
      %8687 = vmatpush1.bf16.msra.mxu0 %v8668
      %8688 = vmatprep.subr.bf16.mxu0 0
      %8689 = vmatpush1.bf16.msra.mxu0 %v8669
      %8690 = vmatprep.subr.bf16.mxu0 0
      %8691 = vmatpush1.bf16.msra.mxu0 %v8670
      %8692 = vmatprep.subr.bf16.mxu0 0
      %8693 = vmatpush1.bf16.msra.mxu0 %v8671
      %8694 = vmatprep.subr.bf16.mxu0 0
      %8695 = vmatpush1.bf16.msra.mxu0 %v8672
      %8696 = vmatprep.subr.bf16.mxu0 0
      %8697 = vmatpush1.bf16.msra.mxu0 %v8673
      %8698 = vmatprep.subr.bf16.mxu0 0
      %8699 = vmatpush1.bf16.msra.mxu0 0
      %8700 = vmatprep.subr.bf16.mxu0 0
      %8701 = vmatpush1.bf16.msra.mxu0 0
      %8702 = vmatprep.subr.bf16.mxu0 0
      %8703 = vmatpush1.bf16.msra.mxu0 0
      %8704 = vmatprep.subr.bf16.mxu0 0
      %8705 = vmatpush1.bf16.msra.mxu0 0
      %8706 = vmatprep.subr.bf16.mxu0 0
      %8707 = vmatpush1.bf16.msra.mxu0 0
      %8708 = vmatprep.subr.bf16.mxu0 0
      %8709 = vmatpush1.bf16.msra.mxu0 0
      %8710 = vmatprep.subr.bf16.mxu0 0
      %8711 = vmatpush1.bf16.msra.mxu0 0
      %8712 = vmatprep.subr.bf16.mxu0 0
      %8713 = vmatpush1.bf16.msra.mxu0 0
      %8714 = vmatprep.mubr.bf16.mxu0 0
      %8715 = vmatmul.mubr.bf16.gmra.mrb[0].mxu0 %v8602
      %v8716 = vpop.f32.mrb[0].mxu0
      %v8717 = vadd.f32 0.0, %v8716
      %v8718 = vpop.f32.mrb[0].mxu0
      %v8719 = vpop.f32.mrb[0].mxu0
      %v8720 = vadd.f32 0.0, %v8719
      %v8721 = vpop.f32.mrb[0].mxu0
      %8722 = vmatprep.mubr.bf16.mxu0 0
      %8723 = vmatmul.mubr.bf16.gmra.mrb[0].mxu0 %v8603
      %v8724 = vpop.f32.mrb[0].mxu0
      %v8725 = vadd.f32 0.0, %v8724
      %v8726 = vpop.f32.mrb[0].mxu0
      %v8727 = vpop.f32.mrb[0].mxu0
      %v8728 = vadd.f32 0.0, %v8727
      %v8729 = vpop.f32.mrb[0].mxu0
      %8730 = vmatprep.mubr.bf16.mxu0 0
      %8731 = vmatmul.mubr.bf16.gmra.mrb[0].mxu0 %v8604
      %v8732 = vpop.f32.mrb[0].mxu0
      %v8733 = vadd.f32 0.0, %v8732
      %v8734 = vpop.f32.mrb[0].mxu0
      %v8735 = vpop.f32.mrb[0].mxu0
      %v8736 = vadd.f32 0.0, %v8735
      %v8737 = vpop.f32.mrb[0].mxu0
      %8738 = vmatprep.mubr.bf16.mxu0 0
      %8739 = vmatmul.mubr.bf16.gmra.mrb[0].mxu0 %v8605
      %v8740 = vpop.f32.mrb[0].mxu0
      %v8741 = vadd.f32 0.0, %v8740
      %v8742 = vpop.f32.mrb[0].mxu0
      %v8743 = vpop.f32.mrb[0].mxu0
      %v8744 = vadd.f32 0.0, %v8743
      %v8745 = vpop.f32.mrb[0].mxu0
      %8746 = vmatprep.mubr.bf16.mxu0 0
      %8747 = vmatmul.mubr.bf16.gmra.mrb[0].mxu0 %v8606
      %v8748 = vpop.f32.mrb[0].mxu0
      %v8749 = vadd.f32 0.0, %v8748
      %v8750 = vpop.f32.mrb[0].mxu0
      %v8751 = vpop.f32.mrb[0].mxu0
      %v8752 = vadd.f32 0.0, %v8751
      %v8753 = vpop.f32.mrb[0].mxu0
      %8754 = vmatprep.mubr.bf16.mxu0 0
      %8755 = vmatmul.mubr.bf16.gmra.mrb[0].mxu0 %v8607
      %v8756 = vpop.f32.mrb[0].mxu0
      %v8757 = vadd.f32 0.0, %v8756
      %v8758 = vpop.f32.mrb[0].mxu0
      %v8759 = vpop.f32.mrb[0].mxu0
      %v8760 = vadd.f32 0.0, %v8759
      %v8761 = vpop.f32.mrb[0].mxu0
      %8762 = vmatprep.mubr.bf16.mxu0 0
      %8763 = vmatmul.mubr.bf16.gmra.mrb[0].mxu0 %v8608
      %v8764 = vpop.f32.mrb[0].mxu0
      %v8765 = vadd.f32 0.0, %v8764
      %v8766 = vpop.f32.mrb[0].mxu0
      %v8767 = vpop.f32.mrb[0].mxu0
      %v8768 = vadd.f32 0.0, %v8767
      %v8769 = vpop.f32.mrb[0].mxu0
      %8770 = vmatprep.mubr.bf16.mxu0 0
      %8771 = vmatmul.mubr.bf16.gmra.mrb[0].mxu0 %v8609
      %v8772 = vpop.f32.mrb[0].mxu0
      %v8773 = vadd.f32 0.0, %v8772
      %v8774 = vpop.f32.mrb[0].mxu0
      %v8775 = vpop.f32.mrb[0].mxu0
      %v8776 = vadd.f32 0.0, %v8775
      %v8777 = vpop.f32.mrb[0].mxu0
      %8778 = vmatprep.mubr.bf16.mxu0 0
      %8779 = vmatmul.mubr.bf16.gmra.mrb[0].mxu0 %v8610
      %v8780 = vpop.f32.mrb[0].mxu0
      %v8781 = vadd.f32 0.0, %v8780
      %v8782 = vpop.f32.mrb[0].mxu0
      %v8783 = vpop.f32.mrb[0].mxu0
      %v8784 = vadd.f32 0.0, %v8783
      %v8785 = vpop.f32.mrb[0].mxu0
      %8786 = vmatprep.mubr.bf16.mxu0 0
      %8787 = vmatmul.mubr.bf16.gmra.mrb[0].mxu0 %v8611
      %v8788 = vpop.f32.mrb[0].mxu0
      %v8789 = vadd.f32 0.0, %v8788
      %v8790 = vpop.f32.mrb[0].mxu0
      %v8791 = vpop.f32.mrb[0].mxu0
      %v8792 = vadd.f32 0.0, %v8791
      %v8793 = vpop.f32.mrb[0].mxu0
      %8794 = vmatprep.mubr.bf16.mxu0 0
      %8795 = vmatmul.mubr.bf16.gmra.mrb[0].mxu0 %v8612
      %v8796 = vpop.f32.mrb[0].mxu0
      %v8797 = vadd.f32 0.0, %v8796
      %v8798 = vpop.f32.mrb[0].mxu0
      %v8799 = vpop.f32.mrb[0].mxu0
      %v8800 = vadd.f32 0.0, %v8799
      %v8801 = vpop.f32.mrb[0].mxu0
      %8802 = vmatprep.mubr.bf16.mxu0 0
      %8803 = vmatmul.mubr.bf16.gmra.mrb[0].mxu0 %v8613
      %v8804 = vpop.f32.mrb[0].mxu0
      %v8805 = vadd.f32 0.0, %v8804
      %v8806 = vpop.f32.mrb[0].mxu0
      %v8807 = vpop.f32.mrb[0].mxu0
      %v8808 = vadd.f32 0.0, %v8807
      %v8809 = vpop.f32.mrb[0].mxu0
      %8810 = vmatprep.mubr.bf16.mxu0 0
      %8811 = vmatmul.mubr.bf16.gmra.mrb[0].mxu0 %v8614
      %v8812 = vpop.f32.mrb[0].mxu0
      %v8813 = vadd.f32 0.0, %v8812
      %v8814 = vpop.f32.mrb[0].mxu0
      %v8815 = vpop.f32.mrb[0].mxu0
      %v8816 = vadd.f32 0.0, %v8815
      %v8817 = vpop.f32.mrb[0].mxu0
      %8818 = vmatprep.mubr.bf16.mxu0 0
      %8819 = vmatmul.mubr.bf16.gmra.mrb[0].mxu0 %v8615
      %v8820 = vpop.f32.mrb[0].mxu0
      %v8821 = vadd.f32 0.0, %v8820
      %v8822 = vpop.f32.mrb[0].mxu0
      %v8823 = vpop.f32.mrb[0].mxu0
      %v8824 = vadd.f32 0.0, %v8823
      %v8825 = vpop.f32.mrb[0].mxu0
      %8826 = vmatprep.mubr.bf16.mxu0 0
      %8827 = vmatmul.mubr.bf16.gmra.mrb[0].mxu0 %v8616
      %v8828 = vpop.f32.mrb[0].mxu0
      %v8829 = vadd.f32 0.0, %v8828
      %v8830 = vpop.f32.mrb[0].mxu0
      %v8831 = vpop.f32.mrb[0].mxu0
      %v8832 = vadd.f32 0.0, %v8831
      %v8833 = vpop.f32.mrb[0].mxu0
      %8834 = vmatprep.mubr.bf16.mxu0 0
      %8835 = vmatmul.mubr.bf16.gmra.mrb[0].mxu0 %v8617
      %v8836 = vpop.f32.mrb[0].mxu0
      %v8837 = vadd.f32 0.0, %v8836
      %v8838 = vpop.f32.mrb[0].mxu0
      %v8839 = vpop.f32.mrb[0].mxu0
      %v8840 = vadd.f32 0.0, %v8839
      %v8841 = vpop.f32.mrb[0].mxu0
      %8842 = vdwg.mxu0
      %v8843 = vadd.f32 %v8089, %v8717
      %v8844 = vadd.f32 %v8090, %v8720
      %v8845 = vadd.f32 %v8091, %v8725
      %v8846 = vadd.f32 %v8092, %v8728
      %v8847 = vadd.f32 %v8093, %v8733
      %v8848 = vadd.f32 %v8094, %v8736
      %v8849 = vadd.f32 %v8095, %v8741
      %v8850 = vadd.f32 %v8096, %v8744
      %v8851 = vadd.f32 %v8097, %v8749
      %v8852 = vadd.f32 %v8098, %v8752
      %v8853 = vadd.f32 %v8099, %v8757
      %v8854 = vadd.f32 %v8100, %v8760
      %v8855 = vadd.f32 %v8101, %v8765
      %v8856 = vadd.f32 %v8102, %v8768
      %v8857 = vadd.f32 %v8103, %v8773
      %v8858 = vadd.f32 %v8104, %v8776
      %v8859 = vadd.f32 %v8105, %v8781
      %v8860 = vadd.f32 %v8106, %v8784
      %v8861 = vadd.f32 %v8107, %v8789
      %v8862 = vadd.f32 %v8108, %v8792
      %v8863 = vadd.f32 %v8109, %v8797
      %v8864 = vadd.f32 %v8110, %v8800
      %v8865 = vadd.f32 %v8111, %v8805
      %v8866 = vadd.f32 %v8112, %v8808
      %v8867 = vadd.f32 %v8113, %v8813
      %v8868 = vadd.f32 %v8114, %v8816
      %v8869 = vadd.f32 %v8115, %v8821
      %v8870 = vadd.f32 %v8116, %v8824
      %v8871 = vadd.f32 %v8117, %v8829
      %v8872 = vadd.f32 %v8118, %v8832
      %v8873 = vadd.f32 %v8119, %v8837
      %v8874 = vadd.f32 %v8120, %v8840
      %v8875 = vld [vmem:[%s686] sm:$0xe]
      %v8876 = vld [vmem:[%s686 + $0xc] sm:$0xe]
      %v8877 = vld [vmem:[%s686 + $0x18] sm:$0xe]
      %v8878 = vld [vmem:[%s686 + $0x24] sm:$0xe]
      %v8879 = vld [vmem:[%s686 + $0x30] sm:$0xe]
      %v8880 = vld [vmem:[%s686 + $0x3c] sm:$0xe]
      %v8881 = vld [vmem:[%s686 + $0x48] sm:$0xe]
      %v8882 = vld [vmem:[%s686 + $0x54] sm:$0xe]
      %v8883 = vld [vmem:[%s686 + $0x60] sm:$0xe]
      %v8884 = vld [vmem:[%s686 + $0x6c] sm:$0xe]
      %v8885 = vld [vmem:[%s686 + $0x78] sm:$0xe]
      %v8886 = vld [vmem:[%s686 + $0x84] sm:$0xe]
      %v8887 = vld [vmem:[%s686 + $0x90] sm:$0xe]
      %v8888 = vld [vmem:[%s686 + $0x9c] sm:$0xe]
      %v8889 = vld [vmem:[%s686 + $0xa8] sm:$0xe]
      %v8890 = vld [vmem:[%s686 + $0xb4] sm:$0xe]
      %v8939 = vrot.slane %v8875, 5
      %v8940 = vrot.slane %v8939, 4
      %v8941 = vrot.slane %v8122, 5
      %v8942 = vsel %vm1900, %v8940, %v8941
      %v8943 = vrot.slane %v8941, 4
      %v8944 = vrot.slane %v8123, 5
      %v8945 = vsel %vm1900, %v8943, %v8944
      %v8946 = vrot.slane %v8876, 5
      %v8947 = vrot.slane %v8946, 4
      %v8948 = vrot.slane %v8125, 5
      %v8949 = vsel %vm1900, %v8947, %v8948
      %v8950 = vrot.slane %v8948, 4
      %v8951 = vrot.slane %v8126, 5
      %v8952 = vsel %vm1900, %v8950, %v8951
      %v8953 = vrot.slane %v8877, 5
      %v8954 = vrot.slane %v8953, 4
      %v8955 = vrot.slane %v8128, 5
      %v8956 = vsel %vm1900, %v8954, %v8955
      %v8957 = vrot.slane %v8955, 4
      %v8958 = vrot.slane %v8129, 5
      %v8959 = vsel %vm1900, %v8957, %v8958
      %v8960 = vrot.slane %v8878, 5
      %v8961 = vrot.slane %v8960, 4
      %v8962 = vrot.slane %v8131, 5
      %v8963 = vsel %vm1900, %v8961, %v8962
      %v8964 = vrot.slane %v8962, 4
      %v8965 = vrot.slane %v8132, 5
      %v8966 = vsel %vm1900, %v8964, %v8965
      %v8967 = vrot.slane %v8879, 5
      %v8968 = vrot.slane %v8967, 4
      %v8969 = vrot.slane %v8134, 5
      %v8970 = vsel %vm1900, %v8968, %v8969
      %v8971 = vrot.slane %v8969, 4
      %v8972 = vrot.slane %v8135, 5
      %v8973 = vsel %vm1900, %v8971, %v8972
      %v8974 = vrot.slane %v8880, 5
      %v8975 = vrot.slane %v8974, 4
      %v8976 = vrot.slane %v8137, 5
      %v8977 = vsel %vm1900, %v8975, %v8976
      %v8978 = vrot.slane %v8976, 4
      %v8979 = vrot.slane %v8138, 5
      %v8980 = vsel %vm1900, %v8978, %v8979
      %v8981 = vrot.slane %v8881, 5
      %v8982 = vrot.slane %v8981, 4
      %v8983 = vrot.slane %v8140, 5
      %v8984 = vsel %vm1900, %v8982, %v8983
      %v8985 = vrot.slane %v8983, 4
      %v8986 = vrot.slane %v8141, 5
      %v8987 = vsel %vm1900, %v8985, %v8986
      %v8988 = vrot.slane %v8882, 5
      %v8989 = vrot.slane %v8988, 4
      %v8990 = vrot.slane %v8143, 5
      %v8991 = vsel %vm1900, %v8989, %v8990
      %v8992 = vrot.slane %v8990, 4
      %v8993 = vrot.slane %v8144, 5
      %v8994 = vsel %vm1900, %v8992, %v8993
      %v8995 = vrot.slane %v8883, 5
      %v8996 = vrot.slane %v8995, 4
      %v8997 = vrot.slane %v8146, 5
      %v8998 = vsel %vm1900, %v8996, %v8997
      %v8999 = vrot.slane %v8997, 4
      %v9000 = vrot.slane %v8147, 5
      %v9001 = vsel %vm1900, %v8999, %v9000
      %v9002 = vrot.slane %v8884, 5
      %v9003 = vrot.slane %v9002, 4
      %v9004 = vrot.slane %v8149, 5
      %v9005 = vsel %vm1900, %v9003, %v9004
      %v9006 = vrot.slane %v9004, 4
      %v9007 = vrot.slane %v8150, 5
      %v9008 = vsel %vm1900, %v9006, %v9007
      %v9009 = vrot.slane %v8885, 5
      %v9010 = vrot.slane %v9009, 4
      %v9011 = vrot.slane %v8152, 5
      %v9012 = vsel %vm1900, %v9010, %v9011
      %v9013 = vrot.slane %v9011, 4
      %v9014 = vrot.slane %v8153, 5
      %v9015 = vsel %vm1900, %v9013, %v9014
      %v9016 = vrot.slane %v8886, 5
      %v9017 = vrot.slane %v9016, 4
      %v9018 = vrot.slane %v8155, 5
      %v9019 = vsel %vm1900, %v9017, %v9018
      %v9020 = vrot.slane %v9018, 4
      %v9021 = vrot.slane %v8156, 5
      %v9022 = vsel %vm1900, %v9020, %v9021
      %v9023 = vrot.slane %v8887, 5
      %v9024 = vrot.slane %v9023, 4
      %v9025 = vrot.slane %v8158, 5
      %v9026 = vsel %vm1900, %v9024, %v9025
      %v9027 = vrot.slane %v9025, 4
      %v9028 = vrot.slane %v8159, 5
      %v9029 = vsel %vm1900, %v9027, %v9028
      %v9030 = vrot.slane %v8888, 5
      %v9031 = vrot.slane %v9030, 4
      %v9032 = vrot.slane %v8161, 5
      %v9033 = vsel %vm1900, %v9031, %v9032
      %v9034 = vrot.slane %v9032, 4
      %v9035 = vrot.slane %v8162, 5
      %v9036 = vsel %vm1900, %v9034, %v9035
      %v9037 = vrot.slane %v8889, 5
      %v9038 = vrot.slane %v9037, 4
      %v9039 = vrot.slane %v8164, 5
      %v9040 = vsel %vm1900, %v9038, %v9039
      %v9041 = vrot.slane %v9039, 4
      %v9042 = vrot.slane %v8165, 5
      %v9043 = vsel %vm1900, %v9041, %v9042
      %v9044 = vrot.slane %v8890, 5
      %v9045 = vrot.slane %v9044, 4
      %v9046 = vrot.slane %v8167, 5
      %v9047 = vsel %vm1900, %v9045, %v9046
      %v9048 = vrot.slane %v9046, 4
      %v9049 = vrot.slane %v8168, 5
      %v9050 = vsel %vm1900, %v9048, %v9049
      %s9051 = scalar_lea.vmem %s3, 320
      %v9052 = vld [vmem:[%s9051] sm:$0xf]
      %v9053 = vld [vmem:[%s9051 + $0x4] sm:$0xf]
      %v9054 = vld [vmem:[%s9051 + $0x8] sm:$0xf]
      %v9055 = vld [vmem:[%s9051 + $0xc] sm:$0xf]
      %v9056 = vld [vmem:[%s9051 + $0x10] sm:$0xf]
      %v9057 = vld [vmem:[%s9051 + $0x14] sm:$0xf]
      %v9058 = vld [vmem:[%s9051 + $0x18] sm:$0xf]
      %v9059 = vld [vmem:[%s9051 + $0x1c] sm:$0xf]
      %v9060 = vld [vmem:[%s9051 + $0x20] sm:$0xf]
      %v9061 = vld [vmem:[%s9051 + $0x24] sm:$0xf]
      %v9062 = vld [vmem:[%s9051 + $0x28] sm:$0xf]
      %v9063 = vld [vmem:[%s9051 + $0x2c] sm:$0xf]
      %v9064 = vld [vmem:[%s9051 + $0x30] sm:$0xf]
      %v9065 = vld [vmem:[%s9051 + $0x34] sm:$0xf]
      %v9066 = vld [vmem:[%s9051 + $0x38] sm:$0xf]
      %v9067 = vld [vmem:[%s9051 + $0x3c] sm:$0xf]
      %v9068 = vunpack.c.l.b16 %v8942
      %v9069 = vunpack.c.l.b16 %v8945
      %v9070 = vunpack.c.l.b16 %v8949
      %v9071 = vunpack.c.l.b16 %v8952
      %v9072 = vunpack.c.l.b16 %v8956
      %v9073 = vunpack.c.l.b16 %v8959
      %v9074 = vunpack.c.l.b16 %v8963
      %v9075 = vunpack.c.l.b16 %v8966
      %v9076 = vunpack.c.l.b16 %v8970
      %v9077 = vunpack.c.l.b16 %v8973
      %v9078 = vunpack.c.l.b16 %v8977
      %v9079 = vunpack.c.l.b16 %v8980
      %v9080 = vunpack.c.l.b16 %v8984
      %v9081 = vunpack.c.l.b16 %v8987
      %v9082 = vunpack.c.l.b16 %v8991
      %v9083 = vunpack.c.l.b16 %v8994
      %v9084 = vunpack.c.l.b16 %v8998
      %v9085 = vunpack.c.l.b16 %v9001
      %v9086 = vunpack.c.l.b16 %v9005
      %v9087 = vunpack.c.l.b16 %v9008
      %v9088 = vunpack.c.l.b16 %v9012
      %v9089 = vunpack.c.l.b16 %v9015
      %v9090 = vunpack.c.l.b16 %v9019
      %v9091 = vunpack.c.l.b16 %v9022
      %v9092 = vunpack.c.l.b16 %v9026
      %v9093 = vunpack.c.l.b16 %v9029
      %v9094 = vunpack.c.l.b16 %v9033
      %v9095 = vunpack.c.l.b16 %v9036
      %v9096 = vunpack.c.l.b16 %v9040
      %v9097 = vunpack.c.l.b16 %v9043
      %v9098 = vunpack.c.l.b16 %v9047
      %v9099 = vunpack.c.l.b16 %v9050
      %v9100 = vpack.c.b16 %v9069, %v9068
      %v9101 = vpack.c.b16 %v9071, %v9070
      %v9102 = vpack.c.b16 %v9073, %v9072
      %v9103 = vpack.c.b16 %v9075, %v9074
      %v9104 = vpack.c.b16 %v9077, %v9076
      %v9105 = vpack.c.b16 %v9079, %v9078
      %v9106 = vpack.c.b16 %v9081, %v9080
      %v9107 = vpack.c.b16 %v9083, %v9082
      %v9108 = vpack.c.b16 %v9085, %v9084
      %v9109 = vpack.c.b16 %v9087, %v9086
      %v9110 = vpack.c.b16 %v9089, %v9088
      %v9111 = vpack.c.b16 %v9091, %v9090
      %v9112 = vpack.c.b16 %v9093, %v9092
      %v9113 = vpack.c.b16 %v9095, %v9094
      %v9114 = vpack.c.b16 %v9097, %v9096
      %v9115 = vpack.c.b16 %v9099, %v9098
      %v9148 = vunpack.c.l.b16 %v9052
      %v9149 = vunpack.c.l.b16 %v9053
      %v9150 = vunpack.c.l.b16 %v9054
      %v9151 = vunpack.c.l.b16 %v9055
      %v9152 = vunpack.c.l.b16 %v9056
      %v9153 = vunpack.c.l.b16 %v9057
      %v9154 = vunpack.c.l.b16 %v9058
      %v9155 = vunpack.c.l.b16 %v9059
      %v9156 = vunpack.c.l.b16 %v9060
      %v9157 = vunpack.c.l.b16 %v9061
      %v9158 = vunpack.c.l.b16 %v9062
      %v9159 = vunpack.c.l.b16 %v9063
      %v9160 = vunpack.c.l.b16 %v9064
      %v9161 = vunpack.c.l.b16 %v9065
      %v9162 = vunpack.c.l.b16 %v9066
      %v9163 = vunpack.c.l.b16 %v9067
      %v9164 = vpack.c.b16 %v9149, %v9148
      %v9165 = vpack.c.b16 %v9151, %v9150
      %v9166 = vpack.c.b16 %v9153, %v9152
      %v9167 = vpack.c.b16 %v9155, %v9154
      %v9168 = vpack.c.b16 %v9157, %v9156
      %v9169 = vpack.c.b16 %v9159, %v9158
      %v9170 = vpack.c.b16 %v9161, %v9160
      %v9171 = vpack.c.b16 %v9163, %v9162
      %9180 = vmatprep.subr.bf16.mxu0 0
      %9181 = vmatpush1.bf16.msra.mxu0 %v9164
      %9182 = vmatprep.subr.bf16.mxu0 0
      %9183 = vmatpush1.bf16.msra.mxu0 %v9165
      %9184 = vmatprep.subr.bf16.mxu0 0
      %9185 = vmatpush1.bf16.msra.mxu0 %v9166
      %9186 = vmatprep.subr.bf16.mxu0 0
      %9187 = vmatpush1.bf16.msra.mxu0 %v9167
      %9188 = vmatprep.subr.bf16.mxu0 0
      %9189 = vmatpush1.bf16.msra.mxu0 %v9168
      %9190 = vmatprep.subr.bf16.mxu0 0
      %9191 = vmatpush1.bf16.msra.mxu0 %v9169
      %9192 = vmatprep.subr.bf16.mxu0 0
      %9193 = vmatpush1.bf16.msra.mxu0 %v9170
      %9194 = vmatprep.subr.bf16.mxu0 0
      %9195 = vmatpush1.bf16.msra.mxu0 %v9171
      %9196 = vmatprep.subr.bf16.mxu0 0
      %9197 = vmatpush1.bf16.msra.mxu0 0
      %9198 = vmatprep.subr.bf16.mxu0 0
      %9199 = vmatpush1.bf16.msra.mxu0 0
      %9200 = vmatprep.subr.bf16.mxu0 0
      %9201 = vmatpush1.bf16.msra.mxu0 0
      %9202 = vmatprep.subr.bf16.mxu0 0
      %9203 = vmatpush1.bf16.msra.mxu0 0
      %9204 = vmatprep.subr.bf16.mxu0 0
      %9205 = vmatpush1.bf16.msra.mxu0 0
      %9206 = vmatprep.subr.bf16.mxu0 0
      %9207 = vmatpush1.bf16.msra.mxu0 0
      %9208 = vmatprep.subr.bf16.mxu0 0
      %9209 = vmatpush1.bf16.msra.mxu0 0
      %9210 = vmatprep.subr.bf16.mxu0 0
      %9211 = vmatpush1.bf16.msra.mxu0 0
      %9212 = vmatprep.mubr.bf16.mxu0 0
      %9213 = vmatmul.mubr.bf16.gmra.mrb[0].mxu0 %v9100
      %v9214 = vpop.f32.mrb[0].mxu0
      %v9215 = vadd.f32 0.0, %v9214
      %v9216 = vpop.f32.mrb[0].mxu0
      %v9217 = vpop.f32.mrb[0].mxu0
      %v9218 = vadd.f32 0.0, %v9217
      %v9219 = vpop.f32.mrb[0].mxu0
      %9220 = vmatprep.mubr.bf16.mxu0 0
      %9221 = vmatmul.mubr.bf16.gmra.mrb[0].mxu0 %v9101
      %v9222 = vpop.f32.mrb[0].mxu0
      %v9223 = vadd.f32 0.0, %v9222
      %v9224 = vpop.f32.mrb[0].mxu0
      %v9225 = vpop.f32.mrb[0].mxu0
      %v9226 = vadd.f32 0.0, %v9225
      %v9227 = vpop.f32.mrb[0].mxu0
      %9228 = vmatprep.mubr.bf16.mxu0 0
      %9229 = vmatmul.mubr.bf16.gmra.mrb[0].mxu0 %v9102
      %v9230 = vpop.f32.mrb[0].mxu0
      %v9231 = vadd.f32 0.0, %v9230
      %v9232 = vpop.f32.mrb[0].mxu0
      %v9233 = vpop.f32.mrb[0].mxu0
      %v9234 = vadd.f32 0.0, %v9233
      %v9235 = vpop.f32.mrb[0].mxu0
      %9236 = vmatprep.mubr.bf16.mxu0 0
      %9237 = vmatmul.mubr.bf16.gmra.mrb[0].mxu0 %v9103
      %v9238 = vpop.f32.mrb[0].mxu0
      %v9239 = vadd.f32 0.0, %v9238
      %v9240 = vpop.f32.mrb[0].mxu0
      %v9241 = vpop.f32.mrb[0].mxu0
      %v9242 = vadd.f32 0.0, %v9241
      %v9243 = vpop.f32.mrb[0].mxu0
      %9244 = vmatprep.mubr.bf16.mxu0 0
      %9245 = vmatmul.mubr.bf16.gmra.mrb[0].mxu0 %v9104
      %v9246 = vpop.f32.mrb[0].mxu0
      %v9247 = vadd.f32 0.0, %v9246
      %v9248 = vpop.f32.mrb[0].mxu0
      %v9249 = vpop.f32.mrb[0].mxu0
      %v9250 = vadd.f32 0.0, %v9249
      %v9251 = vpop.f32.mrb[0].mxu0
      %9252 = vmatprep.mubr.bf16.mxu0 0
      %9253 = vmatmul.mubr.bf16.gmra.mrb[0].mxu0 %v9105
      %v9254 = vpop.f32.mrb[0].mxu0
      %v9255 = vadd.f32 0.0, %v9254
      %v9256 = vpop.f32.mrb[0].mxu0
      %v9257 = vpop.f32.mrb[0].mxu0
      %v9258 = vadd.f32 0.0, %v9257
      %v9259 = vpop.f32.mrb[0].mxu0
      %9260 = vmatprep.mubr.bf16.mxu0 0
      %9261 = vmatmul.mubr.bf16.gmra.mrb[0].mxu0 %v9106
      %v9262 = vpop.f32.mrb[0].mxu0
      %v9263 = vadd.f32 0.0, %v9262
      %v9264 = vpop.f32.mrb[0].mxu0
      %v9265 = vpop.f32.mrb[0].mxu0
      %v9266 = vadd.f32 0.0, %v9265
      %v9267 = vpop.f32.mrb[0].mxu0
      %9268 = vmatprep.mubr.bf16.mxu0 0
      %9269 = vmatmul.mubr.bf16.gmra.mrb[0].mxu0 %v9107
      %v9270 = vpop.f32.mrb[0].mxu0
      %v9271 = vadd.f32 0.0, %v9270
      %v9272 = vpop.f32.mrb[0].mxu0
      %v9273 = vpop.f32.mrb[0].mxu0
      %v9274 = vadd.f32 0.0, %v9273
      %v9275 = vpop.f32.mrb[0].mxu0
      %9276 = vmatprep.mubr.bf16.mxu0 0
      %9277 = vmatmul.mubr.bf16.gmra.mrb[0].mxu0 %v9108
      %v9278 = vpop.f32.mrb[0].mxu0
      %v9279 = vadd.f32 0.0, %v9278
      %v9280 = vpop.f32.mrb[0].mxu0
      %v9281 = vpop.f32.mrb[0].mxu0
      %v9282 = vadd.f32 0.0, %v9281
      %v9283 = vpop.f32.mrb[0].mxu0
      %9284 = vmatprep.mubr.bf16.mxu0 0
      %9285 = vmatmul.mubr.bf16.gmra.mrb[0].mxu0 %v9109
      %v9286 = vpop.f32.mrb[0].mxu0
      %v9287 = vadd.f32 0.0, %v9286
      %v9288 = vpop.f32.mrb[0].mxu0
      %v9289 = vpop.f32.mrb[0].mxu0
      %v9290 = vadd.f32 0.0, %v9289
      %v9291 = vpop.f32.mrb[0].mxu0
      %9292 = vmatprep.mubr.bf16.mxu0 0
      %9293 = vmatmul.mubr.bf16.gmra.mrb[0].mxu0 %v9110
      %v9294 = vpop.f32.mrb[0].mxu0
      %v9295 = vadd.f32 0.0, %v9294
      %v9296 = vpop.f32.mrb[0].mxu0
      %v9297 = vpop.f32.mrb[0].mxu0
      %v9298 = vadd.f32 0.0, %v9297
      %v9299 = vpop.f32.mrb[0].mxu0
      %9300 = vmatprep.mubr.bf16.mxu0 0
      %9301 = vmatmul.mubr.bf16.gmra.mrb[0].mxu0 %v9111
      %v9302 = vpop.f32.mrb[0].mxu0
      %v9303 = vadd.f32 0.0, %v9302
      %v9304 = vpop.f32.mrb[0].mxu0
      %v9305 = vpop.f32.mrb[0].mxu0
      %v9306 = vadd.f32 0.0, %v9305
      %v9307 = vpop.f32.mrb[0].mxu0
      %9308 = vmatprep.mubr.bf16.mxu0 0
      %9309 = vmatmul.mubr.bf16.gmra.mrb[0].mxu0 %v9112
      %v9310 = vpop.f32.mrb[0].mxu0
      %v9311 = vadd.f32 0.0, %v9310
      %v9312 = vpop.f32.mrb[0].mxu0
      %v9313 = vpop.f32.mrb[0].mxu0
      %v9314 = vadd.f32 0.0, %v9313
      %v9315 = vpop.f32.mrb[0].mxu0
      %9316 = vmatprep.mubr.bf16.mxu0 0
      %9317 = vmatmul.mubr.bf16.gmra.mrb[0].mxu0 %v9113
      %v9318 = vpop.f32.mrb[0].mxu0
      %v9319 = vadd.f32 0.0, %v9318
      %v9320 = vpop.f32.mrb[0].mxu0
      %v9321 = vpop.f32.mrb[0].mxu0
      %v9322 = vadd.f32 0.0, %v9321
      %v9323 = vpop.f32.mrb[0].mxu0
      %9324 = vmatprep.mubr.bf16.mxu0 0
      %9325 = vmatmul.mubr.bf16.gmra.mrb[0].mxu0 %v9114
      %v9326 = vpop.f32.mrb[0].mxu0
      %v9327 = vadd.f32 0.0, %v9326
      %v9328 = vpop.f32.mrb[0].mxu0
      %v9329 = vpop.f32.mrb[0].mxu0
      %v9330 = vadd.f32 0.0, %v9329
      %v9331 = vpop.f32.mrb[0].mxu0
      %9332 = vmatprep.mubr.bf16.mxu0 0
      %9333 = vmatmul.mubr.bf16.gmra.mrb[0].mxu0 %v9115
      %v9334 = vpop.f32.mrb[0].mxu0
      %v9335 = vadd.f32 0.0, %v9334
      %v9336 = vpop.f32.mrb[0].mxu0
      %v9337 = vpop.f32.mrb[0].mxu0
      %v9338 = vadd.f32 0.0, %v9337
      %v9339 = vpop.f32.mrb[0].mxu0
      %9340 = vdwg.mxu0
      %v9341 = vadd.f32 %v8843, %v9215
      %v9342 = vadd.f32 %v8844, %v9218
      %v9343 = vadd.f32 %v8845, %v9223
      %v9344 = vadd.f32 %v8846, %v9226
      %v9345 = vadd.f32 %v8847, %v9231
      %v9346 = vadd.f32 %v8848, %v9234
      %v9347 = vadd.f32 %v8849, %v9239
      %v9348 = vadd.f32 %v8850, %v9242
      %v9349 = vadd.f32 %v8851, %v9247
      %v9350 = vadd.f32 %v8852, %v9250
      %v9351 = vadd.f32 %v8853, %v9255
      %v9352 = vadd.f32 %v8854, %v9258
      %v9353 = vadd.f32 %v8855, %v9263
      %v9354 = vadd.f32 %v8856, %v9266
      %v9355 = vadd.f32 %v8857, %v9271
      %v9356 = vadd.f32 %v8858, %v9274
      %v9357 = vadd.f32 %v8859, %v9279
      %v9358 = vadd.f32 %v8860, %v9282
      %v9359 = vadd.f32 %v8861, %v9287
      %v9360 = vadd.f32 %v8862, %v9290
      %v9361 = vadd.f32 %v8863, %v9295
      %v9362 = vadd.f32 %v8864, %v9298
      %v9363 = vadd.f32 %v8865, %v9303
      %v9364 = vadd.f32 %v8866, %v9306
      %v9365 = vadd.f32 %v8867, %v9311
      %v9366 = vadd.f32 %v8868, %v9314
      %v9367 = vadd.f32 %v8869, %v9319
      %v9368 = vadd.f32 %v8870, %v9322
      %v9369 = vadd.f32 %v8871, %v9327
      %v9370 = vadd.f32 %v8872, %v9330
      %v9371 = vadd.f32 %v8873, %v9335
      %v9372 = vadd.f32 %v8874, %v9338
      %v9373 = vld [vmem:[%s3973] sm:$0xf]
      %v9374 = vld [vmem:[%s3973 + $0x4] sm:$0xf]
      %v9375 = vld [vmem:[%s3973 + $0xc] sm:$0xf]
      %v9376 = vld [vmem:[%s3973 + $0x10] sm:$0xf]
      %v9377 = vld [vmem:[%s3973 + $0x18] sm:$0xf]
      %v9378 = vld [vmem:[%s3973 + $0x1c] sm:$0xf]
      %v9379 = vld [vmem:[%s3973 + $0x24] sm:$0xf]
      %v9380 = vld [vmem:[%s3973 + $0x28] sm:$0xf]
      %v9381 = vld [vmem:[%s3973 + $0x30] sm:$0xf]
      %v9382 = vld [vmem:[%s3973 + $0x34] sm:$0xf]
      %v9383 = vld [vmem:[%s3973 + $0x3c] sm:$0xf]
      %v9384 = vld [vmem:[%s3973 + $0x40] sm:$0xf]
      %v9385 = vld [vmem:[%s3973 + $0x48] sm:$0xf]
      %v9386 = vld [vmem:[%s3973 + $0x4c] sm:$0xf]
      %v9387 = vld [vmem:[%s3973 + $0x54] sm:$0xf]
      %v9388 = vld [vmem:[%s3973 + $0x58] sm:$0xf]
      %v9389 = vld [vmem:[%s3973 + $0x60] sm:$0xf]
      %v9390 = vld [vmem:[%s3973 + $0x64] sm:$0xf]
      %v9391 = vld [vmem:[%s3973 + $0x6c] sm:$0xf]
      %v9392 = vld [vmem:[%s3973 + $0x70] sm:$0xf]
      %v9393 = vld [vmem:[%s3973 + $0x78] sm:$0xf]
      %v9394 = vld [vmem:[%s3973 + $0x7c] sm:$0xf]
      %v9395 = vld [vmem:[%s3973 + $0x84] sm:$0xf]
      %v9396 = vld [vmem:[%s3973 + $0x88] sm:$0xf]
      %v9397 = vld [vmem:[%s3973 + $0x90] sm:$0xf]
      %v9398 = vld [vmem:[%s3973 + $0x94] sm:$0xf]
      %v9399 = vld [vmem:[%s3973 + $0x9c] sm:$0xf]
      %v9400 = vld [vmem:[%s3973 + $0xa0] sm:$0xf]
      %v9401 = vld [vmem:[%s3973 + $0xa8] sm:$0xf]
      %v9402 = vld [vmem:[%s3973 + $0xac] sm:$0xf]
      %v9403 = vld [vmem:[%s3973 + $0xb4] sm:$0xf]
      %v9404 = vld [vmem:[%s3973 + $0xb8] sm:$0xf]
      %s9405 = scalar_lea.vmem %s3, 384
      %v9406 = vld [vmem:[%s9405] sm:$0xf]
      %v9407 = vld [vmem:[%s9405 + $0x4] sm:$0xf]
      %v9408 = vld [vmem:[%s9405 + $0x8] sm:$0xf]
      %v9409 = vld [vmem:[%s9405 + $0xc] sm:$0xf]
      %v9410 = vld [vmem:[%s9405 + $0x10] sm:$0xf]
      %v9411 = vld [vmem:[%s9405 + $0x14] sm:$0xf]
      %v9412 = vld [vmem:[%s9405 + $0x18] sm:$0xf]
      %v9413 = vld [vmem:[%s9405 + $0x1c] sm:$0xf]
      %v9414 = vld [vmem:[%s9405 + $0x20] sm:$0xf]
      %v9415 = vld [vmem:[%s9405 + $0x24] sm:$0xf]
      %v9416 = vld [vmem:[%s9405 + $0x28] sm:$0xf]
      %v9417 = vld [vmem:[%s9405 + $0x2c] sm:$0xf]
      %v9418 = vld [vmem:[%s9405 + $0x30] sm:$0xf]
      %v9419 = vld [vmem:[%s9405 + $0x34] sm:$0xf]
      %v9420 = vld [vmem:[%s9405 + $0x38] sm:$0xf]
      %v9421 = vld [vmem:[%s9405 + $0x3c] sm:$0xf]
      %v9454 = vunpack.c.l.b16 %v9373
      %v9455 = vunpack.c.l.b16 %v9374
      %v9456 = vunpack.c.l.b16 %v9375
      %v9457 = vunpack.c.l.b16 %v9376
      %v9458 = vunpack.c.l.b16 %v9377
      %v9459 = vunpack.c.l.b16 %v9378
      %v9460 = vunpack.c.l.b16 %v9379
      %v9461 = vunpack.c.l.b16 %v9380
      %v9462 = vunpack.c.l.b16 %v9381
      %v9463 = vunpack.c.l.b16 %v9382
      %v9464 = vunpack.c.l.b16 %v9383
      %v9465 = vunpack.c.l.b16 %v9384
      %v9466 = vunpack.c.l.b16 %v9385
      %v9467 = vunpack.c.l.b16 %v9386
      %v9468 = vunpack.c.l.b16 %v9387
      %v9469 = vunpack.c.l.b16 %v9388
      %v9470 = vunpack.c.l.b16 %v9389
      %v9471 = vunpack.c.l.b16 %v9390
      %v9472 = vunpack.c.l.b16 %v9391
      %v9473 = vunpack.c.l.b16 %v9392
      %v9474 = vunpack.c.l.b16 %v9393
      %v9475 = vunpack.c.l.b16 %v9394
      %v9476 = vunpack.c.l.b16 %v9395
      %v9477 = vunpack.c.l.b16 %v9396
      %v9478 = vunpack.c.l.b16 %v9397
      %v9479 = vunpack.c.l.b16 %v9398
      %v9480 = vunpack.c.l.b16 %v9399
      %v9481 = vunpack.c.l.b16 %v9400
      %v9482 = vunpack.c.l.b16 %v9401
      %v9483 = vunpack.c.l.b16 %v9402
      %v9484 = vunpack.c.l.b16 %v9403
      %v9485 = vunpack.c.l.b16 %v9404
      %v9486 = vpack.c.b16 %v9455, %v9454
      %v9487 = vpack.c.b16 %v9457, %v9456
      %v9488 = vpack.c.b16 %v9459, %v9458
      %v9489 = vpack.c.b16 %v9461, %v9460
      %v9490 = vpack.c.b16 %v9463, %v9462
      %v9491 = vpack.c.b16 %v9465, %v9464
      %v9492 = vpack.c.b16 %v9467, %v9466
      %v9493 = vpack.c.b16 %v9469, %v9468
      %v9494 = vpack.c.b16 %v9471, %v9470
      %v9495 = vpack.c.b16 %v9473, %v9472
      %v9496 = vpack.c.b16 %v9475, %v9474
      %v9497 = vpack.c.b16 %v9477, %v9476
      %v9498 = vpack.c.b16 %v9479, %v9478
      %v9499 = vpack.c.b16 %v9481, %v9480
      %v9500 = vpack.c.b16 %v9483, %v9482
      %v9501 = vpack.c.b16 %v9485, %v9484
      %v9534 = vunpack.c.l.b16 %v9406
      %v9535 = vunpack.c.l.b16 %v9407
      %v9536 = vunpack.c.l.b16 %v9408
      %v9537 = vunpack.c.l.b16 %v9409
      %v9538 = vunpack.c.l.b16 %v9410
      %v9539 = vunpack.c.l.b16 %v9411
      %v9540 = vunpack.c.l.b16 %v9412
      %v9541 = vunpack.c.l.b16 %v9413
      %v9542 = vunpack.c.l.b16 %v9414
      %v9543 = vunpack.c.l.b16 %v9415
      %v9544 = vunpack.c.l.b16 %v9416
      %v9545 = vunpack.c.l.b16 %v9417
      %v9546 = vunpack.c.l.b16 %v9418
      %v9547 = vunpack.c.l.b16 %v9419
      %v9548 = vunpack.c.l.b16 %v9420
      %v9549 = vunpack.c.l.b16 %v9421
      %v9550 = vpack.c.b16 %v9535, %v9534
      %v9551 = vpack.c.b16 %v9537, %v9536
      %v9552 = vpack.c.b16 %v9539, %v9538
      %v9553 = vpack.c.b16 %v9541, %v9540
      %v9554 = vpack.c.b16 %v9543, %v9542
      %v9555 = vpack.c.b16 %v9545, %v9544
      %v9556 = vpack.c.b16 %v9547, %v9546
      %v9557 = vpack.c.b16 %v9549, %v9548
      %9566 = vmatprep.subr.bf16.mxu0 0
      %9567 = vmatpush1.bf16.msra.mxu0 %v9550
      %9568 = vmatprep.subr.bf16.mxu0 0
      %9569 = vmatpush1.bf16.msra.mxu0 %v9551
      %9570 = vmatprep.subr.bf16.mxu0 0
      %9571 = vmatpush1.bf16.msra.mxu0 %v9552
      %9572 = vmatprep.subr.bf16.mxu0 0
      %9573 = vmatpush1.bf16.msra.mxu0 %v9553
      %9574 = vmatprep.subr.bf16.mxu0 0
      %9575 = vmatpush1.bf16.msra.mxu0 %v9554
      %9576 = vmatprep.subr.bf16.mxu0 0
      %9577 = vmatpush1.bf16.msra.mxu0 %v9555
      %9578 = vmatprep.subr.bf16.mxu0 0
      %9579 = vmatpush1.bf16.msra.mxu0 %v9556
      %9580 = vmatprep.subr.bf16.mxu0 0
      %9581 = vmatpush1.bf16.msra.mxu0 %v9557
      %9582 = vmatprep.subr.bf16.mxu0 0
      %9583 = vmatpush1.bf16.msra.mxu0 0
      %9584 = vmatprep.subr.bf16.mxu0 0
      %9585 = vmatpush1.bf16.msra.mxu0 0
      %9586 = vmatprep.subr.bf16.mxu0 0
      %9587 = vmatpush1.bf16.msra.mxu0 0
      %9588 = vmatprep.subr.bf16.mxu0 0
      %9589 = vmatpush1.bf16.msra.mxu0 0
      %9590 = vmatprep.subr.bf16.mxu0 0
      %9591 = vmatpush1.bf16.msra.mxu0 0
      %9592 = vmatprep.subr.bf16.mxu0 0
      %9593 = vmatpush1.bf16.msra.mxu0 0
      %9594 = vmatprep.subr.bf16.mxu0 0
      %9595 = vmatpush1.bf16.msra.mxu0 0
      %9596 = vmatprep.subr.bf16.mxu0 0
      %9597 = vmatpush1.bf16.msra.mxu0 0
      %9598 = vmatprep.mubr.bf16.mxu0 0
      %9599 = vmatmul.mubr.bf16.gmra.mrb[0].mxu0 %v9486
      %v9600 = vpop.f32.mrb[0].mxu0
      %v9601 = vadd.f32 0.0, %v9600
      %v9602 = vpop.f32.mrb[0].mxu0
      %v9603 = vpop.f32.mrb[0].mxu0
      %v9604 = vadd.f32 0.0, %v9603
      %v9605 = vpop.f32.mrb[0].mxu0
      %9606 = vmatprep.mubr.bf16.mxu0 0
      %9607 = vmatmul.mubr.bf16.gmra.mrb[0].mxu0 %v9487
      %v9608 = vpop.f32.mrb[0].mxu0
      %v9609 = vadd.f32 0.0, %v9608
      %v9610 = vpop.f32.mrb[0].mxu0
      %v9611 = vpop.f32.mrb[0].mxu0
      %v9612 = vadd.f32 0.0, %v9611
      %v9613 = vpop.f32.mrb[0].mxu0
      %9614 = vmatprep.mubr.bf16.mxu0 0
      %9615 = vmatmul.mubr.bf16.gmra.mrb[0].mxu0 %v9488
      %v9616 = vpop.f32.mrb[0].mxu0
      %v9617 = vadd.f32 0.0, %v9616
      %v9618 = vpop.f32.mrb[0].mxu0
      %v9619 = vpop.f32.mrb[0].mxu0
      %v9620 = vadd.f32 0.0, %v9619
      %v9621 = vpop.f32.mrb[0].mxu0
      %9622 = vmatprep.mubr.bf16.mxu0 0
      %9623 = vmatmul.mubr.bf16.gmra.mrb[0].mxu0 %v9489
      %v9624 = vpop.f32.mrb[0].mxu0
      %v9625 = vadd.f32 0.0, %v9624
      %v9626 = vpop.f32.mrb[0].mxu0
      %v9627 = vpop.f32.mrb[0].mxu0
      %v9628 = vadd.f32 0.0, %v9627
      %v9629 = vpop.f32.mrb[0].mxu0
      %9630 = vmatprep.mubr.bf16.mxu0 0
      %9631 = vmatmul.mubr.bf16.gmra.mrb[0].mxu0 %v9490
      %v9632 = vpop.f32.mrb[0].mxu0
      %v9633 = vadd.f32 0.0, %v9632
      %v9634 = vpop.f32.mrb[0].mxu0
      %v9635 = vpop.f32.mrb[0].mxu0
      %v9636 = vadd.f32 0.0, %v9635
      %v9637 = vpop.f32.mrb[0].mxu0
      %9638 = vmatprep.mubr.bf16.mxu0 0
      %9639 = vmatmul.mubr.bf16.gmra.mrb[0].mxu0 %v9491
      %v9640 = vpop.f32.mrb[0].mxu0
      %v9641 = vadd.f32 0.0, %v9640
      %v9642 = vpop.f32.mrb[0].mxu0
      %v9643 = vpop.f32.mrb[0].mxu0
      %v9644 = vadd.f32 0.0, %v9643
      %v9645 = vpop.f32.mrb[0].mxu0
      %9646 = vmatprep.mubr.bf16.mxu0 0
      %9647 = vmatmul.mubr.bf16.gmra.mrb[0].mxu0 %v9492
      %v9648 = vpop.f32.mrb[0].mxu0
      %v9649 = vadd.f32 0.0, %v9648
      %v9650 = vpop.f32.mrb[0].mxu0
      %v9651 = vpop.f32.mrb[0].mxu0
      %v9652 = vadd.f32 0.0, %v9651
      %v9653 = vpop.f32.mrb[0].mxu0
      %9654 = vmatprep.mubr.bf16.mxu0 0
      %9655 = vmatmul.mubr.bf16.gmra.mrb[0].mxu0 %v9493
      %v9656 = vpop.f32.mrb[0].mxu0
      %v9657 = vadd.f32 0.0, %v9656
      %v9658 = vpop.f32.mrb[0].mxu0
      %v9659 = vpop.f32.mrb[0].mxu0
      %v9660 = vadd.f32 0.0, %v9659
      %v9661 = vpop.f32.mrb[0].mxu0
      %9662 = vmatprep.mubr.bf16.mxu0 0
      %9663 = vmatmul.mubr.bf16.gmra.mrb[0].mxu0 %v9494
      %v9664 = vpop.f32.mrb[0].mxu0
      %v9665 = vadd.f32 0.0, %v9664
      %v9666 = vpop.f32.mrb[0].mxu0
      %v9667 = vpop.f32.mrb[0].mxu0
      %v9668 = vadd.f32 0.0, %v9667
      %v9669 = vpop.f32.mrb[0].mxu0
      %9670 = vmatprep.mubr.bf16.mxu0 0
      %9671 = vmatmul.mubr.bf16.gmra.mrb[0].mxu0 %v9495
      %v9672 = vpop.f32.mrb[0].mxu0
      %v9673 = vadd.f32 0.0, %v9672
      %v9674 = vpop.f32.mrb[0].mxu0
      %v9675 = vpop.f32.mrb[0].mxu0
      %v9676 = vadd.f32 0.0, %v9675
      %v9677 = vpop.f32.mrb[0].mxu0
      %9678 = vmatprep.mubr.bf16.mxu0 0
      %9679 = vmatmul.mubr.bf16.gmra.mrb[0].mxu0 %v9496
      %v9680 = vpop.f32.mrb[0].mxu0
      %v9681 = vadd.f32 0.0, %v9680
      %v9682 = vpop.f32.mrb[0].mxu0
      %v9683 = vpop.f32.mrb[0].mxu0
      %v9684 = vadd.f32 0.0, %v9683
      %v9685 = vpop.f32.mrb[0].mxu0
      %9686 = vmatprep.mubr.bf16.mxu0 0
      %9687 = vmatmul.mubr.bf16.gmra.mrb[0].mxu0 %v9497
      %v9688 = vpop.f32.mrb[0].mxu0
      %v9689 = vadd.f32 0.0, %v9688
      %v9690 = vpop.f32.mrb[0].mxu0
      %v9691 = vpop.f32.mrb[0].mxu0
      %v9692 = vadd.f32 0.0, %v9691
      %v9693 = vpop.f32.mrb[0].mxu0
      %9694 = vmatprep.mubr.bf16.mxu0 0
      %9695 = vmatmul.mubr.bf16.gmra.mrb[0].mxu0 %v9498
      %v9696 = vpop.f32.mrb[0].mxu0
      %v9697 = vadd.f32 0.0, %v9696
      %v9698 = vpop.f32.mrb[0].mxu0
      %v9699 = vpop.f32.mrb[0].mxu0
      %v9700 = vadd.f32 0.0, %v9699
      %v9701 = vpop.f32.mrb[0].mxu0
      %9702 = vmatprep.mubr.bf16.mxu0 0
      %9703 = vmatmul.mubr.bf16.gmra.mrb[0].mxu0 %v9499
      %v9704 = vpop.f32.mrb[0].mxu0
      %v9705 = vadd.f32 0.0, %v9704
      %v9706 = vpop.f32.mrb[0].mxu0
      %v9707 = vpop.f32.mrb[0].mxu0
      %v9708 = vadd.f32 0.0, %v9707
      %v9709 = vpop.f32.mrb[0].mxu0
      %9710 = vmatprep.mubr.bf16.mxu0 0
      %9711 = vmatmul.mubr.bf16.gmra.mrb[0].mxu0 %v9500
      %v9712 = vpop.f32.mrb[0].mxu0
      %v9713 = vadd.f32 0.0, %v9712
      %v9714 = vpop.f32.mrb[0].mxu0
      %v9715 = vpop.f32.mrb[0].mxu0
      %v9716 = vadd.f32 0.0, %v9715
      %v9717 = vpop.f32.mrb[0].mxu0
      %9718 = vmatprep.mubr.bf16.mxu0 0
      %9719 = vmatmul.mubr.bf16.gmra.mrb[0].mxu0 %v9501
      %v9720 = vpop.f32.mrb[0].mxu0
      %v9721 = vadd.f32 0.0, %v9720
      %v9722 = vpop.f32.mrb[0].mxu0
      %v9723 = vpop.f32.mrb[0].mxu0
      %v9724 = vadd.f32 0.0, %v9723
      %v9725 = vpop.f32.mrb[0].mxu0
      %9726 = vdwg.mxu0
      %v9727 = vadd.f32 %v9341, %v9601
      %v9728 = vadd.f32 %v9342, %v9604
      %v9729 = vadd.f32 %v9343, %v9609
      %v9730 = vadd.f32 %v9344, %v9612
      %v9731 = vadd.f32 %v9345, %v9617
      %v9732 = vadd.f32 %v9346, %v9620
      %v9733 = vadd.f32 %v9347, %v9625
      %v9734 = vadd.f32 %v9348, %v9628
      %v9735 = vadd.f32 %v9349, %v9633
      %v9736 = vadd.f32 %v9350, %v9636
      %v9737 = vadd.f32 %v9351, %v9641
      %v9738 = vadd.f32 %v9352, %v9644
      %v9739 = vadd.f32 %v9353, %v9649
      %v9740 = vadd.f32 %v9354, %v9652
      %v9741 = vadd.f32 %v9355, %v9657
      %v9742 = vadd.f32 %v9356, %v9660
      %v9743 = vadd.f32 %v9357, %v9665
      %v9744 = vadd.f32 %v9358, %v9668
      %v9745 = vadd.f32 %v9359, %v9673
      %v9746 = vadd.f32 %v9360, %v9676
      %v9747 = vadd.f32 %v9361, %v9681
      %v9748 = vadd.f32 %v9362, %v9684
      %v9749 = vadd.f32 %v9363, %v9689
      %v9750 = vadd.f32 %v9364, %v9692
      %v9751 = vadd.f32 %v9365, %v9697
      %v9752 = vadd.f32 %v9366, %v9700
      %v9753 = vadd.f32 %v9367, %v9705
      %v9754 = vadd.f32 %v9368, %v9708
      %v9755 = vadd.f32 %v9369, %v9713
      %v9756 = vadd.f32 %v9370, %v9716
      %v9757 = vadd.f32 %v9371, %v9721
      %v9758 = vadd.f32 %v9372, %v9724
      %v9759 = vld [vmem:[%s3973] sm:$0xf]
      %v9760 = vld [vmem:[%s3973 + $0x4] sm:$0xf]
      %v9761 = vld [vmem:[%s3973 + $0x8] sm:$0x1]
      %v9762 = vld [vmem:[%s3973 + $0xc] sm:$0xf]
      %v9763 = vld [vmem:[%s3973 + $0x10] sm:$0xf]
      %v9764 = vld [vmem:[%s3973 + $0x14] sm:$0x1]
      %v9765 = vld [vmem:[%s3973 + $0x18] sm:$0xf]
      %v9766 = vld [vmem:[%s3973 + $0x1c] sm:$0xf]
      %v9767 = vld [vmem:[%s3973 + $0x20] sm:$0x1]
      %v9768 = vld [vmem:[%s3973 + $0x24] sm:$0xf]
      %v9769 = vld [vmem:[%s3973 + $0x28] sm:$0xf]
      %v9770 = vld [vmem:[%s3973 + $0x2c] sm:$0x1]
      %v9771 = vld [vmem:[%s3973 + $0x30] sm:$0xf]
      %v9772 = vld [vmem:[%s3973 + $0x34] sm:$0xf]
      %v9773 = vld [vmem:[%s3973 + $0x38] sm:$0x1]
      %v9774 = vld [vmem:[%s3973 + $0x3c] sm:$0xf]
      %v9775 = vld [vmem:[%s3973 + $0x40] sm:$0xf]
      %v9776 = vld [vmem:[%s3973 + $0x44] sm:$0x1]
      %v9777 = vld [vmem:[%s3973 + $0x48] sm:$0xf]
      %v9778 = vld [vmem:[%s3973 + $0x4c] sm:$0xf]
      %v9779 = vld [vmem:[%s3973 + $0x50] sm:$0x1]
      %v9780 = vld [vmem:[%s3973 + $0x54] sm:$0xf]
      %v9781 = vld [vmem:[%s3973 + $0x58] sm:$0xf]
      %v9782 = vld [vmem:[%s3973 + $0x5c] sm:$0x1]
      %v9783 = vld [vmem:[%s3973 + $0x60] sm:$0xf]
      %v9784 = vld [vmem:[%s3973 + $0x64] sm:$0xf]
      %v9785 = vld [vmem:[%s3973 + $0x68] sm:$0x1]
      %v9786 = vld [vmem:[%s3973 + $0x6c] sm:$0xf]
      %v9787 = vld [vmem:[%s3973 + $0x70] sm:$0xf]
      %v9788 = vld [vmem:[%s3973 + $0x74] sm:$0x1]
      %v9789 = vld [vmem:[%s3973 + $0x78] sm:$0xf]
      %v9790 = vld [vmem:[%s3973 + $0x7c] sm:$0xf]
      %v9791 = vld [vmem:[%s3973 + $0x80] sm:$0x1]
      %v9792 = vld [vmem:[%s3973 + $0x84] sm:$0xf]
      %v9793 = vld [vmem:[%s3973 + $0x88] sm:$0xf]
      %v9794 = vld [vmem:[%s3973 + $0x8c] sm:$0x1]
      %v9795 = vld [vmem:[%s3973 + $0x90] sm:$0xf]
      %v9796 = vld [vmem:[%s3973 + $0x94] sm:$0xf]
      %v9797 = vld [vmem:[%s3973 + $0x98] sm:$0x1]
      %v9798 = vld [vmem:[%s3973 + $0x9c] sm:$0xf]
      %v9799 = vld [vmem:[%s3973 + $0xa0] sm:$0xf]
      %v9800 = vld [vmem:[%s3973 + $0xa4] sm:$0x1]
      %v9801 = vld [vmem:[%s3973 + $0xa8] sm:$0xf]
      %v9802 = vld [vmem:[%s3973 + $0xac] sm:$0xf]
      %v9803 = vld [vmem:[%s3973 + $0xb0] sm:$0x1]
      %v9804 = vld [vmem:[%s3973 + $0xb4] sm:$0xf]
      %v9805 = vld [vmem:[%s3973 + $0xb8] sm:$0xf]
      %v9806 = vld [vmem:[%s3973 + $0xbc] sm:$0x1]
      %v9808 = vshrl.u32 %v9759, 16
      %v9810 = vrot.slane %v9808, 4
      %v9811 = vshll.u32 %v9759, 16
      %v9813 = vrot.slane %v9811, 5
      %v9814 = vor.u32 %v9810, %v9813
      %v9815 = vrot.slane %v9814, 4
      %v9817 = vshll.u32 %v9760, 16
      %v9819 = vrot.slane %v9817, 5
      %v9820 = vsel %vm870, %v9815, %v9819
      %v9821 = vshrl.u32 %v9760, 16
      %v9823 = vrot.slane %v9821, 4
      %v9824 = vor.u32 %v9823, %v9819
      %v9825 = vrot.slane %v9824, 4
      %v9827 = vshll.u32 %v9761, 16
      %v9829 = vrot.slane %v9827, 5
      %v9830 = vsel %vm870, %v9825, %v9829
      %v9832 = vshrl.u32 %v9762, 16
      %v9834 = vrot.slane %v9832, 4
      %v9835 = vshll.u32 %v9762, 16
      %v9837 = vrot.slane %v9835, 5
      %v9838 = vor.u32 %v9834, %v9837
      %v9839 = vrot.slane %v9838, 4
      %v9841 = vshll.u32 %v9763, 16
      %v9843 = vrot.slane %v9841, 5
      %v9844 = vsel %vm870, %v9839, %v9843
      %v9845 = vshrl.u32 %v9763, 16
      %v9847 = vrot.slane %v9845, 4
      %v9848 = vor.u32 %v9847, %v9843
      %v9849 = vrot.slane %v9848, 4
      %v9851 = vshll.u32 %v9764, 16
      %v9853 = vrot.slane %v9851, 5
      %v9854 = vsel %vm870, %v9849, %v9853
      %v9856 = vshrl.u32 %v9765, 16
      %v9858 = vrot.slane %v9856, 4
      %v9859 = vshll.u32 %v9765, 16
      %v9861 = vrot.slane %v9859, 5
      %v9862 = vor.u32 %v9858, %v9861
      %v9863 = vrot.slane %v9862, 4
      %v9865 = vshll.u32 %v9766, 16
      %v9867 = vrot.slane %v9865, 5
      %v9868 = vsel %vm870, %v9863, %v9867
      %v9869 = vshrl.u32 %v9766, 16
      %v9871 = vrot.slane %v9869, 4
      %v9872 = vor.u32 %v9871, %v9867
      %v9873 = vrot.slane %v9872, 4
      %v9875 = vshll.u32 %v9767, 16
      %v9877 = vrot.slane %v9875, 5
      %v9878 = vsel %vm870, %v9873, %v9877
      %v9880 = vshrl.u32 %v9768, 16
      %v9882 = vrot.slane %v9880, 4
      %v9883 = vshll.u32 %v9768, 16
      %v9885 = vrot.slane %v9883, 5
      %v9886 = vor.u32 %v9882, %v9885
      %v9887 = vrot.slane %v9886, 4
      %v9889 = vshll.u32 %v9769, 16
      %v9891 = vrot.slane %v9889, 5
      %v9892 = vsel %vm870, %v9887, %v9891
      %v9893 = vshrl.u32 %v9769, 16
      %v9895 = vrot.slane %v9893, 4
      %v9896 = vor.u32 %v9895, %v9891
      %v9897 = vrot.slane %v9896, 4
      %v9899 = vshll.u32 %v9770, 16
      %v9901 = vrot.slane %v9899, 5
      %v9902 = vsel %vm870, %v9897, %v9901
      %v9904 = vshrl.u32 %v9771, 16
      %v9906 = vrot.slane %v9904, 4
      %v9907 = vshll.u32 %v9771, 16
      %v9909 = vrot.slane %v9907, 5
      %v9910 = vor.u32 %v9906, %v9909
      %v9911 = vrot.slane %v9910, 4
      %v9913 = vshll.u32 %v9772, 16
      %v9915 = vrot.slane %v9913, 5
      %v9916 = vsel %vm870, %v9911, %v9915
      %v9917 = vshrl.u32 %v9772, 16
      %v9919 = vrot.slane %v9917, 4
      %v9920 = vor.u32 %v9919, %v9915
      %v9921 = vrot.slane %v9920, 4
      %v9923 = vshll.u32 %v9773, 16
      %v9925 = vrot.slane %v9923, 5
      %v9926 = vsel %vm870, %v9921, %v9925
      %v9928 = vshrl.u32 %v9774, 16
      %v9930 = vrot.slane %v9928, 4
      %v9931 = vshll.u32 %v9774, 16
      %v9933 = vrot.slane %v9931, 5
      %v9934 = vor.u32 %v9930, %v9933
      %v9935 = vrot.slane %v9934, 4
      %v9937 = vshll.u32 %v9775, 16
      %v9939 = vrot.slane %v9937, 5
      %v9940 = vsel %vm870, %v9935, %v9939
      %v9941 = vshrl.u32 %v9775, 16
      %v9943 = vrot.slane %v9941, 4
      %v9944 = vor.u32 %v9943, %v9939
      %v9945 = vrot.slane %v9944, 4
      %v9947 = vshll.u32 %v9776, 16
      %v9949 = vrot.slane %v9947, 5
      %v9950 = vsel %vm870, %v9945, %v9949
      %v9952 = vshrl.u32 %v9777, 16
      %v9954 = vrot.slane %v9952, 4
      %v9955 = vshll.u32 %v9777, 16
      %v9957 = vrot.slane %v9955, 5
      %v9958 = vor.u32 %v9954, %v9957
      %v9959 = vrot.slane %v9958, 4
      %v9961 = vshll.u32 %v9778, 16
      %v9963 = vrot.slane %v9961, 5
      %v9964 = vsel %vm870, %v9959, %v9963
      %v9965 = vshrl.u32 %v9778, 16
      %v9967 = vrot.slane %v9965, 4
      %v9968 = vor.u32 %v9967, %v9963
      %v9969 = vrot.slane %v9968, 4
      %v9971 = vshll.u32 %v9779, 16
      %v9973 = vrot.slane %v9971, 5
      %v9974 = vsel %vm870, %v9969, %v9973
      %v9976 = vshrl.u32 %v9780, 16
      %v9978 = vrot.slane %v9976, 4
      %v9979 = vshll.u32 %v9780, 16
      %v9981 = vrot.slane %v9979, 5
      %v9982 = vor.u32 %v9978, %v9981
      %v9983 = vrot.slane %v9982, 4
      %v9985 = vshll.u32 %v9781, 16
      %v9987 = vrot.slane %v9985, 5
      %v9988 = vsel %vm870, %v9983, %v9987
      %v9989 = vshrl.u32 %v9781, 16
      %v9991 = vrot.slane %v9989, 4
      %v9992 = vor.u32 %v9991, %v9987
      %v9993 = vrot.slane %v9992, 4
      %v9995 = vshll.u32 %v9782, 16
      %v9997 = vrot.slane %v9995, 5
      %v9998 = vsel %vm870, %v9993, %v9997
      %v10000 = vshrl.u32 %v9783, 16
      %v10002 = vrot.slane %v10000, 4
      %v10003 = vshll.u32 %v9783, 16
      %v10005 = vrot.slane %v10003, 5
      %v10006 = vor.u32 %v10002, %v10005
      %v10007 = vrot.slane %v10006, 4
      %v10009 = vshll.u32 %v9784, 16
      %v10011 = vrot.slane %v10009, 5
      %v10012 = vsel %vm870, %v10007, %v10011
      %v10013 = vshrl.u32 %v9784, 16
      %v10015 = vrot.slane %v10013, 4
      %v10016 = vor.u32 %v10015, %v10011
      %v10017 = vrot.slane %v10016, 4
      %v10019 = vshll.u32 %v9785, 16
      %v10021 = vrot.slane %v10019, 5
      %v10022 = vsel %vm870, %v10017, %v10021
      %v10024 = vshrl.u32 %v9786, 16
      %v10026 = vrot.slane %v10024, 4
      %v10027 = vshll.u32 %v9786, 16
      %v10029 = vrot.slane %v10027, 5
      %v10030 = vor.u32 %v10026, %v10029
      %v10031 = vrot.slane %v10030, 4
      %v10033 = vshll.u32 %v9787, 16
      %v10035 = vrot.slane %v10033, 5
      %v10036 = vsel %vm870, %v10031, %v10035
      %v10037 = vshrl.u32 %v9787, 16
      %v10039 = vrot.slane %v10037, 4
      %v10040 = vor.u32 %v10039, %v10035
      %v10041 = vrot.slane %v10040, 4
      %v10043 = vshll.u32 %v9788, 16
      %v10045 = vrot.slane %v10043, 5
      %v10046 = vsel %vm870, %v10041, %v10045
      %v10048 = vshrl.u32 %v9789, 16
      %v10050 = vrot.slane %v10048, 4
      %v10051 = vshll.u32 %v9789, 16
      %v10053 = vrot.slane %v10051, 5
      %v10054 = vor.u32 %v10050, %v10053
      %v10055 = vrot.slane %v10054, 4
      %v10057 = vshll.u32 %v9790, 16
      %v10059 = vrot.slane %v10057, 5
      %v10060 = vsel %vm870, %v10055, %v10059
      %v10061 = vshrl.u32 %v9790, 16
      %v10063 = vrot.slane %v10061, 4
      %v10064 = vor.u32 %v10063, %v10059
      %v10065 = vrot.slane %v10064, 4
      %v10067 = vshll.u32 %v9791, 16
      %v10069 = vrot.slane %v10067, 5
      %v10070 = vsel %vm870, %v10065, %v10069
      %v10072 = vshrl.u32 %v9792, 16
      %v10074 = vrot.slane %v10072, 4
      %v10075 = vshll.u32 %v9792, 16
      %v10077 = vrot.slane %v10075, 5
      %v10078 = vor.u32 %v10074, %v10077
      %v10079 = vrot.slane %v10078, 4
      %v10081 = vshll.u32 %v9793, 16
      %v10083 = vrot.slane %v10081, 5
      %v10084 = vsel %vm870, %v10079, %v10083
      %v10085 = vshrl.u32 %v9793, 16
      %v10087 = vrot.slane %v10085, 4
      %v10088 = vor.u32 %v10087, %v10083
      %v10089 = vrot.slane %v10088, 4
      %v10091 = vshll.u32 %v9794, 16
      %v10093 = vrot.slane %v10091, 5
      %v10094 = vsel %vm870, %v10089, %v10093
      %v10096 = vshrl.u32 %v9795, 16
      %v10098 = vrot.slane %v10096, 4
      %v10099 = vshll.u32 %v9795, 16
      %v10101 = vrot.slane %v10099, 5
      %v10102 = vor.u32 %v10098, %v10101
      %v10103 = vrot.slane %v10102, 4
      %v10105 = vshll.u32 %v9796, 16
      %v10107 = vrot.slane %v10105, 5
      %v10108 = vsel %vm870, %v10103, %v10107
      %v10109 = vshrl.u32 %v9796, 16
      %v10111 = vrot.slane %v10109, 4
      %v10112 = vor.u32 %v10111, %v10107
      %v10113 = vrot.slane %v10112, 4
      %v10115 = vshll.u32 %v9797, 16
      %v10117 = vrot.slane %v10115, 5
      %v10118 = vsel %vm870, %v10113, %v10117
      %v10120 = vshrl.u32 %v9798, 16
      %v10122 = vrot.slane %v10120, 4
      %v10123 = vshll.u32 %v9798, 16
      %v10125 = vrot.slane %v10123, 5
      %v10126 = vor.u32 %v10122, %v10125
      %v10127 = vrot.slane %v10126, 4
      %v10129 = vshll.u32 %v9799, 16
      %v10131 = vrot.slane %v10129, 5
      %v10132 = vsel %vm870, %v10127, %v10131
      %v10133 = vshrl.u32 %v9799, 16
      %v10135 = vrot.slane %v10133, 4
      %v10136 = vor.u32 %v10135, %v10131
      %v10137 = vrot.slane %v10136, 4
      %v10139 = vshll.u32 %v9800, 16
      %v10141 = vrot.slane %v10139, 5
      %v10142 = vsel %vm870, %v10137, %v10141
      %v10144 = vshrl.u32 %v9801, 16
      %v10146 = vrot.slane %v10144, 4
      %v10147 = vshll.u32 %v9801, 16
      %v10149 = vrot.slane %v10147, 5
      %v10150 = vor.u32 %v10146, %v10149
      %v10151 = vrot.slane %v10150, 4
      %v10153 = vshll.u32 %v9802, 16
      %v10155 = vrot.slane %v10153, 5
      %v10156 = vsel %vm870, %v10151, %v10155
      %v10157 = vshrl.u32 %v9802, 16
      %v10159 = vrot.slane %v10157, 4
      %v10160 = vor.u32 %v10159, %v10155
      %v10161 = vrot.slane %v10160, 4
      %v10163 = vshll.u32 %v9803, 16
      %v10165 = vrot.slane %v10163, 5
      %v10166 = vsel %vm870, %v10161, %v10165
      %v10168 = vshrl.u32 %v9804, 16
      %v10170 = vrot.slane %v10168, 4
      %v10171 = vshll.u32 %v9804, 16
      %v10173 = vrot.slane %v10171, 5
      %v10174 = vor.u32 %v10170, %v10173
      %v10175 = vrot.slane %v10174, 4
      %v10177 = vshll.u32 %v9805, 16
      %v10179 = vrot.slane %v10177, 5
      %v10180 = vsel %vm870, %v10175, %v10179
      %v10181 = vshrl.u32 %v9805, 16
      %v10183 = vrot.slane %v10181, 4
      %v10184 = vor.u32 %v10183, %v10179
      %v10185 = vrot.slane %v10184, 4
      %v10187 = vshll.u32 %v9806, 16
      %v10189 = vrot.slane %v10187, 5
      %v10190 = vsel %vm870, %v10185, %v10189
      %s10191 = scalar_lea.vmem %s3, 448
      %v10192 = vld [vmem:[%s10191] sm:$0xf]
      %v10193 = vld [vmem:[%s10191 + $0x4] sm:$0xf]
      %v10194 = vld [vmem:[%s10191 + $0x8] sm:$0xf]
      %v10195 = vld [vmem:[%s10191 + $0xc] sm:$0xf]
      %v10196 = vld [vmem:[%s10191 + $0x10] sm:$0xf]
      %v10197 = vld [vmem:[%s10191 + $0x14] sm:$0xf]
      %v10198 = vld [vmem:[%s10191 + $0x18] sm:$0xf]
      %v10199 = vld [vmem:[%s10191 + $0x1c] sm:$0xf]
      %v10200 = vld [vmem:[%s10191 + $0x20] sm:$0xf]
      %v10201 = vld [vmem:[%s10191 + $0x24] sm:$0xf]
      %v10202 = vld [vmem:[%s10191 + $0x28] sm:$0xf]
      %v10203 = vld [vmem:[%s10191 + $0x2c] sm:$0xf]
      %v10204 = vld [vmem:[%s10191 + $0x30] sm:$0xf]
      %v10205 = vld [vmem:[%s10191 + $0x34] sm:$0xf]
      %v10206 = vld [vmem:[%s10191 + $0x38] sm:$0xf]
      %v10207 = vld [vmem:[%s10191 + $0x3c] sm:$0xf]
      %v10208 = vunpack.c.l.b16 %v9820
      %v10209 = vunpack.c.l.b16 %v9830
      %v10210 = vunpack.c.l.b16 %v9844
      %v10211 = vunpack.c.l.b16 %v9854
      %v10212 = vunpack.c.l.b16 %v9868
      %v10213 = vunpack.c.l.b16 %v9878
      %v10214 = vunpack.c.l.b16 %v9892
      %v10215 = vunpack.c.l.b16 %v9902
      %v10216 = vunpack.c.l.b16 %v9916
      %v10217 = vunpack.c.l.b16 %v9926
      %v10218 = vunpack.c.l.b16 %v9940
      %v10219 = vunpack.c.l.b16 %v9950
      %v10220 = vunpack.c.l.b16 %v9964
      %v10221 = vunpack.c.l.b16 %v9974
      %v10222 = vunpack.c.l.b16 %v9988
      %v10223 = vunpack.c.l.b16 %v9998
      %v10224 = vunpack.c.l.b16 %v10012
      %v10225 = vunpack.c.l.b16 %v10022
      %v10226 = vunpack.c.l.b16 %v10036
      %v10227 = vunpack.c.l.b16 %v10046
      %v10228 = vunpack.c.l.b16 %v10060
      %v10229 = vunpack.c.l.b16 %v10070
      %v10230 = vunpack.c.l.b16 %v10084
      %v10231 = vunpack.c.l.b16 %v10094
      %v10232 = vunpack.c.l.b16 %v10108
      %v10233 = vunpack.c.l.b16 %v10118
      %v10234 = vunpack.c.l.b16 %v10132
      %v10235 = vunpack.c.l.b16 %v10142
      %v10236 = vunpack.c.l.b16 %v10156
      %v10237 = vunpack.c.l.b16 %v10166
      %v10238 = vunpack.c.l.b16 %v10180
      %v10239 = vunpack.c.l.b16 %v10190
      %v10240 = vpack.c.b16 %v10209, %v10208
      %v10241 = vpack.c.b16 %v10211, %v10210
      %v10242 = vpack.c.b16 %v10213, %v10212
      %v10243 = vpack.c.b16 %v10215, %v10214
      %v10244 = vpack.c.b16 %v10217, %v10216
      %v10245 = vpack.c.b16 %v10219, %v10218
      %v10246 = vpack.c.b16 %v10221, %v10220
      %v10247 = vpack.c.b16 %v10223, %v10222
      %v10248 = vpack.c.b16 %v10225, %v10224
      %v10249 = vpack.c.b16 %v10227, %v10226
      %v10250 = vpack.c.b16 %v10229, %v10228
      %v10251 = vpack.c.b16 %v10231, %v10230
      %v10252 = vpack.c.b16 %v10233, %v10232
      %v10253 = vpack.c.b16 %v10235, %v10234
      %v10254 = vpack.c.b16 %v10237, %v10236
      %v10255 = vpack.c.b16 %v10239, %v10238
      %v10288 = vunpack.c.l.b16 %v10192
      %v10289 = vunpack.c.l.b16 %v10193
      %v10290 = vunpack.c.l.b16 %v10194
      %v10291 = vunpack.c.l.b16 %v10195
      %v10292 = vunpack.c.l.b16 %v10196
      %v10293 = vunpack.c.l.b16 %v10197
      %v10294 = vunpack.c.l.b16 %v10198
      %v10295 = vunpack.c.l.b16 %v10199
      %v10296 = vunpack.c.l.b16 %v10200
      %v10297 = vunpack.c.l.b16 %v10201
      %v10298 = vunpack.c.l.b16 %v10202
      %v10299 = vunpack.c.l.b16 %v10203
      %v10300 = vunpack.c.l.b16 %v10204
      %v10301 = vunpack.c.l.b16 %v10205
      %v10302 = vunpack.c.l.b16 %v10206
      %v10303 = vunpack.c.l.b16 %v10207
      %v10304 = vpack.c.b16 %v10289, %v10288
      %v10305 = vpack.c.b16 %v10291, %v10290
      %v10306 = vpack.c.b16 %v10293, %v10292
      %v10307 = vpack.c.b16 %v10295, %v10294
      %v10308 = vpack.c.b16 %v10297, %v10296
      %v10309 = vpack.c.b16 %v10299, %v10298
      %v10310 = vpack.c.b16 %v10301, %v10300
      %v10311 = vpack.c.b16 %v10303, %v10302
      %10320 = vmatprep.subr.bf16.mxu0 0
      %10321 = vmatpush1.bf16.msra.mxu0 %v10304
      %10322 = vmatprep.subr.bf16.mxu0 0
      %10323 = vmatpush1.bf16.msra.mxu0 %v10305
      %10324 = vmatprep.subr.bf16.mxu0 0
      %10325 = vmatpush1.bf16.msra.mxu0 %v10306
      %10326 = vmatprep.subr.bf16.mxu0 0
      %10327 = vmatpush1.bf16.msra.mxu0 %v10307
      %10328 = vmatprep.subr.bf16.mxu0 0
      %10329 = vmatpush1.bf16.msra.mxu0 %v10308
      %10330 = vmatprep.subr.bf16.mxu0 0
      %10331 = vmatpush1.bf16.msra.mxu0 %v10309
      %10332 = vmatprep.subr.bf16.mxu0 0
      %10333 = vmatpush1.bf16.msra.mxu0 %v10310
      %10334 = vmatprep.subr.bf16.mxu0 0
      %10335 = vmatpush1.bf16.msra.mxu0 %v10311
      %10336 = vmatprep.subr.bf16.mxu0 0
      %10337 = vmatpush1.bf16.msra.mxu0 0
      %10338 = vmatprep.subr.bf16.mxu0 0
      %10339 = vmatpush1.bf16.msra.mxu0 0
      %10340 = vmatprep.subr.bf16.mxu0 0
      %10341 = vmatpush1.bf16.msra.mxu0 0
      %10342 = vmatprep.subr.bf16.mxu0 0
      %10343 = vmatpush1.bf16.msra.mxu0 0
      %10344 = vmatprep.subr.bf16.mxu0 0
      %10345 = vmatpush1.bf16.msra.mxu0 0
      %10346 = vmatprep.subr.bf16.mxu0 0
      %10347 = vmatpush1.bf16.msra.mxu0 0
      %10348 = vmatprep.subr.bf16.mxu0 0
      %10349 = vmatpush1.bf16.msra.mxu0 0
      %10350 = vmatprep.subr.bf16.mxu0 0
      %10351 = vmatpush1.bf16.msra.mxu0 0
      %10352 = vmatprep.mubr.bf16.mxu0 0
      %10353 = vmatmul.mubr.bf16.gmra.mrb[0].mxu0 %v10240
      %v10354 = vpop.f32.mrb[0].mxu0
      %v10355 = vadd.f32 0.0, %v10354
      %v10356 = vpop.f32.mrb[0].mxu0
      %v10357 = vpop.f32.mrb[0].mxu0
      %v10358 = vadd.f32 0.0, %v10357
      %v10359 = vpop.f32.mrb[0].mxu0
      %10360 = vmatprep.mubr.bf16.mxu0 0
      %10361 = vmatmul.mubr.bf16.gmra.mrb[0].mxu0 %v10241
      %v10362 = vpop.f32.mrb[0].mxu0
      %v10363 = vadd.f32 0.0, %v10362
      %v10364 = vpop.f32.mrb[0].mxu0
      %v10365 = vpop.f32.mrb[0].mxu0
      %v10366 = vadd.f32 0.0, %v10365
      %v10367 = vpop.f32.mrb[0].mxu0
      %10368 = vmatprep.mubr.bf16.mxu0 0
      %10369 = vmatmul.mubr.bf16.gmra.mrb[0].mxu0 %v10242
      %v10370 = vpop.f32.mrb[0].mxu0
      %v10371 = vadd.f32 0.0, %v10370
      %v10372 = vpop.f32.mrb[0].mxu0
      %v10373 = vpop.f32.mrb[0].mxu0
      %v10374 = vadd.f32 0.0, %v10373
      %v10375 = vpop.f32.mrb[0].mxu0
      %10376 = vmatprep.mubr.bf16.mxu0 0
      %10377 = vmatmul.mubr.bf16.gmra.mrb[0].mxu0 %v10243
      %v10378 = vpop.f32.mrb[0].mxu0
      %v10379 = vadd.f32 0.0, %v10378
      %v10380 = vpop.f32.mrb[0].mxu0
      %v10381 = vpop.f32.mrb[0].mxu0
      %v10382 = vadd.f32 0.0, %v10381
      %v10383 = vpop.f32.mrb[0].mxu0
      %10384 = vmatprep.mubr.bf16.mxu0 0
      %10385 = vmatmul.mubr.bf16.gmra.mrb[0].mxu0 %v10244
      %v10386 = vpop.f32.mrb[0].mxu0
      %v10387 = vadd.f32 0.0, %v10386
      %v10388 = vpop.f32.mrb[0].mxu0
      %v10389 = vpop.f32.mrb[0].mxu0
      %v10390 = vadd.f32 0.0, %v10389
      %v10391 = vpop.f32.mrb[0].mxu0
      %10392 = vmatprep.mubr.bf16.mxu0 0
      %10393 = vmatmul.mubr.bf16.gmra.mrb[0].mxu0 %v10245
      %v10394 = vpop.f32.mrb[0].mxu0
      %v10395 = vadd.f32 0.0, %v10394
      %v10396 = vpop.f32.mrb[0].mxu0
      %v10397 = vpop.f32.mrb[0].mxu0
      %v10398 = vadd.f32 0.0, %v10397
      %v10399 = vpop.f32.mrb[0].mxu0
      %10400 = vmatprep.mubr.bf16.mxu0 0
      %10401 = vmatmul.mubr.bf16.gmra.mrb[0].mxu0 %v10246
      %v10402 = vpop.f32.mrb[0].mxu0
      %v10403 = vadd.f32 0.0, %v10402
      %v10404 = vpop.f32.mrb[0].mxu0
      %v10405 = vpop.f32.mrb[0].mxu0
      %v10406 = vadd.f32 0.0, %v10405
      %v10407 = vpop.f32.mrb[0].mxu0
      %10408 = vmatprep.mubr.bf16.mxu0 0
      %10409 = vmatmul.mubr.bf16.gmra.mrb[0].mxu0 %v10247
      %v10410 = vpop.f32.mrb[0].mxu0
      %v10411 = vadd.f32 0.0, %v10410
      %v10412 = vpop.f32.mrb[0].mxu0
      %v10413 = vpop.f32.mrb[0].mxu0
      %v10414 = vadd.f32 0.0, %v10413
      %v10415 = vpop.f32.mrb[0].mxu0
      %10416 = vmatprep.mubr.bf16.mxu0 0
      %10417 = vmatmul.mubr.bf16.gmra.mrb[0].mxu0 %v10248
      %v10418 = vpop.f32.mrb[0].mxu0
      %v10419 = vadd.f32 0.0, %v10418
      %v10420 = vpop.f32.mrb[0].mxu0
      %v10421 = vpop.f32.mrb[0].mxu0
      %v10422 = vadd.f32 0.0, %v10421
      %v10423 = vpop.f32.mrb[0].mxu0
      %10424 = vmatprep.mubr.bf16.mxu0 0
      %10425 = vmatmul.mubr.bf16.gmra.mrb[0].mxu0 %v10249
      %v10426 = vpop.f32.mrb[0].mxu0
      %v10427 = vadd.f32 0.0, %v10426
      %v10428 = vpop.f32.mrb[0].mxu0
      %v10429 = vpop.f32.mrb[0].mxu0
      %v10430 = vadd.f32 0.0, %v10429
      %v10431 = vpop.f32.mrb[0].mxu0
      %10432 = vmatprep.mubr.bf16.mxu0 0
      %10433 = vmatmul.mubr.bf16.gmra.mrb[0].mxu0 %v10250
      %v10434 = vpop.f32.mrb[0].mxu0
      %v10435 = vadd.f32 0.0, %v10434
      %v10436 = vpop.f32.mrb[0].mxu0
      %v10437 = vpop.f32.mrb[0].mxu0
      %v10438 = vadd.f32 0.0, %v10437
      %v10439 = vpop.f32.mrb[0].mxu0
      %10440 = vmatprep.mubr.bf16.mxu0 0
      %10441 = vmatmul.mubr.bf16.gmra.mrb[0].mxu0 %v10251
      %v10442 = vpop.f32.mrb[0].mxu0
      %v10443 = vadd.f32 0.0, %v10442
      %v10444 = vpop.f32.mrb[0].mxu0
      %v10445 = vpop.f32.mrb[0].mxu0
      %v10446 = vadd.f32 0.0, %v10445
      %v10447 = vpop.f32.mrb[0].mxu0
      %10448 = vmatprep.mubr.bf16.mxu0 0
      %10449 = vmatmul.mubr.bf16.gmra.mrb[0].mxu0 %v10252
      %v10450 = vpop.f32.mrb[0].mxu0
      %v10451 = vadd.f32 0.0, %v10450
      %v10452 = vpop.f32.mrb[0].mxu0
      %v10453 = vpop.f32.mrb[0].mxu0
      %v10454 = vadd.f32 0.0, %v10453
      %v10455 = vpop.f32.mrb[0].mxu0
      %10456 = vmatprep.mubr.bf16.mxu0 0
      %10457 = vmatmul.mubr.bf16.gmra.mrb[0].mxu0 %v10253
      %v10458 = vpop.f32.mrb[0].mxu0
      %v10459 = vadd.f32 0.0, %v10458
      %v10460 = vpop.f32.mrb[0].mxu0
      %v10461 = vpop.f32.mrb[0].mxu0
      %v10462 = vadd.f32 0.0, %v10461
      %v10463 = vpop.f32.mrb[0].mxu0
      %10464 = vmatprep.mubr.bf16.mxu0 0
      %10465 = vmatmul.mubr.bf16.gmra.mrb[0].mxu0 %v10254
      %v10466 = vpop.f32.mrb[0].mxu0
      %v10467 = vadd.f32 0.0, %v10466
      %v10468 = vpop.f32.mrb[0].mxu0
      %v10469 = vpop.f32.mrb[0].mxu0
      %v10470 = vadd.f32 0.0, %v10469
      %v10471 = vpop.f32.mrb[0].mxu0
      %10472 = vmatprep.mubr.bf16.mxu0 0
      %10473 = vmatmul.mubr.bf16.gmra.mrb[0].mxu0 %v10255
      %v10474 = vpop.f32.mrb[0].mxu0
      %v10475 = vadd.f32 0.0, %v10474
      %v10476 = vpop.f32.mrb[0].mxu0
      %v10477 = vpop.f32.mrb[0].mxu0
      %v10478 = vadd.f32 0.0, %v10477
      %v10479 = vpop.f32.mrb[0].mxu0
      %10480 = vdwg.mxu0
      %v10481 = vadd.f32 %v9727, %v10355
      %v10482 = vadd.f32 %v9728, %v10358
      %v10483 = vadd.f32 %v9729, %v10363
      %v10484 = vadd.f32 %v9730, %v10366
      %v10485 = vadd.f32 %v9731, %v10371
      %v10486 = vadd.f32 %v9732, %v10374
      %v10487 = vadd.f32 %v9733, %v10379
      %v10488 = vadd.f32 %v9734, %v10382
      %v10489 = vadd.f32 %v9735, %v10387
      %v10490 = vadd.f32 %v9736, %v10390
      %v10491 = vadd.f32 %v9737, %v10395
      %v10492 = vadd.f32 %v9738, %v10398
      %v10493 = vadd.f32 %v9739, %v10403
      %v10494 = vadd.f32 %v9740, %v10406
      %v10495 = vadd.f32 %v9741, %v10411
      %v10496 = vadd.f32 %v9742, %v10414
      %v10497 = vadd.f32 %v9743, %v10419
      %v10498 = vadd.f32 %v9744, %v10422
      %v10499 = vadd.f32 %v9745, %v10427
      %v10500 = vadd.f32 %v9746, %v10430
      %v10501 = vadd.f32 %v9747, %v10435
      %v10502 = vadd.f32 %v9748, %v10438
      %v10503 = vadd.f32 %v9749, %v10443
      %v10504 = vadd.f32 %v9750, %v10446
      %v10505 = vadd.f32 %v9751, %v10451
      %v10506 = vadd.f32 %v9752, %v10454
      %v10507 = vadd.f32 %v9753, %v10459
      %v10508 = vadd.f32 %v9754, %v10462
      %v10509 = vadd.f32 %v9755, %v10467
      %v10510 = vadd.f32 %v9756, %v10470
      %v10511 = vadd.f32 %v9757, %v10475
      %v10512 = vadd.f32 %v9758, %v10478
      %v10513 = vld [vmem:[%s3973] sm:$0xe]
      %v10514 = vld [vmem:[%s3973 + $0xc] sm:$0xe]
      %v10515 = vld [vmem:[%s3973 + $0x18] sm:$0xe]
      %v10516 = vld [vmem:[%s3973 + $0x24] sm:$0xe]
      %v10517 = vld [vmem:[%s3973 + $0x30] sm:$0xe]
      %v10518 = vld [vmem:[%s3973 + $0x3c] sm:$0xe]
      %v10519 = vld [vmem:[%s3973 + $0x48] sm:$0xe]
      %v10520 = vld [vmem:[%s3973 + $0x54] sm:$0xe]
      %v10521 = vld [vmem:[%s3973 + $0x60] sm:$0xe]
      %v10522 = vld [vmem:[%s3973 + $0x6c] sm:$0xe]
      %v10523 = vld [vmem:[%s3973 + $0x78] sm:$0xe]
      %v10524 = vld [vmem:[%s3973 + $0x84] sm:$0xe]
      %v10525 = vld [vmem:[%s3973 + $0x90] sm:$0xe]
      %v10526 = vld [vmem:[%s3973 + $0x9c] sm:$0xe]
      %v10527 = vld [vmem:[%s3973 + $0xa8] sm:$0xe]
      %v10528 = vld [vmem:[%s3973 + $0xb4] sm:$0xe]
      %v10577 = vrot.slane %v10513, 5
      %v10578 = vrot.slane %v10577, 4
      %v10579 = vrot.slane %v9760, 5
      %v10580 = vsel %vm1900, %v10578, %v10579
      %v10581 = vrot.slane %v10579, 4
      %v10582 = vrot.slane %v9761, 5
      %v10583 = vsel %vm1900, %v10581, %v10582
      %v10584 = vrot.slane %v10514, 5
      %v10585 = vrot.slane %v10584, 4
      %v10586 = vrot.slane %v9763, 5
      %v10587 = vsel %vm1900, %v10585, %v10586
      %v10588 = vrot.slane %v10586, 4
      %v10589 = vrot.slane %v9764, 5
      %v10590 = vsel %vm1900, %v10588, %v10589
      %v10591 = vrot.slane %v10515, 5
      %v10592 = vrot.slane %v10591, 4
      %v10593 = vrot.slane %v9766, 5
      %v10594 = vsel %vm1900, %v10592, %v10593
      %v10595 = vrot.slane %v10593, 4
      %v10596 = vrot.slane %v9767, 5
      %v10597 = vsel %vm1900, %v10595, %v10596
      %v10598 = vrot.slane %v10516, 5
      %v10599 = vrot.slane %v10598, 4
      %v10600 = vrot.slane %v9769, 5
      %v10601 = vsel %vm1900, %v10599, %v10600
      %v10602 = vrot.slane %v10600, 4
      %v10603 = vrot.slane %v9770, 5
      %v10604 = vsel %vm1900, %v10602, %v10603
      %v10605 = vrot.slane %v10517, 5
      %v10606 = vrot.slane %v10605, 4
      %v10607 = vrot.slane %v9772, 5
      %v10608 = vsel %vm1900, %v10606, %v10607
      %v10609 = vrot.slane %v10607, 4
      %v10610 = vrot.slane %v9773, 5
      %v10611 = vsel %vm1900, %v10609, %v10610
      %v10612 = vrot.slane %v10518, 5
      %v10613 = vrot.slane %v10612, 4
      %v10614 = vrot.slane %v9775, 5
      %v10615 = vsel %vm1900, %v10613, %v10614
      %v10616 = vrot.slane %v10614, 4
      %v10617 = vrot.slane %v9776, 5
      %v10618 = vsel %vm1900, %v10616, %v10617
      %v10619 = vrot.slane %v10519, 5
      %v10620 = vrot.slane %v10619, 4
      %v10621 = vrot.slane %v9778, 5
      %v10622 = vsel %vm1900, %v10620, %v10621
      %v10623 = vrot.slane %v10621, 4
      %v10624 = vrot.slane %v9779, 5
      %v10625 = vsel %vm1900, %v10623, %v10624
      %v10626 = vrot.slane %v10520, 5
      %v10627 = vrot.slane %v10626, 4
      %v10628 = vrot.slane %v9781, 5
      %v10629 = vsel %vm1900, %v10627, %v10628
      %v10630 = vrot.slane %v10628, 4
      %v10631 = vrot.slane %v9782, 5
      %v10632 = vsel %vm1900, %v10630, %v10631
      %v10633 = vrot.slane %v10521, 5
      %v10634 = vrot.slane %v10633, 4
      %v10635 = vrot.slane %v9784, 5
      %v10636 = vsel %vm1900, %v10634, %v10635
      %v10637 = vrot.slane %v10635, 4
      %v10638 = vrot.slane %v9785, 5
      %v10639 = vsel %vm1900, %v10637, %v10638
      %v10640 = vrot.slane %v10522, 5
      %v10641 = vrot.slane %v10640, 4
      %v10642 = vrot.slane %v9787, 5
      %v10643 = vsel %vm1900, %v10641, %v10642
      %v10644 = vrot.slane %v10642, 4
      %v10645 = vrot.slane %v9788, 5
      %v10646 = vsel %vm1900, %v10644, %v10645
      %v10647 = vrot.slane %v10523, 5
      %v10648 = vrot.slane %v10647, 4
      %v10649 = vrot.slane %v9790, 5
      %v10650 = vsel %vm1900, %v10648, %v10649
      %v10651 = vrot.slane %v10649, 4
      %v10652 = vrot.slane %v9791, 5
      %v10653 = vsel %vm1900, %v10651, %v10652
      %v10654 = vrot.slane %v10524, 5
      %v10655 = vrot.slane %v10654, 4
      %v10656 = vrot.slane %v9793, 5
      %v10657 = vsel %vm1900, %v10655, %v10656
      %v10658 = vrot.slane %v10656, 4
      %v10659 = vrot.slane %v9794, 5
      %v10660 = vsel %vm1900, %v10658, %v10659
      %v10661 = vrot.slane %v10525, 5
      %v10662 = vrot.slane %v10661, 4
      %v10663 = vrot.slane %v9796, 5
      %v10664 = vsel %vm1900, %v10662, %v10663
      %v10665 = vrot.slane %v10663, 4
      %v10666 = vrot.slane %v9797, 5
      %v10667 = vsel %vm1900, %v10665, %v10666
      %v10668 = vrot.slane %v10526, 5
      %v10669 = vrot.slane %v10668, 4
      %v10670 = vrot.slane %v9799, 5
      %v10671 = vsel %vm1900, %v10669, %v10670
      %v10672 = vrot.slane %v10670, 4
      %v10673 = vrot.slane %v9800, 5
      %v10674 = vsel %vm1900, %v10672, %v10673
      %v10675 = vrot.slane %v10527, 5
      %v10676 = vrot.slane %v10675, 4
      %v10677 = vrot.slane %v9802, 5
      %v10678 = vsel %vm1900, %v10676, %v10677
      %v10679 = vrot.slane %v10677, 4
      %v10680 = vrot.slane %v9803, 5
      %v10681 = vsel %vm1900, %v10679, %v10680
      %v10682 = vrot.slane %v10528, 5
      %v10683 = vrot.slane %v10682, 4
      %v10684 = vrot.slane %v9805, 5
      %v10685 = vsel %vm1900, %v10683, %v10684
      %v10686 = vrot.slane %v10684, 4
      %v10687 = vrot.slane %v9806, 5
      %v10688 = vsel %vm1900, %v10686, %v10687
      %s10689 = scalar_lea.vmem %s3, 512
      %v10690 = vld [vmem:[%s10689] sm:$0xf]
      %v10691 = vld [vmem:[%s10689 + $0x4] sm:$0xf]
      %v10692 = vld [vmem:[%s10689 + $0x8] sm:$0xf]
      %v10693 = vld [vmem:[%s10689 + $0xc] sm:$0xf]
      %v10694 = vld [vmem:[%s10689 + $0x10] sm:$0xf]
      %v10695 = vld [vmem:[%s10689 + $0x14] sm:$0xf]
      %v10696 = vld [vmem:[%s10689 + $0x18] sm:$0xf]
      %v10697 = vld [vmem:[%s10689 + $0x1c] sm:$0xf]
      %v10698 = vld [vmem:[%s10689 + $0x20] sm:$0xf]
      %v10699 = vld [vmem:[%s10689 + $0x24] sm:$0xf]
      %v10700 = vld [vmem:[%s10689 + $0x28] sm:$0xf]
      %v10701 = vld [vmem:[%s10689 + $0x2c] sm:$0xf]
      %v10702 = vld [vmem:[%s10689 + $0x30] sm:$0xf]
      %v10703 = vld [vmem:[%s10689 + $0x34] sm:$0xf]
      %v10704 = vld [vmem:[%s10689 + $0x38] sm:$0xf]
      %v10705 = vld [vmem:[%s10689 + $0x3c] sm:$0xf]
      %v10706 = vunpack.c.l.b16 %v10580
      %v10707 = vunpack.c.l.b16 %v10583
      %v10708 = vunpack.c.l.b16 %v10587
      %v10709 = vunpack.c.l.b16 %v10590
      %v10710 = vunpack.c.l.b16 %v10594
      %v10711 = vunpack.c.l.b16 %v10597
      %v10712 = vunpack.c.l.b16 %v10601
      %v10713 = vunpack.c.l.b16 %v10604
      %v10714 = vunpack.c.l.b16 %v10608
      %v10715 = vunpack.c.l.b16 %v10611
      %v10716 = vunpack.c.l.b16 %v10615
      %v10717 = vunpack.c.l.b16 %v10618
      %v10718 = vunpack.c.l.b16 %v10622
      %v10719 = vunpack.c.l.b16 %v10625
      %v10720 = vunpack.c.l.b16 %v10629
      %v10721 = vunpack.c.l.b16 %v10632
      %v10722 = vunpack.c.l.b16 %v10636
      %v10723 = vunpack.c.l.b16 %v10639
      %v10724 = vunpack.c.l.b16 %v10643
      %v10725 = vunpack.c.l.b16 %v10646
      %v10726 = vunpack.c.l.b16 %v10650
      %v10727 = vunpack.c.l.b16 %v10653
      %v10728 = vunpack.c.l.b16 %v10657
      %v10729 = vunpack.c.l.b16 %v10660
      %v10730 = vunpack.c.l.b16 %v10664
      %v10731 = vunpack.c.l.b16 %v10667
      %v10732 = vunpack.c.l.b16 %v10671
      %v10733 = vunpack.c.l.b16 %v10674
      %v10734 = vunpack.c.l.b16 %v10678
      %v10735 = vunpack.c.l.b16 %v10681
      %v10736 = vunpack.c.l.b16 %v10685
      %v10737 = vunpack.c.l.b16 %v10688
      %v10738 = vpack.c.b16 %v10707, %v10706
      %v10739 = vpack.c.b16 %v10709, %v10708
      %v10740 = vpack.c.b16 %v10711, %v10710
      %v10741 = vpack.c.b16 %v10713, %v10712
      %v10742 = vpack.c.b16 %v10715, %v10714
      %v10743 = vpack.c.b16 %v10717, %v10716
      %v10744 = vpack.c.b16 %v10719, %v10718
      %v10745 = vpack.c.b16 %v10721, %v10720
      %v10746 = vpack.c.b16 %v10723, %v10722
      %v10747 = vpack.c.b16 %v10725, %v10724
      %v10748 = vpack.c.b16 %v10727, %v10726
      %v10749 = vpack.c.b16 %v10729, %v10728
      %v10750 = vpack.c.b16 %v10731, %v10730
      %v10751 = vpack.c.b16 %v10733, %v10732
      %v10752 = vpack.c.b16 %v10735, %v10734
      %v10753 = vpack.c.b16 %v10737, %v10736
      %v10786 = vunpack.c.l.b16 %v10690
      %v10787 = vunpack.c.l.b16 %v10691
      %v10788 = vunpack.c.l.b16 %v10692
      %v10789 = vunpack.c.l.b16 %v10693
      %v10790 = vunpack.c.l.b16 %v10694
      %v10791 = vunpack.c.l.b16 %v10695
      %v10792 = vunpack.c.l.b16 %v10696
      %v10793 = vunpack.c.l.b16 %v10697
      %v10794 = vunpack.c.l.b16 %v10698
      %v10795 = vunpack.c.l.b16 %v10699
      %v10796 = vunpack.c.l.b16 %v10700
      %v10797 = vunpack.c.l.b16 %v10701
      %v10798 = vunpack.c.l.b16 %v10702
      %v10799 = vunpack.c.l.b16 %v10703
      %v10800 = vunpack.c.l.b16 %v10704
      %v10801 = vunpack.c.l.b16 %v10705
      %v10802 = vpack.c.b16 %v10787, %v10786
      %v10803 = vpack.c.b16 %v10789, %v10788
      %v10804 = vpack.c.b16 %v10791, %v10790
      %v10805 = vpack.c.b16 %v10793, %v10792
      %v10806 = vpack.c.b16 %v10795, %v10794
      %v10807 = vpack.c.b16 %v10797, %v10796
      %v10808 = vpack.c.b16 %v10799, %v10798
      %v10809 = vpack.c.b16 %v10801, %v10800
      %10818 = vmatprep.subr.bf16.mxu0 0
      %10819 = vmatpush1.bf16.msra.mxu0 %v10802
      %10820 = vmatprep.subr.bf16.mxu0 0
      %10821 = vmatpush1.bf16.msra.mxu0 %v10803
      %10822 = vmatprep.subr.bf16.mxu0 0
      %10823 = vmatpush1.bf16.msra.mxu0 %v10804
      %10824 = vmatprep.subr.bf16.mxu0 0
      %10825 = vmatpush1.bf16.msra.mxu0 %v10805
      %10826 = vmatprep.subr.bf16.mxu0 0
      %10827 = vmatpush1.bf16.msra.mxu0 %v10806
      %10828 = vmatprep.subr.bf16.mxu0 0
      %10829 = vmatpush1.bf16.msra.mxu0 %v10807
      %10830 = vmatprep.subr.bf16.mxu0 0
      %10831 = vmatpush1.bf16.msra.mxu0 %v10808
      %10832 = vmatprep.subr.bf16.mxu0 0
      %10833 = vmatpush1.bf16.msra.mxu0 %v10809
      %10834 = vmatprep.subr.bf16.mxu0 0
      %10835 = vmatpush1.bf16.msra.mxu0 0
      %10836 = vmatprep.subr.bf16.mxu0 0
      %10837 = vmatpush1.bf16.msra.mxu0 0
      %10838 = vmatprep.subr.bf16.mxu0 0
      %10839 = vmatpush1.bf16.msra.mxu0 0
      %10840 = vmatprep.subr.bf16.mxu0 0
      %10841 = vmatpush1.bf16.msra.mxu0 0
      %10842 = vmatprep.subr.bf16.mxu0 0
      %10843 = vmatpush1.bf16.msra.mxu0 0
      %10844 = vmatprep.subr.bf16.mxu0 0
      %10845 = vmatpush1.bf16.msra.mxu0 0
      %10846 = vmatprep.subr.bf16.mxu0 0
      %10847 = vmatpush1.bf16.msra.mxu0 0
      %10848 = vmatprep.subr.bf16.mxu0 0
      %10849 = vmatpush1.bf16.msra.mxu0 0
      %10850 = vmatprep.mubr.bf16.mxu0 0
      %10851 = vmatmul.mubr.bf16.gmra.mrb[0].mxu0 %v10738
      %v10852 = vpop.f32.mrb[0].mxu0
      %v10853 = vadd.f32 0.0, %v10852
      %v10854 = vpop.f32.mrb[0].mxu0
      %v10855 = vpop.f32.mrb[0].mxu0
      %v10856 = vadd.f32 0.0, %v10855
      %v10857 = vpop.f32.mrb[0].mxu0
      %10858 = vmatprep.mubr.bf16.mxu0 0
      %10859 = vmatmul.mubr.bf16.gmra.mrb[0].mxu0 %v10739
      %v10860 = vpop.f32.mrb[0].mxu0
      %v10861 = vadd.f32 0.0, %v10860
      %v10862 = vpop.f32.mrb[0].mxu0
      %v10863 = vpop.f32.mrb[0].mxu0
      %v10864 = vadd.f32 0.0, %v10863
      %v10865 = vpop.f32.mrb[0].mxu0
      %10866 = vmatprep.mubr.bf16.mxu0 0
      %10867 = vmatmul.mubr.bf16.gmra.mrb[0].mxu0 %v10740
      %v10868 = vpop.f32.mrb[0].mxu0
      %v10869 = vadd.f32 0.0, %v10868
      %v10870 = vpop.f32.mrb[0].mxu0
      %v10871 = vpop.f32.mrb[0].mxu0
      %v10872 = vadd.f32 0.0, %v10871
      %v10873 = vpop.f32.mrb[0].mxu0
      %10874 = vmatprep.mubr.bf16.mxu0 0
      %10875 = vmatmul.mubr.bf16.gmra.mrb[0].mxu0 %v10741
      %v10876 = vpop.f32.mrb[0].mxu0
      %v10877 = vadd.f32 0.0, %v10876
      %v10878 = vpop.f32.mrb[0].mxu0
      %v10879 = vpop.f32.mrb[0].mxu0
      %v10880 = vadd.f32 0.0, %v10879
      %v10881 = vpop.f32.mrb[0].mxu0
      %10882 = vmatprep.mubr.bf16.mxu0 0
      %10883 = vmatmul.mubr.bf16.gmra.mrb[0].mxu0 %v10742
      %v10884 = vpop.f32.mrb[0].mxu0
      %v10885 = vadd.f32 0.0, %v10884
      %v10886 = vpop.f32.mrb[0].mxu0
      %v10887 = vpop.f32.mrb[0].mxu0
      %v10888 = vadd.f32 0.0, %v10887
      %v10889 = vpop.f32.mrb[0].mxu0
      %10890 = vmatprep.mubr.bf16.mxu0 0
      %10891 = vmatmul.mubr.bf16.gmra.mrb[0].mxu0 %v10743
      %v10892 = vpop.f32.mrb[0].mxu0
      %v10893 = vadd.f32 0.0, %v10892
      %v10894 = vpop.f32.mrb[0].mxu0
      %v10895 = vpop.f32.mrb[0].mxu0
      %v10896 = vadd.f32 0.0, %v10895
      %v10897 = vpop.f32.mrb[0].mxu0
      %10898 = vmatprep.mubr.bf16.mxu0 0
      %10899 = vmatmul.mubr.bf16.gmra.mrb[0].mxu0 %v10744
      %v10900 = vpop.f32.mrb[0].mxu0
      %v10901 = vadd.f32 0.0, %v10900
      %v10902 = vpop.f32.mrb[0].mxu0
      %v10903 = vpop.f32.mrb[0].mxu0
      %v10904 = vadd.f32 0.0, %v10903
      %v10905 = vpop.f32.mrb[0].mxu0
      %10906 = vmatprep.mubr.bf16.mxu0 0
      %10907 = vmatmul.mubr.bf16.gmra.mrb[0].mxu0 %v10745
      %v10908 = vpop.f32.mrb[0].mxu0
      %v10909 = vadd.f32 0.0, %v10908
      %v10910 = vpop.f32.mrb[0].mxu0
      %v10911 = vpop.f32.mrb[0].mxu0
      %v10912 = vadd.f32 0.0, %v10911
      %v10913 = vpop.f32.mrb[0].mxu0
      %10914 = vmatprep.mubr.bf16.mxu0 0
      %10915 = vmatmul.mubr.bf16.gmra.mrb[0].mxu0 %v10746
      %v10916 = vpop.f32.mrb[0].mxu0
      %v10917 = vadd.f32 0.0, %v10916
      %v10918 = vpop.f32.mrb[0].mxu0
      %v10919 = vpop.f32.mrb[0].mxu0
      %v10920 = vadd.f32 0.0, %v10919
      %v10921 = vpop.f32.mrb[0].mxu0
      %10922 = vmatprep.mubr.bf16.mxu0 0
      %10923 = vmatmul.mubr.bf16.gmra.mrb[0].mxu0 %v10747
      %v10924 = vpop.f32.mrb[0].mxu0
      %v10925 = vadd.f32 0.0, %v10924
      %v10926 = vpop.f32.mrb[0].mxu0
      %v10927 = vpop.f32.mrb[0].mxu0
      %v10928 = vadd.f32 0.0, %v10927
      %v10929 = vpop.f32.mrb[0].mxu0
      %10930 = vmatprep.mubr.bf16.mxu0 0
      %10931 = vmatmul.mubr.bf16.gmra.mrb[0].mxu0 %v10748
      %v10932 = vpop.f32.mrb[0].mxu0
      %v10933 = vadd.f32 0.0, %v10932
      %v10934 = vpop.f32.mrb[0].mxu0
      %v10935 = vpop.f32.mrb[0].mxu0
      %v10936 = vadd.f32 0.0, %v10935
      %v10937 = vpop.f32.mrb[0].mxu0
      %10938 = vmatprep.mubr.bf16.mxu0 0
      %10939 = vmatmul.mubr.bf16.gmra.mrb[0].mxu0 %v10749
      %v10940 = vpop.f32.mrb[0].mxu0
      %v10941 = vadd.f32 0.0, %v10940
      %v10942 = vpop.f32.mrb[0].mxu0
      %v10943 = vpop.f32.mrb[0].mxu0
      %v10944 = vadd.f32 0.0, %v10943
      %v10945 = vpop.f32.mrb[0].mxu0
      %10946 = vmatprep.mubr.bf16.mxu0 0
      %10947 = vmatmul.mubr.bf16.gmra.mrb[0].mxu0 %v10750
      %v10948 = vpop.f32.mrb[0].mxu0
      %v10949 = vadd.f32 0.0, %v10948
      %v10950 = vpop.f32.mrb[0].mxu0
      %v10951 = vpop.f32.mrb[0].mxu0
      %v10952 = vadd.f32 0.0, %v10951
      %v10953 = vpop.f32.mrb[0].mxu0
      %10954 = vmatprep.mubr.bf16.mxu0 0
      %10955 = vmatmul.mubr.bf16.gmra.mrb[0].mxu0 %v10751
      %v10956 = vpop.f32.mrb[0].mxu0
      %v10957 = vadd.f32 0.0, %v10956
      %v10958 = vpop.f32.mrb[0].mxu0
      %v10959 = vpop.f32.mrb[0].mxu0
      %v10960 = vadd.f32 0.0, %v10959
      %v10961 = vpop.f32.mrb[0].mxu0
      %10962 = vmatprep.mubr.bf16.mxu0 0
      %10963 = vmatmul.mubr.bf16.gmra.mrb[0].mxu0 %v10752
      %v10964 = vpop.f32.mrb[0].mxu0
      %v10965 = vadd.f32 0.0, %v10964
      %v10966 = vpop.f32.mrb[0].mxu0
      %v10967 = vpop.f32.mrb[0].mxu0
      %v10968 = vadd.f32 0.0, %v10967
      %v10969 = vpop.f32.mrb[0].mxu0
      %10970 = vmatprep.mubr.bf16.mxu0 0
      %10971 = vmatmul.mubr.bf16.gmra.mrb[0].mxu0 %v10753
      %v10972 = vpop.f32.mrb[0].mxu0
      %v10973 = vadd.f32 0.0, %v10972
      %v10974 = vpop.f32.mrb[0].mxu0
      %v10975 = vpop.f32.mrb[0].mxu0
      %v10976 = vadd.f32 0.0, %v10975
      %v10977 = vpop.f32.mrb[0].mxu0
      %10978 = vdwg.mxu0
      %v10979 = vadd.f32 %v10481, %v10853
      %v10980 = vadd.f32 %v10482, %v10856
      %v10981 = vadd.f32 %v10483, %v10861
      %v10982 = vadd.f32 %v10484, %v10864
      %v10983 = vadd.f32 %v10485, %v10869
      %v10984 = vadd.f32 %v10486, %v10872
      %v10985 = vadd.f32 %v10487, %v10877
      %v10986 = vadd.f32 %v10488, %v10880
      %v10987 = vadd.f32 %v10489, %v10885
      %v10988 = vadd.f32 %v10490, %v10888
      %v10989 = vadd.f32 %v10491, %v10893
      %v10990 = vadd.f32 %v10492, %v10896
      %v10991 = vadd.f32 %v10493, %v10901
      %v10992 = vadd.f32 %v10494, %v10904
      %v10993 = vadd.f32 %v10495, %v10909
      %v10994 = vadd.f32 %v10496, %v10912
      %v10995 = vadd.f32 %v10497, %v10917
      %v10996 = vadd.f32 %v10498, %v10920
      %v10997 = vadd.f32 %v10499, %v10925
      %v10998 = vadd.f32 %v10500, %v10928
      %v10999 = vadd.f32 %v10501, %v10933
      %v11000 = vadd.f32 %v10502, %v10936
      %v11001 = vadd.f32 %v10503, %v10941
      %v11002 = vadd.f32 %v10504, %v10944
      %v11003 = vadd.f32 %v10505, %v10949
      %v11004 = vadd.f32 %v10506, %v10952
      %v11005 = vadd.f32 %v10507, %v10957
      %v11006 = vadd.f32 %v10508, %v10960
      %v11007 = vadd.f32 %v10509, %v10965
      %v11008 = vadd.f32 %v10510, %v10968
      %v11009 = vadd.f32 %v10511, %v10973
      %v11010 = vadd.f32 %v10512, %v10976
      %v11011 = vld [vmem:[%s4] sm:$0x1]
      %v11013 = vlaneseq
      %v11014 = vshrl.u32 %v11013, 7
      %v11015 = vsub.s32 0, %v11014
      %v11016 = vrot.slane %v11011, %v11015
      %v11018 = vadd.f32 %v10979, %v11016
      %v11019 = vadd.f32 %v10980, %v11016
      %v11020 = vadd.f32 %v10981, %v11016
      %v11021 = vadd.f32 %v10982, %v11016
      %v11022 = vadd.f32 %v10983, %v11016
      %v11023 = vadd.f32 %v10984, %v11016
      %v11024 = vadd.f32 %v10985, %v11016
      %v11025 = vadd.f32 %v10986, %v11016
      %v11026 = vadd.f32 %v10987, %v11016
      %v11027 = vadd.f32 %v10988, %v11016
      %v11028 = vadd.f32 %v10989, %v11016
      %v11029 = vadd.f32 %v10990, %v11016
      %v11030 = vadd.f32 %v10991, %v11016
      %v11031 = vadd.f32 %v10992, %v11016
      %v11032 = vadd.f32 %v10993, %v11016
      %v11033 = vadd.f32 %v10994, %v11016
      %v11034 = vadd.f32 %v10995, %v11016
      %v11035 = vadd.f32 %v10996, %v11016
      %v11036 = vadd.f32 %v10997, %v11016
      %v11037 = vadd.f32 %v10998, %v11016
      %v11038 = vadd.f32 %v10999, %v11016
      %v11039 = vadd.f32 %v11000, %v11016
      %v11040 = vadd.f32 %v11001, %v11016
      %v11041 = vadd.f32 %v11002, %v11016
      %v11042 = vadd.f32 %v11003, %v11016
      %v11043 = vadd.f32 %v11004, %v11016
      %v11044 = vadd.f32 %v11005, %v11016
      %v11045 = vadd.f32 %v11006, %v11016
      %v11046 = vadd.f32 %v11007, %v11016
      %v11047 = vadd.f32 %v11008, %v11016
      %v11048 = vadd.f32 %v11009, %v11016
      %v11049 = vadd.f32 %v11010, %v11016
      %v11050 = vmax.f32 %v11018, 0.0
      %v11051 = vmax.f32 %v11019, 0.0
      %v11052 = vmax.f32 %v11020, 0.0
      %v11053 = vmax.f32 %v11021, 0.0
      %v11054 = vmax.f32 %v11022, 0.0
      %v11055 = vmax.f32 %v11023, 0.0
      %v11056 = vmax.f32 %v11024, 0.0
      %v11057 = vmax.f32 %v11025, 0.0
      %v11058 = vmax.f32 %v11026, 0.0
      %v11059 = vmax.f32 %v11027, 0.0
      %v11060 = vmax.f32 %v11028, 0.0
      %v11061 = vmax.f32 %v11029, 0.0
      %v11062 = vmax.f32 %v11030, 0.0
      %v11063 = vmax.f32 %v11031, 0.0
      %v11064 = vmax.f32 %v11032, 0.0
      %v11065 = vmax.f32 %v11033, 0.0
      %v11066 = vmax.f32 %v11034, 0.0
      %v11067 = vmax.f32 %v11035, 0.0
      %v11068 = vmax.f32 %v11036, 0.0
      %v11069 = vmax.f32 %v11037, 0.0
      %v11070 = vmax.f32 %v11038, 0.0
      %v11071 = vmax.f32 %v11039, 0.0
      %v11072 = vmax.f32 %v11040, 0.0
      %v11073 = vmax.f32 %v11041, 0.0
      %v11074 = vmax.f32 %v11042, 0.0
      %v11075 = vmax.f32 %v11043, 0.0
      %v11076 = vmax.f32 %v11044, 0.0
      %v11077 = vmax.f32 %v11045, 0.0
      %v11078 = vmax.f32 %v11046, 0.0
      %v11079 = vmax.f32 %v11047, 0.0
      %v11080 = vmax.f32 %v11048, 0.0
      %v11081 = vmax.f32 %v11049, 0.0
      %v11082 = vpack.c.bf16 %v11051, %v11050
      %v11083 = vpack.c.bf16 %v11053, %v11052
      %v11084 = vpack.c.bf16 %v11055, %v11054
      %v11085 = vpack.c.bf16 %v11057, %v11056
      %v11086 = vpack.c.bf16 %v11059, %v11058
      %v11087 = vpack.c.bf16 %v11061, %v11060
      %v11088 = vpack.c.bf16 %v11063, %v11062
      %v11089 = vpack.c.bf16 %v11065, %v11064
      %v11090 = vpack.c.bf16 %v11067, %v11066
      %v11091 = vpack.c.bf16 %v11069, %v11068
      %v11092 = vpack.c.bf16 %v11071, %v11070
      %v11093 = vpack.c.bf16 %v11073, %v11072
      %v11094 = vpack.c.bf16 %v11075, %v11074
      %v11095 = vpack.c.bf16 %v11077, %v11076
      %v11096 = vpack.c.bf16 %v11079, %v11078
      %v11097 = vpack.c.bf16 %v11081, %v11080
      %11098 = vmatprep.subr.bf16.mxu0 0
      %11099 = vmatpush1.bf16.msra.mxu0 %v11082
      %11100 = vmatprep.subr.bf16.mxu0 0
      %11101 = vmatpush1.bf16.msra.mxu0 %v11083
      %11102 = vmatprep.subr.bf16.mxu0 0
      %11103 = vmatpush1.bf16.msra.mxu0 %v11084
      %11104 = vmatprep.subr.bf16.mxu0 0
      %11105 = vmatpush1.bf16.msra.mxu0 %v11085
      %11106 = vmatprep.subr.bf16.mxu0 0
      %11107 = vmatpush1.bf16.msra.mxu0 %v11086
      %11108 = vmatprep.subr.bf16.mxu0 0
      %11109 = vmatpush1.bf16.msra.mxu0 %v11087
      %11110 = vmatprep.subr.bf16.mxu0 0
      %11111 = vmatpush1.bf16.msra.mxu0 %v11088
      %11112 = vmatprep.subr.bf16.mxu0 0
      %11113 = vmatpush1.bf16.msra.mxu0 %v11089
      %11114 = vmatprep.subr.bf16.mxu0 0
      %11115 = vmatpush1.bf16.msra.mxu0 %v11090
      %11116 = vmatprep.subr.bf16.mxu0 0
      %11117 = vmatpush1.bf16.msra.mxu0 %v11091
      %11118 = vmatprep.subr.bf16.mxu0 0
      %11119 = vmatpush1.bf16.msra.mxu0 %v11092
      %11120 = vmatprep.subr.bf16.mxu0 0
      %11121 = vmatpush1.bf16.msra.mxu0 %v11093
      %11122 = vmatprep.subr.bf16.mxu0 0
      %11123 = vmatpush1.bf16.msra.mxu0 %v11094
      %11124 = vmatprep.subr.bf16.mxu0 0
      %11125 = vmatpush1.bf16.msra.mxu0 %v11095
      %11126 = vmatprep.subr.bf16.mxu0 0
      %11127 = vmatpush1.bf16.msra.mxu0 %v11096
      %11128 = vmatprep.subr.bf16.mxu0 0
      %11129 = vmatpush1.bf16.msra.mxu0 %v11097
      %11130 = vmatprep.mubr.bf16.mxu0 998259584
      %11131 = vmatmul.mubr.bf16.gmra.mrb[0].mxu0 998259584
      %v11132 = vpop.f32.mrb[0].mxu0
      %v11133 = vadd.f32 0.0, %v11132
      %v11134 = vpop.f32.mrb[0].mxu0
      %v11135 = vpop.f32.mrb[0].mxu0
      %v11136 = vpop.f32.mrb[0].mxu0
      %11137 = vdwg.mxu0
      %v11138 = vpack.c.bf16 %v11133, %v11133
      %v11139 = vld [vmem:[%s5] sm:$0xf]
      %v11140 = vld [vmem:[%s5 + $0x4] sm:$0xf]
      %v11141 = vld [vmem:[%s5 + $0x8] sm:$0xf]
      %v11142 = vld [vmem:[%s5 + $0xc] sm:$0xf]
      %v11143 = vld [vmem:[%s5 + $0x10] sm:$0xf]
      %v11144 = vld [vmem:[%s5 + $0x14] sm:$0xf]
      %v11145 = vld [vmem:[%s5 + $0x18] sm:$0xf]
      %v11146 = vld [vmem:[%s5 + $0x1c] sm:$0xf]
      %v11147 = vld [vmem:[%s5 + $0x20] sm:$0xf]
      %v11148 = vld [vmem:[%s5 + $0x24] sm:$0xf]
      %v11149 = vld [vmem:[%s5 + $0x28] sm:$0xf]
      %v11150 = vld [vmem:[%s5 + $0x2c] sm:$0xf]
      %v11151 = vld [vmem:[%s5 + $0x30] sm:$0xf]
      %v11152 = vld [vmem:[%s5 + $0x34] sm:$0xf]
      %v11153 = vld [vmem:[%s5 + $0x38] sm:$0xf]
      %v11154 = vld [vmem:[%s5 + $0x3c] sm:$0xf]
      %v11155 = vld [vmem:[%s6] sm:$0x1]
      %v11172 = vunpack.c.l.b16 %v11139
      %v11173 = vunpack.c.l.b16 %v11140
      %v11174 = vunpack.c.l.b16 %v11141
      %v11175 = vunpack.c.l.b16 %v11142
      %v11176 = vunpack.c.l.b16 %v11143
      %v11177 = vunpack.c.l.b16 %v11144
      %v11178 = vunpack.c.l.b16 %v11145
      %v11179 = vunpack.c.l.b16 %v11146
      %v11180 = vunpack.c.l.b16 %v11147
      %v11181 = vunpack.c.l.b16 %v11148
      %v11182 = vunpack.c.l.b16 %v11149
      %v11183 = vunpack.c.l.b16 %v11150
      %v11184 = vunpack.c.l.b16 %v11151
      %v11185 = vunpack.c.l.b16 %v11152
      %v11186 = vunpack.c.l.b16 %v11153
      %v11187 = vunpack.c.l.b16 %v11154
      %v11188 = vpack.c.b16 %v11173, %v11172
      %v11189 = vpack.c.b16 %v11175, %v11174
      %v11190 = vpack.c.b16 %v11177, %v11176
      %v11191 = vpack.c.b16 %v11179, %v11178
      %v11192 = vpack.c.b16 %v11181, %v11180
      %v11193 = vpack.c.b16 %v11183, %v11182
      %v11194 = vpack.c.b16 %v11185, %v11184
      %v11195 = vpack.c.b16 %v11187, %v11186
      %11204 = vmatprep.subr.bf16.mxu0 0
      %11205 = vmatpush1.bf16.msra.mxu0 %v11188
      %11206 = vmatprep.subr.bf16.mxu0 0
      %11207 = vmatpush1.bf16.msra.mxu0 %v11189
      %11208 = vmatprep.subr.bf16.mxu0 0
      %11209 = vmatpush1.bf16.msra.mxu0 %v11190
      %11210 = vmatprep.subr.bf16.mxu0 0
      %11211 = vmatpush1.bf16.msra.mxu0 %v11191
      %11212 = vmatprep.subr.bf16.mxu0 0
      %11213 = vmatpush1.bf16.msra.mxu0 %v11192
      %11214 = vmatprep.subr.bf16.mxu0 0
      %11215 = vmatpush1.bf16.msra.mxu0 %v11193
      %11216 = vmatprep.subr.bf16.mxu0 0
      %11217 = vmatpush1.bf16.msra.mxu0 %v11194
      %11218 = vmatprep.subr.bf16.mxu0 0
      %11219 = vmatpush1.bf16.msra.mxu0 %v11195
      %11220 = vmatprep.subr.bf16.mxu0 0
      %11221 = vmatpush1.bf16.msra.mxu0 0
      %11222 = vmatprep.subr.bf16.mxu0 0
      %11223 = vmatpush1.bf16.msra.mxu0 0
      %11224 = vmatprep.subr.bf16.mxu0 0
      %11225 = vmatpush1.bf16.msra.mxu0 0
      %11226 = vmatprep.subr.bf16.mxu0 0
      %11227 = vmatpush1.bf16.msra.mxu0 0
      %11228 = vmatprep.subr.bf16.mxu0 0
      %11229 = vmatpush1.bf16.msra.mxu0 0
      %11230 = vmatprep.subr.bf16.mxu0 0
      %11231 = vmatpush1.bf16.msra.mxu0 0
      %11232 = vmatprep.subr.bf16.mxu0 0
      %11233 = vmatpush1.bf16.msra.mxu0 0
      %11234 = vmatprep.subr.bf16.mxu0 0
      %11235 = vmatpush1.bf16.msra.mxu0 0
      %11236 = vmatprep.mubr.bf16.mxu0 0
      %11237 = vmatmul.mubr.bf16.gmra.mrb[0].mxu0 %v11138
      %v11238 = vpop.f32.mrb[0].mxu0
      %v11239 = vadd.f32 %v11155, %v11238
      %v11240 = vpop.f32.mrb[0].mxu0
      %v11241 = vpop.f32.mrb[0].mxu0
      %v11242 = vpop.f32.mrb[0].mxu0
      %11243 = vdwg.mxu0
      %v11244 = vlaneseq
      %v11245 = vand.u32 %v11244, 127
      %vm11246 = vcmp.ge.s32.totalorder %v11245, 1
      %vm11247 = vcmp.le.s32.totalorder %v11245, 6
      %vm11248 = vmand %vm11246, %vm11247
      %v11249 = vsel %vm11248, %v11239, 0.0
      %vm11250 = vcmask 1040384
      %v11251 = vsel %vm11250, %v11249, 0.0
      %11252 = vadd.xlane.f32.xlu0 %v11251
      %v11253 = vpop.xlane.xlu0 %11252
      %v11254 = vmul.f32 %v11253, 0.16666667
      %vm11255 = vcmp.eq.s32.totalorder %v11245, 0
      %v11256 = vsel %vm11255, %v11239, 0.0
      %v11257 = vsel %vm11250, %v11256, 0.0
      %11258 = vadd.xlane.f32.xlu0 %v11257
      %v11259 = vpop.xlane.xlu0 %11258
      %v11260 = vadd.f32 %v11259, %v11249
      %v11261 = vsub.f32 %v11260, %v11254
      %v11262 = vsel %vm11248, %v11261, 0.0
      %11263 = vst [vmem:[%s274] sm:$0x1] %v11262
      %p11264 = scmp.lt.s32.totalorder %s18, 1
      %s11265 = scalar_select %p11264, %s18, 1
      %s11266 = scalar_lea.vmem %s7, %s11265
      // Predicated region
      $region49: #{dueling_cnn_forward.1} parent=47 // pred_check
        %p11267 = pneg %p188
      $region50: #{dueling_cnn_forward.1} parent=47 // pred_check_branch
        %11269 = sbr.rel (%p11267) target = $region52
      $region51: #{dueling_cnn_forward.1} parent=47 // pred_region
        _
      $region52: #{dueling_cnn_forward.1} parent=47 // pred_fallthru
        _
    $region48: #{dueling_cnn_forward.1} parent=5 // pred_fallthru
      _
    %p11270 = scmp.le.s32.totalorder 2, %s13
    // Predicated region
    $region53: #{dueling_cnn_forward.1} parent=5 // pred_check
      %p11271 = pneg %p11270
    $region54: #{dueling_cnn_forward.1} parent=5 // pred_check_branch
      %11273 = sbr.rel (%p11271) target = $region56
    $region55: #{dueling_cnn_forward.1} parent=5 // pred_region
      %s11274 = ssub.s32 %s13, 2
      // Predicated region
      $region57: #{dueling_cnn_forward.1} parent=55 // pred_check
        %p11275 = pneg %p194
      $region58: #{dueling_cnn_forward.1} parent=55 // pred_check_branch
        %11277 = sbr.rel (%p11275) target = $region60
      $region59: #{dueling_cnn_forward.1} parent=55 // pred_region
        %p11278 = scmp.lt.s32.totalorder %s19, 1
        %s11279 = scalar_select %p11278, %s19, 1
        %s11280 = scalar_lea.vmem %s7, %s11279
      $region60: #{dueling_cnn_forward.1} parent=55 // pred_fallthru
        _
    $region56: #{dueling_cnn_forward.1} parent=5 // pred_fallthru
      _
  $region6: #{dueling_cnn_forward.1} parent=0 // loop_footer
    %s17 = sadd.s32 1, %s13
  $region7: #{dueling_cnn_forward.1} parent=0 // loop_footer_branch
    %12 = sbr.rel target = $region3
  $region8: #{dueling_cnn_forward.1} parent=0 // loop_exit
    _

</llo_original>
